<compile_context>
chip_gen: v6e
topology: v6e:2x2x1
jax: 0.10.0
libtpu: 0.0.40
codegen_flags: <defaults>
</compile_context>

<pallas_src>
import functools

import jax
import jax.numpy as jnp
from jax.experimental import pallas as pl
from jax.experimental.pallas import tpu as pltpu

# ---------------- configuration (globals mirroring the PyTorch script) -------
in_channels = 3
image_size = 16            # free global in the reference code; chosen small here
maxpool_indexes = [0, 1]
BN_EPS = 1e-5


def _round_up(x, m):
    return ((x + m - 1) // m) * m


def _choose_tm(m_pad):
    """Largest row tile (<=512) that still yields >=2 grid steps."""
    for tm in (512, 256, 128, 64, 32, 16):
        if m_pad % tm == 0 and m_pad // tm >= 2:
            return tm
    return m_pad


# ---------------------------- Pallas kernel ----------------------------------
def _fused_matmul_kernel(a_ref, w_ref, s_ref, t_ref, o_ref, *, act):
    y = jnp.dot(a_ref[...], w_ref[...], preferred_element_type=jnp.float32)
    y = y * s_ref[...] + t_ref[...]
    if act == "relu":
        y = jnp.maximum(y, 0.0)
    elif act == "leaky":
        y = jnp.where(y >= 0.0, y, 0.2 * y)
    elif act == "tanh":
        y = jnp.tanh(y)
    o_ref[...] = y.astype(o_ref.dtype)


def fused_matmul(a, w, scale, shift, act="none"):
    """act(scale * (a @ w) + shift); scale/shift are per output column (len N).

    A and W are cast to bf16 for the MXU; accumulation and epilogue are f32.
    N is padded to a multiple of 128 (lane-dense stores) and sliced afterwards.
    """
    M, K = a.shape
    Kw, N = w.shape
    assert K == Kw
    m_pad = _round_up(max(M, 1), 16)
    n_pad = _round_up(N, 128)
    if m_pad != M:
        a = jnp.pad(a, ((0, m_pad - M), (0, 0)))
    if n_pad != N:
        w = jnp.pad(w, ((0, 0), (0, n_pad - N)))
        scale = jnp.pad(scale, (0, n_pad - N))
        shift = jnp.pad(shift, (0, n_pad - N))
    tm = _choose_tm(m_pad)

    out = pl.pallas_call(
        functools.partial(_fused_matmul_kernel, act=act),
        out_shape=jax.ShapeDtypeStruct((m_pad, n_pad), jnp.float32),
        grid_spec=pltpu.PrefetchScalarGridSpec(
            num_scalar_prefetch=0,
            grid=(m_pad // tm,),
            in_specs=[
                pl.BlockSpec((tm, K), lambda i: (i, 0)),      # A row tile (bf16)
                pl.BlockSpec((K, n_pad), lambda i: (0, 0)),   # resident weight (bf16)
                pl.BlockSpec((1, n_pad), lambda i: (0, 0)),   # BN scale (f32)
                pl.BlockSpec((1, n_pad), lambda i: (0, 0)),   # BN shift + bias (f32)
            ],
            out_specs=pl.BlockSpec((tm, n_pad), lambda i: (i, 0)),
        ),
        compiler_params=pltpu.CompilerParams(dimension_semantics=("parallel",)),
    )(
        a.astype(jnp.bfloat16),
        w.astype(jnp.bfloat16),
        scale.reshape(1, n_pad).astype(jnp.float32),
        shift.reshape(1, n_pad).astype(jnp.float32),
    )
    return out[:M, :N]


# ------------------------------- JAX glue (NHWC) ------------------------------
def _im2col_nhwc(x, k, stride, pad):
    """x: (N,H,W,C) -> A: (N*Ho*Wo, k*k*C), columns ordered (kh, kw, c)."""
    n, h, w, c = x.shape
    xp = jnp.pad(x, ((0, 0), (pad, pad), (pad, pad), (0, 0)))
    ho = (h + 2 * pad - k) // stride + 1
    wo = (w + 2 * pad - k) // stride + 1
    cols = []
    for di in range(k):
        for dj in range(k):
            cols.append(xp[:, di:di + stride * ho:stride, dj:dj + stride * wo:stride, :])
    a = jnp.concatenate(cols, axis=-1).reshape(n * ho * wo, k * k * c)
    return a, ho, wo


def conv2d_4x4_s2_p1(x, weight, bias, scale, shift, act):
    """Conv2d(k=4,s=2,p=1). x NHWC, weight torch (Cout,Cin,4,4) -> NHWC out."""
    n = x.shape[0]
    cout, cin = weight.shape[0], weight.shape[1]
    a, ho, wo = _im2col_nhwc(x, 4, 2, 1)
    wm = jnp.transpose(weight, (2, 3, 1, 0)).reshape(16 * cin, cout)   # (kh,kw,ci)xco
    y = fused_matmul(a, wm, scale, scale * bias + shift, act)
    return y.reshape(n, ho, wo, cout)


def _deconv_phase_weight_matrix(weight):
    """ConvTranspose2d(4,2,1) weight (Cin,Cout,4,4) -> (9*Cin, 4*Cout).

    Four sub-pixel phase filters embedded in a shared 3x3 window (stride-1
    conv over the 1-padded input), stacked along output columns.
    """
    cin, cout = weight.shape[0], weight.shape[1]
    w_hw = jnp.transpose(weight, (2, 3, 0, 1))          # (kh, kw, Cin, Cout)
    zeros = jnp.zeros((cin, cout), weight.dtype)

    def taps(parity):                                    # window pos -> kernel tap
        return [3, 1, None] if parity == 0 else [None, 2, 0]

    phase_mats = []
    for py in range(2):
        for px in range(2):
            hm, wm = taps(py), taps(px)
            rows = []
            for u in range(3):
                for v in range(3):
                    if hm[u] is None or wm[v] is None:
                        rows.append(zeros)
                    else:
                        rows.append(w_hw[hm[u], wm[v]])
            phase_mats.append(jnp.stack(rows, axis=0).reshape(9 * cin, cout))
    return jnp.concatenate(phase_mats, axis=1)           # (9*Cin, 4*Cout)


def conv_transpose2d_4x4_s2_p1(x, weight, bias, scale, shift, act):
    """ConvTranspose2d(k=4,s=2,p=1). x NHWC, weight torch (Cin,Cout,4,4)."""
    n, h, w, cin = x.shape
    cout = weight.shape[1]
    a, ho, wo = _im2col_nhwc(x, 3, 1, 1)                 # ho=h, wo=w
    wmat = _deconv_phase_weight_matrix(weight)           # (9*Cin, 4*Cout)
    scale4 = jnp.tile(scale, 4)
    shift4 = jnp.tile(scale * bias + shift, 4)
    y = fused_matmul(a, wmat, scale4, shift4, act)       # (n*h*w, 4*Cout)
    y = y.reshape(n, h, w, 2, 2, cout)                   # (n, h, w, py, px, c)
    y = y.transpose(0, 1, 3, 2, 4, 5).reshape(n, 2 * h, 2 * w, cout)
    return y


def maxpool2x2(x):  # NHWC MaxPool2d(2,2)
    n, h, w, c = x.shape
    return x.reshape(n, h // 2, 2, w // 2, 2, c).max(axis=(2, 4))


def upsample2x(x):  # NHWC nn.Upsample(scale_factor=2, mode='nearest')
    return jnp.repeat(jnp.repeat(x, 2, axis=1), 2, axis=2)


def bn_affine(bn):
    scale = bn["gamma"] / jnp.sqrt(bn["var"] + BN_EPS)
    shift = bn["beta"] - bn["mean"] * scale
    return scale, shift


# ----------------------------- parameters ------------------------------------
def init_params(key, layer_count=3, zsize=512):
    keys = iter(jax.random.split(key, 64))

    def nrm(shape, std=0.05):
        return std * jax.random.normal(next(keys), shape, jnp.float32)

    def bn_init(c):
        return dict(gamma=jnp.ones((c,), jnp.float32), beta=jnp.zeros((c,), jnp.float32),
                    mean=jnp.zeros((c,), jnp.float32), var=jnp.ones((c,), jnp.float32))

    params = {}
    inputs, mul = in_channels, 1
    for i in range(layer_count):
        cout = image_size * mul
        params[f"conv{i + 1}"] = dict(w=nrm((cout, inputs, 4, 4)),
                                      b=jnp.zeros((cout,), jnp.float32))
        params[f"conv{i + 1}_bn"] = bn_init(cout)
        inputs, mul = cout, mul * 2
    d_max = inputs
    feat = inputs * 4 * 4
    params["fc1"] = dict(w=nrm((zsize, feat)), b=nrm((zsize,), 0.01))
    params["fc2"] = dict(w=nrm((zsize, feat)), b=nrm((zsize,), 0.01))
    params["d1"] = dict(w=nrm((feat, zsize)), b=nrm((feat,), 0.01))
    mul = inputs // image_size // 2
    for i in range(1, layer_count):
        cout = image_size * mul
        params[f"deconv{i + 1}"] = dict(w=nrm((inputs, cout, 4, 4)),
                                        b=jnp.zeros((cout,), jnp.float32))
        params[f"deconv{i + 1}_bn"] = bn_init(cout)
        inputs, mul = cout, mul // 2
    params[f"deconv{layer_count + 1}"] = dict(w=nrm((inputs, in_channels, 4, 4)),
                                              b=jnp.zeros((in_channels,), jnp.float32))
    return params, d_max


# ------------------------------- forward --------------------------------------
def vae_forward(params, x, *, layer_count, zsize, d_max):
    # ---- encode (NHWC internally) ----
    h = jnp.transpose(x, (0, 2, 3, 1))                   # NCHW -> NHWC once
    for i in range(layer_count):
        p = params[f"conv{i + 1}"]
        scale, shift = bn_affine(params[f"conv{i + 1}_bn"])
        h = conv2d_4x4_s2_p1(h, p["w"], p["b"], scale, shift, act="relu")
        if i in maxpool_indexes:
            h = maxpool2x2(h)
    n = h.shape[0]
    # torch flattens NCHW (c,h,w) order; h is tiny (n,4,4,d_max) here.
    flat = jnp.transpose(h, (0, 3, 1, 2)).reshape(n, d_max * 16)

    # fc1 + fc2 fused into one matmul (concatenated output columns)
    w12 = jnp.concatenate([params["fc1"]["w"].T, params["fc2"]["w"].T], axis=1)
    b12 = jnp.concatenate([params["fc1"]["b"], params["fc2"]["b"]])
    ones12 = jnp.ones((2 * zsize,), jnp.float32)
    h12 = fused_matmul(flat, w12, ones12, b12, "none")
    mu, logvar = h12[:, :zsize], h12[:, zsize:]

    # ---- reparameterize (eval mode): z = mu ----
    z = mu

    # ---- decode (leaky fused into d1; elementwise so view-order-invariant) ----
    feat = d_max * 16
    d = fused_matmul(z, params["d1"]["w"].T, jnp.ones((feat,), jnp.float32),
                     params["d1"]["b"], "leaky")
    d = d.reshape(n, d_max, 4, 4).transpose(0, 2, 3, 1)  # (c,h,w) view -> NHWC
    for i in range(1, layer_count):
        p = params[f"deconv{i + 1}"]
        scale, shift = bn_affine(params[f"deconv{i + 1}_bn"])
        d = conv_transpose2d_4x4_s2_p1(d, p["w"], p["b"], scale, shift, act="leaky")
        if i - 1 in maxpool_indexes:
            d = upsample2x(d)
    p = params[f"deconv{layer_count + 1}"]
    out = conv_transpose2d_4x4_s2_p1(
        d, p["w"], p["b"],
        jnp.ones((in_channels,), jnp.float32),
        jnp.zeros((in_channels,), jnp.float32),
        act="tanh",
    )
    recon = jnp.transpose(out, (0, 3, 1, 2))             # NHWC -> NCHW once
    return recon, mu, logvar


# --------------------------------- main ---------------------------------------
if __name__ == "__main__":
    layer_count, zsize = 3, 512
    key = jax.random.PRNGKey(0)
    kp, kx = jax.random.split(key)
    params, d_max = init_params(kp, layer_count, zsize)

    # spatial 128 so the encoder (3 stride-2 convs + 2 maxpools) bottoms out at
    # 4x4, as the fc layers require; channels stay small (image_size=16).
    x = jax.random.normal(kx, (2, in_channels, 128, 128), jnp.float32)

    fwd = jax.jit(functools.partial(vae_forward, layer_count=layer_count,
                                    zsize=zsize, d_max=d_max))
    recon, mu, logvar = fwd(params, x)
    jax.block_until_ready((recon, mu, logvar))

    assert recon.shape == (2, in_channels, 128, 128), recon.shape
    assert mu.shape == (2, zsize), mu.shape
    assert logvar.shape == (2, zsize), logvar.shape
    assert bool(jnp.all(jnp.isfinite(recon)))
    assert bool(jnp.all(jnp.isfinite(mu))) and bool(jnp.all(jnp.isfinite(logvar)))
    print("KERNEL_OK")
</pallas_src>

<mosaic_0001>
module attributes {stable_mosaic.version = 11 : i64} {
  func.func @_fused_matmul_kernel(%arg0: i32, %arg1: memref<512x48xbf16, #tpu.memory_space<vmem>>, %arg2: memref<48x128xbf16, #tpu.memory_space<vmem>>, %arg3: memref<1x128xf32, #tpu.memory_space<vmem>>, %arg4: memref<1x128xf32, #tpu.memory_space<vmem>>, %arg5: memref<512x128xf32, #tpu.memory_space<vmem>>) attributes {dimension_semantics = [#tpu.dimension_semantics<parallel>], iteration_bounds = array<i64: 16>, scalar_prefetch = 0 : i64, scratch_operands = 0 : i64, tpu.core_type = #tpu.core_type<tc>, window_params = [{transform_indices = @transform_0, window_bounds = array<i64: 512, 48>}, {pipeline_mode = #tpu.pipeline_mode<synchronous>, transform_indices = @transform_1, window_bounds = array<i64: 48, 128>}, {pipeline_mode = #tpu.pipeline_mode<synchronous>, transform_indices = @transform_2, window_bounds = array<i64: 1, 128>}, {pipeline_mode = #tpu.pipeline_mode<synchronous>, transform_indices = @transform_3, window_bounds = array<i64: 1, 128>}, {transform_indices = @transform_4, window_bounds = array<i64: 512, 128>}]} {
    %c0 = arith.constant 0 : index
    %c0_0 = arith.constant 0 : index
    %0 = vector.load %arg1[%c0, %c0_0] : memref<512x48xbf16, #tpu.memory_space<vmem>>, vector<512x48xbf16>
    %c0_1 = arith.constant 0 : index
    %c0_2 = arith.constant 0 : index
    %1 = vector.load %arg2[%c0_1, %c0_2] : memref<48x128xbf16, #tpu.memory_space<vmem>>, vector<48x128xbf16>
    %cst = arith.constant dense<0.000000e+00> : vector<512x128xf32>
    %2 = tpu.matmul %0, %1, %cst {dimension_numbers = #tpu.dot_dimension_numbers<[1], [0], [0], [1], [0, 0, 1, 1], [], []>} : vector<512x48xbf16>, vector<48x128xbf16>, vector<512x128xf32> -> vector<512x128xf32>
    %c0_3 = arith.constant 0 : index
    %c0_4 = arith.constant 0 : index
    %3 = vector.load %arg3[%c0_3, %c0_4] : memref<1x128xf32, #tpu.memory_space<vmem>>, vector<1x128xf32>
    %4 = vector.broadcast %3 : vector<1x128xf32> to vector<512x128xf32>
    %5 = arith.mulf %2, %4 : vector<512x128xf32>
    %c0_5 = arith.constant 0 : index
    %c0_6 = arith.constant 0 : index
    %6 = vector.load %arg4[%c0_5, %c0_6] : memref<1x128xf32, #tpu.memory_space<vmem>>, vector<1x128xf32>
    %7 = vector.broadcast %6 : vector<1x128xf32> to vector<512x128xf32>
    %8 = arith.addf %5, %7 : vector<512x128xf32>
    %cst_7 = arith.constant 0.000000e+00 : f32
    %9 = vector.broadcast %cst_7 : f32 to vector<512x128xf32>
    %10 = arith.maximumf %8, %9 : vector<512x128xf32>
    %c0_8 = arith.constant 0 : index
    %c0_9 = arith.constant 0 : index
    %11 = vector.load %arg5[%c0_8, %c0_9] : memref<512x128xf32, #tpu.memory_space<vmem>>, vector<512x128xf32>
    tpu.vector_store %arg5[%c0_8, %c0_9], %10 {strides = array<i32>} : memref<512x128xf32, #tpu.memory_space<vmem>>, vector<512x128xf32>,
    return
  }
  func.func @transform_0(%arg0: i32) -> (i32, i32) {
    %c0_i32 = arith.constant 0 : i32
    %c0_i32_0 = arith.constant 0 : i32
    return %arg0, %c0_i32 : i32, i32
  }
  func.func @transform_1(%arg0: i32) -> (i32, i32) {
    %c0_i32 = arith.constant 0 : i32
    %c0_i32_0 = arith.constant 0 : i32
    %c0_i32_1 = arith.constant 0 : i32
    return %c0_i32, %c0_i32_0 : i32, i32
  }
  func.func @transform_2(%arg0: i32) -> (i32, i32) {
    %c0_i32 = arith.constant 0 : i32
    %c0_i32_0 = arith.constant 0 : i32
    %c0_i32_1 = arith.constant 0 : i32
    return %c0_i32, %c0_i32_0 : i32, i32
  }
  func.func @transform_3(%arg0: i32) -> (i32, i32) {
    %c0_i32 = arith.constant 0 : i32
    %c0_i32_0 = arith.constant 0 : i32
    %c0_i32_1 = arith.constant 0 : i32
    return %c0_i32, %c0_i32_0 : i32, i32
  }
  func.func @transform_4(%arg0: i32) -> (i32, i32) {
    %c0_i32 = arith.constant 0 : i32
    %c0_i32_0 = arith.constant 0 : i32
    return %arg0, %c0_i32 : i32, i32
  }
}

module attributes {stable_mosaic.version = 11 : i64} {
  func.func @_fused_matmul_kernel(%arg0: i32, %arg1: memref<256x256xbf16, #tpu.memory_space<vmem>>, %arg2: memref<256x128xbf16, #tpu.memory_space<vmem>>, %arg3: memref<1x128xf32, #tpu.memory_space<vmem>>, %arg4: memref<1x128xf32, #tpu.memory_space<vmem>>, %arg5: memref<256x128xf32, #tpu.memory_space<vmem>>) attributes {dimension_semantics = [#tpu.dimension_semantics<parallel>], iteration_bounds = array<i64: 2>, scalar_prefetch = 0 : i64, scratch_operands = 0 : i64, tpu.core_type = #tpu.core_type<tc>, window_params = [{transform_indices = @transform_0, window_bounds = array<i64: 256, 256>}, {pipeline_mode = #tpu.pipeline_mode<synchronous>, transform_indices = @transform_1, window_bounds = array<i64: 256, 128>}, {pipeline_mode = #tpu.pipeline_mode<synchronous>, transform_indices = @transform_2, window_bounds = array<i64: 1, 128>}, {pipeline_mode = #tpu.pipeline_mode<synchronous>, transform_indices = @transform_3, window_bounds = array<i64: 1, 128>}, {transform_indices = @transform_4, window_bounds = array<i64: 256, 128>}]} {
    %c0 = arith.constant 0 : index
    %c0_0 = arith.constant 0 : index
    %0 = vector.load %arg1[%c0, %c0_0] : memref<256x256xbf16, #tpu.memory_space<vmem>>, vector<256x256xbf16>
    %c0_1 = arith.constant 0 : index
    %c0_2 = arith.constant 0 : index
    %1 = vector.load %arg2[%c0_1, %c0_2] : memref<256x128xbf16, #tpu.memory_space<vmem>>, vector<256x128xbf16>
    %cst = arith.constant dense<0.000000e+00> : vector<256x128xf32>
    %2 = tpu.matmul %0, %1, %cst {dimension_numbers = #tpu.dot_dimension_numbers<[1], [0], [0], [1], [0, 0, 1, 1], [], []>} : vector<256x256xbf16>, vector<256x128xbf16>, vector<256x128xf32> -> vector<256x128xf32>
    %c0_3 = arith.constant 0 : index
    %c0_4 = arith.constant 0 : index
    %3 = vector.load %arg3[%c0_3, %c0_4] : memref<1x128xf32, #tpu.memory_space<vmem>>, vector<1x128xf32>
    %4 = vector.broadcast %3 : vector<1x128xf32> to vector<256x128xf32>
    %5 = arith.mulf %2, %4 : vector<256x128xf32>
    %c0_5 = arith.constant 0 : index
    %c0_6 = arith.constant 0 : index
    %6 = vector.load %arg4[%c0_5, %c0_6] : memref<1x128xf32, #tpu.memory_space<vmem>>, vector<1x128xf32>
    %7 = vector.broadcast %6 : vector<1x128xf32> to vector<256x128xf32>
    %8 = arith.addf %5, %7 : vector<256x128xf32>
    %cst_7 = arith.constant 0.000000e+00 : f32
    %9 = vector.broadcast %cst_7 : f32 to vector<256x128xf32>
    %10 = arith.maximumf %8, %9 : vector<256x128xf32>
    %c0_8 = arith.constant 0 : index
    %c0_9 = arith.constant 0 : index
    %11 = vector.load %arg5[%c0_8, %c0_9] : memref<256x128xf32, #tpu.memory_space<vmem>>, vector<256x128xf32>
    tpu.vector_store %arg5[%c0_8, %c0_9], %10 {strides = array<i32>} : memref<256x128xf32, #tpu.memory_space<vmem>>, vector<256x128xf32>,
    return
  }
  func.func @transform_0(%arg0: i32) -> (i32, i32) {
    %c0_i32 = arith.constant 0 : i32
    %c0_i32_0 = arith.constant 0 : i32
    return %arg0, %c0_i32 : i32, i32
  }
  func.func @transform_1(%arg0: i32) -> (i32, i32) {
    %c0_i32 = arith.constant 0 : i32
    %c0_i32_0 = arith.constant 0 : i32
    %c0_i32_1 = arith.constant 0 : i32
    return %c0_i32, %c0_i32_0 : i32, i32
  }
  func.func @transform_2(%arg0: i32) -> (i32, i32) {
    %c0_i32 = arith.constant 0 : i32
    %c0_i32_0 = arith.constant 0 : i32
    %c0_i32_1 = arith.constant 0 : i32
    return %c0_i32, %c0_i32_0 : i32, i32
  }
  func.func @transform_3(%arg0: i32) -> (i32, i32) {
    %c0_i32 = arith.constant 0 : i32
    %c0_i32_0 = arith.constant 0 : i32
    %c0_i32_1 = arith.constant 0 : i32
    return %c0_i32, %c0_i32_0 : i32, i32
  }
  func.func @transform_4(%arg0: i32) -> (i32, i32) {
    %c0_i32 = arith.constant 0 : i32
    %c0_i32_0 = arith.constant 0 : i32
    return %arg0, %c0_i32 : i32, i32
  }
}

module attributes {stable_mosaic.version = 11 : i64} {
  func.func @_fused_matmul_kernel(%arg0: i32, %arg1: memref<16x512xbf16, #tpu.memory_space<vmem>>, %arg2: memref<512x128xbf16, #tpu.memory_space<vmem>>, %arg3: memref<1x128xf32, #tpu.memory_space<vmem>>, %arg4: memref<1x128xf32, #tpu.memory_space<vmem>>, %arg5: memref<16x128xf32, #tpu.memory_space<vmem>>) attributes {dimension_semantics = [#tpu.dimension_semantics<parallel>], iteration_bounds = array<i64: 2>, scalar_prefetch = 0 : i64, scratch_operands = 0 : i64, tpu.core_type = #tpu.core_type<tc>, window_params = [{transform_indices = @transform_0, window_bounds = array<i64: 16, 512>}, {pipeline_mode = #tpu.pipeline_mode<synchronous>, transform_indices = @transform_1, window_bounds = array<i64: 512, 128>}, {pipeline_mode = #tpu.pipeline_mode<synchronous>, transform_indices = @transform_2, window_bounds = array<i64: 1, 128>}, {pipeline_mode = #tpu.pipeline_mode<synchronous>, transform_indices = @transform_3, window_bounds = array<i64: 1, 128>}, {transform_indices = @transform_4, window_bounds = array<i64: 16, 128>}]} {
    %c0 = arith.constant 0 : index
    %c0_0 = arith.constant 0 : index
    %0 = vector.load %arg1[%c0, %c0_0] : memref<16x512xbf16, #tpu.memory_space<vmem>>, vector<16x512xbf16>
    %c0_1 = arith.constant 0 : index
    %c0_2 = arith.constant 0 : index
    %1 = vector.load %arg2[%c0_1, %c0_2] : memref<512x128xbf16, #tpu.memory_space<vmem>>, vector<512x128xbf16>
    %cst = arith.constant dense<0.000000e+00> : vector<16x128xf32>
    %2 = tpu.matmul %0, %1, %cst {dimension_numbers = #tpu.dot_dimension_numbers<[1], [0], [0], [1], [0, 0, 1, 1], [], []>} : vector<16x512xbf16>, vector<512x128xbf16>, vector<16x128xf32> -> vector<16x128xf32>
    %c0_3 = arith.constant 0 : index
    %c0_4 = arith.constant 0 : index
    %3 = vector.load %arg3[%c0_3, %c0_4] : memref<1x128xf32, #tpu.memory_space<vmem>>, vector<1x128xf32>
    %4 = vector.broadcast %3 : vector<1x128xf32> to vector<16x128xf32>
    %5 = arith.mulf %2, %4 : vector<16x128xf32>
    %c0_5 = arith.constant 0 : index
    %c0_6 = arith.constant 0 : index
    %6 = vector.load %arg4[%c0_5, %c0_6] : memref<1x128xf32, #tpu.memory_space<vmem>>, vector<1x128xf32>
    %7 = vector.broadcast %6 : vector<1x128xf32> to vector<16x128xf32>
    %8 = arith.addf %5, %7 : vector<16x128xf32>
    %cst_7 = arith.constant 0.000000e+00 : f32
    %9 = vector.broadcast %cst_7 : f32 to vector<16x128xf32>
    %10 = arith.maximumf %8, %9 : vector<16x128xf32>
    %c0_8 = arith.constant 0 : index
    %c0_9 = arith.constant 0 : index
    %11 = vector.load %arg5[%c0_8, %c0_9] : memref<16x128xf32, #tpu.memory_space<vmem>>, vector<16x128xf32>
    tpu.vector_store %arg5[%c0_8, %c0_9], %10 {strides = array<i32>} : memref<16x128xf32, #tpu.memory_space<vmem>>, vector<16x128xf32>,
    return
  }
  func.func @transform_0(%arg0: i32) -> (i32, i32) {
    %c0_i32 = arith.constant 0 : i32
    %c0_i32_0 = arith.constant 0 : i32
    return %arg0, %c0_i32 : i32, i32
  }
  func.func @transform_1(%arg0: i32) -> (i32, i32) {
    %c0_i32 = arith.constant 0 : i32
    %c0_i32_0 = arith.constant 0 : i32
    %c0_i32_1 = arith.constant 0 : i32
    return %c0_i32, %c0_i32_0 : i32, i32
  }
  func.func @transform_2(%arg0: i32) -> (i32, i32) {
    %c0_i32 = arith.constant 0 : i32
    %c0_i32_0 = arith.constant 0 : i32
    %c0_i32_1 = arith.constant 0 : i32
    return %c0_i32, %c0_i32_0 : i32, i32
  }
  func.func @transform_3(%arg0: i32) -> (i32, i32) {
    %c0_i32 = arith.constant 0 : i32
    %c0_i32_0 = arith.constant 0 : i32
    %c0_i32_1 = arith.constant 0 : i32
    return %c0_i32, %c0_i32_0 : i32, i32
  }
  func.func @transform_4(%arg0: i32) -> (i32, i32) {
    %c0_i32 = arith.constant 0 : i32
    %c0_i32_0 = arith.constant 0 : i32
    return %arg0, %c0_i32 : i32, i32
  }
}

module attributes {stable_mosaic.version = 11 : i64} {
  func.func @_fused_matmul_kernel(%arg0: i32, %arg1: memref<16x1024xbf16, #tpu.memory_space<vmem>>, %arg2: memref<1024x1024xbf16, #tpu.memory_space<vmem>>, %arg3: memref<1x1024xf32, #tpu.memory_space<vmem>>, %arg4: memref<1x1024xf32, #tpu.memory_space<vmem>>, %arg5: memref<16x1024xf32, #tpu.memory_space<vmem>>) attributes {dimension_semantics = [#tpu.dimension_semantics<parallel>], iteration_bounds = array<i64: 1>, scalar_prefetch = 0 : i64, scratch_operands = 0 : i64, tpu.core_type = #tpu.core_type<tc>, window_params = [{transform_indices = @transform_0, window_bounds = array<i64: 16, 1024>}, {pipeline_mode = #tpu.pipeline_mode<synchronous>, transform_indices = @transform_1, window_bounds = array<i64: 1024, 1024>}, {pipeline_mode = #tpu.pipeline_mode<synchronous>, transform_indices = @transform_2, window_bounds = array<i64: 1, 1024>}, {pipeline_mode = #tpu.pipeline_mode<synchronous>, transform_indices = @transform_3, window_bounds = array<i64: 1, 1024>}, {transform_indices = @transform_4, window_bounds = array<i64: 16, 1024>}]} {
    %c0 = arith.constant 0 : index
    %c0_0 = arith.constant 0 : index
    %0 = vector.load %arg1[%c0, %c0_0] : memref<16x1024xbf16, #tpu.memory_space<vmem>>, vector<16x1024xbf16>
    %c0_1 = arith.constant 0 : index
    %c0_2 = arith.constant 0 : index
    %1 = vector.load %arg2[%c0_1, %c0_2] : memref<1024x1024xbf16, #tpu.memory_space<vmem>>, vector<1024x1024xbf16>
    %cst = arith.constant dense<0.000000e+00> : vector<16x1024xf32>
    %2 = tpu.matmul %0, %1, %cst {dimension_numbers = #tpu.dot_dimension_numbers<[1], [0], [0], [1], [0, 0, 1, 1], [], []>} : vector<16x1024xbf16>, vector<1024x1024xbf16>, vector<16x1024xf32> -> vector<16x1024xf32>
    %c0_3 = arith.constant 0 : index
    %c0_4 = arith.constant 0 : index
    %3 = vector.load %arg3[%c0_3, %c0_4] : memref<1x1024xf32, #tpu.memory_space<vmem>>, vector<1x1024xf32>
    %4 = vector.broadcast %3 : vector<1x1024xf32> to vector<16x1024xf32>
    %5 = arith.mulf %2, %4 : vector<16x1024xf32>
    %c0_5 = arith.constant 0 : index
    %c0_6 = arith.constant 0 : index
    %6 = vector.load %arg4[%c0_5, %c0_6] : memref<1x1024xf32, #tpu.memory_space<vmem>>, vector<1x1024xf32>
    %7 = vector.broadcast %6 : vector<1x1024xf32> to vector<16x1024xf32>
    %8 = arith.addf %5, %7 : vector<16x1024xf32>
    %c0_7 = arith.constant 0 : index
    %c0_8 = arith.constant 0 : index
    %9 = vector.load %arg5[%c0_7, %c0_8] : memref<16x1024xf32, #tpu.memory_space<vmem>>, vector<16x1024xf32>
    tpu.vector_store %arg5[%c0_7, %c0_8], %8 {strides = array<i32>} : memref<16x1024xf32, #tpu.memory_space<vmem>>, vector<16x1024xf32>,
    return
  }
  func.func @transform_0(%arg0: i32) -> (i32, i32) {
    %c0_i32 = arith.constant 0 : i32
    %c0_i32_0 = arith.constant 0 : i32
    return %arg0, %c0_i32 : i32, i32
  }
  func.func @transform_1(%arg0: i32) -> (i32, i32) {
    %c0_i32 = arith.constant 0 : i32
    %c0_i32_0 = arith.constant 0 : i32
    %c0_i32_1 = arith.constant 0 : i32
    return %c0_i32, %c0_i32_0 : i32, i32
  }
  func.func @transform_2(%arg0: i32) -> (i32, i32) {
    %c0_i32 = arith.constant 0 : i32
    %c0_i32_0 = arith.constant 0 : i32
    %c0_i32_1 = arith.constant 0 : i32
    return %c0_i32, %c0_i32_0 : i32, i32
  }
  func.func @transform_3(%arg0: i32) -> (i32, i32) {
    %c0_i32 = arith.constant 0 : i32
    %c0_i32_0 = arith.constant 0 : i32
    %c0_i32_1 = arith.constant 0 : i32
    return %c0_i32, %c0_i32_0 : i32, i32
  }
  func.func @transform_4(%arg0: i32) -> (i32, i32) {
    %c0_i32 = arith.constant 0 : i32
    %c0_i32_0 = arith.constant 0 : i32
    return %arg0, %c0_i32 : i32, i32
  }
}

module attributes {stable_mosaic.version = 11 : i64} {
  func.func @_fused_matmul_kernel(%arg0: i32, %arg1: memref<16x512xbf16, #tpu.memory_space<vmem>>, %arg2: memref<512x1024xbf16, #tpu.memory_space<vmem>>, %arg3: memref<1x1024xf32, #tpu.memory_space<vmem>>, %arg4: memref<1x1024xf32, #tpu.memory_space<vmem>>, %arg5: memref<16x1024xf32, #tpu.memory_space<vmem>>) attributes {dimension_semantics = [#tpu.dimension_semantics<parallel>], iteration_bounds = array<i64: 1>, scalar_prefetch = 0 : i64, scratch_operands = 0 : i64, tpu.core_type = #tpu.core_type<tc>, window_params = [{transform_indices = @transform_0, window_bounds = array<i64: 16, 512>}, {pipeline_mode = #tpu.pipeline_mode<synchronous>, transform_indices = @transform_1, window_bounds = array<i64: 512, 1024>}, {pipeline_mode = #tpu.pipeline_mode<synchronous>, transform_indices = @transform_2, window_bounds = array<i64: 1, 1024>}, {pipeline_mode = #tpu.pipeline_mode<synchronous>, transform_indices = @transform_3, window_bounds = array<i64: 1, 1024>}, {transform_indices = @transform_4, window_bounds = array<i64: 16, 1024>}]} {
    %c0 = arith.constant 0 : index
    %c0_0 = arith.constant 0 : index
    %0 = vector.load %arg1[%c0, %c0_0] : memref<16x512xbf16, #tpu.memory_space<vmem>>, vector<16x512xbf16>
    %c0_1 = arith.constant 0 : index
    %c0_2 = arith.constant 0 : index
    %1 = vector.load %arg2[%c0_1, %c0_2] : memref<512x1024xbf16, #tpu.memory_space<vmem>>, vector<512x1024xbf16>
    %cst = arith.constant dense<0.000000e+00> : vector<16x1024xf32>
    %2 = tpu.matmul %0, %1, %cst {dimension_numbers = #tpu.dot_dimension_numbers<[1], [0], [0], [1], [0, 0, 1, 1], [], []>} : vector<16x512xbf16>, vector<512x1024xbf16>, vector<16x1024xf32> -> vector<16x1024xf32>
    %c0_3 = arith.constant 0 : index
    %c0_4 = arith.constant 0 : index
    %3 = vector.load %arg3[%c0_3, %c0_4] : memref<1x1024xf32, #tpu.memory_space<vmem>>, vector<1x1024xf32>
    %4 = vector.broadcast %3 : vector<1x1024xf32> to vector<16x1024xf32>
    %5 = arith.mulf %2, %4 : vector<16x1024xf32>
    %c0_5 = arith.constant 0 : index
    %c0_6 = arith.constant 0 : index
    %6 = vector.load %arg4[%c0_5, %c0_6] : memref<1x1024xf32, #tpu.memory_space<vmem>>, vector<1x1024xf32>
    %7 = vector.broadcast %6 : vector<1x1024xf32> to vector<16x1024xf32>
    %8 = arith.addf %5, %7 : vector<16x1024xf32>
    %cst_7 = arith.constant 0.000000e+00 : f32
    %9 = vector.broadcast %cst_7 : f32 to vector<16x1024xf32>
    %10 = arith.cmpf oge, %8, %9 : vector<16x1024xf32>
    %cst_8 = arith.constant 2.000000e-01 : f32
    %11 = vector.broadcast %cst_8 : f32 to vector<16x1024xf32>
    %12 = arith.mulf %11, %8 : vector<16x1024xf32>
    %13 = arith.select %10, %8, %12 : vector<16x1024xi1>, vector<16x1024xf32>
    %c0_9 = arith.constant 0 : index
    %c0_10 = arith.constant 0 : index
    %14 = vector.load %arg5[%c0_9, %c0_10] : memref<16x1024xf32, #tpu.memory_space<vmem>>, vector<16x1024xf32>
    tpu.vector_store %arg5[%c0_9, %c0_10], %13 {strides = array<i32>} : memref<16x1024xf32, #tpu.memory_space<vmem>>, vector<16x1024xf32>,
    return
  }
  func.func @transform_0(%arg0: i32) -> (i32, i32) {
    %c0_i32 = arith.constant 0 : i32
    %c0_i32_0 = arith.constant 0 : i32
    return %arg0, %c0_i32 : i32, i32
  }
  func.func @transform_1(%arg0: i32) -> (i32, i32) {
    %c0_i32 = arith.constant 0 : i32
    %c0_i32_0 = arith.constant 0 : i32
    %c0_i32_1 = arith.constant 0 : i32
    return %c0_i32, %c0_i32_0 : i32, i32
  }
  func.func @transform_2(%arg0: i32) -> (i32, i32) {
    %c0_i32 = arith.constant 0 : i32
    %c0_i32_0 = arith.constant 0 : i32
    %c0_i32_1 = arith.constant 0 : i32
    return %c0_i32, %c0_i32_0 : i32, i32
  }
  func.func @transform_3(%arg0: i32) -> (i32, i32) {
    %c0_i32 = arith.constant 0 : i32
    %c0_i32_0 = arith.constant 0 : i32
    %c0_i32_1 = arith.constant 0 : i32
    return %c0_i32, %c0_i32_0 : i32, i32
  }
  func.func @transform_4(%arg0: i32) -> (i32, i32) {
    %c0_i32 = arith.constant 0 : i32
    %c0_i32_0 = arith.constant 0 : i32
    return %arg0, %c0_i32 : i32, i32
  }
}

module attributes {stable_mosaic.version = 11 : i64} {
  func.func @_fused_matmul_kernel(%arg0: i32, %arg1: memref<16x576xbf16, #tpu.memory_space<vmem>>, %arg2: memref<576x128xbf16, #tpu.memory_space<vmem>>, %arg3: memref<1x128xf32, #tpu.memory_space<vmem>>, %arg4: memref<1x128xf32, #tpu.memory_space<vmem>>, %arg5: memref<16x128xf32, #tpu.memory_space<vmem>>) attributes {dimension_semantics = [#tpu.dimension_semantics<parallel>], iteration_bounds = array<i64: 2>, scalar_prefetch = 0 : i64, scratch_operands = 0 : i64, tpu.core_type = #tpu.core_type<tc>, window_params = [{transform_indices = @transform_0, window_bounds = array<i64: 16, 576>}, {pipeline_mode = #tpu.pipeline_mode<synchronous>, transform_indices = @transform_1, window_bounds = array<i64: 576, 128>}, {pipeline_mode = #tpu.pipeline_mode<synchronous>, transform_indices = @transform_2, window_bounds = array<i64: 1, 128>}, {pipeline_mode = #tpu.pipeline_mode<synchronous>, transform_indices = @transform_3, window_bounds = array<i64: 1, 128>}, {transform_indices = @transform_4, window_bounds = array<i64: 16, 128>}]} {
    %c0 = arith.constant 0 : index
    %c0_0 = arith.constant 0 : index
    %0 = vector.load %arg1[%c0, %c0_0] : memref<16x576xbf16, #tpu.memory_space<vmem>>, vector<16x576xbf16>
    %c0_1 = arith.constant 0 : index
    %c0_2 = arith.constant 0 : index
    %1 = vector.load %arg2[%c0_1, %c0_2] : memref<576x128xbf16, #tpu.memory_space<vmem>>, vector<576x128xbf16>
    %cst = arith.constant dense<0.000000e+00> : vector<16x128xf32>
    %2 = tpu.matmul %0, %1, %cst {dimension_numbers = #tpu.dot_dimension_numbers<[1], [0], [0], [1], [0, 0, 1, 1], [], []>} : vector<16x576xbf16>, vector<576x128xbf16>, vector<16x128xf32> -> vector<16x128xf32>
    %c0_3 = arith.constant 0 : index
    %c0_4 = arith.constant 0 : index
    %3 = vector.load %arg3[%c0_3, %c0_4] : memref<1x128xf32, #tpu.memory_space<vmem>>, vector<1x128xf32>
    %4 = vector.broadcast %3 : vector<1x128xf32> to vector<16x128xf32>
    %5 = arith.mulf %2, %4 : vector<16x128xf32>
    %c0_5 = arith.constant 0 : index
    %c0_6 = arith.constant 0 : index
    %6 = vector.load %arg4[%c0_5, %c0_6] : memref<1x128xf32, #tpu.memory_space<vmem>>, vector<1x128xf32>
    %7 = vector.broadcast %6 : vector<1x128xf32> to vector<16x128xf32>
    %8 = arith.addf %5, %7 : vector<16x128xf32>
    %cst_7 = arith.constant 0.000000e+00 : f32
    %9 = vector.broadcast %cst_7 : f32 to vector<16x128xf32>
    %10 = arith.cmpf oge, %8, %9 : vector<16x128xf32>
    %cst_8 = arith.constant 2.000000e-01 : f32
    %11 = vector.broadcast %cst_8 : f32 to vector<16x128xf32>
    %12 = arith.mulf %11, %8 : vector<16x128xf32>
    %13 = arith.select %10, %8, %12 : vector<16x128xi1>, vector<16x128xf32>
    %c0_9 = arith.constant 0 : index
    %c0_10 = arith.constant 0 : index
    %14 = vector.load %arg5[%c0_9, %c0_10] : memref<16x128xf32, #tpu.memory_space<vmem>>, vector<16x128xf32>
    tpu.vector_store %arg5[%c0_9, %c0_10], %13 {strides = array<i32>} : memref<16x128xf32, #tpu.memory_space<vmem>>, vector<16x128xf32>,
    return
  }
  func.func @transform_0(%arg0: i32) -> (i32, i32) {
    %c0_i32 = arith.constant 0 : i32
    %c0_i32_0 = arith.constant 0 : i32
    return %arg0, %c0_i32 : i32, i32
  }
  func.func @transform_1(%arg0: i32) -> (i32, i32) {
    %c0_i32 = arith.constant 0 : i32
    %c0_i32_0 = arith.constant 0 : i32
    %c0_i32_1 = arith.constant 0 : i32
    return %c0_i32, %c0_i32_0 : i32, i32
  }
  func.func @transform_2(%arg0: i32) -> (i32, i32) {
    %c0_i32 = arith.constant 0 : i32
    %c0_i32_0 = arith.constant 0 : i32
    %c0_i32_1 = arith.constant 0 : i32
    return %c0_i32, %c0_i32_0 : i32, i32
  }
  func.func @transform_3(%arg0: i32) -> (i32, i32) {
    %c0_i32 = arith.constant 0 : i32
    %c0_i32_0 = arith.constant 0 : i32
    %c0_i32_1 = arith.constant 0 : i32
    return %c0_i32, %c0_i32_0 : i32, i32
  }
  func.func @transform_4(%arg0: i32) -> (i32, i32) {
    %c0_i32 = arith.constant 0 : i32
    %c0_i32_0 = arith.constant 0 : i32
    return %arg0, %c0_i32 : i32, i32
  }
}

module attributes {stable_mosaic.version = 11 : i64} {
  func.func @_fused_matmul_kernel(%arg0: i32, %arg1: memref<256x288xbf16, #tpu.memory_space<vmem>>, %arg2: memref<288x128xbf16, #tpu.memory_space<vmem>>, %arg3: memref<1x128xf32, #tpu.memory_space<vmem>>, %arg4: memref<1x128xf32, #tpu.memory_space<vmem>>, %arg5: memref<256x128xf32, #tpu.memory_space<vmem>>) attributes {dimension_semantics = [#tpu.dimension_semantics<parallel>], iteration_bounds = array<i64: 2>, scalar_prefetch = 0 : i64, scratch_operands = 0 : i64, tpu.core_type = #tpu.core_type<tc>, window_params = [{transform_indices = @transform_0, window_bounds = array<i64: 256, 288>}, {pipeline_mode = #tpu.pipeline_mode<synchronous>, transform_indices = @transform_1, window_bounds = array<i64: 288, 128>}, {pipeline_mode = #tpu.pipeline_mode<synchronous>, transform_indices = @transform_2, window_bounds = array<i64: 1, 128>}, {pipeline_mode = #tpu.pipeline_mode<synchronous>, transform_indices = @transform_3, window_bounds = array<i64: 1, 128>}, {transform_indices = @transform_4, window_bounds = array<i64: 256, 128>}]} {
    %c0 = arith.constant 0 : index
    %c0_0 = arith.constant 0 : index
    %0 = vector.load %arg1[%c0, %c0_0] : memref<256x288xbf16, #tpu.memory_space<vmem>>, vector<256x288xbf16>
    %c0_1 = arith.constant 0 : index
    %c0_2 = arith.constant 0 : index
    %1 = vector.load %arg2[%c0_1, %c0_2] : memref<288x128xbf16, #tpu.memory_space<vmem>>, vector<288x128xbf16>
    %cst = arith.constant dense<0.000000e+00> : vector<256x128xf32>
    %2 = tpu.matmul %0, %1, %cst {dimension_numbers = #tpu.dot_dimension_numbers<[1], [0], [0], [1], [0, 0, 1, 1], [], []>} : vector<256x288xbf16>, vector<288x128xbf16>, vector<256x128xf32> -> vector<256x128xf32>
    %c0_3 = arith.constant 0 : index
    %c0_4 = arith.constant 0 : index
    %3 = vector.load %arg3[%c0_3, %c0_4] : memref<1x128xf32, #tpu.memory_space<vmem>>, vector<1x128xf32>
    %4 = vector.broadcast %3 : vector<1x128xf32> to vector<256x128xf32>
    %5 = arith.mulf %2, %4 : vector<256x128xf32>
    %c0_5 = arith.constant 0 : index
    %c0_6 = arith.constant 0 : index
    %6 = vector.load %arg4[%c0_5, %c0_6] : memref<1x128xf32, #tpu.memory_space<vmem>>, vector<1x128xf32>
    %7 = vector.broadcast %6 : vector<1x128xf32> to vector<256x128xf32>
    %8 = arith.addf %5, %7 : vector<256x128xf32>
    %cst_7 = arith.constant 0.000000e+00 : f32
    %9 = vector.broadcast %cst_7 : f32 to vector<256x128xf32>
    %10 = arith.cmpf oge, %8, %9 : vector<256x128xf32>
    %cst_8 = arith.constant 2.000000e-01 : f32
    %11 = vector.broadcast %cst_8 : f32 to vector<256x128xf32>
    %12 = arith.mulf %11, %8 : vector<256x128xf32>
    %13 = arith.select %10, %8, %12 : vector<256x128xi1>, vector<256x128xf32>
    %c0_9 = arith.constant 0 : index
    %c0_10 = arith.constant 0 : index
    %14 = vector.load %arg5[%c0_9, %c0_10] : memref<256x128xf32, #tpu.memory_space<vmem>>, vector<256x128xf32>
    tpu.vector_store %arg5[%c0_9, %c0_10], %13 {strides = array<i32>} : memref<256x128xf32, #tpu.memory_space<vmem>>, vector<256x128xf32>,
    return
  }
  func.func @transform_0(%arg0: i32) -> (i32, i32) {
    %c0_i32 = arith.constant 0 : i32
    %c0_i32_0 = arith.constant 0 : i32
    return %arg0, %c0_i32 : i32, i32
  }
  func.func @transform_1(%arg0: i32) -> (i32, i32) {
    %c0_i32 = arith.constant 0 : i32
    %c0_i32_0 = arith.constant 0 : i32
    %c0_i32_1 = arith.constant 0 : i32
    return %c0_i32, %c0_i32_0 : i32, i32
  }
  func.func @transform_2(%arg0: i32) -> (i32, i32) {
    %c0_i32 = arith.constant 0 : i32
    %c0_i32_0 = arith.constant 0 : i32
    %c0_i32_1 = arith.constant 0 : i32
    return %c0_i32, %c0_i32_0 : i32, i32
  }
  func.func @transform_3(%arg0: i32) -> (i32, i32) {
    %c0_i32 = arith.constant 0 : i32
    %c0_i32_0 = arith.constant 0 : i32
    %c0_i32_1 = arith.constant 0 : i32
    return %c0_i32, %c0_i32_0 : i32, i32
  }
  func.func @transform_4(%arg0: i32) -> (i32, i32) {
    %c0_i32 = arith.constant 0 : i32
    %c0_i32_0 = arith.constant 0 : i32
    return %arg0, %c0_i32 : i32, i32
  }
}

module attributes {stable_mosaic.version = 11 : i64} {
  func.func @_fused_matmul_kernel(%arg0: i32, %arg1: memref<512x144xbf16, #tpu.memory_space<vmem>>, %arg2: memref<144x128xbf16, #tpu.memory_space<vmem>>, %arg3: memref<1x128xf32, #tpu.memory_space<vmem>>, %arg4: memref<1x128xf32, #tpu.memory_space<vmem>>, %arg5: memref<512x128xf32, #tpu.memory_space<vmem>>) attributes {dimension_semantics = [#tpu.dimension_semantics<parallel>], iteration_bounds = array<i64: 16>, scalar_prefetch = 0 : i64, scratch_operands = 0 : i64, tpu.core_type = #tpu.core_type<tc>, window_params = [{transform_indices = @transform_0, window_bounds = array<i64: 512, 144>}, {pipeline_mode = #tpu.pipeline_mode<synchronous>, transform_indices = @transform_1, window_bounds = array<i64: 144, 128>}, {pipeline_mode = #tpu.pipeline_mode<synchronous>, transform_indices = @transform_2, window_bounds = array<i64: 1, 128>}, {pipeline_mode = #tpu.pipeline_mode<synchronous>, transform_indices = @transform_3, window_bounds = array<i64: 1, 128>}, {transform_indices = @transform_4, window_bounds = array<i64: 512, 128>}]} {
    %c0 = arith.constant 0 : index
    %c0_0 = arith.constant 0 : index
    %0 = vector.load %arg1[%c0, %c0_0] : memref<512x144xbf16, #tpu.memory_space<vmem>>, vector<512x144xbf16>
    %c0_1 = arith.constant 0 : index
    %c0_2 = arith.constant 0 : index
    %1 = vector.load %arg2[%c0_1, %c0_2] : memref<144x128xbf16, #tpu.memory_space<vmem>>, vector<144x128xbf16>
    %cst = arith.constant dense<0.000000e+00> : vector<512x128xf32>
    %2 = tpu.matmul %0, %1, %cst {dimension_numbers = #tpu.dot_dimension_numbers<[1], [0], [0], [1], [0, 0, 1, 1], [], []>} : vector<512x144xbf16>, vector<144x128xbf16>, vector<512x128xf32> -> vector<512x128xf32>
    %c0_3 = arith.constant 0 : index
    %c0_4 = arith.constant 0 : index
    %3 = vector.load %arg3[%c0_3, %c0_4] : memref<1x128xf32, #tpu.memory_space<vmem>>, vector<1x128xf32>
    %4 = vector.broadcast %3 : vector<1x128xf32> to vector<512x128xf32>
    %5 = arith.mulf %2, %4 : vector<512x128xf32>
    %c0_5 = arith.constant 0 : index
    %c0_6 = arith.constant 0 : index
    %6 = vector.load %arg4[%c0_5, %c0_6] : memref<1x128xf32, #tpu.memory_space<vmem>>, vector<1x128xf32>
    %7 = vector.broadcast %6 : vector<1x128xf32> to vector<512x128xf32>
    %8 = arith.addf %5, %7 : vector<512x128xf32>
    %9 = math.tanh %8 : vector<512x128xf32>
    %c0_7 = arith.constant 0 : index
    %c0_8 = arith.constant 0 : index
    %10 = vector.load %arg5[%c0_7, %c0_8] : memref<512x128xf32, #tpu.memory_space<vmem>>, vector<512x128xf32>
    tpu.vector_store %arg5[%c0_7, %c0_8], %9 {strides = array<i32>} : memref<512x128xf32, #tpu.memory_space<vmem>>, vector<512x128xf32>,
    return
  }
  func.func @transform_0(%arg0: i32) -> (i32, i32) {
    %c0_i32 = arith.constant 0 : i32
    %c0_i32_0 = arith.constant 0 : i32
    return %arg0, %c0_i32 : i32, i32
  }
  func.func @transform_1(%arg0: i32) -> (i32, i32) {
    %c0_i32 = arith.constant 0 : i32
    %c0_i32_0 = arith.constant 0 : i32
    %c0_i32_1 = arith.constant 0 : i32
    return %c0_i32, %c0_i32_0 : i32, i32
  }
  func.func @transform_2(%arg0: i32) -> (i32, i32) {
    %c0_i32 = arith.constant 0 : i32
    %c0_i32_0 = arith.constant 0 : i32
    %c0_i32_1 = arith.constant 0 : i32
    return %c0_i32, %c0_i32_0 : i32, i32
  }
  func.func @transform_3(%arg0: i32) -> (i32, i32) {
    %c0_i32 = arith.constant 0 : i32
    %c0_i32_0 = arith.constant 0 : i32
    %c0_i32_1 = arith.constant 0 : i32
    return %c0_i32, %c0_i32_0 : i32, i32
  }
  func.func @transform_4(%arg0: i32) -> (i32, i32) {
    %c0_i32 = arith.constant 0 : i32
    %c0_i32_0 = arith.constant 0 : i32
    return %arg0, %c0_i32 : i32, i32
  }
}

</mosaic_0001>

<llo_original>
// kernel: tile.43
$region0: #{tile.43}
  #allocation0 [shape = 's32[1]{0}', space=sflag, size = 0x4, scoped, tag = 'scoped memory for tile.43']
  %s0 = inlined_call_operand.vmem [shape: f32[16], index: 0, kind: input, shape index: {}]
  %s1 = inlined_call_operand.vmem [shape: f32[4,16], index: 1, kind: output, shape index: {}]
  // Predicated region
  $region2: #{tile.43} parent=0 // pred_check
    _
  $region3: #{tile.43} parent=0 // pred_check_branch
    %3 = sbr.rel (0) target = $region5
  $region4: #{tile.43} parent=0 // pred_region
    _
  $region5: #{tile.43} parent=0 // pred_fallthru
    _
  %v4 = vld [vmem:[%s0] ss:$0 sm:$0xff]
  %5 = vst [vmem:[%s1] sm:$0xf] %v4

// kernel: tile.44
$region0: #{tile.44}
  %s0 = inlined_call_operand.vmem [shape: f32[4,16], index: 0, kind: input, shape index: {}]
  %s1 = inlined_call_operand.vmem [shape: f32[64], index: 1, kind: output, shape index: {}]
  $region1: #{tile.44} parent=0
    #allocation0 [shape = 'u8[4096]{0}', space=vmem, size = 0x1000, scoped, tag = 'scoped mem for output reshape']
    #allocation1 [shape = 'u8[4096]{0}', space=vmem, size = 0x1000, scoped, tag = 'scoped mem for input reshape']
    %s3 = sshll.u32 1, 4
    %s4 = ssub.s32 %s3, 1
    %v5 = vld [vmem:[%s0] sm:%s4]
    %6 = vst [vmem:[#allocation1] sm:%s4] %v5
    %v7 = vld [vmem:[#allocation1] sm:$0x1]
    %vm8 = vcmask 130048
    %9 = vst.msk [vmem:[#allocation0] sm:$0x1] %vm8, %v7
    %s10 = scalar_lea.vmem [#allocation1], 3
    %v11 = vld [vmem:[%s10] sm:$0x1]
    %12 = vrot.lane.b32.xlu0 %v11, 48
    %v13 = vpop.permute.xlu0 %12
    %vm14 = vcmask 523648
    %15 = vst.msk [vmem:[#allocation0] sm:$0x1] %vm14, %v13
    %s16 = scalar_lea.vmem [#allocation1], 2
    %v17 = vld [vmem:[%s16] sm:$0x1]
    %18 = vrot.lane.b32.xlu0 %v17, 32
    %v19 = vpop.permute.xlu0 %18
    %vm20 = vcmask 392448
    %21 = vst.msk [vmem:[#allocation0] sm:$0x1] %vm20, %v19
    %s22 = scalar_lea.vmem [#allocation1], 1
    %v23 = vld [vmem:[%s22] sm:$0x1]
    %24 = vrot.lane.b32.xlu0 %v23, 16
    %v25 = vpop.permute.xlu0 %24
    %vm26 = vcmask 261248
    %27 = vst.msk [vmem:[#allocation0] sm:$0x1] %vm26, %v25
    %s29 = sshll.u32 1, 1
    %s30 = ssub.s32 %s29, 1
    %v32 = vld [vmem:[#allocation0] sm:%s30]
    %s33 = sshll.u32 1, 1
    %s34 = ssub.s32 %s33, 1
    %35 = vst [vmem:[%s1] sm:%s34] %v32

// kernel: tile.32
$region0: #{tile.32}
  #allocation0 [shape = 's32[1]{0}', space=sflag, size = 0x4, scoped, tag = 'scoped memory for tile.32']
  %s0 = inlined_call_operand.vmem [shape: f32[32], index: 0, kind: input, shape index: {}]
  %s1 = inlined_call_operand.vmem [shape: f32[4,32], index: 1, kind: output, shape index: {}]
  // Predicated region
  $region2: #{tile.32} parent=0 // pred_check
    _
  $region3: #{tile.32} parent=0 // pred_check_branch
    %3 = sbr.rel (0) target = $region5
  $region4: #{tile.32} parent=0 // pred_region
    _
  $region5: #{tile.32} parent=0 // pred_fallthru
    _
  %v4 = vld [vmem:[%s0] ss:$0 sm:$0xff]
  %5 = vst [vmem:[%s1] sm:$0xf] %v4

// kernel: tile.34
$region0: #{tile.34}
  %s0 = inlined_call_operand.vmem [shape: f32[4,32], index: 0, kind: input, shape index: {}]
  %s1 = inlined_call_operand.vmem [shape: f32[1,128], index: 1, kind: output, shape index: {}]
  $region1: #{tile.34} parent=0
    #allocation0 [shape = 'u8[4096]{0}', space=vmem, size = 0x1000, scoped, tag = 'scoped mem for output reshape']
    #allocation1 [shape = 'u8[4096]{0}', space=vmem, size = 0x1000, scoped, tag = 'scoped mem for input reshape']
    %s3 = sshll.u32 1, 4
    %s4 = ssub.s32 %s3, 1
    %v5 = vld [vmem:[%s0] sm:%s4]
    %6 = vst [vmem:[#allocation1] sm:%s4] %v5
    %v7 = vld [vmem:[#allocation1] sm:$0x1]
    %vm8 = vcmask 261120
    %9 = vst.msk [vmem:[#allocation0] sm:$0x1] %vm8, %v7
    %s10 = scalar_lea.vmem [#allocation1], 3
    %v11 = vld [vmem:[%s10] sm:$0x1]
    %12 = vrot.lane.b32.xlu0 %v11, 96
    %v13 = vpop.permute.xlu0 %12
    %vm14 = vcmask 1048320
    %15 = vst.msk [vmem:[#allocation0] sm:$0x1] %vm14, %v13
    %s16 = scalar_lea.vmem [#allocation1], 2
    %v17 = vld [vmem:[%s16] sm:$0x1]
    %18 = vrot.lane.b32.xlu0 %v17, 64
    %v19 = vpop.permute.xlu0 %18
    %vm20 = vcmask 785920
    %21 = vst.msk [vmem:[#allocation0] sm:$0x1] %vm20, %v19
    %s22 = scalar_lea.vmem [#allocation1], 1
    %v23 = vld [vmem:[%s22] sm:$0x1]
    %24 = vrot.lane.b32.xlu0 %v23, 32
    %v25 = vpop.permute.xlu0 %24
    %vm26 = vcmask 523520
    %27 = vst.msk [vmem:[#allocation0] sm:$0x1] %vm26, %v25
    %s29 = sshll.u32 1, 1
    %s30 = ssub.s32 %s29, 1
    %v32 = vld [vmem:[#allocation0] sm:%s30]
    %s33 = sshll.u32 1, 1
    %s34 = ssub.s32 %s33, 1
    %35 = vst [vmem:[%s1] sm:%s34] %v32

// kernel: tile.48
$region0: #{tile.48}
  #allocation2 [shape = 's32[1]{0}', space=sflag, size = 0x4, scoped, tag = 'scoped memory for tile.48']
  %s0 = inlined_call_operand.hbm [shape: f32[3], index: 0, kind: input, shape index: {}]
  %s1 = inlined_call_operand.vmem [shape: f32[4,3], index: 1, kind: output, shape index: {}]
  $region1: #{tile.48} parent=0
    #allocation0 [shape = 'u8[512]{0}', space=vmem, size = 0x400, scoped, tag = 'operand span for operand 0']
    #allocation1 [shape = 's32[1]{0}', space=sflag, size = 0x4, scoped, tag = 'scoped memory for tile.48']
    %2 = vsyncpa [#allocation1], 0
    // Predicated region
    $region2: #{tile.48} parent=1 // pred_check
      _
    $region3: #{tile.48} parent=1 // pred_check_branch
      %4 = sbr.rel (0) target = $region5
    $region4: #{tile.48} parent=1 // pred_region
      %s6 = ssub.s32 16, 16
      %7 = vsyncadd [#allocation1], %s6
      %s9 = sshll.u32 [#allocation0], 4
      %s10 = int_to_ptr.vmem [resolvable:$true] %s9
      %12 = dma.hbm_to_vmem [thread:$0]  %s0, 16, %s10, [#allocation1]
    $region5: #{tile.48} parent=1 // pred_fallthru
      _
    // Predicated region
    $region6: #{tile.48} parent=1 // pred_check
      _
    $region7: #{tile.48} parent=1 // pred_check_branch
      %14 = sbr.rel (0) target = $region9
    $region8: #{tile.48} parent=1 // pred_region
      %15 = dma.done [#allocation1], 16
    $region9: #{tile.48} parent=1 // pred_fallthru
      _
    %v16 = vld [vmem:[#allocation0] ss:$0 sm:$0xff]
    %17 = vst [vmem:[%s1] sm:$0xf] %v16
    %18 = vsyncpa [#allocation1], 1

// kernel: tile.49
$region0: #{tile.49}
  %s0 = inlined_call_operand.vmem [shape: f32[4,3], index: 0, kind: input, shape index: {}]
  %s1 = inlined_call_operand.vmem [shape: f32[12], index: 1, kind: output, shape index: {}]
  $region1: #{tile.49} parent=0
    #allocation0 [shape = 'u8[4096]{0}', space=vmem, size = 0x1000, scoped, tag = 'scoped mem for output reshape']
    #allocation1 [shape = 'u8[4096]{0}', space=vmem, size = 0x1000, scoped, tag = 'scoped mem for input reshape']
    %s3 = sshll.u32 1, 4
    %s4 = ssub.s32 %s3, 1
    %v5 = vld [vmem:[%s0] sm:%s4]
    %6 = vst [vmem:[#allocation1] sm:%s4] %v5
    %v7 = vld [vmem:[#allocation1] sm:$0x1]
    %vm8 = vcmask 23552
    %9 = vst.msk [vmem:[#allocation0] sm:$0x1] %vm8, %v7
    %s10 = scalar_lea.vmem [#allocation1], 3
    %v11 = vld [vmem:[%s10] sm:$0x1]
    %12 = vrot.lane.b32.xlu0 %v11, 9
    %v13 = vpop.permute.xlu0 %12
    %vm14 = vcmask 97352
    %15 = vst.msk [vmem:[#allocation0] sm:$0x1] %vm14, %v13
    %s16 = scalar_lea.vmem [#allocation1], 2
    %v17 = vld [vmem:[%s16] sm:$0x1]
    %18 = vrot.lane.b32.xlu0 %v17, 6
    %v19 = vpop.permute.xlu0 %18
    %vm20 = vcmask 72752
    %21 = vst.msk [vmem:[#allocation0] sm:$0x1] %vm20, %v19
    %s22 = scalar_lea.vmem [#allocation1], 1
    %v23 = vld [vmem:[%s22] sm:$0x1]
    %24 = vrot.lane.b32.xlu0 %v23, 3
    %v25 = vpop.permute.xlu0 %24
    %vm26 = vcmask 48152
    %27 = vst.msk [vmem:[#allocation0] sm:$0x1] %vm26, %v25
    %s29 = sshll.u32 1, 1
    %s30 = ssub.s32 %s29, 1
    %v32 = vld [vmem:[#allocation0] sm:%s30]
    %s33 = sshll.u32 1, 1
    %s34 = ssub.s32 %s33, 1
    %35 = vst [vmem:[%s1] sm:%s34] %v32

// kernel: vae_forward.8
$region0: #{vae_forward.8}
  #allocation0 [shape = 'u32[]', space=smem, size = 0x4, offset = 0x4, fixed_abs, tag = 'smem constant byte address 0x4 - core index']
  #allocation1 [shape = 'u32[144,128]{1,0:T(1,128)}', space=vmem, size = 0x12000, scoped, tag = 'internal scratch']
  %s0 = inlined_call_operand.vmem [shape: bf16[8192,48], index: 0, kind: input, shape index: {}]
  %s1 = inlined_call_operand.vmem [shape: bf16[48,128], index: 1, kind: input, shape index: {}]
  %s2 = inlined_call_operand.vmem [shape: f32[1,128], index: 2, kind: input, shape index: {}]
  %s3 = inlined_call_operand.vmem [shape: f32[1,128], index: 3, kind: input, shape index: {}]
  %s4 = inlined_call_operand.vmem [shape: f32[8192,128], index: 4, kind: output, shape index: {}]
  %s5 = sld [smem:[#allocation0]]
  $region49: #{vae_forward.8} parent=0
    _
  %s7 = ssub.s32 1, %s5
  %s8 = scalar_select 0, %s7, %s5
  loop: start=0, step=1, limit=18
  $region2: #{vae_forward.8} parent=0 // loop_pre_header
    _
  $region3: #{vae_forward.8} parent=0 // loop_header
    %s10 = sphi 0, %s14
    %p11 = scmp.ge.s32.totalorder %s10, 18
    %s20 = sphi 0, %s22
    %s23 = sphi 0, %s20
    %s24 = sphi 0, %s23
    %s40 = sphi 0, %s24
    %s44 = sphi 0, %s44
    %s46 = sphi 0, %s44
    %s47 = sphi 0, %s46
    %s61 = sphi 0, %s47
    %s65 = sphi 0, %s65
    %s67 = sphi 0, %s65
    %s68 = sphi 0, %s67
    %s82 = sphi 0, %s68
    %s86 = sphi 0, %s86
    %s88 = sphi 0, %s86
    %s89 = sphi 0, %s88
    %s103 = sphi 0, %s89
    %s109 = sphi 0, %s111
    %s112 = sphi 0, %s109
    %s113 = sphi 0, %s112
    %s129 = sphi 0, %s113
  $region4: #{vae_forward.8} parent=0 // loop_header_branch
    %13 = sbr.rel (%p11) target = $region8
  $region5: #{vae_forward.8} parent=0 // loop_body
    %s15 = ssub.s32 %s10, 1
    %s16 = ssub.s32 %s10, 2
    %s17 = sadd.s32 %s10, 1
    %s18 = ssub.s32 %s10, %s17
    %p19 = scmp.eq.s32.totalorder %s18, 0
    %s21 = sadd.s32 %s20, 1
    %s22 = scalar_select %p19, %s20, %s21
    %p25 = pneg %p19
    %p26 = scmp.eq.s32.totalorder %s10, 15
    %p27 = por %p25, %p26
    %p28 = scmp.ne.s32.totalorder %s20, %s23
    %p29 = scmp.eq.s32.totalorder %s10, 0
    %p30 = por %p28, %p29
    %p31 = scmp.ne.s32.totalorder %s20, %s23
    %p32 = scmp.eq.s32.totalorder %s15, 15
    %p33 = por %p31, %p32
    %p34 = scmp.ne.s32.totalorder %s23, %s24
    %p35 = scmp.eq.s32.totalorder %s15, 0
    %p36 = por %p34, %p35
    %p37 = scmp.ne.s32.totalorder %s23, %s24
    %p38 = scmp.eq.s32.totalorder %s16, 15
    %p39 = por %p37, %p38
    %p41 = scmp.ne.s32.totalorder %s24, %s40
    %p42 = scmp.eq.s32.totalorder %s16, 0
    %p43 = por %p41, %p42
    %s45 = sadd.s32 %s44, 1
    %p48 = scmp.eq.s32.totalorder %s10, 15
    %p49 = scmp.ne.s32.totalorder %s44, %s46
    %p50 = scmp.eq.s32.totalorder %s10, 0
    %p51 = por %p49, %p50
    %p52 = scmp.ne.s32.totalorder %s44, %s46
    %p53 = scmp.eq.s32.totalorder %s15, 15
    %p54 = por %p52, %p53
    %p55 = scmp.ne.s32.totalorder %s46, %s47
    %p56 = scmp.eq.s32.totalorder %s15, 0
    %p57 = por %p55, %p56
    %p58 = scmp.ne.s32.totalorder %s46, %s47
    %p59 = scmp.eq.s32.totalorder %s16, 15
    %p60 = por %p58, %p59
    %p62 = scmp.ne.s32.totalorder %s47, %s61
    %p63 = scmp.eq.s32.totalorder %s16, 0
    %p64 = por %p62, %p63
    %s66 = sadd.s32 %s65, 1
    %p69 = scmp.eq.s32.totalorder %s10, 15
    %p70 = scmp.ne.s32.totalorder %s65, %s67
    %p71 = scmp.eq.s32.totalorder %s10, 0
    %p72 = por %p70, %p71
    %p73 = scmp.ne.s32.totalorder %s65, %s67
    %p74 = scmp.eq.s32.totalorder %s15, 15
    %p75 = por %p73, %p74
    %p76 = scmp.ne.s32.totalorder %s67, %s68
    %p77 = scmp.eq.s32.totalorder %s15, 0
    %p78 = por %p76, %p77
    %p79 = scmp.ne.s32.totalorder %s67, %s68
    %p80 = scmp.eq.s32.totalorder %s16, 15
    %p81 = por %p79, %p80
    %p83 = scmp.ne.s32.totalorder %s68, %s82
    %p84 = scmp.eq.s32.totalorder %s16, 0
    %p85 = por %p83, %p84
    %s87 = sadd.s32 %s86, 1
    %p90 = scmp.eq.s32.totalorder %s10, 15
    %p91 = scmp.ne.s32.totalorder %s86, %s88
    %p92 = scmp.eq.s32.totalorder %s10, 0
    %p93 = por %p91, %p92
    %p94 = scmp.ne.s32.totalorder %s86, %s88
    %p95 = scmp.eq.s32.totalorder %s15, 15
    %p96 = por %p94, %p95
    %p97 = scmp.ne.s32.totalorder %s88, %s89
    %p98 = scmp.eq.s32.totalorder %s15, 0
    %p99 = por %p97, %p98
    %p100 = scmp.ne.s32.totalorder %s88, %s89
    %p101 = scmp.eq.s32.totalorder %s16, 15
    %p102 = por %p100, %p101
    %p104 = scmp.ne.s32.totalorder %s89, %s103
    %p105 = scmp.eq.s32.totalorder %s16, 0
    %p106 = por %p104, %p105
    %s107 = ssub.s32 %s10, %s17
    %p108 = scmp.eq.s32.totalorder %s107, 0
    %s110 = sadd.s32 %s109, 1
    %s111 = scalar_select %p108, %s109, %s110
    %p114 = pneg %p108
    %p115 = scmp.eq.s32.totalorder %s10, 15
    %p116 = por %p114, %p115
    %p117 = scmp.ne.s32.totalorder %s109, %s112
    %p118 = scmp.eq.s32.totalorder %s10, 0
    %p119 = por %p117, %p118
    %p120 = scmp.ne.s32.totalorder %s109, %s112
    %p121 = scmp.eq.s32.totalorder %s15, 15
    %p122 = por %p120, %p121
    %p123 = scmp.ne.s32.totalorder %s112, %s113
    %p124 = scmp.eq.s32.totalorder %s15, 0
    %p125 = por %p123, %p124
    %p126 = scmp.ne.s32.totalorder %s112, %s113
    %p127 = scmp.eq.s32.totalorder %s16, 15
    %p128 = por %p126, %p127
    %p130 = scmp.ne.s32.totalorder %s113, %s129
    %p131 = scmp.eq.s32.totalorder %s16, 0
    %p132 = por %p130, %p131
    %p133 = scmp.le.s32.totalorder 1, %s10
    %p134 = scmp.lt.s32.totalorder %s10, 17
    %p135 = pnand %p133, %p134
    %p136 = pneg %p135
    // Predicated region
    $region9: #{vae_forward.8} parent=5 // pred_check
      _
    $region10: #{vae_forward.8} parent=5 // pred_check_branch
      %138 = sbr.rel (%p135) target = $region12
    $region11: #{vae_forward.8} parent=5 // pred_region
      %s139 = ssub.s32 %s10, 1
      // Predicated region
      $region13: #{vae_forward.8} parent=11 // pred_check
        %p140 = pneg %p57
      $region14: #{vae_forward.8} parent=11 // pred_check_branch
        %142 = sbr.rel (%p140) target = $region16
      $region15: #{vae_forward.8} parent=11 // pred_region
        _
      $region16: #{vae_forward.8} parent=11 // pred_fallthru
        _
      // Predicated region
      $region17: #{vae_forward.8} parent=11 // pred_check
        %p143 = pneg %p78
      $region18: #{vae_forward.8} parent=11 // pred_check_branch
        %145 = sbr.rel (%p143) target = $region20
      $region19: #{vae_forward.8} parent=11 // pred_region
        _
      $region20: #{vae_forward.8} parent=11 // pred_fallthru
        _
      // Predicated region
      $region21: #{vae_forward.8} parent=11 // pred_check
        %p146 = pneg %p99
      $region22: #{vae_forward.8} parent=11 // pred_check_branch
        %148 = sbr.rel (%p146) target = $region24
      $region23: #{vae_forward.8} parent=11 // pred_region
        _
      $region24: #{vae_forward.8} parent=11 // pred_fallthru
        _
    $region12: #{vae_forward.8} parent=5 // pred_fallthru
      _
    %p149 = scmp.lt.s32.totalorder %s10, 16
    // Predicated region
    $region25: #{vae_forward.8} parent=5 // pred_check
      %p150 = pneg %p149
    $region26: #{vae_forward.8} parent=5 // pred_check_branch
      %152 = sbr.rel (%p150) target = $region28
    $region27: #{vae_forward.8} parent=5 // pred_region
      // Predicated region
      $region29: #{vae_forward.8} parent=27 // pred_check
        %p153 = pneg %p30
      $region30: #{vae_forward.8} parent=27 // pred_check_branch
        %155 = sbr.rel (%p153) target = $region32
      $region31: #{vae_forward.8} parent=27 // pred_region
        %s156 = smul.u32 64, %s10
        %p157 = scmp.lt.s32.totalorder %s156, 1023
        %s158 = scalar_select %p157, %s156, 1023
        %s159 = smul.addr %s158, 4
        %s160 = scalar_lea.vmem %s0, %s159
        %s161 = smul.u32 64, %s10
      $region32: #{vae_forward.8} parent=27 // pred_fallthru
        _
    $region28: #{vae_forward.8} parent=5 // pred_fallthru
      _
    %p162 = scmp.le.s32.totalorder 1, %s10
    %p163 = scmp.lt.s32.totalorder %s10, 17
    %p164 = pnand %p162, %p163
    %p165 = pneg %p164
    // Predicated region
    $region33: #{vae_forward.8} parent=5 // pred_check
      _
    $region34: #{vae_forward.8} parent=5 // pred_check_branch
      %167 = sbr.rel (%p164) target = $region36
    $region35: #{vae_forward.8} parent=5 // pred_region
      %s168 = ssub.s32 %s10, 1
      %s169 = smul.u32 64, %s15
      %p170 = scmp.lt.s32.totalorder %s169, 1023
      %s171 = scalar_select %p170, %s169, 1023
      %s172 = smul.addr %s171, 4
      %s173 = scalar_lea.vmem %s0, %s172
      %p174 = pneg %p36
      %p175 = pneg %p33
      %p176 = pneg %p57
      %p177 = pneg %p54
      %p178 = pneg %p78
      %p179 = pneg %p75
      %p180 = pneg %p99
      %p181 = pneg %p96
      %p182 = pneg %p125
      %p183 = pneg %p122
      %s184 = smul.u32 64, %s15
      %p185 = scmp.lt.s32.totalorder %s184, 1023
      %s186 = scalar_select %p185, %s184, 1023
      %s187 = smul.addr %s186, 8
      %s188 = scalar_lea.vmem %s4, %s187
      %s189 = smul.u32 64, %s15
      %p190 = scmp.lt.s32.totalorder %s189, 1023
      %s191 = scalar_select %p190, %s189, 1023
      %s192 = smul.addr %s191, 4
      %s193 = scalar_lea.vmem %s0, %s192
      %s194 = smul.u32 64, %s15
      %s195 = smul.u32 64, %s15
      %p196 = scmp.lt.s32.totalorder %s195, 1023
      %s197 = scalar_select %p196, %s195, 1023
      %s198 = smul.addr %s197, 8
      %s199 = scalar_lea.vmem %s4, %s198
      %s200 = smul.u32 64, %s15
      %v202 = vld [vmem:[%s193] sm:$0xf]
      %v203 = vld [vmem:[%s193 + $0x4] sm:$0xf]
      %v204 = vld [vmem:[%s193 + $0x8] sm:$0xf]
      %v205 = vld [vmem:[%s193 + $0xc] sm:$0xf]
      %v206 = vld [vmem:[%s193 + $0x10] sm:$0xf]
      %v207 = vld [vmem:[%s193 + $0x14] sm:$0xf]
      %v208 = vld [vmem:[%s193 + $0x18] sm:$0xf]
      %v209 = vld [vmem:[%s193 + $0x1c] sm:$0xf]
      %v210 = vld [vmem:[%s193 + $0x20] sm:$0xf]
      %v211 = vld [vmem:[%s193 + $0x24] sm:$0xf]
      %v212 = vld [vmem:[%s193 + $0x28] sm:$0xf]
      %v213 = vld [vmem:[%s193 + $0x2c] sm:$0xf]
      %v214 = vld [vmem:[%s193 + $0x30] sm:$0xf]
      %v215 = vld [vmem:[%s193 + $0x34] sm:$0xf]
      %v216 = vld [vmem:[%s193 + $0x38] sm:$0xf]
      %v217 = vld [vmem:[%s193 + $0x3c] sm:$0xf]
      %v218 = vld [vmem:[%s193 + $0x40] sm:$0xf]
      %v219 = vld [vmem:[%s193 + $0x44] sm:$0xf]
      %v220 = vld [vmem:[%s193 + $0x48] sm:$0xf]
      %v221 = vld [vmem:[%s193 + $0x4c] sm:$0xf]
      %v222 = vld [vmem:[%s193 + $0x50] sm:$0xf]
      %v223 = vld [vmem:[%s193 + $0x54] sm:$0xf]
      %v224 = vld [vmem:[%s193 + $0x58] sm:$0xf]
      %v225 = vld [vmem:[%s193 + $0x5c] sm:$0xf]
      %v226 = vld [vmem:[%s193 + $0x60] sm:$0xf]
      %v227 = vld [vmem:[%s193 + $0x64] sm:$0xf]
      %v228 = vld [vmem:[%s193 + $0x68] sm:$0xf]
      %v229 = vld [vmem:[%s193 + $0x6c] sm:$0xf]
      %v230 = vld [vmem:[%s193 + $0x70] sm:$0xf]
      %v231 = vld [vmem:[%s193 + $0x74] sm:$0xf]
      %v232 = vld [vmem:[%s193 + $0x78] sm:$0xf]
      %v233 = vld [vmem:[%s193 + $0x7c] sm:$0xf]
      %v234 = vld [vmem:[%s193 + $0x80] sm:$0xf]
      %v235 = vld [vmem:[%s193 + $0x84] sm:$0xf]
      %v236 = vld [vmem:[%s193 + $0x88] sm:$0xf]
      %v237 = vld [vmem:[%s193 + $0x8c] sm:$0xf]
      %v238 = vld [vmem:[%s193 + $0x90] sm:$0xf]
      %v239 = vld [vmem:[%s193 + $0x94] sm:$0xf]
      %v240 = vld [vmem:[%s193 + $0x98] sm:$0xf]
      %v241 = vld [vmem:[%s193 + $0x9c] sm:$0xf]
      %v242 = vld [vmem:[%s193 + $0xa0] sm:$0xf]
      %v243 = vld [vmem:[%s193 + $0xa4] sm:$0xf]
      %v244 = vld [vmem:[%s193 + $0xa8] sm:$0xf]
      %v245 = vld [vmem:[%s193 + $0xac] sm:$0xf]
      %v246 = vld [vmem:[%s193 + $0xb0] sm:$0xf]
      %v247 = vld [vmem:[%s193 + $0xb4] sm:$0xf]
      %v248 = vld [vmem:[%s193 + $0xb8] sm:$0xf]
      %v249 = vld [vmem:[%s193 + $0xbc] sm:$0xf]
      %v250 = vld [vmem:[%s193 + $0xc0] sm:$0xf]
      %v251 = vld [vmem:[%s193 + $0xc4] sm:$0xf]
      %v252 = vld [vmem:[%s193 + $0xc8] sm:$0xf]
      %v253 = vld [vmem:[%s193 + $0xcc] sm:$0xf]
      %v254 = vld [vmem:[%s193 + $0xd0] sm:$0xf]
      %v255 = vld [vmem:[%s193 + $0xd4] sm:$0xf]
      %v256 = vld [vmem:[%s193 + $0xd8] sm:$0xf]
      %v257 = vld [vmem:[%s193 + $0xdc] sm:$0xf]
      %v258 = vld [vmem:[%s193 + $0xe0] sm:$0xf]
      %v259 = vld [vmem:[%s193 + $0xe4] sm:$0xf]
      %v260 = vld [vmem:[%s193 + $0xe8] sm:$0xf]
      %v261 = vld [vmem:[%s193 + $0xec] sm:$0xf]
      %v262 = vld [vmem:[%s193 + $0xf0] sm:$0xf]
      %v263 = vld [vmem:[%s193 + $0xf4] sm:$0xf]
      %v264 = vld [vmem:[%s193 + $0xf8] sm:$0xf]
      %v265 = vld [vmem:[%s193 + $0xfc] sm:$0xf]
      %v266 = vld [vmem:[%s1] sm:$0xf]
      %v267 = vld [vmem:[%s1 + $0x4] sm:$0xf]
      %v268 = vld [vmem:[%s1 + $0x8] sm:$0xf]
      %v269 = vld [vmem:[%s1 + $0xc] sm:$0xf]
      %v270 = vld [vmem:[%s1 + $0x10] sm:$0xf]
      %v271 = vld [vmem:[%s1 + $0x14] sm:$0xf]
      %v336 = vunpack.c.l.b16 %v202
      %v337 = vunpack.c.l.b16 %v203
      %v338 = vunpack.c.l.b16 %v204
      %v339 = vunpack.c.l.b16 %v205
      %v340 = vunpack.c.l.b16 %v206
      %v341 = vunpack.c.l.b16 %v207
      %v342 = vunpack.c.l.b16 %v208
      %v343 = vunpack.c.l.b16 %v209
      %v344 = vunpack.c.l.b16 %v210
      %v345 = vunpack.c.l.b16 %v211
      %v346 = vunpack.c.l.b16 %v212
      %v347 = vunpack.c.l.b16 %v213
      %v348 = vunpack.c.l.b16 %v214
      %v349 = vunpack.c.l.b16 %v215
      %v350 = vunpack.c.l.b16 %v216
      %v351 = vunpack.c.l.b16 %v217
      %v352 = vunpack.c.l.b16 %v218
      %v353 = vunpack.c.l.b16 %v219
      %v354 = vunpack.c.l.b16 %v220
      %v355 = vunpack.c.l.b16 %v221
      %v356 = vunpack.c.l.b16 %v222
      %v357 = vunpack.c.l.b16 %v223
      %v358 = vunpack.c.l.b16 %v224
      %v359 = vunpack.c.l.b16 %v225
      %v360 = vunpack.c.l.b16 %v226
      %v361 = vunpack.c.l.b16 %v227
      %v362 = vunpack.c.l.b16 %v228
      %v363 = vunpack.c.l.b16 %v229
      %v364 = vunpack.c.l.b16 %v230
      %v365 = vunpack.c.l.b16 %v231
      %v366 = vunpack.c.l.b16 %v232
      %v367 = vunpack.c.l.b16 %v233
      %v368 = vunpack.c.l.b16 %v234
      %v369 = vunpack.c.l.b16 %v235
      %v370 = vunpack.c.l.b16 %v236
      %v371 = vunpack.c.l.b16 %v237
      %v372 = vunpack.c.l.b16 %v238
      %v373 = vunpack.c.l.b16 %v239
      %v374 = vunpack.c.l.b16 %v240
      %v375 = vunpack.c.l.b16 %v241
      %v376 = vunpack.c.l.b16 %v242
      %v377 = vunpack.c.l.b16 %v243
      %v378 = vunpack.c.l.b16 %v244
      %v379 = vunpack.c.l.b16 %v245
      %v380 = vunpack.c.l.b16 %v246
      %v381 = vunpack.c.l.b16 %v247
      %v382 = vunpack.c.l.b16 %v248
      %v383 = vunpack.c.l.b16 %v249
      %v384 = vunpack.c.l.b16 %v250
      %v385 = vunpack.c.l.b16 %v251
      %v386 = vunpack.c.l.b16 %v252
      %v387 = vunpack.c.l.b16 %v253
      %v388 = vunpack.c.l.b16 %v254
      %v389 = vunpack.c.l.b16 %v255
      %v390 = vunpack.c.l.b16 %v256
      %v391 = vunpack.c.l.b16 %v257
      %v392 = vunpack.c.l.b16 %v258
      %v393 = vunpack.c.l.b16 %v259
      %v394 = vunpack.c.l.b16 %v260
      %v395 = vunpack.c.l.b16 %v261
      %v396 = vunpack.c.l.b16 %v262
      %v397 = vunpack.c.l.b16 %v263
      %v398 = vunpack.c.l.b16 %v264
      %v399 = vunpack.c.l.b16 %v265
      %v400 = vpack.c.b16 %v337, %v336
      %v401 = vpack.c.b16 %v339, %v338
      %v402 = vpack.c.b16 %v341, %v340
      %v403 = vpack.c.b16 %v343, %v342
      %v404 = vpack.c.b16 %v345, %v344
      %v405 = vpack.c.b16 %v347, %v346
      %v406 = vpack.c.b16 %v349, %v348
      %v407 = vpack.c.b16 %v351, %v350
      %v408 = vpack.c.b16 %v353, %v352
      %v409 = vpack.c.b16 %v355, %v354
      %v410 = vpack.c.b16 %v357, %v356
      %v411 = vpack.c.b16 %v359, %v358
      %v412 = vpack.c.b16 %v361, %v360
      %v413 = vpack.c.b16 %v363, %v362
      %v414 = vpack.c.b16 %v365, %v364
      %v415 = vpack.c.b16 %v367, %v366
      %v416 = vpack.c.b16 %v369, %v368
      %v417 = vpack.c.b16 %v371, %v370
      %v418 = vpack.c.b16 %v373, %v372
      %v419 = vpack.c.b16 %v375, %v374
      %v420 = vpack.c.b16 %v377, %v376
      %v421 = vpack.c.b16 %v379, %v378
      %v422 = vpack.c.b16 %v381, %v380
      %v423 = vpack.c.b16 %v383, %v382
      %v424 = vpack.c.b16 %v385, %v384
      %v425 = vpack.c.b16 %v387, %v386
      %v426 = vpack.c.b16 %v389, %v388
      %v427 = vpack.c.b16 %v391, %v390
      %v428 = vpack.c.b16 %v393, %v392
      %v429 = vpack.c.b16 %v395, %v394
      %v430 = vpack.c.b16 %v397, %v396
      %v431 = vpack.c.b16 %v399, %v398
      %v438 = vunpack.c.l.b16 %v266
      %v439 = vunpack.c.l.b16 %v267
      %v440 = vunpack.c.l.b16 %v268
      %v441 = vunpack.c.l.b16 %v269
      %v442 = vunpack.c.l.b16 %v270
      %v443 = vunpack.c.l.b16 %v271
      %v444 = vpack.c.b16 %v439, %v438
      %v445 = vpack.c.b16 %v441, %v440
      %v446 = vpack.c.b16 %v443, %v442
      %vm450 = vcmask 392192
      %v452 = vsel %vm450, %v400, 0
      %v455 = vsel %vm450, %v401, 0
      %v458 = vsel %vm450, %v402, 0
      %v461 = vsel %vm450, %v403, 0
      %v464 = vsel %vm450, %v404, 0
      %v467 = vsel %vm450, %v405, 0
      %v470 = vsel %vm450, %v406, 0
      %v473 = vsel %vm450, %v407, 0
      %v476 = vsel %vm450, %v408, 0
      %v479 = vsel %vm450, %v409, 0
      %v482 = vsel %vm450, %v410, 0
      %v485 = vsel %vm450, %v411, 0
      %v488 = vsel %vm450, %v412, 0
      %v491 = vsel %vm450, %v413, 0
      %v494 = vsel %vm450, %v414, 0
      %v497 = vsel %vm450, %v415, 0
      %v500 = vsel %vm450, %v416, 0
      %v503 = vsel %vm450, %v417, 0
      %v506 = vsel %vm450, %v418, 0
      %v509 = vsel %vm450, %v419, 0
      %v512 = vsel %vm450, %v420, 0
      %v515 = vsel %vm450, %v421, 0
      %v518 = vsel %vm450, %v422, 0
      %v521 = vsel %vm450, %v423, 0
      %v524 = vsel %vm450, %v424, 0
      %v527 = vsel %vm450, %v425, 0
      %v530 = vsel %vm450, %v426, 0
      %v533 = vsel %vm450, %v427, 0
      %v536 = vsel %vm450, %v428, 0
      %v539 = vsel %vm450, %v429, 0
      %v542 = vsel %vm450, %v430, 0
      %v545 = vsel %vm450, %v431, 0
      %547 = vmatprep.subr.bf16.mxu0 0
      %548 = vmatpush1.bf16.msra.mxu0 0
      %549 = vmatprep.subr.bf16.mxu0 0
      %550 = vmatpush1.bf16.msra.mxu0 0
      %551 = vmatprep.subr.bf16.mxu0 0
      %552 = vmatpush1.bf16.msra.mxu0 0
      %553 = vmatprep.subr.bf16.mxu0 0
      %554 = vmatpush1.bf16.msra.mxu0 0
      %555 = vmatprep.subr.bf16.mxu0 0
      %556 = vmatpush1.bf16.msra.mxu0 0
      %557 = vmatprep.subr.bf16.mxu0 0
      %558 = vmatpush1.bf16.msra.mxu0 %v446
      %559 = vmatprep.subr.bf16.mxu0 0
      %560 = vmatpush1.bf16.msra.mxu0 %v445
      %561 = vmatprep.subr.bf16.mxu0 0
      %562 = vmatpush1.bf16.msra.mxu0 %v444
      %563 = vmatprep.subr.bf16.mxu0 0
      %564 = vmatpush2.bf16.msra.mxu0 0
      %565 = vmatprep.subr.bf16.mxu0 0
      %566 = vmatpush2.bf16.msra.mxu0 0
      %567 = vmatprep.subr.bf16.mxu0 0
      %568 = vmatpush2.bf16.msra.mxu0 0
      %569 = vmatprep.subr.bf16.mxu0 0
      %570 = vmatpush2.bf16.msra.mxu0 0
      %571 = vmatprep.subr.bf16.mxu0 0
      %572 = vmatpush2.bf16.msra.mxu0 0
      %573 = vmatprep.subr.bf16.mxu0 0
      %574 = vmatpush2.bf16.msra.mxu0 0
      %575 = vmatprep.subr.bf16.mxu0 0
      %576 = vmatpush2.bf16.msra.mxu0 0
      %577 = vmatprep.subr.bf16.mxu0 0
      %578 = vmatpush2.bf16.msra.mxu0 0
      %579 = vmatprep.mubr.bf16.mxu0 0
      %580 = vmatmul.mubr.bf16.gmra.mxu0 %v452
      %v581 = vpop.f32.mrf.mxu0
      %v582 = vadd.f32 0.0, %v581
      %v583 = vpop.f32.mrf.mxu0
      %v584 = vpop.f32.mrf.mxu0
      %v585 = vadd.f32 0.0, %v584
      %v586 = vpop.f32.mrf.mxu0
      %587 = vmatprep.mubr.bf16.mxu0 0
      %588 = vmatmul.mubr.bf16.gmra.mxu0 %v455
      %v589 = vpop.f32.mrf.mxu0
      %v590 = vadd.f32 0.0, %v589
      %v591 = vpop.f32.mrf.mxu0
      %v592 = vpop.f32.mrf.mxu0
      %v593 = vadd.f32 0.0, %v592
      %v594 = vpop.f32.mrf.mxu0
      %595 = vmatprep.mubr.bf16.mxu0 0
      %596 = vmatmul.mubr.bf16.gmra.mxu0 %v458
      %v597 = vpop.f32.mrf.mxu0
      %v598 = vadd.f32 0.0, %v597
      %v599 = vpop.f32.mrf.mxu0
      %v600 = vpop.f32.mrf.mxu0
      %v601 = vadd.f32 0.0, %v600
      %v602 = vpop.f32.mrf.mxu0
      %603 = vmatprep.mubr.bf16.mxu0 0
      %604 = vmatmul.mubr.bf16.gmra.mxu0 %v461
      %v605 = vpop.f32.mrf.mxu0
      %v606 = vadd.f32 0.0, %v605
      %v607 = vpop.f32.mrf.mxu0
      %v608 = vpop.f32.mrf.mxu0
      %v609 = vadd.f32 0.0, %v608
      %v610 = vpop.f32.mrf.mxu0
      %611 = vmatprep.mubr.bf16.mxu0 0
      %612 = vmatmul.mubr.bf16.gmra.mxu0 %v464
      %v613 = vpop.f32.mrf.mxu0
      %v614 = vadd.f32 0.0, %v613
      %v615 = vpop.f32.mrf.mxu0
      %v616 = vpop.f32.mrf.mxu0
      %v617 = vadd.f32 0.0, %v616
      %v618 = vpop.f32.mrf.mxu0
      %619 = vmatprep.mubr.bf16.mxu0 0
      %620 = vmatmul.mubr.bf16.gmra.mxu0 %v467
      %v621 = vpop.f32.mrf.mxu0
      %v622 = vadd.f32 0.0, %v621
      %v623 = vpop.f32.mrf.mxu0
      %v624 = vpop.f32.mrf.mxu0
      %v625 = vadd.f32 0.0, %v624
      %v626 = vpop.f32.mrf.mxu0
      %627 = vmatprep.mubr.bf16.mxu0 0
      %628 = vmatmul.mubr.bf16.gmra.mxu0 %v470
      %v629 = vpop.f32.mrf.mxu0
      %v630 = vadd.f32 0.0, %v629
      %v631 = vpop.f32.mrf.mxu0
      %v632 = vpop.f32.mrf.mxu0
      %v633 = vadd.f32 0.0, %v632
      %v634 = vpop.f32.mrf.mxu0
      %635 = vmatprep.mubr.bf16.mxu0 0
      %636 = vmatmul.mubr.bf16.gmra.mxu0 %v473
      %v637 = vpop.f32.mrf.mxu0
      %v638 = vadd.f32 0.0, %v637
      %v639 = vpop.f32.mrf.mxu0
      %v640 = vpop.f32.mrf.mxu0
      %v641 = vadd.f32 0.0, %v640
      %v642 = vpop.f32.mrf.mxu0
      %643 = vmatprep.mubr.bf16.mxu0 0
      %644 = vmatmul.mubr.bf16.gmra.mxu0 %v476
      %v645 = vpop.f32.mrf.mxu0
      %v646 = vadd.f32 0.0, %v645
      %v647 = vpop.f32.mrf.mxu0
      %v648 = vpop.f32.mrf.mxu0
      %v649 = vadd.f32 0.0, %v648
      %v650 = vpop.f32.mrf.mxu0
      %651 = vmatprep.mubr.bf16.mxu0 0
      %652 = vmatmul.mubr.bf16.gmra.mxu0 %v479
      %v653 = vpop.f32.mrf.mxu0
      %v654 = vadd.f32 0.0, %v653
      %v655 = vpop.f32.mrf.mxu0
      %v656 = vpop.f32.mrf.mxu0
      %v657 = vadd.f32 0.0, %v656
      %v658 = vpop.f32.mrf.mxu0
      %659 = vmatprep.mubr.bf16.mxu0 0
      %660 = vmatmul.mubr.bf16.gmra.mxu0 %v482
      %v661 = vpop.f32.mrf.mxu0
      %v662 = vadd.f32 0.0, %v661
      %v663 = vpop.f32.mrf.mxu0
      %v664 = vpop.f32.mrf.mxu0
      %v665 = vadd.f32 0.0, %v664
      %v666 = vpop.f32.mrf.mxu0
      %667 = vmatprep.mubr.bf16.mxu0 0
      %668 = vmatmul.mubr.bf16.gmra.mxu0 %v485
      %v669 = vpop.f32.mrf.mxu0
      %v670 = vadd.f32 0.0, %v669
      %v671 = vpop.f32.mrf.mxu0
      %v672 = vpop.f32.mrf.mxu0
      %v673 = vadd.f32 0.0, %v672
      %v674 = vpop.f32.mrf.mxu0
      %675 = vmatprep.mubr.bf16.mxu0 0
      %676 = vmatmul.mubr.bf16.gmra.mxu0 %v488
      %v677 = vpop.f32.mrf.mxu0
      %v678 = vadd.f32 0.0, %v677
      %v679 = vpop.f32.mrf.mxu0
      %v680 = vpop.f32.mrf.mxu0
      %v681 = vadd.f32 0.0, %v680
      %v682 = vpop.f32.mrf.mxu0
      %683 = vmatprep.mubr.bf16.mxu0 0
      %684 = vmatmul.mubr.bf16.gmra.mxu0 %v491
      %v685 = vpop.f32.mrf.mxu0
      %v686 = vadd.f32 0.0, %v685
      %v687 = vpop.f32.mrf.mxu0
      %v688 = vpop.f32.mrf.mxu0
      %v689 = vadd.f32 0.0, %v688
      %v690 = vpop.f32.mrf.mxu0
      %691 = vmatprep.mubr.bf16.mxu0 0
      %692 = vmatmul.mubr.bf16.gmra.mxu0 %v494
      %v693 = vpop.f32.mrf.mxu0
      %v694 = vadd.f32 0.0, %v693
      %v695 = vpop.f32.mrf.mxu0
      %v696 = vpop.f32.mrf.mxu0
      %v697 = vadd.f32 0.0, %v696
      %v698 = vpop.f32.mrf.mxu0
      %699 = vmatprep.mubr.bf16.mxu0 0
      %700 = vmatmul.mubr.bf16.gmra.mxu0 %v497
      %v701 = vpop.f32.mrf.mxu0
      %v702 = vadd.f32 0.0, %v701
      %v703 = vpop.f32.mrf.mxu0
      %v704 = vpop.f32.mrf.mxu0
      %v705 = vadd.f32 0.0, %v704
      %v706 = vpop.f32.mrf.mxu0
      %707 = vmatprep.mubr.bf16.mxu0 0
      %708 = vmatmul.mubr.bf16.gmra.mxu0 %v500
      %v709 = vpop.f32.mrf.mxu0
      %v710 = vadd.f32 0.0, %v709
      %v711 = vpop.f32.mrf.mxu0
      %v712 = vpop.f32.mrf.mxu0
      %v713 = vadd.f32 0.0, %v712
      %v714 = vpop.f32.mrf.mxu0
      %715 = vmatprep.mubr.bf16.mxu0 0
      %716 = vmatmul.mubr.bf16.gmra.mxu0 %v503
      %v717 = vpop.f32.mrf.mxu0
      %v718 = vadd.f32 0.0, %v717
      %v719 = vpop.f32.mrf.mxu0
      %v720 = vpop.f32.mrf.mxu0
      %v721 = vadd.f32 0.0, %v720
      %v722 = vpop.f32.mrf.mxu0
      %723 = vmatprep.mubr.bf16.mxu0 0
      %724 = vmatmul.mubr.bf16.gmra.mxu0 %v506
      %v725 = vpop.f32.mrf.mxu0
      %v726 = vadd.f32 0.0, %v725
      %v727 = vpop.f32.mrf.mxu0
      %v728 = vpop.f32.mrf.mxu0
      %v729 = vadd.f32 0.0, %v728
      %v730 = vpop.f32.mrf.mxu0
      %731 = vmatprep.mubr.bf16.mxu0 0
      %732 = vmatmul.mubr.bf16.gmra.mxu0 %v509
      %v733 = vpop.f32.mrf.mxu0
      %v734 = vadd.f32 0.0, %v733
      %v735 = vpop.f32.mrf.mxu0
      %v736 = vpop.f32.mrf.mxu0
      %v737 = vadd.f32 0.0, %v736
      %v738 = vpop.f32.mrf.mxu0
      %739 = vmatprep.mubr.bf16.mxu0 0
      %740 = vmatmul.mubr.bf16.gmra.mxu0 %v512
      %v741 = vpop.f32.mrf.mxu0
      %v742 = vadd.f32 0.0, %v741
      %v743 = vpop.f32.mrf.mxu0
      %v744 = vpop.f32.mrf.mxu0
      %v745 = vadd.f32 0.0, %v744
      %v746 = vpop.f32.mrf.mxu0
      %747 = vmatprep.mubr.bf16.mxu0 0
      %748 = vmatmul.mubr.bf16.gmra.mxu0 %v515
      %v749 = vpop.f32.mrf.mxu0
      %v750 = vadd.f32 0.0, %v749
      %v751 = vpop.f32.mrf.mxu0
      %v752 = vpop.f32.mrf.mxu0
      %v753 = vadd.f32 0.0, %v752
      %v754 = vpop.f32.mrf.mxu0
      %755 = vmatprep.mubr.bf16.mxu0 0
      %756 = vmatmul.mubr.bf16.gmra.mxu0 %v518
      %v757 = vpop.f32.mrf.mxu0
      %v758 = vadd.f32 0.0, %v757
      %v759 = vpop.f32.mrf.mxu0
      %v760 = vpop.f32.mrf.mxu0
      %v761 = vadd.f32 0.0, %v760
      %v762 = vpop.f32.mrf.mxu0
      %763 = vmatprep.mubr.bf16.mxu0 0
      %764 = vmatmul.mubr.bf16.gmra.mxu0 %v521
      %v765 = vpop.f32.mrf.mxu0
      %v766 = vadd.f32 0.0, %v765
      %v767 = vpop.f32.mrf.mxu0
      %v768 = vpop.f32.mrf.mxu0
      %v769 = vadd.f32 0.0, %v768
      %v770 = vpop.f32.mrf.mxu0
      %771 = vmatprep.mubr.bf16.mxu0 0
      %772 = vmatmul.mubr.bf16.gmra.mxu0 %v524
      %v773 = vpop.f32.mrf.mxu0
      %v774 = vadd.f32 0.0, %v773
      %v775 = vpop.f32.mrf.mxu0
      %v776 = vpop.f32.mrf.mxu0
      %v777 = vadd.f32 0.0, %v776
      %v778 = vpop.f32.mrf.mxu0
      %779 = vmatprep.mubr.bf16.mxu0 0
      %780 = vmatmul.mubr.bf16.gmra.mxu0 %v527
      %v781 = vpop.f32.mrf.mxu0
      %v782 = vadd.f32 0.0, %v781
      %v783 = vpop.f32.mrf.mxu0
      %v784 = vpop.f32.mrf.mxu0
      %v785 = vadd.f32 0.0, %v784
      %v786 = vpop.f32.mrf.mxu0
      %787 = vmatprep.mubr.bf16.mxu0 0
      %788 = vmatmul.mubr.bf16.gmra.mxu0 %v530
      %v789 = vpop.f32.mrf.mxu0
      %v790 = vadd.f32 0.0, %v789
      %v791 = vpop.f32.mrf.mxu0
      %v792 = vpop.f32.mrf.mxu0
      %v793 = vadd.f32 0.0, %v792
      %v794 = vpop.f32.mrf.mxu0
      %795 = vmatprep.mubr.bf16.mxu0 0
      %796 = vmatmul.mubr.bf16.gmra.mxu0 %v533
      %v797 = vpop.f32.mrf.mxu0
      %v798 = vadd.f32 0.0, %v797
      %v799 = vpop.f32.mrf.mxu0
      %v800 = vpop.f32.mrf.mxu0
      %v801 = vadd.f32 0.0, %v800
      %v802 = vpop.f32.mrf.mxu0
      %803 = vmatprep.mubr.bf16.mxu0 0
      %804 = vmatmul.mubr.bf16.gmra.mxu0 %v536
      %v805 = vpop.f32.mrf.mxu0
      %v806 = vadd.f32 0.0, %v805
      %v807 = vpop.f32.mrf.mxu0
      %v808 = vpop.f32.mrf.mxu0
      %v809 = vadd.f32 0.0, %v808
      %v810 = vpop.f32.mrf.mxu0
      %811 = vmatprep.mubr.bf16.mxu0 0
      %812 = vmatmul.mubr.bf16.gmra.mxu0 %v539
      %v813 = vpop.f32.mrf.mxu0
      %v814 = vadd.f32 0.0, %v813
      %v815 = vpop.f32.mrf.mxu0
      %v816 = vpop.f32.mrf.mxu0
      %v817 = vadd.f32 0.0, %v816
      %v818 = vpop.f32.mrf.mxu0
      %819 = vmatprep.mubr.bf16.mxu0 0
      %820 = vmatmul.mubr.bf16.gmra.mxu0 %v542
      %v821 = vpop.f32.mrf.mxu0
      %v822 = vadd.f32 0.0, %v821
      %v823 = vpop.f32.mrf.mxu0
      %v824 = vpop.f32.mrf.mxu0
      %v825 = vadd.f32 0.0, %v824
      %v826 = vpop.f32.mrf.mxu0
      %827 = vmatprep.mubr.bf16.mxu0 0
      %828 = vmatmul.mubr.bf16.gmra.mxu0 %v545
      %v829 = vpop.f32.mrf.mxu0
      %v830 = vadd.f32 0.0, %v829
      %v831 = vpop.f32.mrf.mxu0
      %v832 = vpop.f32.mrf.mxu0
      %v833 = vadd.f32 0.0, %v832
      %v834 = vpop.f32.mrf.mxu0
      %835 = vdwg.mxu0
      %v836 = vld [vmem:[%s2] sm:$0x1]
      %v838 = vlaneseq
      %v839 = vshrl.u32 %v838, 7
      %v840 = vsub.s32 0, %v839
      %v841 = vrot.slane %v836, %v840
      %v843 = vmul.f32 %v582, %v841
      %v844 = vmul.f32 %v585, %v841
      %v845 = vmul.f32 %v590, %v841
      %v846 = vmul.f32 %v593, %v841
      %v847 = vmul.f32 %v598, %v841
      %v848 = vmul.f32 %v601, %v841
      %v849 = vmul.f32 %v606, %v841
      %v850 = vmul.f32 %v609, %v841
      %v851 = vmul.f32 %v614, %v841
      %v852 = vmul.f32 %v617, %v841
      %v853 = vmul.f32 %v622, %v841
      %v854 = vmul.f32 %v625, %v841
      %v855 = vmul.f32 %v630, %v841
      %v856 = vmul.f32 %v633, %v841
      %v857 = vmul.f32 %v638, %v841
      %v858 = vmul.f32 %v641, %v841
      %v859 = vmul.f32 %v646, %v841
      %v860 = vmul.f32 %v649, %v841
      %v861 = vmul.f32 %v654, %v841
      %v862 = vmul.f32 %v657, %v841
      %v863 = vmul.f32 %v662, %v841
      %v864 = vmul.f32 %v665, %v841
      %v865 = vmul.f32 %v670, %v841
      %v866 = vmul.f32 %v673, %v841
      %v867 = vmul.f32 %v678, %v841
      %v868 = vmul.f32 %v681, %v841
      %v869 = vmul.f32 %v686, %v841
      %v870 = vmul.f32 %v689, %v841
      %v871 = vmul.f32 %v694, %v841
      %v872 = vmul.f32 %v697, %v841
      %v873 = vmul.f32 %v702, %v841
      %v874 = vmul.f32 %v705, %v841
      %v875 = vmul.f32 %v710, %v841
      %v876 = vmul.f32 %v713, %v841
      %v877 = vmul.f32 %v718, %v841
      %v878 = vmul.f32 %v721, %v841
      %v879 = vmul.f32 %v726, %v841
      %v880 = vmul.f32 %v729, %v841
      %v881 = vmul.f32 %v734, %v841
      %v882 = vmul.f32 %v737, %v841
      %v883 = vmul.f32 %v742, %v841
      %v884 = vmul.f32 %v745, %v841
      %v885 = vmul.f32 %v750, %v841
      %v886 = vmul.f32 %v753, %v841
      %v887 = vmul.f32 %v758, %v841
      %v888 = vmul.f32 %v761, %v841
      %v889 = vmul.f32 %v766, %v841
      %v890 = vmul.f32 %v769, %v841
      %v891 = vmul.f32 %v774, %v841
      %v892 = vmul.f32 %v777, %v841
      %v893 = vmul.f32 %v782, %v841
      %v894 = vmul.f32 %v785, %v841
      %v895 = vmul.f32 %v790, %v841
      %v896 = vmul.f32 %v793, %v841
      %v897 = vmul.f32 %v798, %v841
      %v898 = vmul.f32 %v801, %v841
      %v899 = vmul.f32 %v806, %v841
      %v900 = vmul.f32 %v809, %v841
      %v901 = vmul.f32 %v814, %v841
      %v902 = vmul.f32 %v817, %v841
      %v903 = vmul.f32 %v822, %v841
      %v904 = vmul.f32 %v825, %v841
      %v905 = vmul.f32 %v830, %v841
      %v906 = vmul.f32 %v833, %v841
      %v907 = vld [vmem:[%s3] sm:$0x1]
      %v909 = vlaneseq
      %v910 = vshrl.u32 %v909, 7
      %v911 = vsub.s32 0, %v910
      %v912 = vrot.slane %v907, %v911
      %v914 = vadd.f32 %v843, %v912
      %v915 = vadd.f32 %v844, %v912
      %v916 = vadd.f32 %v845, %v912
      %v917 = vadd.f32 %v846, %v912
      %v918 = vadd.f32 %v847, %v912
      %v919 = vadd.f32 %v848, %v912
      %v920 = vadd.f32 %v849, %v912
      %v921 = vadd.f32 %v850, %v912
      %v922 = vadd.f32 %v851, %v912
      %v923 = vadd.f32 %v852, %v912
      %v924 = vadd.f32 %v853, %v912
      %v925 = vadd.f32 %v854, %v912
      %v926 = vadd.f32 %v855, %v912
      %v927 = vadd.f32 %v856, %v912
      %v928 = vadd.f32 %v857, %v912
      %v929 = vadd.f32 %v858, %v912
      %v930 = vadd.f32 %v859, %v912
      %v931 = vadd.f32 %v860, %v912
      %v932 = vadd.f32 %v861, %v912
      %v933 = vadd.f32 %v862, %v912
      %v934 = vadd.f32 %v863, %v912
      %v935 = vadd.f32 %v864, %v912
      %v936 = vadd.f32 %v865, %v912
      %v937 = vadd.f32 %v866, %v912
      %v938 = vadd.f32 %v867, %v912
      %v939 = vadd.f32 %v868, %v912
      %v940 = vadd.f32 %v869, %v912
      %v941 = vadd.f32 %v870, %v912
      %v942 = vadd.f32 %v871, %v912
      %v943 = vadd.f32 %v872, %v912
      %v944 = vadd.f32 %v873, %v912
      %v945 = vadd.f32 %v874, %v912
      %v946 = vadd.f32 %v875, %v912
      %v947 = vadd.f32 %v876, %v912
      %v948 = vadd.f32 %v877, %v912
      %v949 = vadd.f32 %v878, %v912
      %v950 = vadd.f32 %v879, %v912
      %v951 = vadd.f32 %v880, %v912
      %v952 = vadd.f32 %v881, %v912
      %v953 = vadd.f32 %v882, %v912
      %v954 = vadd.f32 %v883, %v912
      %v955 = vadd.f32 %v884, %v912
      %v956 = vadd.f32 %v885, %v912
      %v957 = vadd.f32 %v886, %v912
      %v958 = vadd.f32 %v887, %v912
      %v959 = vadd.f32 %v888, %v912
      %v960 = vadd.f32 %v889, %v912
      %v961 = vadd.f32 %v890, %v912
      %v962 = vadd.f32 %v891, %v912
      %v963 = vadd.f32 %v892, %v912
      %v964 = vadd.f32 %v893, %v912
      %v965 = vadd.f32 %v894, %v912
      %v966 = vadd.f32 %v895, %v912
      %v967 = vadd.f32 %v896, %v912
      %v968 = vadd.f32 %v897, %v912
      %v969 = vadd.f32 %v898, %v912
      %v970 = vadd.f32 %v899, %v912
      %v971 = vadd.f32 %v900, %v912
      %v972 = vadd.f32 %v901, %v912
      %v973 = vadd.f32 %v902, %v912
      %v974 = vadd.f32 %v903, %v912
      %v975 = vadd.f32 %v904, %v912
      %v976 = vadd.f32 %v905, %v912
      %v977 = vadd.f32 %v906, %v912
      %v978 = vmax.f32 %v914, 0.0
      %v979 = vmax.f32 %v915, 0.0
      %v980 = vmax.f32 %v916, 0.0
      %v981 = vmax.f32 %v917, 0.0
      %v982 = vmax.f32 %v918, 0.0
      %v983 = vmax.f32 %v919, 0.0
      %v984 = vmax.f32 %v920, 0.0
      %v985 = vmax.f32 %v921, 0.0
      %v986 = vmax.f32 %v922, 0.0
      %v987 = vmax.f32 %v923, 0.0
      %v988 = vmax.f32 %v924, 0.0
      %v989 = vmax.f32 %v925, 0.0
      %v990 = vmax.f32 %v926, 0.0
      %v991 = vmax.f32 %v927, 0.0
      %v992 = vmax.f32 %v928, 0.0
      %v993 = vmax.f32 %v929, 0.0
      %v994 = vmax.f32 %v930, 0.0
      %v995 = vmax.f32 %v931, 0.0
      %v996 = vmax.f32 %v932, 0.0
      %v997 = vmax.f32 %v933, 0.0
      %v998 = vmax.f32 %v934, 0.0
      %v999 = vmax.f32 %v935, 0.0
      %v1000 = vmax.f32 %v936, 0.0
      %v1001 = vmax.f32 %v937, 0.0
      %v1002 = vmax.f32 %v938, 0.0
      %v1003 = vmax.f32 %v939, 0.0
      %v1004 = vmax.f32 %v940, 0.0
      %v1005 = vmax.f32 %v941, 0.0
      %v1006 = vmax.f32 %v942, 0.0
      %v1007 = vmax.f32 %v943, 0.0
      %v1008 = vmax.f32 %v944, 0.0
      %v1009 = vmax.f32 %v945, 0.0
      %v1010 = vmax.f32 %v946, 0.0
      %v1011 = vmax.f32 %v947, 0.0
      %v1012 = vmax.f32 %v948, 0.0
      %v1013 = vmax.f32 %v949, 0.0
      %v1014 = vmax.f32 %v950, 0.0
      %v1015 = vmax.f32 %v951, 0.0
      %v1016 = vmax.f32 %v952, 0.0
      %v1017 = vmax.f32 %v953, 0.0
      %v1018 = vmax.f32 %v954, 0.0
      %v1019 = vmax.f32 %v955, 0.0
      %v1020 = vmax.f32 %v956, 0.0
      %v1021 = vmax.f32 %v957, 0.0
      %v1022 = vmax.f32 %v958, 0.0
      %v1023 = vmax.f32 %v959, 0.0
      %v1024 = vmax.f32 %v960, 0.0
      %v1025 = vmax.f32 %v961, 0.0
      %v1026 = vmax.f32 %v962, 0.0
      %v1027 = vmax.f32 %v963, 0.0
      %v1028 = vmax.f32 %v964, 0.0
      %v1029 = vmax.f32 %v965, 0.0
      %v1030 = vmax.f32 %v966, 0.0
      %v1031 = vmax.f32 %v967, 0.0
      %v1032 = vmax.f32 %v968, 0.0
      %v1033 = vmax.f32 %v969, 0.0
      %v1034 = vmax.f32 %v970, 0.0
      %v1035 = vmax.f32 %v971, 0.0
      %v1036 = vmax.f32 %v972, 0.0
      %v1037 = vmax.f32 %v973, 0.0
      %v1038 = vmax.f32 %v974, 0.0
      %v1039 = vmax.f32 %v975, 0.0
      %v1040 = vmax.f32 %v976, 0.0
      %v1041 = vmax.f32 %v977, 0.0
      %1042 = vst [vmem:[%s199] sm:$0xff] %v978
      %1043 = vst [vmem:[%s199 + $0x8] sm:$0xff] %v979
      %1044 = vst [vmem:[%s199 + $0x10] sm:$0xff] %v980
      %1045 = vst [vmem:[%s199 + $0x18] sm:$0xff] %v981
      %1046 = vst [vmem:[%s199 + $0x20] sm:$0xff] %v982
      %1047 = vst [vmem:[%s199 + $0x28] sm:$0xff] %v983
      %1048 = vst [vmem:[%s199 + $0x30] sm:$0xff] %v984
      %1049 = vst [vmem:[%s199 + $0x38] sm:$0xff] %v985
      %1050 = vst [vmem:[%s199 + $0x40] sm:$0xff] %v986
      %1051 = vst [vmem:[%s199 + $0x48] sm:$0xff] %v987
      %1052 = vst [vmem:[%s199 + $0x50] sm:$0xff] %v988
      %1053 = vst [vmem:[%s199 + $0x58] sm:$0xff] %v989
      %1054 = vst [vmem:[%s199 + $0x60] sm:$0xff] %v990
      %1055 = vst [vmem:[%s199 + $0x68] sm:$0xff] %v991
      %1056 = vst [vmem:[%s199 + $0x70] sm:$0xff] %v992
      %1057 = vst [vmem:[%s199 + $0x78] sm:$0xff] %v993
      %1058 = vst [vmem:[%s199 + $0x80] sm:$0xff] %v994
      %1059 = vst [vmem:[%s199 + $0x88] sm:$0xff] %v995
      %1060 = vst [vmem:[%s199 + $0x90] sm:$0xff] %v996
      %1061 = vst [vmem:[%s199 + $0x98] sm:$0xff] %v997
      %1062 = vst [vmem:[%s199 + $0xa0] sm:$0xff] %v998
      %1063 = vst [vmem:[%s199 + $0xa8] sm:$0xff] %v999
      %1064 = vst [vmem:[%s199 + $0xb0] sm:$0xff] %v1000
      %1065 = vst [vmem:[%s199 + $0xb8] sm:$0xff] %v1001
      %1066 = vst [vmem:[%s199 + $0xc0] sm:$0xff] %v1002
      %1067 = vst [vmem:[%s199 + $0xc8] sm:$0xff] %v1003
      %1068 = vst [vmem:[%s199 + $0xd0] sm:$0xff] %v1004
      %1069 = vst [vmem:[%s199 + $0xd8] sm:$0xff] %v1005
      %1070 = vst [vmem:[%s199 + $0xe0] sm:$0xff] %v1006
      %1071 = vst [vmem:[%s199 + $0xe8] sm:$0xff] %v1007
      %1072 = vst [vmem:[%s199 + $0xf0] sm:$0xff] %v1008
      %1073 = vst [vmem:[%s199 + $0xf8] sm:$0xff] %v1009
      %1074 = vst [vmem:[%s199 + $0x100] sm:$0xff] %v1010
      %1075 = vst [vmem:[%s199 + $0x108] sm:$0xff] %v1011
      %1076 = vst [vmem:[%s199 + $0x110] sm:$0xff] %v1012
      %1077 = vst [vmem:[%s199 + $0x118] sm:$0xff] %v1013
      %1078 = vst [vmem:[%s199 + $0x120] sm:$0xff] %v1014
      %1079 = vst [vmem:[%s199 + $0x128] sm:$0xff] %v1015
      %1080 = vst [vmem:[%s199 + $0x130] sm:$0xff] %v1016
      %1081 = vst [vmem:[%s199 + $0x138] sm:$0xff] %v1017
      %1082 = vst [vmem:[%s199 + $0x140] sm:$0xff] %v1018
      %1083 = vst [vmem:[%s199 + $0x148] sm:$0xff] %v1019
      %1084 = vst [vmem:[%s199 + $0x150] sm:$0xff] %v1020
      %1085 = vst [vmem:[%s199 + $0x158] sm:$0xff] %v1021
      %1086 = vst [vmem:[%s199 + $0x160] sm:$0xff] %v1022
      %1087 = vst [vmem:[%s199 + $0x168] sm:$0xff] %v1023
      %1088 = vst [vmem:[%s199 + $0x170] sm:$0xff] %v1024
      %1089 = vst [vmem:[%s199 + $0x178] sm:$0xff] %v1025
      %1090 = vst [vmem:[%s199 + $0x180] sm:$0xff] %v1026
      %1091 = vst [vmem:[%s199 + $0x188] sm:$0xff] %v1027
      %1092 = vst [vmem:[%s199 + $0x190] sm:$0xff] %v1028
      %1093 = vst [vmem:[%s199 + $0x198] sm:$0xff] %v1029
      %1094 = vst [vmem:[%s199 + $0x1a0] sm:$0xff] %v1030
      %1095 = vst [vmem:[%s199 + $0x1a8] sm:$0xff] %v1031
      %1096 = vst [vmem:[%s199 + $0x1b0] sm:$0xff] %v1032
      %1097 = vst [vmem:[%s199 + $0x1b8] sm:$0xff] %v1033
      %1098 = vst [vmem:[%s199 + $0x1c0] sm:$0xff] %v1034
      %1099 = vst [vmem:[%s199 + $0x1c8] sm:$0xff] %v1035
      %1100 = vst [vmem:[%s199 + $0x1d0] sm:$0xff] %v1036
      %1101 = vst [vmem:[%s199 + $0x1d8] sm:$0xff] %v1037
      %1102 = vst [vmem:[%s199 + $0x1e0] sm:$0xff] %v1038
      %1103 = vst [vmem:[%s199 + $0x1e8] sm:$0xff] %v1039
      %1104 = vst [vmem:[%s199 + $0x1f0] sm:$0xff] %v1040
      %1105 = vst [vmem:[%s199 + $0x1f8] sm:$0xff] %v1041
      %s1106 = smul.u32 64, %s15
      %p1107 = scmp.lt.s32.totalorder %s1106, 1023
      %s1108 = scalar_select %p1107, %s1106, 1023
      %s1109 = smul.addr %s1108, 8
      %s1110 = scalar_lea.vmem %s4, %s1109
      // Predicated region
      $region37: #{vae_forward.8} parent=35 // pred_check
        %p1111 = pneg %p122
      $region38: #{vae_forward.8} parent=35 // pred_check_branch
        %1113 = sbr.rel (%p1111) target = $region40
      $region39: #{vae_forward.8} parent=35 // pred_region
        %s1114 = smul.u32 64, %s15
      $region40: #{vae_forward.8} parent=35 // pred_fallthru
        _
    $region36: #{vae_forward.8} parent=5 // pred_fallthru
      _
    %p1115 = scmp.le.s32.totalorder 2, %s10
    // Predicated region
    $region41: #{vae_forward.8} parent=5 // pred_check
      %p1116 = pneg %p1115
    $region42: #{vae_forward.8} parent=5 // pred_check_branch
      %1118 = sbr.rel (%p1116) target = $region44
    $region43: #{vae_forward.8} parent=5 // pred_region
      %s1119 = ssub.s32 %s10, 2
      // Predicated region
      $region45: #{vae_forward.8} parent=43 // pred_check
        %p1120 = pneg %p128
      $region46: #{vae_forward.8} parent=43 // pred_check_branch
        %1122 = sbr.rel (%p1120) target = $region48
      $region47: #{vae_forward.8} parent=43 // pred_region
        %s1123 = smul.u32 64, %s16
        %p1124 = scmp.lt.s32.totalorder %s1123, 1023
        %s1125 = scalar_select %p1124, %s1123, 1023
        %s1126 = smul.addr %s1125, 8
        %s1127 = scalar_lea.vmem %s4, %s1126
      $region48: #{vae_forward.8} parent=43 // pred_fallthru
        _
    $region44: #{vae_forward.8} parent=5 // pred_fallthru
      _
  $region6: #{vae_forward.8} parent=0 // loop_footer
    %s14 = sadd.s32 1, %s10
  $region7: #{vae_forward.8} parent=0 // loop_footer_branch
    %9 = sbr.rel target = $region3
  $region8: #{vae_forward.8} parent=0 // loop_exit
    _

// kernel: vae_forward.9
$region0: #{vae_forward.9}
  #allocation0 [shape = 'u32[]', space=smem, size = 0x4, offset = 0x4, fixed_abs, tag = 'smem constant byte address 0x4 - core index']
  #allocation1 [shape = 'u32[144,128]{1,0:T(1,128)}', space=vmem, size = 0x12000, scoped, tag = 'internal scratch']
  %s0 = inlined_call_operand.vmem [shape: bf16[512,256], index: 0, kind: input, shape index: {}]
  %s1 = inlined_call_operand.vmem [shape: bf16[256,128], index: 1, kind: input, shape index: {}]
  %s2 = inlined_call_operand.vmem [shape: f32[1,128], index: 2, kind: input, shape index: {}]
  %s3 = inlined_call_operand.vmem [shape: f32[1,128], index: 3, kind: input, shape index: {}]
  %s4 = inlined_call_operand.vmem [shape: f32[512,128], index: 4, kind: output, shape index: {}]
  %s5 = sld [smem:[#allocation0]]
  $region49: #{vae_forward.9} parent=0
    _
  %s7 = ssub.s32 1, %s5
  %s8 = scalar_select 0, %s7, %s5
  loop: start=0, step=1, limit=4
  $region2: #{vae_forward.9} parent=0 // loop_pre_header
    _
  $region3: #{vae_forward.9} parent=0 // loop_header
    %s10 = sphi 0, %s14
    %p11 = scmp.ge.s32.totalorder %s10, 4
    %s20 = sphi 0, %s22
    %s23 = sphi 0, %s20
    %s24 = sphi 0, %s23
    %s40 = sphi 0, %s24
    %s44 = sphi 0, %s44
    %s46 = sphi 0, %s44
    %s47 = sphi 0, %s46
    %s61 = sphi 0, %s47
    %s65 = sphi 0, %s65
    %s67 = sphi 0, %s65
    %s68 = sphi 0, %s67
    %s82 = sphi 0, %s68
    %s86 = sphi 0, %s86
    %s88 = sphi 0, %s86
    %s89 = sphi 0, %s88
    %s103 = sphi 0, %s89
    %s109 = sphi 0, %s111
    %s112 = sphi 0, %s109
    %s113 = sphi 0, %s112
    %s129 = sphi 0, %s113
  $region4: #{vae_forward.9} parent=0 // loop_header_branch
    %13 = sbr.rel (%p11) target = $region8
  $region5: #{vae_forward.9} parent=0 // loop_body
    %s15 = ssub.s32 %s10, 1
    %s16 = ssub.s32 %s10, 2
    %s17 = sadd.s32 %s10, 1
    %s18 = ssub.s32 %s10, %s17
    %p19 = scmp.eq.s32.totalorder %s18, 0
    %s21 = sadd.s32 %s20, 1
    %s22 = scalar_select %p19, %s20, %s21
    %p25 = pneg %p19
    %p26 = scmp.eq.s32.totalorder %s10, 1
    %p27 = por %p25, %p26
    %p28 = scmp.ne.s32.totalorder %s20, %s23
    %p29 = scmp.eq.s32.totalorder %s10, 0
    %p30 = por %p28, %p29
    %p31 = scmp.ne.s32.totalorder %s20, %s23
    %p32 = scmp.eq.s32.totalorder %s15, 1
    %p33 = por %p31, %p32
    %p34 = scmp.ne.s32.totalorder %s23, %s24
    %p35 = scmp.eq.s32.totalorder %s15, 0
    %p36 = por %p34, %p35
    %p37 = scmp.ne.s32.totalorder %s23, %s24
    %p38 = scmp.eq.s32.totalorder %s16, 1
    %p39 = por %p37, %p38
    %p41 = scmp.ne.s32.totalorder %s24, %s40
    %p42 = scmp.eq.s32.totalorder %s16, 0
    %p43 = por %p41, %p42
    %s45 = sadd.s32 %s44, 1
    %p48 = scmp.eq.s32.totalorder %s10, 1
    %p49 = scmp.ne.s32.totalorder %s44, %s46
    %p50 = scmp.eq.s32.totalorder %s10, 0
    %p51 = por %p49, %p50
    %p52 = scmp.ne.s32.totalorder %s44, %s46
    %p53 = scmp.eq.s32.totalorder %s15, 1
    %p54 = por %p52, %p53
    %p55 = scmp.ne.s32.totalorder %s46, %s47
    %p56 = scmp.eq.s32.totalorder %s15, 0
    %p57 = por %p55, %p56
    %p58 = scmp.ne.s32.totalorder %s46, %s47
    %p59 = scmp.eq.s32.totalorder %s16, 1
    %p60 = por %p58, %p59
    %p62 = scmp.ne.s32.totalorder %s47, %s61
    %p63 = scmp.eq.s32.totalorder %s16, 0
    %p64 = por %p62, %p63
    %s66 = sadd.s32 %s65, 1
    %p69 = scmp.eq.s32.totalorder %s10, 1
    %p70 = scmp.ne.s32.totalorder %s65, %s67
    %p71 = scmp.eq.s32.totalorder %s10, 0
    %p72 = por %p70, %p71
    %p73 = scmp.ne.s32.totalorder %s65, %s67
    %p74 = scmp.eq.s32.totalorder %s15, 1
    %p75 = por %p73, %p74
    %p76 = scmp.ne.s32.totalorder %s67, %s68
    %p77 = scmp.eq.s32.totalorder %s15, 0
    %p78 = por %p76, %p77
    %p79 = scmp.ne.s32.totalorder %s67, %s68
    %p80 = scmp.eq.s32.totalorder %s16, 1
    %p81 = por %p79, %p80
    %p83 = scmp.ne.s32.totalorder %s68, %s82
    %p84 = scmp.eq.s32.totalorder %s16, 0
    %p85 = por %p83, %p84
    %s87 = sadd.s32 %s86, 1
    %p90 = scmp.eq.s32.totalorder %s10, 1
    %p91 = scmp.ne.s32.totalorder %s86, %s88
    %p92 = scmp.eq.s32.totalorder %s10, 0
    %p93 = por %p91, %p92
    %p94 = scmp.ne.s32.totalorder %s86, %s88
    %p95 = scmp.eq.s32.totalorder %s15, 1
    %p96 = por %p94, %p95
    %p97 = scmp.ne.s32.totalorder %s88, %s89
    %p98 = scmp.eq.s32.totalorder %s15, 0
    %p99 = por %p97, %p98
    %p100 = scmp.ne.s32.totalorder %s88, %s89
    %p101 = scmp.eq.s32.totalorder %s16, 1
    %p102 = por %p100, %p101
    %p104 = scmp.ne.s32.totalorder %s89, %s103
    %p105 = scmp.eq.s32.totalorder %s16, 0
    %p106 = por %p104, %p105
    %s107 = ssub.s32 %s10, %s17
    %p108 = scmp.eq.s32.totalorder %s107, 0
    %s110 = sadd.s32 %s109, 1
    %s111 = scalar_select %p108, %s109, %s110
    %p114 = pneg %p108
    %p115 = scmp.eq.s32.totalorder %s10, 1
    %p116 = por %p114, %p115
    %p117 = scmp.ne.s32.totalorder %s109, %s112
    %p118 = scmp.eq.s32.totalorder %s10, 0
    %p119 = por %p117, %p118
    %p120 = scmp.ne.s32.totalorder %s109, %s112
    %p121 = scmp.eq.s32.totalorder %s15, 1
    %p122 = por %p120, %p121
    %p123 = scmp.ne.s32.totalorder %s112, %s113
    %p124 = scmp.eq.s32.totalorder %s15, 0
    %p125 = por %p123, %p124
    %p126 = scmp.ne.s32.totalorder %s112, %s113
    %p127 = scmp.eq.s32.totalorder %s16, 1
    %p128 = por %p126, %p127
    %p130 = scmp.ne.s32.totalorder %s113, %s129
    %p131 = scmp.eq.s32.totalorder %s16, 0
    %p132 = por %p130, %p131
    %p133 = scmp.le.s32.totalorder 1, %s10
    %p134 = scmp.lt.s32.totalorder %s10, 3
    %p135 = pnand %p133, %p134
    %p136 = pneg %p135
    // Predicated region
    $region9: #{vae_forward.9} parent=5 // pred_check
      _
    $region10: #{vae_forward.9} parent=5 // pred_check_branch
      %138 = sbr.rel (%p135) target = $region12
    $region11: #{vae_forward.9} parent=5 // pred_region
      %s139 = ssub.s32 %s10, 1
      // Predicated region
      $region13: #{vae_forward.9} parent=11 // pred_check
        %p140 = pneg %p57
      $region14: #{vae_forward.9} parent=11 // pred_check_branch
        %142 = sbr.rel (%p140) target = $region16
      $region15: #{vae_forward.9} parent=11 // pred_region
        _
      $region16: #{vae_forward.9} parent=11 // pred_fallthru
        _
      // Predicated region
      $region17: #{vae_forward.9} parent=11 // pred_check
        %p143 = pneg %p78
      $region18: #{vae_forward.9} parent=11 // pred_check_branch
        %145 = sbr.rel (%p143) target = $region20
      $region19: #{vae_forward.9} parent=11 // pred_region
        _
      $region20: #{vae_forward.9} parent=11 // pred_fallthru
        _
      // Predicated region
      $region21: #{vae_forward.9} parent=11 // pred_check
        %p146 = pneg %p99
      $region22: #{vae_forward.9} parent=11 // pred_check_branch
        %148 = sbr.rel (%p146) target = $region24
      $region23: #{vae_forward.9} parent=11 // pred_region
        _
      $region24: #{vae_forward.9} parent=11 // pred_fallthru
        _
    $region12: #{vae_forward.9} parent=5 // pred_fallthru
      _
    %p149 = scmp.lt.s32.totalorder %s10, 2
    // Predicated region
    $region25: #{vae_forward.9} parent=5 // pred_check
      %p150 = pneg %p149
    $region26: #{vae_forward.9} parent=5 // pred_check_branch
      %152 = sbr.rel (%p150) target = $region28
    $region27: #{vae_forward.9} parent=5 // pred_region
      // Predicated region
      $region29: #{vae_forward.9} parent=27 // pred_check
        %p153 = pneg %p30
      $region30: #{vae_forward.9} parent=27 // pred_check_branch
        %155 = sbr.rel (%p153) target = $region32
      $region31: #{vae_forward.9} parent=27 // pred_region
        %s156 = smul.u32 32, %s10
        %p157 = scmp.lt.s32.totalorder %s156, 63
        %s158 = scalar_select %p157, %s156, 63
        %s159 = smul.addr %s158, 2
        %s160 = smul.addr %s159, 4
        %s161 = scalar_lea.vmem %s0, %s160
        %s162 = smul.u32 32, %s10
      $region32: #{vae_forward.9} parent=27 // pred_fallthru
        _
    $region28: #{vae_forward.9} parent=5 // pred_fallthru
      _
    %p163 = scmp.le.s32.totalorder 1, %s10
    %p164 = scmp.lt.s32.totalorder %s10, 3
    %p165 = pnand %p163, %p164
    %p166 = pneg %p165
    // Predicated region
    $region33: #{vae_forward.9} parent=5 // pred_check
      _
    $region34: #{vae_forward.9} parent=5 // pred_check_branch
      %168 = sbr.rel (%p165) target = $region36
    $region35: #{vae_forward.9} parent=5 // pred_region
      %s169 = ssub.s32 %s10, 1
      %s170 = smul.u32 32, %s15
      %p171 = scmp.lt.s32.totalorder %s170, 63
      %s172 = scalar_select %p171, %s170, 63
      %s173 = smul.addr %s172, 2
      %s174 = smul.addr %s173, 4
      %s175 = scalar_lea.vmem %s0, %s174
      %p176 = pneg %p36
      %p177 = pneg %p33
      %p178 = pneg %p57
      %p179 = pneg %p54
      %p180 = pneg %p78
      %p181 = pneg %p75
      %p182 = pneg %p99
      %p183 = pneg %p96
      %p184 = pneg %p125
      %p185 = pneg %p122
      %s186 = smul.u32 32, %s15
      %p187 = scmp.lt.s32.totalorder %s186, 63
      %s188 = scalar_select %p187, %s186, 63
      %s189 = smul.addr %s188, 8
      %s190 = scalar_lea.vmem %s4, %s189
      %s191 = smul.u32 32, %s15
      %p192 = scmp.lt.s32.totalorder %s191, 63
      %s193 = scalar_select %p192, %s191, 63
      %s194 = smul.addr %s193, 2
      %s195 = smul.addr %s194, 4
      %s196 = scalar_lea.vmem %s0, %s195
      %s197 = smul.u32 32, %s15
      %s198 = smul.u32 32, %s15
      %p199 = scmp.lt.s32.totalorder %s198, 63
      %s200 = scalar_select %p199, %s198, 63
      %s201 = smul.addr %s200, 8
      %s202 = scalar_lea.vmem %s4, %s201
      %s203 = smul.u32 32, %s15
      %v205 = vld [vmem:[%s196] sm:$0xff]
      %v206 = vld [vmem:[%s196 + $0x8] sm:$0xff]
      %v207 = vld [vmem:[%s196 + $0x10] sm:$0xff]
      %v208 = vld [vmem:[%s196 + $0x18] sm:$0xff]
      %v209 = vld [vmem:[%s196 + $0x20] sm:$0xff]
      %v210 = vld [vmem:[%s196 + $0x28] sm:$0xff]
      %v211 = vld [vmem:[%s196 + $0x30] sm:$0xff]
      %v212 = vld [vmem:[%s196 + $0x38] sm:$0xff]
      %v213 = vld [vmem:[%s196 + $0x40] sm:$0xff]
      %v214 = vld [vmem:[%s196 + $0x48] sm:$0xff]
      %v215 = vld [vmem:[%s196 + $0x50] sm:$0xff]
      %v216 = vld [vmem:[%s196 + $0x58] sm:$0xff]
      %v217 = vld [vmem:[%s196 + $0x60] sm:$0xff]
      %v218 = vld [vmem:[%s196 + $0x68] sm:$0xff]
      %v219 = vld [vmem:[%s196 + $0x70] sm:$0xff]
      %v220 = vld [vmem:[%s196 + $0x78] sm:$0xff]
      %v221 = vld [vmem:[%s196 + $0x80] sm:$0xff]
      %v222 = vld [vmem:[%s196 + $0x88] sm:$0xff]
      %v223 = vld [vmem:[%s196 + $0x90] sm:$0xff]
      %v224 = vld [vmem:[%s196 + $0x98] sm:$0xff]
      %v225 = vld [vmem:[%s196 + $0xa0] sm:$0xff]
      %v226 = vld [vmem:[%s196 + $0xa8] sm:$0xff]
      %v227 = vld [vmem:[%s196 + $0xb0] sm:$0xff]
      %v228 = vld [vmem:[%s196 + $0xb8] sm:$0xff]
      %v229 = vld [vmem:[%s196 + $0xc0] sm:$0xff]
      %v230 = vld [vmem:[%s196 + $0xc8] sm:$0xff]
      %v231 = vld [vmem:[%s196 + $0xd0] sm:$0xff]
      %v232 = vld [vmem:[%s196 + $0xd8] sm:$0xff]
      %v233 = vld [vmem:[%s196 + $0xe0] sm:$0xff]
      %v234 = vld [vmem:[%s196 + $0xe8] sm:$0xff]
      %v235 = vld [vmem:[%s196 + $0xf0] sm:$0xff]
      %v236 = vld [vmem:[%s196 + $0xf8] sm:$0xff]
      %v237 = vld [vmem:[%s1] sm:$0xf]
      %v238 = vld [vmem:[%s1 + $0x4] sm:$0xf]
      %v239 = vld [vmem:[%s1 + $0x8] sm:$0xf]
      %v240 = vld [vmem:[%s1 + $0xc] sm:$0xf]
      %v241 = vld [vmem:[%s1 + $0x10] sm:$0xf]
      %v242 = vld [vmem:[%s1 + $0x14] sm:$0xf]
      %v243 = vld [vmem:[%s1 + $0x18] sm:$0xf]
      %v244 = vld [vmem:[%s1 + $0x1c] sm:$0xf]
      %v245 = vld [vmem:[%s1 + $0x20] sm:$0xf]
      %v246 = vld [vmem:[%s1 + $0x24] sm:$0xf]
      %v247 = vld [vmem:[%s1 + $0x28] sm:$0xf]
      %v248 = vld [vmem:[%s1 + $0x2c] sm:$0xf]
      %v249 = vld [vmem:[%s1 + $0x30] sm:$0xf]
      %v250 = vld [vmem:[%s1 + $0x34] sm:$0xf]
      %v251 = vld [vmem:[%s1 + $0x38] sm:$0xf]
      %v252 = vld [vmem:[%s1 + $0x3c] sm:$0xf]
      %v253 = vld [vmem:[%s1 + $0x40] sm:$0xf]
      %v254 = vld [vmem:[%s1 + $0x44] sm:$0xf]
      %v255 = vld [vmem:[%s1 + $0x48] sm:$0xf]
      %v256 = vld [vmem:[%s1 + $0x4c] sm:$0xf]
      %v257 = vld [vmem:[%s1 + $0x50] sm:$0xf]
      %v258 = vld [vmem:[%s1 + $0x54] sm:$0xf]
      %v259 = vld [vmem:[%s1 + $0x58] sm:$0xf]
      %v260 = vld [vmem:[%s1 + $0x5c] sm:$0xf]
      %v261 = vld [vmem:[%s1 + $0x60] sm:$0xf]
      %v262 = vld [vmem:[%s1 + $0x64] sm:$0xf]
      %v263 = vld [vmem:[%s1 + $0x68] sm:$0xf]
      %v264 = vld [vmem:[%s1 + $0x6c] sm:$0xf]
      %v265 = vld [vmem:[%s1 + $0x70] sm:$0xf]
      %v266 = vld [vmem:[%s1 + $0x74] sm:$0xf]
      %v267 = vld [vmem:[%s1 + $0x78] sm:$0xf]
      %v268 = vld [vmem:[%s1 + $0x7c] sm:$0xf]
      %v301 = vunpack.c.l.b16 %v205
      %v302 = vunpack.c.h.b16 %v205
      %v303 = vunpack.c.l.b16 %v206
      %v304 = vunpack.c.h.b16 %v206
      %v305 = vunpack.c.l.b16 %v207
      %v306 = vunpack.c.h.b16 %v207
      %v307 = vunpack.c.l.b16 %v208
      %v308 = vunpack.c.h.b16 %v208
      %v309 = vunpack.c.l.b16 %v209
      %v310 = vunpack.c.h.b16 %v209
      %v311 = vunpack.c.l.b16 %v210
      %v312 = vunpack.c.h.b16 %v210
      %v313 = vunpack.c.l.b16 %v211
      %v314 = vunpack.c.h.b16 %v211
      %v315 = vunpack.c.l.b16 %v212
      %v316 = vunpack.c.h.b16 %v212
      %v317 = vunpack.c.l.b16 %v213
      %v318 = vunpack.c.h.b16 %v213
      %v319 = vunpack.c.l.b16 %v214
      %v320 = vunpack.c.h.b16 %v214
      %v321 = vunpack.c.l.b16 %v215
      %v322 = vunpack.c.h.b16 %v215
      %v323 = vunpack.c.l.b16 %v216
      %v324 = vunpack.c.h.b16 %v216
      %v325 = vunpack.c.l.b16 %v217
      %v326 = vunpack.c.h.b16 %v217
      %v327 = vunpack.c.l.b16 %v218
      %v328 = vunpack.c.h.b16 %v218
      %v329 = vunpack.c.l.b16 %v219
      %v330 = vunpack.c.h.b16 %v219
      %v331 = vunpack.c.l.b16 %v220
      %v332 = vunpack.c.h.b16 %v220
      %v333 = vunpack.c.l.b16 %v221
      %v334 = vunpack.c.h.b16 %v221
      %v335 = vunpack.c.l.b16 %v222
      %v336 = vunpack.c.h.b16 %v222
      %v337 = vunpack.c.l.b16 %v223
      %v338 = vunpack.c.h.b16 %v223
      %v339 = vunpack.c.l.b16 %v224
      %v340 = vunpack.c.h.b16 %v224
      %v341 = vunpack.c.l.b16 %v225
      %v342 = vunpack.c.h.b16 %v225
      %v343 = vunpack.c.l.b16 %v226
      %v344 = vunpack.c.h.b16 %v226
      %v345 = vunpack.c.l.b16 %v227
      %v346 = vunpack.c.h.b16 %v227
      %v347 = vunpack.c.l.b16 %v228
      %v348 = vunpack.c.h.b16 %v228
      %v349 = vunpack.c.l.b16 %v229
      %v350 = vunpack.c.h.b16 %v229
      %v351 = vunpack.c.l.b16 %v230
      %v352 = vunpack.c.h.b16 %v230
      %v353 = vunpack.c.l.b16 %v231
      %v354 = vunpack.c.h.b16 %v231
      %v355 = vunpack.c.l.b16 %v232
      %v356 = vunpack.c.h.b16 %v232
      %v357 = vunpack.c.l.b16 %v233
      %v358 = vunpack.c.h.b16 %v233
      %v359 = vunpack.c.l.b16 %v234
      %v360 = vunpack.c.h.b16 %v234
      %v361 = vunpack.c.l.b16 %v235
      %v362 = vunpack.c.h.b16 %v235
      %v363 = vunpack.c.l.b16 %v236
      %v364 = vunpack.c.h.b16 %v236
      %v365 = vpack.c.b16 %v303, %v301
      %v366 = vpack.c.b16 %v304, %v302
      %v367 = vpack.c.b16 %v307, %v305
      %v368 = vpack.c.b16 %v308, %v306
      %v369 = vpack.c.b16 %v311, %v309
      %v370 = vpack.c.b16 %v312, %v310
      %v371 = vpack.c.b16 %v315, %v313
      %v372 = vpack.c.b16 %v316, %v314
      %v373 = vpack.c.b16 %v319, %v317
      %v374 = vpack.c.b16 %v320, %v318
      %v375 = vpack.c.b16 %v323, %v321
      %v376 = vpack.c.b16 %v324, %v322
      %v377 = vpack.c.b16 %v327, %v325
      %v378 = vpack.c.b16 %v328, %v326
      %v379 = vpack.c.b16 %v331, %v329
      %v380 = vpack.c.b16 %v332, %v330
      %v381 = vpack.c.b16 %v335, %v333
      %v382 = vpack.c.b16 %v336, %v334
      %v383 = vpack.c.b16 %v339, %v337
      %v384 = vpack.c.b16 %v340, %v338
      %v385 = vpack.c.b16 %v343, %v341
      %v386 = vpack.c.b16 %v344, %v342
      %v387 = vpack.c.b16 %v347, %v345
      %v388 = vpack.c.b16 %v348, %v346
      %v389 = vpack.c.b16 %v351, %v349
      %v390 = vpack.c.b16 %v352, %v350
      %v391 = vpack.c.b16 %v355, %v353
      %v392 = vpack.c.b16 %v356, %v354
      %v393 = vpack.c.b16 %v359, %v357
      %v394 = vpack.c.b16 %v360, %v358
      %v395 = vpack.c.b16 %v363, %v361
      %v396 = vpack.c.b16 %v364, %v362
      %v461 = vunpack.c.l.b16 %v237
      %v462 = vunpack.c.l.b16 %v238
      %v463 = vunpack.c.l.b16 %v239
      %v464 = vunpack.c.l.b16 %v240
      %v465 = vunpack.c.l.b16 %v241
      %v466 = vunpack.c.l.b16 %v242
      %v467 = vunpack.c.l.b16 %v243
      %v468 = vunpack.c.l.b16 %v244
      %v469 = vunpack.c.l.b16 %v245
      %v470 = vunpack.c.l.b16 %v246
      %v471 = vunpack.c.l.b16 %v247
      %v472 = vunpack.c.l.b16 %v248
      %v473 = vunpack.c.l.b16 %v249
      %v474 = vunpack.c.l.b16 %v250
      %v475 = vunpack.c.l.b16 %v251
      %v476 = vunpack.c.l.b16 %v252
      %v477 = vunpack.c.l.b16 %v253
      %v478 = vunpack.c.l.b16 %v254
      %v479 = vunpack.c.l.b16 %v255
      %v480 = vunpack.c.l.b16 %v256
      %v481 = vunpack.c.l.b16 %v257
      %v482 = vunpack.c.l.b16 %v258
      %v483 = vunpack.c.l.b16 %v259
      %v484 = vunpack.c.l.b16 %v260
      %v485 = vunpack.c.l.b16 %v261
      %v486 = vunpack.c.l.b16 %v262
      %v487 = vunpack.c.l.b16 %v263
      %v488 = vunpack.c.l.b16 %v264
      %v489 = vunpack.c.l.b16 %v265
      %v490 = vunpack.c.l.b16 %v266
      %v491 = vunpack.c.l.b16 %v267
      %v492 = vunpack.c.l.b16 %v268
      %v493 = vpack.c.b16 %v462, %v461
      %v494 = vpack.c.b16 %v464, %v463
      %v495 = vpack.c.b16 %v466, %v465
      %v496 = vpack.c.b16 %v468, %v467
      %v497 = vpack.c.b16 %v470, %v469
      %v498 = vpack.c.b16 %v472, %v471
      %v499 = vpack.c.b16 %v474, %v473
      %v500 = vpack.c.b16 %v476, %v475
      %v501 = vpack.c.b16 %v478, %v477
      %v502 = vpack.c.b16 %v480, %v479
      %v503 = vpack.c.b16 %v482, %v481
      %v504 = vpack.c.b16 %v484, %v483
      %v505 = vpack.c.b16 %v486, %v485
      %v506 = vpack.c.b16 %v488, %v487
      %v507 = vpack.c.b16 %v490, %v489
      %v508 = vpack.c.b16 %v492, %v491
      %525 = vmatprep.subr.bf16.mxu0 0
      %526 = vmatpush1.bf16.msra.mxu0 %v500
      %527 = vmatprep.subr.bf16.mxu0 0
      %528 = vmatpush1.bf16.msra.mxu0 %v499
      %529 = vmatprep.subr.bf16.mxu0 0
      %530 = vmatpush1.bf16.msra.mxu0 %v498
      %531 = vmatprep.subr.bf16.mxu0 0
      %532 = vmatpush1.bf16.msra.mxu0 %v497
      %533 = vmatprep.subr.bf16.mxu0 0
      %534 = vmatpush1.bf16.msra.mxu0 %v496
      %535 = vmatprep.subr.bf16.mxu0 0
      %536 = vmatpush1.bf16.msra.mxu0 %v495
      %537 = vmatprep.subr.bf16.mxu0 0
      %538 = vmatpush1.bf16.msra.mxu0 %v494
      %539 = vmatprep.subr.bf16.mxu0 0
      %540 = vmatpush1.bf16.msra.mxu0 %v493
      %541 = vmatprep.subr.bf16.mxu0 0
      %542 = vmatpush2.bf16.msra.mxu0 %v508
      %543 = vmatprep.subr.bf16.mxu0 0
      %544 = vmatpush2.bf16.msra.mxu0 %v507
      %545 = vmatprep.subr.bf16.mxu0 0
      %546 = vmatpush2.bf16.msra.mxu0 %v506
      %547 = vmatprep.subr.bf16.mxu0 0
      %548 = vmatpush2.bf16.msra.mxu0 %v505
      %549 = vmatprep.subr.bf16.mxu0 0
      %550 = vmatpush2.bf16.msra.mxu0 %v504
      %551 = vmatprep.subr.bf16.mxu0 0
      %552 = vmatpush2.bf16.msra.mxu0 %v503
      %553 = vmatprep.subr.bf16.mxu0 0
      %554 = vmatpush2.bf16.msra.mxu0 %v502
      %555 = vmatprep.subr.bf16.mxu0 0
      %556 = vmatpush2.bf16.msra.mxu0 %v501
      %557 = vmatprep.mubr.bf16.mxu0 %v366
      %558 = vmatmul.mubr.bf16.gmra.mxu0 %v365
      %v559 = vpop.f32.mrf.mxu0
      %v560 = vadd.f32 0.0, %v559
      %v561 = vpop.f32.mrf.mxu0
      %v562 = vpop.f32.mrf.mxu0
      %v563 = vadd.f32 0.0, %v562
      %v564 = vpop.f32.mrf.mxu0
      %565 = vmatprep.mubr.bf16.mxu0 %v368
      %566 = vmatmul.mubr.bf16.gmra.mxu0 %v367
      %v567 = vpop.f32.mrf.mxu0
      %v568 = vadd.f32 0.0, %v567
      %v569 = vpop.f32.mrf.mxu0
      %v570 = vpop.f32.mrf.mxu0
      %v571 = vadd.f32 0.0, %v570
      %v572 = vpop.f32.mrf.mxu0
      %573 = vmatprep.mubr.bf16.mxu0 %v370
      %574 = vmatmul.mubr.bf16.gmra.mxu0 %v369
      %v575 = vpop.f32.mrf.mxu0
      %v576 = vadd.f32 0.0, %v575
      %v577 = vpop.f32.mrf.mxu0
      %v578 = vpop.f32.mrf.mxu0
      %v579 = vadd.f32 0.0, %v578
      %v580 = vpop.f32.mrf.mxu0
      %581 = vmatprep.mubr.bf16.mxu0 %v372
      %582 = vmatmul.mubr.bf16.gmra.mxu0 %v371
      %v583 = vpop.f32.mrf.mxu0
      %v584 = vadd.f32 0.0, %v583
      %v585 = vpop.f32.mrf.mxu0
      %v586 = vpop.f32.mrf.mxu0
      %v587 = vadd.f32 0.0, %v586
      %v588 = vpop.f32.mrf.mxu0
      %589 = vmatprep.mubr.bf16.mxu0 %v374
      %590 = vmatmul.mubr.bf16.gmra.mxu0 %v373
      %v591 = vpop.f32.mrf.mxu0
      %v592 = vadd.f32 0.0, %v591
      %v593 = vpop.f32.mrf.mxu0
      %v594 = vpop.f32.mrf.mxu0
      %v595 = vadd.f32 0.0, %v594
      %v596 = vpop.f32.mrf.mxu0
      %597 = vmatprep.mubr.bf16.mxu0 %v376
      %598 = vmatmul.mubr.bf16.gmra.mxu0 %v375
      %v599 = vpop.f32.mrf.mxu0
      %v600 = vadd.f32 0.0, %v599
      %v601 = vpop.f32.mrf.mxu0
      %v602 = vpop.f32.mrf.mxu0
      %v603 = vadd.f32 0.0, %v602
      %v604 = vpop.f32.mrf.mxu0
      %605 = vmatprep.mubr.bf16.mxu0 %v378
      %606 = vmatmul.mubr.bf16.gmra.mxu0 %v377
      %v607 = vpop.f32.mrf.mxu0
      %v608 = vadd.f32 0.0, %v607
      %v609 = vpop.f32.mrf.mxu0
      %v610 = vpop.f32.mrf.mxu0
      %v611 = vadd.f32 0.0, %v610
      %v612 = vpop.f32.mrf.mxu0
      %613 = vmatprep.mubr.bf16.mxu0 %v380
      %614 = vmatmul.mubr.bf16.gmra.mxu0 %v379
      %v615 = vpop.f32.mrf.mxu0
      %v616 = vadd.f32 0.0, %v615
      %v617 = vpop.f32.mrf.mxu0
      %v618 = vpop.f32.mrf.mxu0
      %v619 = vadd.f32 0.0, %v618
      %v620 = vpop.f32.mrf.mxu0
      %621 = vmatprep.mubr.bf16.mxu0 %v382
      %622 = vmatmul.mubr.bf16.gmra.mxu0 %v381
      %v623 = vpop.f32.mrf.mxu0
      %v624 = vadd.f32 0.0, %v623
      %v625 = vpop.f32.mrf.mxu0
      %v626 = vpop.f32.mrf.mxu0
      %v627 = vadd.f32 0.0, %v626
      %v628 = vpop.f32.mrf.mxu0
      %629 = vmatprep.mubr.bf16.mxu0 %v384
      %630 = vmatmul.mubr.bf16.gmra.mxu0 %v383
      %v631 = vpop.f32.mrf.mxu0
      %v632 = vadd.f32 0.0, %v631
      %v633 = vpop.f32.mrf.mxu0
      %v634 = vpop.f32.mrf.mxu0
      %v635 = vadd.f32 0.0, %v634
      %v636 = vpop.f32.mrf.mxu0
      %637 = vmatprep.mubr.bf16.mxu0 %v386
      %638 = vmatmul.mubr.bf16.gmra.mxu0 %v385
      %v639 = vpop.f32.mrf.mxu0
      %v640 = vadd.f32 0.0, %v639
      %v641 = vpop.f32.mrf.mxu0
      %v642 = vpop.f32.mrf.mxu0
      %v643 = vadd.f32 0.0, %v642
      %v644 = vpop.f32.mrf.mxu0
      %645 = vmatprep.mubr.bf16.mxu0 %v388
      %646 = vmatmul.mubr.bf16.gmra.mxu0 %v387
      %v647 = vpop.f32.mrf.mxu0
      %v648 = vadd.f32 0.0, %v647
      %v649 = vpop.f32.mrf.mxu0
      %v650 = vpop.f32.mrf.mxu0
      %v651 = vadd.f32 0.0, %v650
      %v652 = vpop.f32.mrf.mxu0
      %653 = vmatprep.mubr.bf16.mxu0 %v390
      %654 = vmatmul.mubr.bf16.gmra.mxu0 %v389
      %v655 = vpop.f32.mrf.mxu0
      %v656 = vadd.f32 0.0, %v655
      %v657 = vpop.f32.mrf.mxu0
      %v658 = vpop.f32.mrf.mxu0
      %v659 = vadd.f32 0.0, %v658
      %v660 = vpop.f32.mrf.mxu0
      %661 = vmatprep.mubr.bf16.mxu0 %v392
      %662 = vmatmul.mubr.bf16.gmra.mxu0 %v391
      %v663 = vpop.f32.mrf.mxu0
      %v664 = vadd.f32 0.0, %v663
      %v665 = vpop.f32.mrf.mxu0
      %v666 = vpop.f32.mrf.mxu0
      %v667 = vadd.f32 0.0, %v666
      %v668 = vpop.f32.mrf.mxu0
      %669 = vmatprep.mubr.bf16.mxu0 %v394
      %670 = vmatmul.mubr.bf16.gmra.mxu0 %v393
      %v671 = vpop.f32.mrf.mxu0
      %v672 = vadd.f32 0.0, %v671
      %v673 = vpop.f32.mrf.mxu0
      %v674 = vpop.f32.mrf.mxu0
      %v675 = vadd.f32 0.0, %v674
      %v676 = vpop.f32.mrf.mxu0
      %677 = vmatprep.mubr.bf16.mxu0 %v396
      %678 = vmatmul.mubr.bf16.gmra.mxu0 %v395
      %v679 = vpop.f32.mrf.mxu0
      %v680 = vadd.f32 0.0, %v679
      %v681 = vpop.f32.mrf.mxu0
      %v682 = vpop.f32.mrf.mxu0
      %v683 = vadd.f32 0.0, %v682
      %v684 = vpop.f32.mrf.mxu0
      %685 = vdwg.mxu0
      %v686 = vld [vmem:[%s2] sm:$0x1]
      %v688 = vlaneseq
      %v689 = vshrl.u32 %v688, 7
      %v690 = vsub.s32 0, %v689
      %v691 = vrot.slane %v686, %v690
      %v693 = vmul.f32 %v560, %v691
      %v694 = vmul.f32 %v563, %v691
      %v695 = vmul.f32 %v568, %v691
      %v696 = vmul.f32 %v571, %v691
      %v697 = vmul.f32 %v576, %v691
      %v698 = vmul.f32 %v579, %v691
      %v699 = vmul.f32 %v584, %v691
      %v700 = vmul.f32 %v587, %v691
      %v701 = vmul.f32 %v592, %v691
      %v702 = vmul.f32 %v595, %v691
      %v703 = vmul.f32 %v600, %v691
      %v704 = vmul.f32 %v603, %v691
      %v705 = vmul.f32 %v608, %v691
      %v706 = vmul.f32 %v611, %v691
      %v707 = vmul.f32 %v616, %v691
      %v708 = vmul.f32 %v619, %v691
      %v709 = vmul.f32 %v624, %v691
      %v710 = vmul.f32 %v627, %v691
      %v711 = vmul.f32 %v632, %v691
      %v712 = vmul.f32 %v635, %v691
      %v713 = vmul.f32 %v640, %v691
      %v714 = vmul.f32 %v643, %v691
      %v715 = vmul.f32 %v648, %v691
      %v716 = vmul.f32 %v651, %v691
      %v717 = vmul.f32 %v656, %v691
      %v718 = vmul.f32 %v659, %v691
      %v719 = vmul.f32 %v664, %v691
      %v720 = vmul.f32 %v667, %v691
      %v721 = vmul.f32 %v672, %v691
      %v722 = vmul.f32 %v675, %v691
      %v723 = vmul.f32 %v680, %v691
      %v724 = vmul.f32 %v683, %v691
      %v725 = vld [vmem:[%s3] sm:$0x1]
      %v727 = vlaneseq
      %v728 = vshrl.u32 %v727, 7
      %v729 = vsub.s32 0, %v728
      %v730 = vrot.slane %v725, %v729
      %v732 = vadd.f32 %v693, %v730
      %v733 = vadd.f32 %v694, %v730
      %v734 = vadd.f32 %v695, %v730
      %v735 = vadd.f32 %v696, %v730
      %v736 = vadd.f32 %v697, %v730
      %v737 = vadd.f32 %v698, %v730
      %v738 = vadd.f32 %v699, %v730
      %v739 = vadd.f32 %v700, %v730
      %v740 = vadd.f32 %v701, %v730
      %v741 = vadd.f32 %v702, %v730
      %v742 = vadd.f32 %v703, %v730
      %v743 = vadd.f32 %v704, %v730
      %v744 = vadd.f32 %v705, %v730
      %v745 = vadd.f32 %v706, %v730
      %v746 = vadd.f32 %v707, %v730
      %v747 = vadd.f32 %v708, %v730
      %v748 = vadd.f32 %v709, %v730
      %v749 = vadd.f32 %v710, %v730
      %v750 = vadd.f32 %v711, %v730
      %v751 = vadd.f32 %v712, %v730
      %v752 = vadd.f32 %v713, %v730
      %v753 = vadd.f32 %v714, %v730
      %v754 = vadd.f32 %v715, %v730
      %v755 = vadd.f32 %v716, %v730
      %v756 = vadd.f32 %v717, %v730
      %v757 = vadd.f32 %v718, %v730
      %v758 = vadd.f32 %v719, %v730
      %v759 = vadd.f32 %v720, %v730
      %v760 = vadd.f32 %v721, %v730
      %v761 = vadd.f32 %v722, %v730
      %v762 = vadd.f32 %v723, %v730
      %v763 = vadd.f32 %v724, %v730
      %v764 = vmax.f32 %v732, 0.0
      %v765 = vmax.f32 %v733, 0.0
      %v766 = vmax.f32 %v734, 0.0
      %v767 = vmax.f32 %v735, 0.0
      %v768 = vmax.f32 %v736, 0.0
      %v769 = vmax.f32 %v737, 0.0
      %v770 = vmax.f32 %v738, 0.0
      %v771 = vmax.f32 %v739, 0.0
      %v772 = vmax.f32 %v740, 0.0
      %v773 = vmax.f32 %v741, 0.0
      %v774 = vmax.f32 %v742, 0.0
      %v775 = vmax.f32 %v743, 0.0
      %v776 = vmax.f32 %v744, 0.0
      %v777 = vmax.f32 %v745, 0.0
      %v778 = vmax.f32 %v746, 0.0
      %v779 = vmax.f32 %v747, 0.0
      %v780 = vmax.f32 %v748, 0.0
      %v781 = vmax.f32 %v749, 0.0
      %v782 = vmax.f32 %v750, 0.0
      %v783 = vmax.f32 %v751, 0.0
      %v784 = vmax.f32 %v752, 0.0
      %v785 = vmax.f32 %v753, 0.0
      %v786 = vmax.f32 %v754, 0.0
      %v787 = vmax.f32 %v755, 0.0
      %v788 = vmax.f32 %v756, 0.0
      %v789 = vmax.f32 %v757, 0.0
      %v790 = vmax.f32 %v758, 0.0
      %v791 = vmax.f32 %v759, 0.0
      %v792 = vmax.f32 %v760, 0.0
      %v793 = vmax.f32 %v761, 0.0
      %v794 = vmax.f32 %v762, 0.0
      %v795 = vmax.f32 %v763, 0.0
      %796 = vst [vmem:[%s202] sm:$0xff] %v764
      %797 = vst [vmem:[%s202 + $0x8] sm:$0xff] %v765
      %798 = vst [vmem:[%s202 + $0x10] sm:$0xff] %v766
      %799 = vst [vmem:[%s202 + $0x18] sm:$0xff] %v767
      %800 = vst [vmem:[%s202 + $0x20] sm:$0xff] %v768
      %801 = vst [vmem:[%s202 + $0x28] sm:$0xff] %v769
      %802 = vst [vmem:[%s202 + $0x30] sm:$0xff] %v770
      %803 = vst [vmem:[%s202 + $0x38] sm:$0xff] %v771
      %804 = vst [vmem:[%s202 + $0x40] sm:$0xff] %v772
      %805 = vst [vmem:[%s202 + $0x48] sm:$0xff] %v773
      %806 = vst [vmem:[%s202 + $0x50] sm:$0xff] %v774
      %807 = vst [vmem:[%s202 + $0x58] sm:$0xff] %v775
      %808 = vst [vmem:[%s202 + $0x60] sm:$0xff] %v776
      %809 = vst [vmem:[%s202 + $0x68] sm:$0xff] %v777
      %810 = vst [vmem:[%s202 + $0x70] sm:$0xff] %v778
      %811 = vst [vmem:[%s202 + $0x78] sm:$0xff] %v779
      %812 = vst [vmem:[%s202 + $0x80] sm:$0xff] %v780
      %813 = vst [vmem:[%s202 + $0x88] sm:$0xff] %v781
      %814 = vst [vmem:[%s202 + $0x90] sm:$0xff] %v782
      %815 = vst [vmem:[%s202 + $0x98] sm:$0xff] %v783
      %816 = vst [vmem:[%s202 + $0xa0] sm:$0xff] %v784
      %817 = vst [vmem:[%s202 + $0xa8] sm:$0xff] %v785
      %818 = vst [vmem:[%s202 + $0xb0] sm:$0xff] %v786
      %819 = vst [vmem:[%s202 + $0xb8] sm:$0xff] %v787
      %820 = vst [vmem:[%s202 + $0xc0] sm:$0xff] %v788
      %821 = vst [vmem:[%s202 + $0xc8] sm:$0xff] %v789
      %822 = vst [vmem:[%s202 + $0xd0] sm:$0xff] %v790
      %823 = vst [vmem:[%s202 + $0xd8] sm:$0xff] %v791
      %824 = vst [vmem:[%s202 + $0xe0] sm:$0xff] %v792
      %825 = vst [vmem:[%s202 + $0xe8] sm:$0xff] %v793
      %826 = vst [vmem:[%s202 + $0xf0] sm:$0xff] %v794
      %827 = vst [vmem:[%s202 + $0xf8] sm:$0xff] %v795
      %s828 = smul.u32 32, %s15
      %p829 = scmp.lt.s32.totalorder %s828, 63
      %s830 = scalar_select %p829, %s828, 63
      %s831 = smul.addr %s830, 8
      %s832 = scalar_lea.vmem %s4, %s831
      // Predicated region
      $region37: #{vae_forward.9} parent=35 // pred_check
        %p833 = pneg %p122
      $region38: #{vae_forward.9} parent=35 // pred_check_branch
        %835 = sbr.rel (%p833) target = $region40
      $region39: #{vae_forward.9} parent=35 // pred_region
        %s836 = smul.u32 32, %s15
      $region40: #{vae_forward.9} parent=35 // pred_fallthru
        _
    $region36: #{vae_forward.9} parent=5 // pred_fallthru
      _
    %p837 = scmp.le.s32.totalorder 2, %s10
    // Predicated region
    $region41: #{vae_forward.9} parent=5 // pred_check
      %p838 = pneg %p837
    $region42: #{vae_forward.9} parent=5 // pred_check_branch
      %840 = sbr.rel (%p838) target = $region44
    $region43: #{vae_forward.9} parent=5 // pred_region
      %s841 = ssub.s32 %s10, 2
      // Predicated region
      $region45: #{vae_forward.9} parent=43 // pred_check
        %p842 = pneg %p128
      $region46: #{vae_forward.9} parent=43 // pred_check_branch
        %844 = sbr.rel (%p842) target = $region48
      $region47: #{vae_forward.9} parent=43 // pred_region
        %s845 = smul.u32 32, %s16
        %p846 = scmp.lt.s32.totalorder %s845, 63
        %s847 = scalar_select %p846, %s845, 63
        %s848 = smul.addr %s847, 8
        %s849 = scalar_lea.vmem %s4, %s848
      $region48: #{vae_forward.9} parent=43 // pred_fallthru
        _
    $region44: #{vae_forward.9} parent=5 // pred_fallthru
      _
  $region6: #{vae_forward.9} parent=0 // loop_footer
    %s14 = sadd.s32 1, %s10
  $region7: #{vae_forward.9} parent=0 // loop_footer_branch
    %9 = sbr.rel target = $region3
  $region8: #{vae_forward.9} parent=0 // loop_exit
    _

// kernel: vae_forward.10
$region0: #{vae_forward.10}
  #allocation0 [shape = 'u32[]', space=smem, size = 0x4, offset = 0x4, fixed_abs, tag = 'smem constant byte address 0x4 - core index']
  #allocation1 [shape = 'u32[144,128]{1,0:T(1,128)}', space=vmem, size = 0x12000, scoped, tag = 'internal scratch']
  %s0 = inlined_call_operand.vmem [shape: bf16[32,512], index: 0, kind: input, shape index: {}]
  %s1 = inlined_call_operand.vmem [shape: bf16[512,128], index: 1, kind: input, shape index: {}]
  %s2 = inlined_call_operand.vmem [shape: f32[1,128], index: 2, kind: input, shape index: {}]
  %s3 = inlined_call_operand.vmem [shape: f32[1,128], index: 3, kind: input, shape index: {}]
  %s4 = inlined_call_operand.vmem [shape: f32[32,128], index: 4, kind: output, shape index: {}]
  %s5 = sld [smem:[#allocation0]]
  $region49: #{vae_forward.10} parent=0
    _
  %s7 = ssub.s32 1, %s5
  %s8 = scalar_select 0, %s7, %s5
  loop: start=0, step=1, limit=4
  $region2: #{vae_forward.10} parent=0 // loop_pre_header
    _
  $region3: #{vae_forward.10} parent=0 // loop_header
    %s10 = sphi 0, %s14
    %p11 = scmp.ge.s32.totalorder %s10, 4
    %s20 = sphi 0, %s22
    %s23 = sphi 0, %s20
    %s24 = sphi 0, %s23
    %s40 = sphi 0, %s24
    %s44 = sphi 0, %s44
    %s46 = sphi 0, %s44
    %s47 = sphi 0, %s46
    %s61 = sphi 0, %s47
    %s65 = sphi 0, %s65
    %s67 = sphi 0, %s65
    %s68 = sphi 0, %s67
    %s82 = sphi 0, %s68
    %s86 = sphi 0, %s86
    %s88 = sphi 0, %s86
    %s89 = sphi 0, %s88
    %s103 = sphi 0, %s89
    %s109 = sphi 0, %s111
    %s112 = sphi 0, %s109
    %s113 = sphi 0, %s112
    %s129 = sphi 0, %s113
  $region4: #{vae_forward.10} parent=0 // loop_header_branch
    %13 = sbr.rel (%p11) target = $region8
  $region5: #{vae_forward.10} parent=0 // loop_body
    %s15 = ssub.s32 %s10, 1
    %s16 = ssub.s32 %s10, 2
    %s17 = sadd.s32 %s10, 1
    %s18 = ssub.s32 %s10, %s17
    %p19 = scmp.eq.s32.totalorder %s18, 0
    %s21 = sadd.s32 %s20, 1
    %s22 = scalar_select %p19, %s20, %s21
    %p25 = pneg %p19
    %p26 = scmp.eq.s32.totalorder %s10, 1
    %p27 = por %p25, %p26
    %p28 = scmp.ne.s32.totalorder %s20, %s23
    %p29 = scmp.eq.s32.totalorder %s10, 0
    %p30 = por %p28, %p29
    %p31 = scmp.ne.s32.totalorder %s20, %s23
    %p32 = scmp.eq.s32.totalorder %s15, 1
    %p33 = por %p31, %p32
    %p34 = scmp.ne.s32.totalorder %s23, %s24
    %p35 = scmp.eq.s32.totalorder %s15, 0
    %p36 = por %p34, %p35
    %p37 = scmp.ne.s32.totalorder %s23, %s24
    %p38 = scmp.eq.s32.totalorder %s16, 1
    %p39 = por %p37, %p38
    %p41 = scmp.ne.s32.totalorder %s24, %s40
    %p42 = scmp.eq.s32.totalorder %s16, 0
    %p43 = por %p41, %p42
    %s45 = sadd.s32 %s44, 1
    %p48 = scmp.eq.s32.totalorder %s10, 1
    %p49 = scmp.ne.s32.totalorder %s44, %s46
    %p50 = scmp.eq.s32.totalorder %s10, 0
    %p51 = por %p49, %p50
    %p52 = scmp.ne.s32.totalorder %s44, %s46
    %p53 = scmp.eq.s32.totalorder %s15, 1
    %p54 = por %p52, %p53
    %p55 = scmp.ne.s32.totalorder %s46, %s47
    %p56 = scmp.eq.s32.totalorder %s15, 0
    %p57 = por %p55, %p56
    %p58 = scmp.ne.s32.totalorder %s46, %s47
    %p59 = scmp.eq.s32.totalorder %s16, 1
    %p60 = por %p58, %p59
    %p62 = scmp.ne.s32.totalorder %s47, %s61
    %p63 = scmp.eq.s32.totalorder %s16, 0
    %p64 = por %p62, %p63
    %s66 = sadd.s32 %s65, 1
    %p69 = scmp.eq.s32.totalorder %s10, 1
    %p70 = scmp.ne.s32.totalorder %s65, %s67
    %p71 = scmp.eq.s32.totalorder %s10, 0
    %p72 = por %p70, %p71
    %p73 = scmp.ne.s32.totalorder %s65, %s67
    %p74 = scmp.eq.s32.totalorder %s15, 1
    %p75 = por %p73, %p74
    %p76 = scmp.ne.s32.totalorder %s67, %s68
    %p77 = scmp.eq.s32.totalorder %s15, 0
    %p78 = por %p76, %p77
    %p79 = scmp.ne.s32.totalorder %s67, %s68
    %p80 = scmp.eq.s32.totalorder %s16, 1
    %p81 = por %p79, %p80
    %p83 = scmp.ne.s32.totalorder %s68, %s82
    %p84 = scmp.eq.s32.totalorder %s16, 0
    %p85 = por %p83, %p84
    %s87 = sadd.s32 %s86, 1
    %p90 = scmp.eq.s32.totalorder %s10, 1
    %p91 = scmp.ne.s32.totalorder %s86, %s88
    %p92 = scmp.eq.s32.totalorder %s10, 0
    %p93 = por %p91, %p92
    %p94 = scmp.ne.s32.totalorder %s86, %s88
    %p95 = scmp.eq.s32.totalorder %s15, 1
    %p96 = por %p94, %p95
    %p97 = scmp.ne.s32.totalorder %s88, %s89
    %p98 = scmp.eq.s32.totalorder %s15, 0
    %p99 = por %p97, %p98
    %p100 = scmp.ne.s32.totalorder %s88, %s89
    %p101 = scmp.eq.s32.totalorder %s16, 1
    %p102 = por %p100, %p101
    %p104 = scmp.ne.s32.totalorder %s89, %s103
    %p105 = scmp.eq.s32.totalorder %s16, 0
    %p106 = por %p104, %p105
    %s107 = ssub.s32 %s10, %s17
    %p108 = scmp.eq.s32.totalorder %s107, 0
    %s110 = sadd.s32 %s109, 1
    %s111 = scalar_select %p108, %s109, %s110
    %p114 = pneg %p108
    %p115 = scmp.eq.s32.totalorder %s10, 1
    %p116 = por %p114, %p115
    %p117 = scmp.ne.s32.totalorder %s109, %s112
    %p118 = scmp.eq.s32.totalorder %s10, 0
    %p119 = por %p117, %p118
    %p120 = scmp.ne.s32.totalorder %s109, %s112
    %p121 = scmp.eq.s32.totalorder %s15, 1
    %p122 = por %p120, %p121
    %p123 = scmp.ne.s32.totalorder %s112, %s113
    %p124 = scmp.eq.s32.totalorder %s15, 0
    %p125 = por %p123, %p124
    %p126 = scmp.ne.s32.totalorder %s112, %s113
    %p127 = scmp.eq.s32.totalorder %s16, 1
    %p128 = por %p126, %p127
    %p130 = scmp.ne.s32.totalorder %s113, %s129
    %p131 = scmp.eq.s32.totalorder %s16, 0
    %p132 = por %p130, %p131
    %p133 = scmp.le.s32.totalorder 1, %s10
    %p134 = scmp.lt.s32.totalorder %s10, 3
    %p135 = pnand %p133, %p134
    %p136 = pneg %p135
    // Predicated region
    $region9: #{vae_forward.10} parent=5 // pred_check
      _
    $region10: #{vae_forward.10} parent=5 // pred_check_branch
      %138 = sbr.rel (%p135) target = $region12
    $region11: #{vae_forward.10} parent=5 // pred_region
      %s139 = ssub.s32 %s10, 1
      // Predicated region
      $region13: #{vae_forward.10} parent=11 // pred_check
        %p140 = pneg %p57
      $region14: #{vae_forward.10} parent=11 // pred_check_branch
        %142 = sbr.rel (%p140) target = $region16
      $region15: #{vae_forward.10} parent=11 // pred_region
        _
      $region16: #{vae_forward.10} parent=11 // pred_fallthru
        _
      // Predicated region
      $region17: #{vae_forward.10} parent=11 // pred_check
        %p143 = pneg %p78
      $region18: #{vae_forward.10} parent=11 // pred_check_branch
        %145 = sbr.rel (%p143) target = $region20
      $region19: #{vae_forward.10} parent=11 // pred_region
        _
      $region20: #{vae_forward.10} parent=11 // pred_fallthru
        _
      // Predicated region
      $region21: #{vae_forward.10} parent=11 // pred_check
        %p146 = pneg %p99
      $region22: #{vae_forward.10} parent=11 // pred_check_branch
        %148 = sbr.rel (%p146) target = $region24
      $region23: #{vae_forward.10} parent=11 // pred_region
        _
      $region24: #{vae_forward.10} parent=11 // pred_fallthru
        _
    $region12: #{vae_forward.10} parent=5 // pred_fallthru
      _
    %p149 = scmp.lt.s32.totalorder %s10, 2
    // Predicated region
    $region25: #{vae_forward.10} parent=5 // pred_check
      %p150 = pneg %p149
    $region26: #{vae_forward.10} parent=5 // pred_check_branch
      %152 = sbr.rel (%p150) target = $region28
    $region27: #{vae_forward.10} parent=5 // pred_region
      // Predicated region
      $region29: #{vae_forward.10} parent=27 // pred_check
        %p153 = pneg %p30
      $region30: #{vae_forward.10} parent=27 // pred_check_branch
        %155 = sbr.rel (%p153) target = $region32
      $region31: #{vae_forward.10} parent=27 // pred_region
        %s156 = smul.u32 2, %s10
        %p157 = scmp.lt.s32.totalorder %s156, 3
        %s158 = scalar_select %p157, %s156, 3
        %s159 = smul.addr %s158, 4
        %s160 = smul.addr %s159, 4
        %s161 = scalar_lea.vmem %s0, %s160
        %s162 = smul.u32 2, %s10
      $region32: #{vae_forward.10} parent=27 // pred_fallthru
        _
    $region28: #{vae_forward.10} parent=5 // pred_fallthru
      _
    %p163 = scmp.le.s32.totalorder 1, %s10
    %p164 = scmp.lt.s32.totalorder %s10, 3
    %p165 = pnand %p163, %p164
    %p166 = pneg %p165
    // Predicated region
    $region33: #{vae_forward.10} parent=5 // pred_check
      _
    $region34: #{vae_forward.10} parent=5 // pred_check_branch
      %168 = sbr.rel (%p165) target = $region36
    $region35: #{vae_forward.10} parent=5 // pred_region
      %s169 = ssub.s32 %s10, 1
      %s170 = smul.u32 2, %s15
      %p171 = scmp.lt.s32.totalorder %s170, 3
      %s172 = scalar_select %p171, %s170, 3
      %s173 = smul.addr %s172, 4
      %s174 = smul.addr %s173, 4
      %s175 = scalar_lea.vmem %s0, %s174
      %p176 = pneg %p36
      %p177 = pneg %p33
      %p178 = pneg %p57
      %p179 = pneg %p54
      %p180 = pneg %p78
      %p181 = pneg %p75
      %p182 = pneg %p99
      %p183 = pneg %p96
      %p184 = pneg %p125
      %p185 = pneg %p122
      %s186 = smul.u32 2, %s15
      %p187 = scmp.lt.s32.totalorder %s186, 3
      %s188 = scalar_select %p187, %s186, 3
      %s189 = smul.addr %s188, 8
      %s190 = scalar_lea.vmem %s4, %s189
      %s191 = smul.u32 2, %s15
      %p192 = scmp.lt.s32.totalorder %s191, 3
      %s193 = scalar_select %p192, %s191, 3
      %s194 = smul.addr %s193, 4
      %s195 = smul.addr %s194, 4
      %s196 = scalar_lea.vmem %s0, %s195
      %s197 = smul.u32 2, %s15
      %s198 = smul.u32 2, %s15
      %p199 = scmp.lt.s32.totalorder %s198, 3
      %s200 = scalar_select %p199, %s198, 3
      %s201 = smul.addr %s200, 8
      %s202 = scalar_lea.vmem %s4, %s201
      %s203 = smul.u32 2, %s15
      %v205 = vld [vmem:[%s196] sm:$0xff]
      %v206 = vld [vmem:[%s196 + $0x8] sm:$0xff]
      %v207 = vld [vmem:[%s196 + $0x10] sm:$0xff]
      %v208 = vld [vmem:[%s196 + $0x18] sm:$0xff]
      %v209 = vld [vmem:[%s1] sm:$0xf]
      %v210 = vld [vmem:[%s1 + $0x4] sm:$0xf]
      %v211 = vld [vmem:[%s1 + $0x8] sm:$0xf]
      %v212 = vld [vmem:[%s1 + $0xc] sm:$0xf]
      %v213 = vld [vmem:[%s1 + $0x10] sm:$0xf]
      %v214 = vld [vmem:[%s1 + $0x14] sm:$0xf]
      %v215 = vld [vmem:[%s1 + $0x18] sm:$0xf]
      %v216 = vld [vmem:[%s1 + $0x1c] sm:$0xf]
      %v217 = vld [vmem:[%s1 + $0x20] sm:$0xf]
      %v218 = vld [vmem:[%s1 + $0x24] sm:$0xf]
      %v219 = vld [vmem:[%s1 + $0x28] sm:$0xf]
      %v220 = vld [vmem:[%s1 + $0x2c] sm:$0xf]
      %v221 = vld [vmem:[%s1 + $0x30] sm:$0xf]
      %v222 = vld [vmem:[%s1 + $0x34] sm:$0xf]
      %v223 = vld [vmem:[%s1 + $0x38] sm:$0xf]
      %v224 = vld [vmem:[%s1 + $0x3c] sm:$0xf]
      %v225 = vld [vmem:[%s1 + $0x40] sm:$0xf]
      %v226 = vld [vmem:[%s1 + $0x44] sm:$0xf]
      %v227 = vld [vmem:[%s1 + $0x48] sm:$0xf]
      %v228 = vld [vmem:[%s1 + $0x4c] sm:$0xf]
      %v229 = vld [vmem:[%s1 + $0x50] sm:$0xf]
      %v230 = vld [vmem:[%s1 + $0x54] sm:$0xf]
      %v231 = vld [vmem:[%s1 + $0x58] sm:$0xf]
      %v232 = vld [vmem:[%s1 + $0x5c] sm:$0xf]
      %v233 = vld [vmem:[%s1 + $0x60] sm:$0xf]
      %v234 = vld [vmem:[%s1 + $0x64] sm:$0xf]
      %v235 = vld [vmem:[%s1 + $0x68] sm:$0xf]
      %v236 = vld [vmem:[%s1 + $0x6c] sm:$0xf]
      %v237 = vld [vmem:[%s1 + $0x70] sm:$0xf]
      %v238 = vld [vmem:[%s1 + $0x74] sm:$0xf]
      %v239 = vld [vmem:[%s1 + $0x78] sm:$0xf]
      %v240 = vld [vmem:[%s1 + $0x7c] sm:$0xf]
      %v241 = vld [vmem:[%s1 + $0x80] sm:$0xf]
      %v242 = vld [vmem:[%s1 + $0x84] sm:$0xf]
      %v243 = vld [vmem:[%s1 + $0x88] sm:$0xf]
      %v244 = vld [vmem:[%s1 + $0x8c] sm:$0xf]
      %v245 = vld [vmem:[%s1 + $0x90] sm:$0xf]
      %v246 = vld [vmem:[%s1 + $0x94] sm:$0xf]
      %v247 = vld [vmem:[%s1 + $0x98] sm:$0xf]
      %v248 = vld [vmem:[%s1 + $0x9c] sm:$0xf]
      %v249 = vld [vmem:[%s1 + $0xa0] sm:$0xf]
      %v250 = vld [vmem:[%s1 + $0xa4] sm:$0xf]
      %v251 = vld [vmem:[%s1 + $0xa8] sm:$0xf]
      %v252 = vld [vmem:[%s1 + $0xac] sm:$0xf]
      %v253 = vld [vmem:[%s1 + $0xb0] sm:$0xf]
      %v254 = vld [vmem:[%s1 + $0xb4] sm:$0xf]
      %v255 = vld [vmem:[%s1 + $0xb8] sm:$0xf]
      %v256 = vld [vmem:[%s1 + $0xbc] sm:$0xf]
      %v257 = vld [vmem:[%s1 + $0xc0] sm:$0xf]
      %v258 = vld [vmem:[%s1 + $0xc4] sm:$0xf]
      %v259 = vld [vmem:[%s1 + $0xc8] sm:$0xf]
      %v260 = vld [vmem:[%s1 + $0xcc] sm:$0xf]
      %v261 = vld [vmem:[%s1 + $0xd0] sm:$0xf]
      %v262 = vld [vmem:[%s1 + $0xd4] sm:$0xf]
      %v263 = vld [vmem:[%s1 + $0xd8] sm:$0xf]
      %v264 = vld [vmem:[%s1 + $0xdc] sm:$0xf]
      %v265 = vld [vmem:[%s1 + $0xe0] sm:$0xf]
      %v266 = vld [vmem:[%s1 + $0xe4] sm:$0xf]
      %v267 = vld [vmem:[%s1 + $0xe8] sm:$0xf]
      %v268 = vld [vmem:[%s1 + $0xec] sm:$0xf]
      %v269 = vld [vmem:[%s1 + $0xf0] sm:$0xf]
      %v270 = vld [vmem:[%s1 + $0xf4] sm:$0xf]
      %v271 = vld [vmem:[%s1 + $0xf8] sm:$0xf]
      %v272 = vld [vmem:[%s1 + $0xfc] sm:$0xf]
      %v277 = vunpack.c.l.b16 %v205
      %v278 = vunpack.c.h.b16 %v205
      %v279 = vunpack.c.l.b16 %v206
      %v280 = vunpack.c.h.b16 %v206
      %v281 = vunpack.c.l.b16 %v207
      %v282 = vunpack.c.h.b16 %v207
      %v283 = vunpack.c.l.b16 %v208
      %v284 = vunpack.c.h.b16 %v208
      %v285 = vpack.c.b16 %v281, %v277
      %v286 = vpack.c.b16 %v282, %v278
      %v287 = vpack.c.b16 %v283, %v279
      %v288 = vpack.c.b16 %v284, %v280
      %v357 = vunpack.c.l.b16 %v209
      %v358 = vunpack.c.l.b16 %v210
      %v359 = vunpack.c.l.b16 %v211
      %v360 = vunpack.c.l.b16 %v212
      %v361 = vunpack.c.l.b16 %v213
      %v362 = vunpack.c.l.b16 %v214
      %v363 = vunpack.c.l.b16 %v215
      %v364 = vunpack.c.l.b16 %v216
      %v365 = vunpack.c.l.b16 %v217
      %v366 = vunpack.c.l.b16 %v218
      %v367 = vunpack.c.l.b16 %v219
      %v368 = vunpack.c.l.b16 %v220
      %v369 = vunpack.c.l.b16 %v221
      %v370 = vunpack.c.l.b16 %v222
      %v371 = vunpack.c.l.b16 %v223
      %v372 = vunpack.c.l.b16 %v224
      %v373 = vunpack.c.l.b16 %v225
      %v374 = vunpack.c.l.b16 %v226
      %v375 = vunpack.c.l.b16 %v227
      %v376 = vunpack.c.l.b16 %v228
      %v377 = vunpack.c.l.b16 %v229
      %v378 = vunpack.c.l.b16 %v230
      %v379 = vunpack.c.l.b16 %v231
      %v380 = vunpack.c.l.b16 %v232
      %v381 = vunpack.c.l.b16 %v233
      %v382 = vunpack.c.l.b16 %v234
      %v383 = vunpack.c.l.b16 %v235
      %v384 = vunpack.c.l.b16 %v236
      %v385 = vunpack.c.l.b16 %v237
      %v386 = vunpack.c.l.b16 %v238
      %v387 = vunpack.c.l.b16 %v239
      %v388 = vunpack.c.l.b16 %v240
      %v389 = vunpack.c.l.b16 %v241
      %v390 = vunpack.c.l.b16 %v242
      %v391 = vunpack.c.l.b16 %v243
      %v392 = vunpack.c.l.b16 %v244
      %v393 = vunpack.c.l.b16 %v245
      %v394 = vunpack.c.l.b16 %v246
      %v395 = vunpack.c.l.b16 %v247
      %v396 = vunpack.c.l.b16 %v248
      %v397 = vunpack.c.l.b16 %v249
      %v398 = vunpack.c.l.b16 %v250
      %v399 = vunpack.c.l.b16 %v251
      %v400 = vunpack.c.l.b16 %v252
      %v401 = vunpack.c.l.b16 %v253
      %v402 = vunpack.c.l.b16 %v254
      %v403 = vunpack.c.l.b16 %v255
      %v404 = vunpack.c.l.b16 %v256
      %v405 = vunpack.c.l.b16 %v257
      %v406 = vunpack.c.l.b16 %v258
      %v407 = vunpack.c.l.b16 %v259
      %v408 = vunpack.c.l.b16 %v260
      %v409 = vunpack.c.l.b16 %v261
      %v410 = vunpack.c.l.b16 %v262
      %v411 = vunpack.c.l.b16 %v263
      %v412 = vunpack.c.l.b16 %v264
      %v413 = vunpack.c.l.b16 %v265
      %v414 = vunpack.c.l.b16 %v266
      %v415 = vunpack.c.l.b16 %v267
      %v416 = vunpack.c.l.b16 %v268
      %v417 = vunpack.c.l.b16 %v269
      %v418 = vunpack.c.l.b16 %v270
      %v419 = vunpack.c.l.b16 %v271
      %v420 = vunpack.c.l.b16 %v272
      %v421 = vpack.c.b16 %v358, %v357
      %v422 = vpack.c.b16 %v360, %v359
      %v423 = vpack.c.b16 %v362, %v361
      %v424 = vpack.c.b16 %v364, %v363
      %v425 = vpack.c.b16 %v366, %v365
      %v426 = vpack.c.b16 %v368, %v367
      %v427 = vpack.c.b16 %v370, %v369
      %v428 = vpack.c.b16 %v372, %v371
      %v429 = vpack.c.b16 %v374, %v373
      %v430 = vpack.c.b16 %v376, %v375
      %v431 = vpack.c.b16 %v378, %v377
      %v432 = vpack.c.b16 %v380, %v379
      %v433 = vpack.c.b16 %v382, %v381
      %v434 = vpack.c.b16 %v384, %v383
      %v435 = vpack.c.b16 %v386, %v385
      %v436 = vpack.c.b16 %v388, %v387
      %v437 = vpack.c.b16 %v390, %v389
      %v438 = vpack.c.b16 %v392, %v391
      %v439 = vpack.c.b16 %v394, %v393
      %v440 = vpack.c.b16 %v396, %v395
      %v441 = vpack.c.b16 %v398, %v397
      %v442 = vpack.c.b16 %v400, %v399
      %v443 = vpack.c.b16 %v402, %v401
      %v444 = vpack.c.b16 %v404, %v403
      %v445 = vpack.c.b16 %v406, %v405
      %v446 = vpack.c.b16 %v408, %v407
      %v447 = vpack.c.b16 %v410, %v409
      %v448 = vpack.c.b16 %v412, %v411
      %v449 = vpack.c.b16 %v414, %v413
      %v450 = vpack.c.b16 %v416, %v415
      %v451 = vpack.c.b16 %v418, %v417
      %v452 = vpack.c.b16 %v420, %v419
      %485 = vmatprep.subr.bf16.mxu0 0
      %486 = vmatpush1.bf16.msra.mxu0 %v428
      %487 = vmatprep.subr.bf16.mxu0 0
      %488 = vmatpush1.bf16.msra.mxu0 %v427
      %489 = vmatprep.subr.bf16.mxu0 0
      %490 = vmatpush1.bf16.msra.mxu0 %v426
      %491 = vmatprep.subr.bf16.mxu0 0
      %492 = vmatpush1.bf16.msra.mxu0 %v425
      %493 = vmatprep.subr.bf16.mxu0 0
      %494 = vmatpush1.bf16.msra.mxu0 %v424
      %495 = vmatprep.subr.bf16.mxu0 0
      %496 = vmatpush1.bf16.msra.mxu0 %v423
      %497 = vmatprep.subr.bf16.mxu0 0
      %498 = vmatpush1.bf16.msra.mxu0 %v422
      %499 = vmatprep.subr.bf16.mxu0 0
      %500 = vmatpush1.bf16.msra.mxu0 %v421
      %501 = vmatprep.subr.bf16.mxu0 0
      %502 = vmatpush2.bf16.msra.mxu0 %v436
      %503 = vmatprep.subr.bf16.mxu0 0
      %504 = vmatpush2.bf16.msra.mxu0 %v435
      %505 = vmatprep.subr.bf16.mxu0 0
      %506 = vmatpush2.bf16.msra.mxu0 %v434
      %507 = vmatprep.subr.bf16.mxu0 0
      %508 = vmatpush2.bf16.msra.mxu0 %v433
      %509 = vmatprep.subr.bf16.mxu0 0
      %510 = vmatpush2.bf16.msra.mxu0 %v432
      %511 = vmatprep.subr.bf16.mxu0 0
      %512 = vmatpush2.bf16.msra.mxu0 %v431
      %513 = vmatprep.subr.bf16.mxu0 0
      %514 = vmatpush2.bf16.msra.mxu0 %v430
      %515 = vmatprep.subr.bf16.mxu0 0
      %516 = vmatpush2.bf16.msra.mxu0 %v429
      %517 = vmatprep.mubr.bf16.mxu0 %v286
      %518 = vmatmul.mubr.bf16.gmra.mxu0 %v285
      %v519 = vpop.f32.mrf.mxu0
      %v520 = vadd.f32 0.0, %v519
      %v521 = vpop.f32.mrf.mxu0
      %v522 = vpop.f32.mrf.mxu0
      %v523 = vadd.f32 0.0, %v522
      %v524 = vpop.f32.mrf.mxu0
      %525 = vdwg.mxu0
      %526 = vmatprep.subr.bf16.mxu0 0
      %527 = vmatpush1.bf16.msra.mxu0 %v444
      %528 = vmatprep.subr.bf16.mxu0 0
      %529 = vmatpush1.bf16.msra.mxu0 %v443
      %530 = vmatprep.subr.bf16.mxu0 0
      %531 = vmatpush1.bf16.msra.mxu0 %v442
      %532 = vmatprep.subr.bf16.mxu0 0
      %533 = vmatpush1.bf16.msra.mxu0 %v441
      %534 = vmatprep.subr.bf16.mxu0 0
      %535 = vmatpush1.bf16.msra.mxu0 %v440
      %536 = vmatprep.subr.bf16.mxu0 0
      %537 = vmatpush1.bf16.msra.mxu0 %v439
      %538 = vmatprep.subr.bf16.mxu0 0
      %539 = vmatpush1.bf16.msra.mxu0 %v438
      %540 = vmatprep.subr.bf16.mxu0 0
      %541 = vmatpush1.bf16.msra.mxu0 %v437
      %542 = vmatprep.subr.bf16.mxu0 0
      %543 = vmatpush2.bf16.msra.mxu0 %v452
      %544 = vmatprep.subr.bf16.mxu0 0
      %545 = vmatpush2.bf16.msra.mxu0 %v451
      %546 = vmatprep.subr.bf16.mxu0 0
      %547 = vmatpush2.bf16.msra.mxu0 %v450
      %548 = vmatprep.subr.bf16.mxu0 0
      %549 = vmatpush2.bf16.msra.mxu0 %v449
      %550 = vmatprep.subr.bf16.mxu0 0
      %551 = vmatpush2.bf16.msra.mxu0 %v448
      %552 = vmatprep.subr.bf16.mxu0 0
      %553 = vmatpush2.bf16.msra.mxu0 %v447
      %554 = vmatprep.subr.bf16.mxu0 0
      %555 = vmatpush2.bf16.msra.mxu0 %v446
      %556 = vmatprep.subr.bf16.mxu0 0
      %557 = vmatpush2.bf16.msra.mxu0 %v445
      %558 = vmatprep.mubr.bf16.mxu0 %v288
      %559 = vmatmul.mubr.bf16.gmra.mxu0 %v287
      %v560 = vpop.f32.mrf.mxu0
      %v561 = vadd.f32 %v520, %v560
      %v562 = vpop.f32.mrf.mxu0
      %v563 = vpop.f32.mrf.mxu0
      %v564 = vadd.f32 %v523, %v563
      %v565 = vpop.f32.mrf.mxu0
      %566 = vdwg.mxu0
      %v567 = vld [vmem:[%s2] sm:$0x1]
      %v569 = vlaneseq
      %v570 = vshrl.u32 %v569, 7
      %v571 = vsub.s32 0, %v570
      %v572 = vrot.slane %v567, %v571
      %v574 = vmul.f32 %v561, %v572
      %v575 = vmul.f32 %v564, %v572
      %v576 = vld [vmem:[%s3] sm:$0x1]
      %v578 = vlaneseq
      %v579 = vshrl.u32 %v578, 7
      %v580 = vsub.s32 0, %v579
      %v581 = vrot.slane %v576, %v580
      %v583 = vadd.f32 %v574, %v581
      %v584 = vadd.f32 %v575, %v581
      %v585 = vmax.f32 %v583, 0.0
      %v586 = vmax.f32 %v584, 0.0
      %587 = vst [vmem:[%s202] sm:$0xff] %v585
      %588 = vst [vmem:[%s202 + $0x8] sm:$0xff] %v586
      %s589 = smul.u32 2, %s15
      %p590 = scmp.lt.s32.totalorder %s589, 3
      %s591 = scalar_select %p590, %s589, 3
      %s592 = smul.addr %s591, 8
      %s593 = scalar_lea.vmem %s4, %s592
      // Predicated region
      $region37: #{vae_forward.10} parent=35 // pred_check
        %p594 = pneg %p122
      $region38: #{vae_forward.10} parent=35 // pred_check_branch
        %596 = sbr.rel (%p594) target = $region40
      $region39: #{vae_forward.10} parent=35 // pred_region
        %s597 = smul.u32 2, %s15
      $region40: #{vae_forward.10} parent=35 // pred_fallthru
        _
    $region36: #{vae_forward.10} parent=5 // pred_fallthru
      _
    %p598 = scmp.le.s32.totalorder 2, %s10
    // Predicated region
    $region41: #{vae_forward.10} parent=5 // pred_check
      %p599 = pneg %p598
    $region42: #{vae_forward.10} parent=5 // pred_check_branch
      %601 = sbr.rel (%p599) target = $region44
    $region43: #{vae_forward.10} parent=5 // pred_region
      %s602 = ssub.s32 %s10, 2
      // Predicated region
      $region45: #{vae_forward.10} parent=43 // pred_check
        %p603 = pneg %p128
      $region46: #{vae_forward.10} parent=43 // pred_check_branch
        %605 = sbr.rel (%p603) target = $region48
      $region47: #{vae_forward.10} parent=43 // pred_region
        %s606 = smul.u32 2, %s16
        %p607 = scmp.lt.s32.totalorder %s606, 3
        %s608 = scalar_select %p607, %s606, 3
        %s609 = smul.addr %s608, 8
        %s610 = scalar_lea.vmem %s4, %s609
      $region48: #{vae_forward.10} parent=43 // pred_fallthru
        _
    $region44: #{vae_forward.10} parent=5 // pred_fallthru
      _
  $region6: #{vae_forward.10} parent=0 // loop_footer
    %s14 = sadd.s32 1, %s10
  $region7: #{vae_forward.10} parent=0 // loop_footer_branch
    %9 = sbr.rel target = $region3
  $region8: #{vae_forward.10} parent=0 // loop_exit
    _

// kernel: vae_forward.12
$region0: #{vae_forward.12}
  #allocation0 [shape = 'u32[]', space=smem, size = 0x4, offset = 0x4, fixed_abs, tag = 'smem constant byte address 0x4 - core index']
  #allocation1 [shape = 'u32[144,128]{1,0:T(1,128)}', space=vmem, size = 0x12000, scoped, tag = 'internal scratch']
  %s0 = inlined_call_operand.vmem [shape: bf16[16,512], index: 0, kind: input, shape index: {}]
  %s1 = inlined_call_operand.vmem [shape: bf16[512,1024], index: 1, kind: input, shape index: {}]
  %s2 = inlined_call_operand.vmem [shape: f32[1,1024], index: 2, kind: input, shape index: {}]
  %s3 = inlined_call_operand.vmem [shape: f32[1,1024], index: 3, kind: input, shape index: {}]
  %s4 = inlined_call_operand.vmem [shape: f32[16,1024], index: 4, kind: output, shape index: {}]
  %s5 = sld [smem:[#allocation0]]
  $region26: #{vae_forward.12} parent=0
    _
  %s7 = ssub.s32 1, %s5
  %s8 = scalar_select 0, %s7, %s5
  // Predicated region
  $region2: #{vae_forward.12} parent=0 // pred_check
    _
  $region3: #{vae_forward.12} parent=0 // pred_check_branch
    %10 = sbr.rel (0) target = $region5
  $region4: #{vae_forward.12} parent=0 // pred_region
    _
  $region5: #{vae_forward.12} parent=0 // pred_fallthru
    _
  // Predicated region
  $region6: #{vae_forward.12} parent=0 // pred_check
    _
  $region7: #{vae_forward.12} parent=0 // pred_check_branch
    %12 = sbr.rel (0) target = $region9
  $region8: #{vae_forward.12} parent=0 // pred_region
    _
  $region9: #{vae_forward.12} parent=0 // pred_fallthru
    _
  // Predicated region
  $region10: #{vae_forward.12} parent=0 // pred_check
    _
  $region11: #{vae_forward.12} parent=0 // pred_check_branch
    %14 = sbr.rel (0) target = $region13
  $region12: #{vae_forward.12} parent=0 // pred_region
    _
  $region13: #{vae_forward.12} parent=0 // pred_fallthru
    _
  // Predicated region
  $region14: #{vae_forward.12} parent=0 // pred_check
    _
  $region15: #{vae_forward.12} parent=0 // pred_check_branch
    %16 = sbr.rel (0) target = $region17
  $region16: #{vae_forward.12} parent=0 // pred_region
    _
  $region17: #{vae_forward.12} parent=0 // pred_fallthru
    _
  %v17 = vld [vmem:[%s0] sm:$0xff]
  %v18 = vld [vmem:[%s0 + $0x8] sm:$0xff]
  %v19 = vld [vmem:[%s0 + $0x10] sm:$0xff]
  %v20 = vld [vmem:[%s0 + $0x18] sm:$0xff]
  %v21 = vld [vmem:[%s1] sm:$0xff]
  %v22 = vld [vmem:[%s1 + $0x8] sm:$0xff]
  %v23 = vld [vmem:[%s1 + $0x10] sm:$0xff]
  %v24 = vld [vmem:[%s1 + $0x18] sm:$0xff]
  %v25 = vld [vmem:[%s1 + $0x20] sm:$0xff]
  %v26 = vld [vmem:[%s1 + $0x28] sm:$0xff]
  %v27 = vld [vmem:[%s1 + $0x30] sm:$0xff]
  %v28 = vld [vmem:[%s1 + $0x38] sm:$0xff]
  %v29 = vld [vmem:[%s1 + $0x40] sm:$0xff]
  %v30 = vld [vmem:[%s1 + $0x48] sm:$0xff]
  %v31 = vld [vmem:[%s1 + $0x50] sm:$0xff]
  %v32 = vld [vmem:[%s1 + $0x58] sm:$0xff]
  %v33 = vld [vmem:[%s1 + $0x60] sm:$0xff]
  %v34 = vld [vmem:[%s1 + $0x68] sm:$0xff]
  %v35 = vld [vmem:[%s1 + $0x70] sm:$0xff]
  %v36 = vld [vmem:[%s1 + $0x78] sm:$0xff]
  %v37 = vld [vmem:[%s1 + $0x80] sm:$0xff]
  %v38 = vld [vmem:[%s1 + $0x88] sm:$0xff]
  %v39 = vld [vmem:[%s1 + $0x90] sm:$0xff]
  %v40 = vld [vmem:[%s1 + $0x98] sm:$0xff]
  %v41 = vld [vmem:[%s1 + $0xa0] sm:$0xff]
  %v42 = vld [vmem:[%s1 + $0xa8] sm:$0xff]
  %v43 = vld [vmem:[%s1 + $0xb0] sm:$0xff]
  %v44 = vld [vmem:[%s1 + $0xb8] sm:$0xff]
  %v45 = vld [vmem:[%s1 + $0xc0] sm:$0xff]
  %v46 = vld [vmem:[%s1 + $0xc8] sm:$0xff]
  %v47 = vld [vmem:[%s1 + $0xd0] sm:$0xff]
  %v48 = vld [vmem:[%s1 + $0xd8] sm:$0xff]
  %v49 = vld [vmem:[%s1 + $0xe0] sm:$0xff]
  %v50 = vld [vmem:[%s1 + $0xe8] sm:$0xff]
  %v51 = vld [vmem:[%s1 + $0xf0] sm:$0xff]
  %v52 = vld [vmem:[%s1 + $0xf8] sm:$0xff]
  %v53 = vld [vmem:[%s1 + $0x100] sm:$0xff]
  %v54 = vld [vmem:[%s1 + $0x108] sm:$0xff]
  %v55 = vld [vmem:[%s1 + $0x110] sm:$0xff]
  %v56 = vld [vmem:[%s1 + $0x118] sm:$0xff]
  %v57 = vld [vmem:[%s1 + $0x120] sm:$0xff]
  %v58 = vld [vmem:[%s1 + $0x128] sm:$0xff]
  %v59 = vld [vmem:[%s1 + $0x130] sm:$0xff]
  %v60 = vld [vmem:[%s1 + $0x138] sm:$0xff]
  %v61 = vld [vmem:[%s1 + $0x140] sm:$0xff]
  %v62 = vld [vmem:[%s1 + $0x148] sm:$0xff]
  %v63 = vld [vmem:[%s1 + $0x150] sm:$0xff]
  %v64 = vld [vmem:[%s1 + $0x158] sm:$0xff]
  %v65 = vld [vmem:[%s1 + $0x160] sm:$0xff]
  %v66 = vld [vmem:[%s1 + $0x168] sm:$0xff]
  %v67 = vld [vmem:[%s1 + $0x170] sm:$0xff]
  %v68 = vld [vmem:[%s1 + $0x178] sm:$0xff]
  %v69 = vld [vmem:[%s1 + $0x180] sm:$0xff]
  %v70 = vld [vmem:[%s1 + $0x188] sm:$0xff]
  %v71 = vld [vmem:[%s1 + $0x190] sm:$0xff]
  %v72 = vld [vmem:[%s1 + $0x198] sm:$0xff]
  %v73 = vld [vmem:[%s1 + $0x1a0] sm:$0xff]
  %v74 = vld [vmem:[%s1 + $0x1a8] sm:$0xff]
  %v75 = vld [vmem:[%s1 + $0x1b0] sm:$0xff]
  %v76 = vld [vmem:[%s1 + $0x1b8] sm:$0xff]
  %v77 = vld [vmem:[%s1 + $0x1c0] sm:$0xff]
  %v78 = vld [vmem:[%s1 + $0x1c8] sm:$0xff]
  %v79 = vld [vmem:[%s1 + $0x1d0] sm:$0xff]
  %v80 = vld [vmem:[%s1 + $0x1d8] sm:$0xff]
  %v81 = vld [vmem:[%s1 + $0x1e0] sm:$0xff]
  %v82 = vld [vmem:[%s1 + $0x1e8] sm:$0xff]
  %v83 = vld [vmem:[%s1 + $0x1f0] sm:$0xff]
  %v84 = vld [vmem:[%s1 + $0x1f8] sm:$0xff]
  %v85 = vld [vmem:[%s1 + $0x200] sm:$0xff]
  %v86 = vld [vmem:[%s1 + $0x208] sm:$0xff]
  %v87 = vld [vmem:[%s1 + $0x210] sm:$0xff]
  %v88 = vld [vmem:[%s1 + $0x218] sm:$0xff]
  %v89 = vld [vmem:[%s1 + $0x220] sm:$0xff]
  %v90 = vld [vmem:[%s1 + $0x228] sm:$0xff]
  %v91 = vld [vmem:[%s1 + $0x230] sm:$0xff]
  %v92 = vld [vmem:[%s1 + $0x238] sm:$0xff]
  %v93 = vld [vmem:[%s1 + $0x240] sm:$0xff]
  %v94 = vld [vmem:[%s1 + $0x248] sm:$0xff]
  %v95 = vld [vmem:[%s1 + $0x250] sm:$0xff]
  %v96 = vld [vmem:[%s1 + $0x258] sm:$0xff]
  %v97 = vld [vmem:[%s1 + $0x260] sm:$0xff]
  %v98 = vld [vmem:[%s1 + $0x268] sm:$0xff]
  %v99 = vld [vmem:[%s1 + $0x270] sm:$0xff]
  %v100 = vld [vmem:[%s1 + $0x278] sm:$0xff]
  %v101 = vld [vmem:[%s1 + $0x280] sm:$0xff]
  %v102 = vld [vmem:[%s1 + $0x288] sm:$0xff]
  %v103 = vld [vmem:[%s1 + $0x290] sm:$0xff]
  %v104 = vld [vmem:[%s1 + $0x298] sm:$0xff]
  %v105 = vld [vmem:[%s1 + $0x2a0] sm:$0xff]
  %v106 = vld [vmem:[%s1 + $0x2a8] sm:$0xff]
  %v107 = vld [vmem:[%s1 + $0x2b0] sm:$0xff]
  %v108 = vld [vmem:[%s1 + $0x2b8] sm:$0xff]
  %v109 = vld [vmem:[%s1 + $0x2c0] sm:$0xff]
  %v110 = vld [vmem:[%s1 + $0x2c8] sm:$0xff]
  %v111 = vld [vmem:[%s1 + $0x2d0] sm:$0xff]
  %v112 = vld [vmem:[%s1 + $0x2d8] sm:$0xff]
  %v113 = vld [vmem:[%s1 + $0x2e0] sm:$0xff]
  %v114 = vld [vmem:[%s1 + $0x2e8] sm:$0xff]
  %v115 = vld [vmem:[%s1 + $0x2f0] sm:$0xff]
  %v116 = vld [vmem:[%s1 + $0x2f8] sm:$0xff]
  %v117 = vld [vmem:[%s1 + $0x300] sm:$0xff]
  %v118 = vld [vmem:[%s1 + $0x308] sm:$0xff]
  %v119 = vld [vmem:[%s1 + $0x310] sm:$0xff]
  %v120 = vld [vmem:[%s1 + $0x318] sm:$0xff]
  %v121 = vld [vmem:[%s1 + $0x320] sm:$0xff]
  %v122 = vld [vmem:[%s1 + $0x328] sm:$0xff]
  %v123 = vld [vmem:[%s1 + $0x330] sm:$0xff]
  %v124 = vld [vmem:[%s1 + $0x338] sm:$0xff]
  %v125 = vld [vmem:[%s1 + $0x340] sm:$0xff]
  %v126 = vld [vmem:[%s1 + $0x348] sm:$0xff]
  %v127 = vld [vmem:[%s1 + $0x350] sm:$0xff]
  %v128 = vld [vmem:[%s1 + $0x358] sm:$0xff]
  %v129 = vld [vmem:[%s1 + $0x360] sm:$0xff]
  %v130 = vld [vmem:[%s1 + $0x368] sm:$0xff]
  %v131 = vld [vmem:[%s1 + $0x370] sm:$0xff]
  %v132 = vld [vmem:[%s1 + $0x378] sm:$0xff]
  %v133 = vld [vmem:[%s1 + $0x380] sm:$0xff]
  %v134 = vld [vmem:[%s1 + $0x388] sm:$0xff]
  %v135 = vld [vmem:[%s1 + $0x390] sm:$0xff]
  %v136 = vld [vmem:[%s1 + $0x398] sm:$0xff]
  %v137 = vld [vmem:[%s1 + $0x3a0] sm:$0xff]
  %v138 = vld [vmem:[%s1 + $0x3a8] sm:$0xff]
  %v139 = vld [vmem:[%s1 + $0x3b0] sm:$0xff]
  %v140 = vld [vmem:[%s1 + $0x3b8] sm:$0xff]
  %v141 = vld [vmem:[%s1 + $0x3c0] sm:$0xff]
  %v142 = vld [vmem:[%s1 + $0x3c8] sm:$0xff]
  %v143 = vld [vmem:[%s1 + $0x3d0] sm:$0xff]
  %v144 = vld [vmem:[%s1 + $0x3d8] sm:$0xff]
  %v145 = vld [vmem:[%s1 + $0x3e0] sm:$0xff]
  %v146 = vld [vmem:[%s1 + $0x3e8] sm:$0xff]
  %v147 = vld [vmem:[%s1 + $0x3f0] sm:$0xff]
  %v148 = vld [vmem:[%s1 + $0x3f8] sm:$0xff]
  %v149 = vld [vmem:[%s1 + $0x400] sm:$0xff]
  %v150 = vld [vmem:[%s1 + $0x408] sm:$0xff]
  %v151 = vld [vmem:[%s1 + $0x410] sm:$0xff]
  %v152 = vld [vmem:[%s1 + $0x418] sm:$0xff]
  %v153 = vld [vmem:[%s1 + $0x420] sm:$0xff]
  %v154 = vld [vmem:[%s1 + $0x428] sm:$0xff]
  %v155 = vld [vmem:[%s1 + $0x430] sm:$0xff]
  %v156 = vld [vmem:[%s1 + $0x438] sm:$0xff]
  %v157 = vld [vmem:[%s1 + $0x440] sm:$0xff]
  %v158 = vld [vmem:[%s1 + $0x448] sm:$0xff]
  %v159 = vld [vmem:[%s1 + $0x450] sm:$0xff]
  %v160 = vld [vmem:[%s1 + $0x458] sm:$0xff]
  %v161 = vld [vmem:[%s1 + $0x460] sm:$0xff]
  %v162 = vld [vmem:[%s1 + $0x468] sm:$0xff]
  %v163 = vld [vmem:[%s1 + $0x470] sm:$0xff]
  %v164 = vld [vmem:[%s1 + $0x478] sm:$0xff]
  %v165 = vld [vmem:[%s1 + $0x480] sm:$0xff]
  %v166 = vld [vmem:[%s1 + $0x488] sm:$0xff]
  %v167 = vld [vmem:[%s1 + $0x490] sm:$0xff]
  %v168 = vld [vmem:[%s1 + $0x498] sm:$0xff]
  %v169 = vld [vmem:[%s1 + $0x4a0] sm:$0xff]
  %v170 = vld [vmem:[%s1 + $0x4a8] sm:$0xff]
  %v171 = vld [vmem:[%s1 + $0x4b0] sm:$0xff]
  %v172 = vld [vmem:[%s1 + $0x4b8] sm:$0xff]
  %v173 = vld [vmem:[%s1 + $0x4c0] sm:$0xff]
  %v174 = vld [vmem:[%s1 + $0x4c8] sm:$0xff]
  %v175 = vld [vmem:[%s1 + $0x4d0] sm:$0xff]
  %v176 = vld [vmem:[%s1 + $0x4d8] sm:$0xff]
  %v177 = vld [vmem:[%s1 + $0x4e0] sm:$0xff]
  %v178 = vld [vmem:[%s1 + $0x4e8] sm:$0xff]
  %v179 = vld [vmem:[%s1 + $0x4f0] sm:$0xff]
  %v180 = vld [vmem:[%s1 + $0x4f8] sm:$0xff]
  %v181 = vld [vmem:[%s1 + $0x500] sm:$0xff]
  %v182 = vld [vmem:[%s1 + $0x508] sm:$0xff]
  %v183 = vld [vmem:[%s1 + $0x510] sm:$0xff]
  %v184 = vld [vmem:[%s1 + $0x518] sm:$0xff]
  %v185 = vld [vmem:[%s1 + $0x520] sm:$0xff]
  %v186 = vld [vmem:[%s1 + $0x528] sm:$0xff]
  %v187 = vld [vmem:[%s1 + $0x530] sm:$0xff]
  %v188 = vld [vmem:[%s1 + $0x538] sm:$0xff]
  %v189 = vld [vmem:[%s1 + $0x540] sm:$0xff]
  %v190 = vld [vmem:[%s1 + $0x548] sm:$0xff]
  %v191 = vld [vmem:[%s1 + $0x550] sm:$0xff]
  %v192 = vld [vmem:[%s1 + $0x558] sm:$0xff]
  %v193 = vld [vmem:[%s1 + $0x560] sm:$0xff]
  %v194 = vld [vmem:[%s1 + $0x568] sm:$0xff]
  %v195 = vld [vmem:[%s1 + $0x570] sm:$0xff]
  %v196 = vld [vmem:[%s1 + $0x578] sm:$0xff]
  %v197 = vld [vmem:[%s1 + $0x580] sm:$0xff]
  %v198 = vld [vmem:[%s1 + $0x588] sm:$0xff]
  %v199 = vld [vmem:[%s1 + $0x590] sm:$0xff]
  %v200 = vld [vmem:[%s1 + $0x598] sm:$0xff]
  %v201 = vld [vmem:[%s1 + $0x5a0] sm:$0xff]
  %v202 = vld [vmem:[%s1 + $0x5a8] sm:$0xff]
  %v203 = vld [vmem:[%s1 + $0x5b0] sm:$0xff]
  %v204 = vld [vmem:[%s1 + $0x5b8] sm:$0xff]
  %v205 = vld [vmem:[%s1 + $0x5c0] sm:$0xff]
  %v206 = vld [vmem:[%s1 + $0x5c8] sm:$0xff]
  %v207 = vld [vmem:[%s1 + $0x5d0] sm:$0xff]
  %v208 = vld [vmem:[%s1 + $0x5d8] sm:$0xff]
  %v209 = vld [vmem:[%s1 + $0x5e0] sm:$0xff]
  %v210 = vld [vmem:[%s1 + $0x5e8] sm:$0xff]
  %v211 = vld [vmem:[%s1 + $0x5f0] sm:$0xff]
  %v212 = vld [vmem:[%s1 + $0x5f8] sm:$0xff]
  %v213 = vld [vmem:[%s1 + $0x600] sm:$0xff]
  %v214 = vld [vmem:[%s1 + $0x608] sm:$0xff]
  %v215 = vld [vmem:[%s1 + $0x610] sm:$0xff]
  %v216 = vld [vmem:[%s1 + $0x618] sm:$0xff]
  %v217 = vld [vmem:[%s1 + $0x620] sm:$0xff]
  %v218 = vld [vmem:[%s1 + $0x628] sm:$0xff]
  %v219 = vld [vmem:[%s1 + $0x630] sm:$0xff]
  %v220 = vld [vmem:[%s1 + $0x638] sm:$0xff]
  %v221 = vld [vmem:[%s1 + $0x640] sm:$0xff]
  %v222 = vld [vmem:[%s1 + $0x648] sm:$0xff]
  %v223 = vld [vmem:[%s1 + $0x650] sm:$0xff]
  %v224 = vld [vmem:[%s1 + $0x658] sm:$0xff]
  %v225 = vld [vmem:[%s1 + $0x660] sm:$0xff]
  %v226 = vld [vmem:[%s1 + $0x668] sm:$0xff]
  %v227 = vld [vmem:[%s1 + $0x670] sm:$0xff]
  %v228 = vld [vmem:[%s1 + $0x678] sm:$0xff]
  %v229 = vld [vmem:[%s1 + $0x680] sm:$0xff]
  %v230 = vld [vmem:[%s1 + $0x688] sm:$0xff]
  %v231 = vld [vmem:[%s1 + $0x690] sm:$0xff]
  %v232 = vld [vmem:[%s1 + $0x698] sm:$0xff]
  %v233 = vld [vmem:[%s1 + $0x6a0] sm:$0xff]
  %v234 = vld [vmem:[%s1 + $0x6a8] sm:$0xff]
  %v235 = vld [vmem:[%s1 + $0x6b0] sm:$0xff]
  %v236 = vld [vmem:[%s1 + $0x6b8] sm:$0xff]
  %v237 = vld [vmem:[%s1 + $0x6c0] sm:$0xff]
  %v238 = vld [vmem:[%s1 + $0x6c8] sm:$0xff]
  %v239 = vld [vmem:[%s1 + $0x6d0] sm:$0xff]
  %v240 = vld [vmem:[%s1 + $0x6d8] sm:$0xff]
  %v241 = vld [vmem:[%s1 + $0x6e0] sm:$0xff]
  %v242 = vld [vmem:[%s1 + $0x6e8] sm:$0xff]
  %v243 = vld [vmem:[%s1 + $0x6f0] sm:$0xff]
  %v244 = vld [vmem:[%s1 + $0x6f8] sm:$0xff]
  %v245 = vld [vmem:[%s1 + $0x700] sm:$0xff]
  %v246 = vld [vmem:[%s1 + $0x708] sm:$0xff]
  %v247 = vld [vmem:[%s1 + $0x710] sm:$0xff]
  %v248 = vld [vmem:[%s1 + $0x718] sm:$0xff]
  %v249 = vld [vmem:[%s1 + $0x720] sm:$0xff]
  %v250 = vld [vmem:[%s1 + $0x728] sm:$0xff]
  %v251 = vld [vmem:[%s1 + $0x730] sm:$0xff]
  %v252 = vld [vmem:[%s1 + $0x738] sm:$0xff]
  %v253 = vld [vmem:[%s1 + $0x740] sm:$0xff]
  %v254 = vld [vmem:[%s1 + $0x748] sm:$0xff]
  %v255 = vld [vmem:[%s1 + $0x750] sm:$0xff]
  %v256 = vld [vmem:[%s1 + $0x758] sm:$0xff]
  %v257 = vld [vmem:[%s1 + $0x760] sm:$0xff]
  %v258 = vld [vmem:[%s1 + $0x768] sm:$0xff]
  %v259 = vld [vmem:[%s1 + $0x770] sm:$0xff]
  %v260 = vld [vmem:[%s1 + $0x778] sm:$0xff]
  %v261 = vld [vmem:[%s1 + $0x780] sm:$0xff]
  %v262 = vld [vmem:[%s1 + $0x788] sm:$0xff]
  %v263 = vld [vmem:[%s1 + $0x790] sm:$0xff]
  %v264 = vld [vmem:[%s1 + $0x798] sm:$0xff]
  %v265 = vld [vmem:[%s1 + $0x7a0] sm:$0xff]
  %v266 = vld [vmem:[%s1 + $0x7a8] sm:$0xff]
  %v267 = vld [vmem:[%s1 + $0x7b0] sm:$0xff]
  %v268 = vld [vmem:[%s1 + $0x7b8] sm:$0xff]
  %v269 = vld [vmem:[%s1 + $0x7c0] sm:$0xff]
  %v270 = vld [vmem:[%s1 + $0x7c8] sm:$0xff]
  %v271 = vld [vmem:[%s1 + $0x7d0] sm:$0xff]
  %v272 = vld [vmem:[%s1 + $0x7d8] sm:$0xff]
  %v273 = vld [vmem:[%s1 + $0x7e0] sm:$0xff]
  %v274 = vld [vmem:[%s1 + $0x7e8] sm:$0xff]
  %v275 = vld [vmem:[%s1 + $0x7f0] sm:$0xff]
  %v276 = vld [vmem:[%s1 + $0x7f8] sm:$0xff]
  %v281 = vunpack.c.l.b16 %v17
  %v282 = vunpack.c.h.b16 %v17
  %v283 = vunpack.c.l.b16 %v18
  %v284 = vunpack.c.h.b16 %v18
  %v285 = vunpack.c.l.b16 %v19
  %v286 = vunpack.c.h.b16 %v19
  %v287 = vunpack.c.l.b16 %v20
  %v288 = vunpack.c.h.b16 %v20
  %v289 = vpack.c.b16 %v285, %v281
  %v290 = vpack.c.b16 %v286, %v282
  %v291 = vpack.c.b16 %v287, %v283
  %v292 = vpack.c.b16 %v288, %v284
  %v553 = vunpack.c.l.b16 %v21
  %v554 = vunpack.c.h.b16 %v21
  %v555 = vunpack.c.l.b16 %v22
  %v556 = vunpack.c.h.b16 %v22
  %v557 = vunpack.c.l.b16 %v23
  %v558 = vunpack.c.h.b16 %v23
  %v559 = vunpack.c.l.b16 %v24
  %v560 = vunpack.c.h.b16 %v24
  %v561 = vunpack.c.l.b16 %v25
  %v562 = vunpack.c.h.b16 %v25
  %v563 = vunpack.c.l.b16 %v26
  %v564 = vunpack.c.h.b16 %v26
  %v565 = vunpack.c.l.b16 %v27
  %v566 = vunpack.c.h.b16 %v27
  %v567 = vunpack.c.l.b16 %v28
  %v568 = vunpack.c.h.b16 %v28
  %v569 = vunpack.c.l.b16 %v29
  %v570 = vunpack.c.h.b16 %v29
  %v571 = vunpack.c.l.b16 %v30
  %v572 = vunpack.c.h.b16 %v30
  %v573 = vunpack.c.l.b16 %v31
  %v574 = vunpack.c.h.b16 %v31
  %v575 = vunpack.c.l.b16 %v32
  %v576 = vunpack.c.h.b16 %v32
  %v577 = vunpack.c.l.b16 %v33
  %v578 = vunpack.c.h.b16 %v33
  %v579 = vunpack.c.l.b16 %v34
  %v580 = vunpack.c.h.b16 %v34
  %v581 = vunpack.c.l.b16 %v35
  %v582 = vunpack.c.h.b16 %v35
  %v583 = vunpack.c.l.b16 %v36
  %v584 = vunpack.c.h.b16 %v36
  %v585 = vunpack.c.l.b16 %v37
  %v586 = vunpack.c.h.b16 %v37
  %v587 = vunpack.c.l.b16 %v38
  %v588 = vunpack.c.h.b16 %v38
  %v589 = vunpack.c.l.b16 %v39
  %v590 = vunpack.c.h.b16 %v39
  %v591 = vunpack.c.l.b16 %v40
  %v592 = vunpack.c.h.b16 %v40
  %v593 = vunpack.c.l.b16 %v41
  %v594 = vunpack.c.h.b16 %v41
  %v595 = vunpack.c.l.b16 %v42
  %v596 = vunpack.c.h.b16 %v42
  %v597 = vunpack.c.l.b16 %v43
  %v598 = vunpack.c.h.b16 %v43
  %v599 = vunpack.c.l.b16 %v44
  %v600 = vunpack.c.h.b16 %v44
  %v601 = vunpack.c.l.b16 %v45
  %v602 = vunpack.c.h.b16 %v45
  %v603 = vunpack.c.l.b16 %v46
  %v604 = vunpack.c.h.b16 %v46
  %v605 = vunpack.c.l.b16 %v47
  %v606 = vunpack.c.h.b16 %v47
  %v607 = vunpack.c.l.b16 %v48
  %v608 = vunpack.c.h.b16 %v48
  %v609 = vunpack.c.l.b16 %v49
  %v610 = vunpack.c.h.b16 %v49
  %v611 = vunpack.c.l.b16 %v50
  %v612 = vunpack.c.h.b16 %v50
  %v613 = vunpack.c.l.b16 %v51
  %v614 = vunpack.c.h.b16 %v51
  %v615 = vunpack.c.l.b16 %v52
  %v616 = vunpack.c.h.b16 %v52
  %v617 = vunpack.c.l.b16 %v53
  %v618 = vunpack.c.h.b16 %v53
  %v619 = vunpack.c.l.b16 %v54
  %v620 = vunpack.c.h.b16 %v54
  %v621 = vunpack.c.l.b16 %v55
  %v622 = vunpack.c.h.b16 %v55
  %v623 = vunpack.c.l.b16 %v56
  %v624 = vunpack.c.h.b16 %v56
  %v625 = vunpack.c.l.b16 %v57
  %v626 = vunpack.c.h.b16 %v57
  %v627 = vunpack.c.l.b16 %v58
  %v628 = vunpack.c.h.b16 %v58
  %v629 = vunpack.c.l.b16 %v59
  %v630 = vunpack.c.h.b16 %v59
  %v631 = vunpack.c.l.b16 %v60
  %v632 = vunpack.c.h.b16 %v60
  %v633 = vunpack.c.l.b16 %v61
  %v634 = vunpack.c.h.b16 %v61
  %v635 = vunpack.c.l.b16 %v62
  %v636 = vunpack.c.h.b16 %v62
  %v637 = vunpack.c.l.b16 %v63
  %v638 = vunpack.c.h.b16 %v63
  %v639 = vunpack.c.l.b16 %v64
  %v640 = vunpack.c.h.b16 %v64
  %v641 = vunpack.c.l.b16 %v65
  %v642 = vunpack.c.h.b16 %v65
  %v643 = vunpack.c.l.b16 %v66
  %v644 = vunpack.c.h.b16 %v66
  %v645 = vunpack.c.l.b16 %v67
  %v646 = vunpack.c.h.b16 %v67
  %v647 = vunpack.c.l.b16 %v68
  %v648 = vunpack.c.h.b16 %v68
  %v649 = vunpack.c.l.b16 %v69
  %v650 = vunpack.c.h.b16 %v69
  %v651 = vunpack.c.l.b16 %v70
  %v652 = vunpack.c.h.b16 %v70
  %v653 = vunpack.c.l.b16 %v71
  %v654 = vunpack.c.h.b16 %v71
  %v655 = vunpack.c.l.b16 %v72
  %v656 = vunpack.c.h.b16 %v72
  %v657 = vunpack.c.l.b16 %v73
  %v658 = vunpack.c.h.b16 %v73
  %v659 = vunpack.c.l.b16 %v74
  %v660 = vunpack.c.h.b16 %v74
  %v661 = vunpack.c.l.b16 %v75
  %v662 = vunpack.c.h.b16 %v75
  %v663 = vunpack.c.l.b16 %v76
  %v664 = vunpack.c.h.b16 %v76
  %v665 = vunpack.c.l.b16 %v77
  %v666 = vunpack.c.h.b16 %v77
  %v667 = vunpack.c.l.b16 %v78
  %v668 = vunpack.c.h.b16 %v78
  %v669 = vunpack.c.l.b16 %v79
  %v670 = vunpack.c.h.b16 %v79
  %v671 = vunpack.c.l.b16 %v80
  %v672 = vunpack.c.h.b16 %v80
  %v673 = vunpack.c.l.b16 %v81
  %v674 = vunpack.c.h.b16 %v81
  %v675 = vunpack.c.l.b16 %v82
  %v676 = vunpack.c.h.b16 %v82
  %v677 = vunpack.c.l.b16 %v83
  %v678 = vunpack.c.h.b16 %v83
  %v679 = vunpack.c.l.b16 %v84
  %v680 = vunpack.c.h.b16 %v84
  %v681 = vunpack.c.l.b16 %v85
  %v682 = vunpack.c.h.b16 %v85
  %v683 = vunpack.c.l.b16 %v86
  %v684 = vunpack.c.h.b16 %v86
  %v685 = vunpack.c.l.b16 %v87
  %v686 = vunpack.c.h.b16 %v87
  %v687 = vunpack.c.l.b16 %v88
  %v688 = vunpack.c.h.b16 %v88
  %v689 = vunpack.c.l.b16 %v89
  %v690 = vunpack.c.h.b16 %v89
  %v691 = vunpack.c.l.b16 %v90
  %v692 = vunpack.c.h.b16 %v90
  %v693 = vunpack.c.l.b16 %v91
  %v694 = vunpack.c.h.b16 %v91
  %v695 = vunpack.c.l.b16 %v92
  %v696 = vunpack.c.h.b16 %v92
  %v697 = vunpack.c.l.b16 %v93
  %v698 = vunpack.c.h.b16 %v93
  %v699 = vunpack.c.l.b16 %v94
  %v700 = vunpack.c.h.b16 %v94
  %v701 = vunpack.c.l.b16 %v95
  %v702 = vunpack.c.h.b16 %v95
  %v703 = vunpack.c.l.b16 %v96
  %v704 = vunpack.c.h.b16 %v96
  %v705 = vunpack.c.l.b16 %v97
  %v706 = vunpack.c.h.b16 %v97
  %v707 = vunpack.c.l.b16 %v98
  %v708 = vunpack.c.h.b16 %v98
  %v709 = vunpack.c.l.b16 %v99
  %v710 = vunpack.c.h.b16 %v99
  %v711 = vunpack.c.l.b16 %v100
  %v712 = vunpack.c.h.b16 %v100
  %v713 = vunpack.c.l.b16 %v101
  %v714 = vunpack.c.h.b16 %v101
  %v715 = vunpack.c.l.b16 %v102
  %v716 = vunpack.c.h.b16 %v102
  %v717 = vunpack.c.l.b16 %v103
  %v718 = vunpack.c.h.b16 %v103
  %v719 = vunpack.c.l.b16 %v104
  %v720 = vunpack.c.h.b16 %v104
  %v721 = vunpack.c.l.b16 %v105
  %v722 = vunpack.c.h.b16 %v105
  %v723 = vunpack.c.l.b16 %v106
  %v724 = vunpack.c.h.b16 %v106
  %v725 = vunpack.c.l.b16 %v107
  %v726 = vunpack.c.h.b16 %v107
  %v727 = vunpack.c.l.b16 %v108
  %v728 = vunpack.c.h.b16 %v108
  %v729 = vunpack.c.l.b16 %v109
  %v730 = vunpack.c.h.b16 %v109
  %v731 = vunpack.c.l.b16 %v110
  %v732 = vunpack.c.h.b16 %v110
  %v733 = vunpack.c.l.b16 %v111
  %v734 = vunpack.c.h.b16 %v111
  %v735 = vunpack.c.l.b16 %v112
  %v736 = vunpack.c.h.b16 %v112
  %v737 = vunpack.c.l.b16 %v113
  %v738 = vunpack.c.h.b16 %v113
  %v739 = vunpack.c.l.b16 %v114
  %v740 = vunpack.c.h.b16 %v114
  %v741 = vunpack.c.l.b16 %v115
  %v742 = vunpack.c.h.b16 %v115
  %v743 = vunpack.c.l.b16 %v116
  %v744 = vunpack.c.h.b16 %v116
  %v745 = vunpack.c.l.b16 %v117
  %v746 = vunpack.c.h.b16 %v117
  %v747 = vunpack.c.l.b16 %v118
  %v748 = vunpack.c.h.b16 %v118
  %v749 = vunpack.c.l.b16 %v119
  %v750 = vunpack.c.h.b16 %v119
  %v751 = vunpack.c.l.b16 %v120
  %v752 = vunpack.c.h.b16 %v120
  %v753 = vunpack.c.l.b16 %v121
  %v754 = vunpack.c.h.b16 %v121
  %v755 = vunpack.c.l.b16 %v122
  %v756 = vunpack.c.h.b16 %v122
  %v757 = vunpack.c.l.b16 %v123
  %v758 = vunpack.c.h.b16 %v123
  %v759 = vunpack.c.l.b16 %v124
  %v760 = vunpack.c.h.b16 %v124
  %v761 = vunpack.c.l.b16 %v125
  %v762 = vunpack.c.h.b16 %v125
  %v763 = vunpack.c.l.b16 %v126
  %v764 = vunpack.c.h.b16 %v126
  %v765 = vunpack.c.l.b16 %v127
  %v766 = vunpack.c.h.b16 %v127
  %v767 = vunpack.c.l.b16 %v128
  %v768 = vunpack.c.h.b16 %v128
  %v769 = vunpack.c.l.b16 %v129
  %v770 = vunpack.c.h.b16 %v129
  %v771 = vunpack.c.l.b16 %v130
  %v772 = vunpack.c.h.b16 %v130
  %v773 = vunpack.c.l.b16 %v131
  %v774 = vunpack.c.h.b16 %v131
  %v775 = vunpack.c.l.b16 %v132
  %v776 = vunpack.c.h.b16 %v132
  %v777 = vunpack.c.l.b16 %v133
  %v778 = vunpack.c.h.b16 %v133
  %v779 = vunpack.c.l.b16 %v134
  %v780 = vunpack.c.h.b16 %v134
  %v781 = vunpack.c.l.b16 %v135
  %v782 = vunpack.c.h.b16 %v135
  %v783 = vunpack.c.l.b16 %v136
  %v784 = vunpack.c.h.b16 %v136
  %v785 = vunpack.c.l.b16 %v137
  %v786 = vunpack.c.h.b16 %v137
  %v787 = vunpack.c.l.b16 %v138
  %v788 = vunpack.c.h.b16 %v138
  %v789 = vunpack.c.l.b16 %v139
  %v790 = vunpack.c.h.b16 %v139
  %v791 = vunpack.c.l.b16 %v140
  %v792 = vunpack.c.h.b16 %v140
  %v793 = vunpack.c.l.b16 %v141
  %v794 = vunpack.c.h.b16 %v141
  %v795 = vunpack.c.l.b16 %v142
  %v796 = vunpack.c.h.b16 %v142
  %v797 = vunpack.c.l.b16 %v143
  %v798 = vunpack.c.h.b16 %v143
  %v799 = vunpack.c.l.b16 %v144
  %v800 = vunpack.c.h.b16 %v144
  %v801 = vunpack.c.l.b16 %v145
  %v802 = vunpack.c.h.b16 %v145
  %v803 = vunpack.c.l.b16 %v146
  %v804 = vunpack.c.h.b16 %v146
  %v805 = vunpack.c.l.b16 %v147
  %v806 = vunpack.c.h.b16 %v147
  %v807 = vunpack.c.l.b16 %v148
  %v808 = vunpack.c.h.b16 %v148
  %v809 = vunpack.c.l.b16 %v149
  %v810 = vunpack.c.h.b16 %v149
  %v811 = vunpack.c.l.b16 %v150
  %v812 = vunpack.c.h.b16 %v150
  %v813 = vunpack.c.l.b16 %v151
  %v814 = vunpack.c.h.b16 %v151
  %v815 = vunpack.c.l.b16 %v152
  %v816 = vunpack.c.h.b16 %v152
  %v817 = vunpack.c.l.b16 %v153
  %v818 = vunpack.c.h.b16 %v153
  %v819 = vunpack.c.l.b16 %v154
  %v820 = vunpack.c.h.b16 %v154
  %v821 = vunpack.c.l.b16 %v155
  %v822 = vunpack.c.h.b16 %v155
  %v823 = vunpack.c.l.b16 %v156
  %v824 = vunpack.c.h.b16 %v156
  %v825 = vunpack.c.l.b16 %v157
  %v826 = vunpack.c.h.b16 %v157
  %v827 = vunpack.c.l.b16 %v158
  %v828 = vunpack.c.h.b16 %v158
  %v829 = vunpack.c.l.b16 %v159
  %v830 = vunpack.c.h.b16 %v159
  %v831 = vunpack.c.l.b16 %v160
  %v832 = vunpack.c.h.b16 %v160
  %v833 = vunpack.c.l.b16 %v161
  %v834 = vunpack.c.h.b16 %v161
  %v835 = vunpack.c.l.b16 %v162
  %v836 = vunpack.c.h.b16 %v162
  %v837 = vunpack.c.l.b16 %v163
  %v838 = vunpack.c.h.b16 %v163
  %v839 = vunpack.c.l.b16 %v164
  %v840 = vunpack.c.h.b16 %v164
  %v841 = vunpack.c.l.b16 %v165
  %v842 = vunpack.c.h.b16 %v165
  %v843 = vunpack.c.l.b16 %v166
  %v844 = vunpack.c.h.b16 %v166
  %v845 = vunpack.c.l.b16 %v167
  %v846 = vunpack.c.h.b16 %v167
  %v847 = vunpack.c.l.b16 %v168
  %v848 = vunpack.c.h.b16 %v168
  %v849 = vunpack.c.l.b16 %v169
  %v850 = vunpack.c.h.b16 %v169
  %v851 = vunpack.c.l.b16 %v170
  %v852 = vunpack.c.h.b16 %v170
  %v853 = vunpack.c.l.b16 %v171
  %v854 = vunpack.c.h.b16 %v171
  %v855 = vunpack.c.l.b16 %v172
  %v856 = vunpack.c.h.b16 %v172
  %v857 = vunpack.c.l.b16 %v173
  %v858 = vunpack.c.h.b16 %v173
  %v859 = vunpack.c.l.b16 %v174
  %v860 = vunpack.c.h.b16 %v174
  %v861 = vunpack.c.l.b16 %v175
  %v862 = vunpack.c.h.b16 %v175
  %v863 = vunpack.c.l.b16 %v176
  %v864 = vunpack.c.h.b16 %v176
  %v865 = vunpack.c.l.b16 %v177
  %v866 = vunpack.c.h.b16 %v177
  %v867 = vunpack.c.l.b16 %v178
  %v868 = vunpack.c.h.b16 %v178
  %v869 = vunpack.c.l.b16 %v179
  %v870 = vunpack.c.h.b16 %v179
  %v871 = vunpack.c.l.b16 %v180
  %v872 = vunpack.c.h.b16 %v180
  %v873 = vunpack.c.l.b16 %v181
  %v874 = vunpack.c.h.b16 %v181
  %v875 = vunpack.c.l.b16 %v182
  %v876 = vunpack.c.h.b16 %v182
  %v877 = vunpack.c.l.b16 %v183
  %v878 = vunpack.c.h.b16 %v183
  %v879 = vunpack.c.l.b16 %v184
  %v880 = vunpack.c.h.b16 %v184
  %v881 = vunpack.c.l.b16 %v185
  %v882 = vunpack.c.h.b16 %v185
  %v883 = vunpack.c.l.b16 %v186
  %v884 = vunpack.c.h.b16 %v186
  %v885 = vunpack.c.l.b16 %v187
  %v886 = vunpack.c.h.b16 %v187
  %v887 = vunpack.c.l.b16 %v188
  %v888 = vunpack.c.h.b16 %v188
  %v889 = vunpack.c.l.b16 %v189
  %v890 = vunpack.c.h.b16 %v189
  %v891 = vunpack.c.l.b16 %v190
  %v892 = vunpack.c.h.b16 %v190
  %v893 = vunpack.c.l.b16 %v191
  %v894 = vunpack.c.h.b16 %v191
  %v895 = vunpack.c.l.b16 %v192
  %v896 = vunpack.c.h.b16 %v192
  %v897 = vunpack.c.l.b16 %v193
  %v898 = vunpack.c.h.b16 %v193
  %v899 = vunpack.c.l.b16 %v194
  %v900 = vunpack.c.h.b16 %v194
  %v901 = vunpack.c.l.b16 %v195
  %v902 = vunpack.c.h.b16 %v195
  %v903 = vunpack.c.l.b16 %v196
  %v904 = vunpack.c.h.b16 %v196
  %v905 = vunpack.c.l.b16 %v197
  %v906 = vunpack.c.h.b16 %v197
  %v907 = vunpack.c.l.b16 %v198
  %v908 = vunpack.c.h.b16 %v198
  %v909 = vunpack.c.l.b16 %v199
  %v910 = vunpack.c.h.b16 %v199
  %v911 = vunpack.c.l.b16 %v200
  %v912 = vunpack.c.h.b16 %v200
  %v913 = vunpack.c.l.b16 %v201
  %v914 = vunpack.c.h.b16 %v201
  %v915 = vunpack.c.l.b16 %v202
  %v916 = vunpack.c.h.b16 %v202
  %v917 = vunpack.c.l.b16 %v203
  %v918 = vunpack.c.h.b16 %v203
  %v919 = vunpack.c.l.b16 %v204
  %v920 = vunpack.c.h.b16 %v204
  %v921 = vunpack.c.l.b16 %v205
  %v922 = vunpack.c.h.b16 %v205
  %v923 = vunpack.c.l.b16 %v206
  %v924 = vunpack.c.h.b16 %v206
  %v925 = vunpack.c.l.b16 %v207
  %v926 = vunpack.c.h.b16 %v207
  %v927 = vunpack.c.l.b16 %v208
  %v928 = vunpack.c.h.b16 %v208
  %v929 = vunpack.c.l.b16 %v209
  %v930 = vunpack.c.h.b16 %v209
  %v931 = vunpack.c.l.b16 %v210
  %v932 = vunpack.c.h.b16 %v210
  %v933 = vunpack.c.l.b16 %v211
  %v934 = vunpack.c.h.b16 %v211
  %v935 = vunpack.c.l.b16 %v212
  %v936 = vunpack.c.h.b16 %v212
  %v937 = vunpack.c.l.b16 %v213
  %v938 = vunpack.c.h.b16 %v213
  %v939 = vunpack.c.l.b16 %v214
  %v940 = vunpack.c.h.b16 %v214
  %v941 = vunpack.c.l.b16 %v215
  %v942 = vunpack.c.h.b16 %v215
  %v943 = vunpack.c.l.b16 %v216
  %v944 = vunpack.c.h.b16 %v216
  %v945 = vunpack.c.l.b16 %v217
  %v946 = vunpack.c.h.b16 %v217
  %v947 = vunpack.c.l.b16 %v218
  %v948 = vunpack.c.h.b16 %v218
  %v949 = vunpack.c.l.b16 %v219
  %v950 = vunpack.c.h.b16 %v219
  %v951 = vunpack.c.l.b16 %v220
  %v952 = vunpack.c.h.b16 %v220
  %v953 = vunpack.c.l.b16 %v221
  %v954 = vunpack.c.h.b16 %v221
  %v955 = vunpack.c.l.b16 %v222
  %v956 = vunpack.c.h.b16 %v222
  %v957 = vunpack.c.l.b16 %v223
  %v958 = vunpack.c.h.b16 %v223
  %v959 = vunpack.c.l.b16 %v224
  %v960 = vunpack.c.h.b16 %v224
  %v961 = vunpack.c.l.b16 %v225
  %v962 = vunpack.c.h.b16 %v225
  %v963 = vunpack.c.l.b16 %v226
  %v964 = vunpack.c.h.b16 %v226
  %v965 = vunpack.c.l.b16 %v227
  %v966 = vunpack.c.h.b16 %v227
  %v967 = vunpack.c.l.b16 %v228
  %v968 = vunpack.c.h.b16 %v228
  %v969 = vunpack.c.l.b16 %v229
  %v970 = vunpack.c.h.b16 %v229
  %v971 = vunpack.c.l.b16 %v230
  %v972 = vunpack.c.h.b16 %v230
  %v973 = vunpack.c.l.b16 %v231
  %v974 = vunpack.c.h.b16 %v231
  %v975 = vunpack.c.l.b16 %v232
  %v976 = vunpack.c.h.b16 %v232
  %v977 = vunpack.c.l.b16 %v233
  %v978 = vunpack.c.h.b16 %v233
  %v979 = vunpack.c.l.b16 %v234
  %v980 = vunpack.c.h.b16 %v234
  %v981 = vunpack.c.l.b16 %v235
  %v982 = vunpack.c.h.b16 %v235
  %v983 = vunpack.c.l.b16 %v236
  %v984 = vunpack.c.h.b16 %v236
  %v985 = vunpack.c.l.b16 %v237
  %v986 = vunpack.c.h.b16 %v237
  %v987 = vunpack.c.l.b16 %v238
  %v988 = vunpack.c.h.b16 %v238
  %v989 = vunpack.c.l.b16 %v239
  %v990 = vunpack.c.h.b16 %v239
  %v991 = vunpack.c.l.b16 %v240
  %v992 = vunpack.c.h.b16 %v240
  %v993 = vunpack.c.l.b16 %v241
  %v994 = vunpack.c.h.b16 %v241
  %v995 = vunpack.c.l.b16 %v242
  %v996 = vunpack.c.h.b16 %v242
  %v997 = vunpack.c.l.b16 %v243
  %v998 = vunpack.c.h.b16 %v243
  %v999 = vunpack.c.l.b16 %v244
  %v1000 = vunpack.c.h.b16 %v244
  %v1001 = vunpack.c.l.b16 %v245
  %v1002 = vunpack.c.h.b16 %v245
  %v1003 = vunpack.c.l.b16 %v246
  %v1004 = vunpack.c.h.b16 %v246
  %v1005 = vunpack.c.l.b16 %v247
  %v1006 = vunpack.c.h.b16 %v247
  %v1007 = vunpack.c.l.b16 %v248
  %v1008 = vunpack.c.h.b16 %v248
  %v1009 = vunpack.c.l.b16 %v249
  %v1010 = vunpack.c.h.b16 %v249
  %v1011 = vunpack.c.l.b16 %v250
  %v1012 = vunpack.c.h.b16 %v250
  %v1013 = vunpack.c.l.b16 %v251
  %v1014 = vunpack.c.h.b16 %v251
  %v1015 = vunpack.c.l.b16 %v252
  %v1016 = vunpack.c.h.b16 %v252
  %v1017 = vunpack.c.l.b16 %v253
  %v1018 = vunpack.c.h.b16 %v253
  %v1019 = vunpack.c.l.b16 %v254
  %v1020 = vunpack.c.h.b16 %v254
  %v1021 = vunpack.c.l.b16 %v255
  %v1022 = vunpack.c.h.b16 %v255
  %v1023 = vunpack.c.l.b16 %v256
  %v1024 = vunpack.c.h.b16 %v256
  %v1025 = vunpack.c.l.b16 %v257
  %v1026 = vunpack.c.h.b16 %v257
  %v1027 = vunpack.c.l.b16 %v258
  %v1028 = vunpack.c.h.b16 %v258
  %v1029 = vunpack.c.l.b16 %v259
  %v1030 = vunpack.c.h.b16 %v259
  %v1031 = vunpack.c.l.b16 %v260
  %v1032 = vunpack.c.h.b16 %v260
  %v1033 = vunpack.c.l.b16 %v261
  %v1034 = vunpack.c.h.b16 %v261
  %v1035 = vunpack.c.l.b16 %v262
  %v1036 = vunpack.c.h.b16 %v262
  %v1037 = vunpack.c.l.b16 %v263
  %v1038 = vunpack.c.h.b16 %v263
  %v1039 = vunpack.c.l.b16 %v264
  %v1040 = vunpack.c.h.b16 %v264
  %v1041 = vunpack.c.l.b16 %v265
  %v1042 = vunpack.c.h.b16 %v265
  %v1043 = vunpack.c.l.b16 %v266
  %v1044 = vunpack.c.h.b16 %v266
  %v1045 = vunpack.c.l.b16 %v267
  %v1046 = vunpack.c.h.b16 %v267
  %v1047 = vunpack.c.l.b16 %v268
  %v1048 = vunpack.c.h.b16 %v268
  %v1049 = vunpack.c.l.b16 %v269
  %v1050 = vunpack.c.h.b16 %v269
  %v1051 = vunpack.c.l.b16 %v270
  %v1052 = vunpack.c.h.b16 %v270
  %v1053 = vunpack.c.l.b16 %v271
  %v1054 = vunpack.c.h.b16 %v271
  %v1055 = vunpack.c.l.b16 %v272
  %v1056 = vunpack.c.h.b16 %v272
  %v1057 = vunpack.c.l.b16 %v273
  %v1058 = vunpack.c.h.b16 %v273
  %v1059 = vunpack.c.l.b16 %v274
  %v1060 = vunpack.c.h.b16 %v274
  %v1061 = vunpack.c.l.b16 %v275
  %v1062 = vunpack.c.h.b16 %v275
  %v1063 = vunpack.c.l.b16 %v276
  %v1064 = vunpack.c.h.b16 %v276
  %v1065 = vpack.c.b16 %v561, %v553
  %v1066 = vpack.c.b16 %v562, %v554
  %v1067 = vpack.c.b16 %v563, %v555
  %v1068 = vpack.c.b16 %v564, %v556
  %v1069 = vpack.c.b16 %v565, %v557
  %v1070 = vpack.c.b16 %v566, %v558
  %v1071 = vpack.c.b16 %v567, %v559
  %v1072 = vpack.c.b16 %v568, %v560
  %v1073 = vpack.c.b16 %v577, %v569
  %v1074 = vpack.c.b16 %v578, %v570
  %v1075 = vpack.c.b16 %v579, %v571
  %v1076 = vpack.c.b16 %v580, %v572
  %v1077 = vpack.c.b16 %v581, %v573
  %v1078 = vpack.c.b16 %v582, %v574
  %v1079 = vpack.c.b16 %v583, %v575
  %v1080 = vpack.c.b16 %v584, %v576
  %v1081 = vpack.c.b16 %v593, %v585
  %v1082 = vpack.c.b16 %v594, %v586
  %v1083 = vpack.c.b16 %v595, %v587
  %v1084 = vpack.c.b16 %v596, %v588
  %v1085 = vpack.c.b16 %v597, %v589
  %v1086 = vpack.c.b16 %v598, %v590
  %v1087 = vpack.c.b16 %v599, %v591
  %v1088 = vpack.c.b16 %v600, %v592
  %v1089 = vpack.c.b16 %v609, %v601
  %v1090 = vpack.c.b16 %v610, %v602
  %v1091 = vpack.c.b16 %v611, %v603
  %v1092 = vpack.c.b16 %v612, %v604
  %v1093 = vpack.c.b16 %v613, %v605
  %v1094 = vpack.c.b16 %v614, %v606
  %v1095 = vpack.c.b16 %v615, %v607
  %v1096 = vpack.c.b16 %v616, %v608
  %v1097 = vpack.c.b16 %v625, %v617
  %v1098 = vpack.c.b16 %v626, %v618
  %v1099 = vpack.c.b16 %v627, %v619
  %v1100 = vpack.c.b16 %v628, %v620
  %v1101 = vpack.c.b16 %v629, %v621
  %v1102 = vpack.c.b16 %v630, %v622
  %v1103 = vpack.c.b16 %v631, %v623
  %v1104 = vpack.c.b16 %v632, %v624
  %v1105 = vpack.c.b16 %v641, %v633
  %v1106 = vpack.c.b16 %v642, %v634
  %v1107 = vpack.c.b16 %v643, %v635
  %v1108 = vpack.c.b16 %v644, %v636
  %v1109 = vpack.c.b16 %v645, %v637
  %v1110 = vpack.c.b16 %v646, %v638
  %v1111 = vpack.c.b16 %v647, %v639
  %v1112 = vpack.c.b16 %v648, %v640
  %v1113 = vpack.c.b16 %v657, %v649
  %v1114 = vpack.c.b16 %v658, %v650
  %v1115 = vpack.c.b16 %v659, %v651
  %v1116 = vpack.c.b16 %v660, %v652
  %v1117 = vpack.c.b16 %v661, %v653
  %v1118 = vpack.c.b16 %v662, %v654
  %v1119 = vpack.c.b16 %v663, %v655
  %v1120 = vpack.c.b16 %v664, %v656
  %v1121 = vpack.c.b16 %v673, %v665
  %v1122 = vpack.c.b16 %v674, %v666
  %v1123 = vpack.c.b16 %v675, %v667
  %v1124 = vpack.c.b16 %v676, %v668
  %v1125 = vpack.c.b16 %v677, %v669
  %v1126 = vpack.c.b16 %v678, %v670
  %v1127 = vpack.c.b16 %v679, %v671
  %v1128 = vpack.c.b16 %v680, %v672
  %v1129 = vpack.c.b16 %v689, %v681
  %v1130 = vpack.c.b16 %v690, %v682
  %v1131 = vpack.c.b16 %v691, %v683
  %v1132 = vpack.c.b16 %v692, %v684
  %v1133 = vpack.c.b16 %v693, %v685
  %v1134 = vpack.c.b16 %v694, %v686
  %v1135 = vpack.c.b16 %v695, %v687
  %v1136 = vpack.c.b16 %v696, %v688
  %v1137 = vpack.c.b16 %v705, %v697
  %v1138 = vpack.c.b16 %v706, %v698
  %v1139 = vpack.c.b16 %v707, %v699
  %v1140 = vpack.c.b16 %v708, %v700
  %v1141 = vpack.c.b16 %v709, %v701
  %v1142 = vpack.c.b16 %v710, %v702
  %v1143 = vpack.c.b16 %v711, %v703
  %v1144 = vpack.c.b16 %v712, %v704
  %v1145 = vpack.c.b16 %v721, %v713
  %v1146 = vpack.c.b16 %v722, %v714
  %v1147 = vpack.c.b16 %v723, %v715
  %v1148 = vpack.c.b16 %v724, %v716
  %v1149 = vpack.c.b16 %v725, %v717
  %v1150 = vpack.c.b16 %v726, %v718
  %v1151 = vpack.c.b16 %v727, %v719
  %v1152 = vpack.c.b16 %v728, %v720
  %v1153 = vpack.c.b16 %v737, %v729
  %v1154 = vpack.c.b16 %v738, %v730
  %v1155 = vpack.c.b16 %v739, %v731
  %v1156 = vpack.c.b16 %v740, %v732
  %v1157 = vpack.c.b16 %v741, %v733
  %v1158 = vpack.c.b16 %v742, %v734
  %v1159 = vpack.c.b16 %v743, %v735
  %v1160 = vpack.c.b16 %v744, %v736
  %v1161 = vpack.c.b16 %v753, %v745
  %v1162 = vpack.c.b16 %v754, %v746
  %v1163 = vpack.c.b16 %v755, %v747
  %v1164 = vpack.c.b16 %v756, %v748
  %v1165 = vpack.c.b16 %v757, %v749
  %v1166 = vpack.c.b16 %v758, %v750
  %v1167 = vpack.c.b16 %v759, %v751
  %v1168 = vpack.c.b16 %v760, %v752
  %v1169 = vpack.c.b16 %v769, %v761
  %v1170 = vpack.c.b16 %v770, %v762
  %v1171 = vpack.c.b16 %v771, %v763
  %v1172 = vpack.c.b16 %v772, %v764
  %v1173 = vpack.c.b16 %v773, %v765
  %v1174 = vpack.c.b16 %v774, %v766
  %v1175 = vpack.c.b16 %v775, %v767
  %v1176 = vpack.c.b16 %v776, %v768
  %v1177 = vpack.c.b16 %v785, %v777
  %v1178 = vpack.c.b16 %v786, %v778
  %v1179 = vpack.c.b16 %v787, %v779
  %v1180 = vpack.c.b16 %v788, %v780
  %v1181 = vpack.c.b16 %v789, %v781
  %v1182 = vpack.c.b16 %v790, %v782
  %v1183 = vpack.c.b16 %v791, %v783
  %v1184 = vpack.c.b16 %v792, %v784
  %v1185 = vpack.c.b16 %v801, %v793
  %v1186 = vpack.c.b16 %v802, %v794
  %v1187 = vpack.c.b16 %v803, %v795
  %v1188 = vpack.c.b16 %v804, %v796
  %v1189 = vpack.c.b16 %v805, %v797
  %v1190 = vpack.c.b16 %v806, %v798
  %v1191 = vpack.c.b16 %v807, %v799
  %v1192 = vpack.c.b16 %v808, %v800
  %v1193 = vpack.c.b16 %v817, %v809
  %v1194 = vpack.c.b16 %v818, %v810
  %v1195 = vpack.c.b16 %v819, %v811
  %v1196 = vpack.c.b16 %v820, %v812
  %v1197 = vpack.c.b16 %v821, %v813
  %v1198 = vpack.c.b16 %v822, %v814
  %v1199 = vpack.c.b16 %v823, %v815
  %v1200 = vpack.c.b16 %v824, %v816
  %v1201 = vpack.c.b16 %v833, %v825
  %v1202 = vpack.c.b16 %v834, %v826
  %v1203 = vpack.c.b16 %v835, %v827
  %v1204 = vpack.c.b16 %v836, %v828
  %v1205 = vpack.c.b16 %v837, %v829
  %v1206 = vpack.c.b16 %v838, %v830
  %v1207 = vpack.c.b16 %v839, %v831
  %v1208 = vpack.c.b16 %v840, %v832
  %v1209 = vpack.c.b16 %v849, %v841
  %v1210 = vpack.c.b16 %v850, %v842
  %v1211 = vpack.c.b16 %v851, %v843
  %v1212 = vpack.c.b16 %v852, %v844
  %v1213 = vpack.c.b16 %v853, %v845
  %v1214 = vpack.c.b16 %v854, %v846
  %v1215 = vpack.c.b16 %v855, %v847
  %v1216 = vpack.c.b16 %v856, %v848
  %v1217 = vpack.c.b16 %v865, %v857
  %v1218 = vpack.c.b16 %v866, %v858
  %v1219 = vpack.c.b16 %v867, %v859
  %v1220 = vpack.c.b16 %v868, %v860
  %v1221 = vpack.c.b16 %v869, %v861
  %v1222 = vpack.c.b16 %v870, %v862
  %v1223 = vpack.c.b16 %v871, %v863
  %v1224 = vpack.c.b16 %v872, %v864
  %v1225 = vpack.c.b16 %v881, %v873
  %v1226 = vpack.c.b16 %v882, %v874
  %v1227 = vpack.c.b16 %v883, %v875
  %v1228 = vpack.c.b16 %v884, %v876
  %v1229 = vpack.c.b16 %v885, %v877
  %v1230 = vpack.c.b16 %v886, %v878
  %v1231 = vpack.c.b16 %v887, %v879
  %v1232 = vpack.c.b16 %v888, %v880
  %v1233 = vpack.c.b16 %v897, %v889
  %v1234 = vpack.c.b16 %v898, %v890
  %v1235 = vpack.c.b16 %v899, %v891
  %v1236 = vpack.c.b16 %v900, %v892
  %v1237 = vpack.c.b16 %v901, %v893
  %v1238 = vpack.c.b16 %v902, %v894
  %v1239 = vpack.c.b16 %v903, %v895
  %v1240 = vpack.c.b16 %v904, %v896
  %v1241 = vpack.c.b16 %v913, %v905
  %v1242 = vpack.c.b16 %v914, %v906
  %v1243 = vpack.c.b16 %v915, %v907
  %v1244 = vpack.c.b16 %v916, %v908
  %v1245 = vpack.c.b16 %v917, %v909
  %v1246 = vpack.c.b16 %v918, %v910
  %v1247 = vpack.c.b16 %v919, %v911
  %v1248 = vpack.c.b16 %v920, %v912
  %v1249 = vpack.c.b16 %v929, %v921
  %v1250 = vpack.c.b16 %v930, %v922
  %v1251 = vpack.c.b16 %v931, %v923
  %v1252 = vpack.c.b16 %v932, %v924
  %v1253 = vpack.c.b16 %v933, %v925
  %v1254 = vpack.c.b16 %v934, %v926
  %v1255 = vpack.c.b16 %v935, %v927
  %v1256 = vpack.c.b16 %v936, %v928
  %v1257 = vpack.c.b16 %v945, %v937
  %v1258 = vpack.c.b16 %v946, %v938
  %v1259 = vpack.c.b16 %v947, %v939
  %v1260 = vpack.c.b16 %v948, %v940
  %v1261 = vpack.c.b16 %v949, %v941
  %v1262 = vpack.c.b16 %v950, %v942
  %v1263 = vpack.c.b16 %v951, %v943
  %v1264 = vpack.c.b16 %v952, %v944
  %v1265 = vpack.c.b16 %v961, %v953
  %v1266 = vpack.c.b16 %v962, %v954
  %v1267 = vpack.c.b16 %v963, %v955
  %v1268 = vpack.c.b16 %v964, %v956
  %v1269 = vpack.c.b16 %v965, %v957
  %v1270 = vpack.c.b16 %v966, %v958
  %v1271 = vpack.c.b16 %v967, %v959
  %v1272 = vpack.c.b16 %v968, %v960
  %v1273 = vpack.c.b16 %v977, %v969
  %v1274 = vpack.c.b16 %v978, %v970
  %v1275 = vpack.c.b16 %v979, %v971
  %v1276 = vpack.c.b16 %v980, %v972
  %v1277 = vpack.c.b16 %v981, %v973
  %v1278 = vpack.c.b16 %v982, %v974
  %v1279 = vpack.c.b16 %v983, %v975
  %v1280 = vpack.c.b16 %v984, %v976
  %v1281 = vpack.c.b16 %v993, %v985
  %v1282 = vpack.c.b16 %v994, %v986
  %v1283 = vpack.c.b16 %v995, %v987
  %v1284 = vpack.c.b16 %v996, %v988
  %v1285 = vpack.c.b16 %v997, %v989
  %v1286 = vpack.c.b16 %v998, %v990
  %v1287 = vpack.c.b16 %v999, %v991
  %v1288 = vpack.c.b16 %v1000, %v992
  %v1289 = vpack.c.b16 %v1009, %v1001
  %v1290 = vpack.c.b16 %v1010, %v1002
  %v1291 = vpack.c.b16 %v1011, %v1003
  %v1292 = vpack.c.b16 %v1012, %v1004
  %v1293 = vpack.c.b16 %v1013, %v1005
  %v1294 = vpack.c.b16 %v1014, %v1006
  %v1295 = vpack.c.b16 %v1015, %v1007
  %v1296 = vpack.c.b16 %v1016, %v1008
  %v1297 = vpack.c.b16 %v1025, %v1017
  %v1298 = vpack.c.b16 %v1026, %v1018
  %v1299 = vpack.c.b16 %v1027, %v1019
  %v1300 = vpack.c.b16 %v1028, %v1020
  %v1301 = vpack.c.b16 %v1029, %v1021
  %v1302 = vpack.c.b16 %v1030, %v1022
  %v1303 = vpack.c.b16 %v1031, %v1023
  %v1304 = vpack.c.b16 %v1032, %v1024
  %v1305 = vpack.c.b16 %v1041, %v1033
  %v1306 = vpack.c.b16 %v1042, %v1034
  %v1307 = vpack.c.b16 %v1043, %v1035
  %v1308 = vpack.c.b16 %v1044, %v1036
  %v1309 = vpack.c.b16 %v1045, %v1037
  %v1310 = vpack.c.b16 %v1046, %v1038
  %v1311 = vpack.c.b16 %v1047, %v1039
  %v1312 = vpack.c.b16 %v1048, %v1040
  %v1313 = vpack.c.b16 %v1057, %v1049
  %v1314 = vpack.c.b16 %v1058, %v1050
  %v1315 = vpack.c.b16 %v1059, %v1051
  %v1316 = vpack.c.b16 %v1060, %v1052
  %v1317 = vpack.c.b16 %v1061, %v1053
  %v1318 = vpack.c.b16 %v1062, %v1054
  %v1319 = vpack.c.b16 %v1063, %v1055
  %v1320 = vpack.c.b16 %v1064, %v1056
  %1577 = vmatprep.subr.bf16.mxu0 %v1122
  %1578 = vmatpush1.bf16.msra.mxu0 %v1121
  %1579 = vmatprep.subr.bf16.mxu0 %v1114
  %1580 = vmatpush1.bf16.msra.mxu0 %v1113
  %1581 = vmatprep.subr.bf16.mxu0 %v1106
  %1582 = vmatpush1.bf16.msra.mxu0 %v1105
  %1583 = vmatprep.subr.bf16.mxu0 %v1098
  %1584 = vmatpush1.bf16.msra.mxu0 %v1097
  %1585 = vmatprep.subr.bf16.mxu0 %v1090
  %1586 = vmatpush1.bf16.msra.mxu0 %v1089
  %1587 = vmatprep.subr.bf16.mxu0 %v1082
  %1588 = vmatpush1.bf16.msra.mxu0 %v1081
  %1589 = vmatprep.subr.bf16.mxu0 %v1074
  %1590 = vmatpush1.bf16.msra.mxu0 %v1073
  %1591 = vmatprep.subr.bf16.mxu0 %v1066
  %1592 = vmatpush1.bf16.msra.mxu0 %v1065
  %1593 = vmatprep.subr.bf16.mxu0 %v1186
  %1594 = vmatpush2.bf16.msra.mxu0 %v1185
  %1595 = vmatprep.subr.bf16.mxu0 %v1178
  %1596 = vmatpush2.bf16.msra.mxu0 %v1177
  %1597 = vmatprep.subr.bf16.mxu0 %v1170
  %1598 = vmatpush2.bf16.msra.mxu0 %v1169
  %1599 = vmatprep.subr.bf16.mxu0 %v1162
  %1600 = vmatpush2.bf16.msra.mxu0 %v1161
  %1601 = vmatprep.subr.bf16.mxu0 %v1154
  %1602 = vmatpush2.bf16.msra.mxu0 %v1153
  %1603 = vmatprep.subr.bf16.mxu0 %v1146
  %1604 = vmatpush2.bf16.msra.mxu0 %v1145
  %1605 = vmatprep.subr.bf16.mxu0 %v1138
  %1606 = vmatpush2.bf16.msra.mxu0 %v1137
  %1607 = vmatprep.subr.bf16.mxu0 %v1130
  %1608 = vmatpush2.bf16.msra.mxu0 %v1129
  %1609 = vmatprep.mubr.bf16.mxu0 %v290
  %1610 = vmatmul.mubr.bf16.gmra.mxu0 %v289
  %v1611 = vpop.f32.mrf.mxu0
  %v1612 = vadd.f32 0.0, %v1611
  %v1613 = vpop.f32.mrf.mxu0
  %v1614 = vadd.f32 0.0, %v1613
  %v1615 = vpop.f32.mrf.mxu0
  %v1616 = vadd.f32 0.0, %v1615
  %v1617 = vpop.f32.mrf.mxu0
  %v1618 = vadd.f32 0.0, %v1617
  %1619 = vdwg.mxu0
  %1620 = vmatprep.subr.bf16.mxu0 %v1250
  %1621 = vmatpush1.bf16.msra.mxu0 %v1249
  %1622 = vmatprep.subr.bf16.mxu0 %v1242
  %1623 = vmatpush1.bf16.msra.mxu0 %v1241
  %1624 = vmatprep.subr.bf16.mxu0 %v1234
  %1625 = vmatpush1.bf16.msra.mxu0 %v1233
  %1626 = vmatprep.subr.bf16.mxu0 %v1226
  %1627 = vmatpush1.bf16.msra.mxu0 %v1225
  %1628 = vmatprep.subr.bf16.mxu0 %v1218
  %1629 = vmatpush1.bf16.msra.mxu0 %v1217
  %1630 = vmatprep.subr.bf16.mxu0 %v1210
  %1631 = vmatpush1.bf16.msra.mxu0 %v1209
  %1632 = vmatprep.subr.bf16.mxu0 %v1202
  %1633 = vmatpush1.bf16.msra.mxu0 %v1201
  %1634 = vmatprep.subr.bf16.mxu0 %v1194
  %1635 = vmatpush1.bf16.msra.mxu0 %v1193
  %1636 = vmatprep.subr.bf16.mxu0 %v1314
  %1637 = vmatpush2.bf16.msra.mxu0 %v1313
  %1638 = vmatprep.subr.bf16.mxu0 %v1306
  %1639 = vmatpush2.bf16.msra.mxu0 %v1305
  %1640 = vmatprep.subr.bf16.mxu0 %v1298
  %1641 = vmatpush2.bf16.msra.mxu0 %v1297
  %1642 = vmatprep.subr.bf16.mxu0 %v1290
  %1643 = vmatpush2.bf16.msra.mxu0 %v1289
  %1644 = vmatprep.subr.bf16.mxu0 %v1282
  %1645 = vmatpush2.bf16.msra.mxu0 %v1281
  %1646 = vmatprep.subr.bf16.mxu0 %v1274
  %1647 = vmatpush2.bf16.msra.mxu0 %v1273
  %1648 = vmatprep.subr.bf16.mxu0 %v1266
  %1649 = vmatpush2.bf16.msra.mxu0 %v1265
  %1650 = vmatprep.subr.bf16.mxu0 %v1258
  %1651 = vmatpush2.bf16.msra.mxu0 %v1257
  %1652 = vmatprep.mubr.bf16.mxu0 %v292
  %1653 = vmatmul.mubr.bf16.gmra.mxu0 %v291
  %v1654 = vpop.f32.mrf.mxu0
  %v1655 = vadd.f32 %v1612, %v1654
  %v1656 = vpop.f32.mrf.mxu0
  %v1657 = vadd.f32 %v1614, %v1656
  %v1658 = vpop.f32.mrf.mxu0
  %v1659 = vadd.f32 %v1616, %v1658
  %v1660 = vpop.f32.mrf.mxu0
  %v1661 = vadd.f32 %v1618, %v1660
  %1662 = vdwg.mxu0
  %1663 = vmatprep.subr.bf16.mxu0 %v1124
  %1664 = vmatpush1.bf16.msra.mxu0 %v1123
  %1665 = vmatprep.subr.bf16.mxu0 %v1116
  %1666 = vmatpush1.bf16.msra.mxu0 %v1115
  %1667 = vmatprep.subr.bf16.mxu0 %v1108
  %1668 = vmatpush1.bf16.msra.mxu0 %v1107
  %1669 = vmatprep.subr.bf16.mxu0 %v1100
  %1670 = vmatpush1.bf16.msra.mxu0 %v1099
  %1671 = vmatprep.subr.bf16.mxu0 %v1092
  %1672 = vmatpush1.bf16.msra.mxu0 %v1091
  %1673 = vmatprep.subr.bf16.mxu0 %v1084
  %1674 = vmatpush1.bf16.msra.mxu0 %v1083
  %1675 = vmatprep.subr.bf16.mxu0 %v1076
  %1676 = vmatpush1.bf16.msra.mxu0 %v1075
  %1677 = vmatprep.subr.bf16.mxu0 %v1068
  %1678 = vmatpush1.bf16.msra.mxu0 %v1067
  %1679 = vmatprep.subr.bf16.mxu0 %v1188
  %1680 = vmatpush2.bf16.msra.mxu0 %v1187
  %1681 = vmatprep.subr.bf16.mxu0 %v1180
  %1682 = vmatpush2.bf16.msra.mxu0 %v1179
  %1683 = vmatprep.subr.bf16.mxu0 %v1172
  %1684 = vmatpush2.bf16.msra.mxu0 %v1171
  %1685 = vmatprep.subr.bf16.mxu0 %v1164
  %1686 = vmatpush2.bf16.msra.mxu0 %v1163
  %1687 = vmatprep.subr.bf16.mxu0 %v1156
  %1688 = vmatpush2.bf16.msra.mxu0 %v1155
  %1689 = vmatprep.subr.bf16.mxu0 %v1148
  %1690 = vmatpush2.bf16.msra.mxu0 %v1147
  %1691 = vmatprep.subr.bf16.mxu0 %v1140
  %1692 = vmatpush2.bf16.msra.mxu0 %v1139
  %1693 = vmatprep.subr.bf16.mxu0 %v1132
  %1694 = vmatpush2.bf16.msra.mxu0 %v1131
  %1695 = vmatprep.mubr.bf16.mxu0 %v290
  %1696 = vmatmul.mubr.bf16.gmra.mxu0 %v289
  %v1697 = vpop.f32.mrf.mxu0
  %v1698 = vadd.f32 0.0, %v1697
  %v1699 = vpop.f32.mrf.mxu0
  %v1700 = vadd.f32 0.0, %v1699
  %v1701 = vpop.f32.mrf.mxu0
  %v1702 = vadd.f32 0.0, %v1701
  %v1703 = vpop.f32.mrf.mxu0
  %v1704 = vadd.f32 0.0, %v1703
  %1705 = vdwg.mxu0
  %1706 = vmatprep.subr.bf16.mxu0 %v1252
  %1707 = vmatpush1.bf16.msra.mxu0 %v1251
  %1708 = vmatprep.subr.bf16.mxu0 %v1244
  %1709 = vmatpush1.bf16.msra.mxu0 %v1243
  %1710 = vmatprep.subr.bf16.mxu0 %v1236
  %1711 = vmatpush1.bf16.msra.mxu0 %v1235
  %1712 = vmatprep.subr.bf16.mxu0 %v1228
  %1713 = vmatpush1.bf16.msra.mxu0 %v1227
  %1714 = vmatprep.subr.bf16.mxu0 %v1220
  %1715 = vmatpush1.bf16.msra.mxu0 %v1219
  %1716 = vmatprep.subr.bf16.mxu0 %v1212
  %1717 = vmatpush1.bf16.msra.mxu0 %v1211
  %1718 = vmatprep.subr.bf16.mxu0 %v1204
  %1719 = vmatpush1.bf16.msra.mxu0 %v1203
  %1720 = vmatprep.subr.bf16.mxu0 %v1196
  %1721 = vmatpush1.bf16.msra.mxu0 %v1195
  %1722 = vmatprep.subr.bf16.mxu0 %v1316
  %1723 = vmatpush2.bf16.msra.mxu0 %v1315
  %1724 = vmatprep.subr.bf16.mxu0 %v1308
  %1725 = vmatpush2.bf16.msra.mxu0 %v1307
  %1726 = vmatprep.subr.bf16.mxu0 %v1300
  %1727 = vmatpush2.bf16.msra.mxu0 %v1299
  %1728 = vmatprep.subr.bf16.mxu0 %v1292
  %1729 = vmatpush2.bf16.msra.mxu0 %v1291
  %1730 = vmatprep.subr.bf16.mxu0 %v1284
  %1731 = vmatpush2.bf16.msra.mxu0 %v1283
  %1732 = vmatprep.subr.bf16.mxu0 %v1276
  %1733 = vmatpush2.bf16.msra.mxu0 %v1275
  %1734 = vmatprep.subr.bf16.mxu0 %v1268
  %1735 = vmatpush2.bf16.msra.mxu0 %v1267
  %1736 = vmatprep.subr.bf16.mxu0 %v1260
  %1737 = vmatpush2.bf16.msra.mxu0 %v1259
  %1738 = vmatprep.mubr.bf16.mxu0 %v292
  %1739 = vmatmul.mubr.bf16.gmra.mxu0 %v291
  %v1740 = vpop.f32.mrf.mxu0
  %v1741 = vadd.f32 %v1698, %v1740
  %v1742 = vpop.f32.mrf.mxu0
  %v1743 = vadd.f32 %v1700, %v1742
  %v1744 = vpop.f32.mrf.mxu0
  %v1745 = vadd.f32 %v1702, %v1744
  %v1746 = vpop.f32.mrf.mxu0
  %v1747 = vadd.f32 %v1704, %v1746
  %1748 = vdwg.mxu0
  %1749 = vmatprep.subr.bf16.mxu0 %v1126
  %1750 = vmatpush1.bf16.msra.mxu0 %v1125
  %1751 = vmatprep.subr.bf16.mxu0 %v1118
  %1752 = vmatpush1.bf16.msra.mxu0 %v1117
  %1753 = vmatprep.subr.bf16.mxu0 %v1110
  %1754 = vmatpush1.bf16.msra.mxu0 %v1109
  %1755 = vmatprep.subr.bf16.mxu0 %v1102
  %1756 = vmatpush1.bf16.msra.mxu0 %v1101
  %1757 = vmatprep.subr.bf16.mxu0 %v1094
  %1758 = vmatpush1.bf16.msra.mxu0 %v1093
  %1759 = vmatprep.subr.bf16.mxu0 %v1086
  %1760 = vmatpush1.bf16.msra.mxu0 %v1085
  %1761 = vmatprep.subr.bf16.mxu0 %v1078
  %1762 = vmatpush1.bf16.msra.mxu0 %v1077
  %1763 = vmatprep.subr.bf16.mxu0 %v1070
  %1764 = vmatpush1.bf16.msra.mxu0 %v1069
  %1765 = vmatprep.subr.bf16.mxu0 %v1190
  %1766 = vmatpush2.bf16.msra.mxu0 %v1189
  %1767 = vmatprep.subr.bf16.mxu0 %v1182
  %1768 = vmatpush2.bf16.msra.mxu0 %v1181
  %1769 = vmatprep.subr.bf16.mxu0 %v1174
  %1770 = vmatpush2.bf16.msra.mxu0 %v1173
  %1771 = vmatprep.subr.bf16.mxu0 %v1166
  %1772 = vmatpush2.bf16.msra.mxu0 %v1165
  %1773 = vmatprep.subr.bf16.mxu0 %v1158
  %1774 = vmatpush2.bf16.msra.mxu0 %v1157
  %1775 = vmatprep.subr.bf16.mxu0 %v1150
  %1776 = vmatpush2.bf16.msra.mxu0 %v1149
  %1777 = vmatprep.subr.bf16.mxu0 %v1142
  %1778 = vmatpush2.bf16.msra.mxu0 %v1141
  %1779 = vmatprep.subr.bf16.mxu0 %v1134
  %1780 = vmatpush2.bf16.msra.mxu0 %v1133
  %1781 = vmatprep.mubr.bf16.mxu0 %v290
  %1782 = vmatmul.mubr.bf16.gmra.mxu0 %v289
  %v1783 = vpop.f32.mrf.mxu0
  %v1784 = vadd.f32 0.0, %v1783
  %v1785 = vpop.f32.mrf.mxu0
  %v1786 = vadd.f32 0.0, %v1785
  %v1787 = vpop.f32.mrf.mxu0
  %v1788 = vadd.f32 0.0, %v1787
  %v1789 = vpop.f32.mrf.mxu0
  %v1790 = vadd.f32 0.0, %v1789
  %1791 = vdwg.mxu0
  %1792 = vmatprep.subr.bf16.mxu0 %v1254
  %1793 = vmatpush1.bf16.msra.mxu0 %v1253
  %1794 = vmatprep.subr.bf16.mxu0 %v1246
  %1795 = vmatpush1.bf16.msra.mxu0 %v1245
  %1796 = vmatprep.subr.bf16.mxu0 %v1238
  %1797 = vmatpush1.bf16.msra.mxu0 %v1237
  %1798 = vmatprep.subr.bf16.mxu0 %v1230
  %1799 = vmatpush1.bf16.msra.mxu0 %v1229
  %1800 = vmatprep.subr.bf16.mxu0 %v1222
  %1801 = vmatpush1.bf16.msra.mxu0 %v1221
  %1802 = vmatprep.subr.bf16.mxu0 %v1214
  %1803 = vmatpush1.bf16.msra.mxu0 %v1213
  %1804 = vmatprep.subr.bf16.mxu0 %v1206
  %1805 = vmatpush1.bf16.msra.mxu0 %v1205
  %1806 = vmatprep.subr.bf16.mxu0 %v1198
  %1807 = vmatpush1.bf16.msra.mxu0 %v1197
  %1808 = vmatprep.subr.bf16.mxu0 %v1318
  %1809 = vmatpush2.bf16.msra.mxu0 %v1317
  %1810 = vmatprep.subr.bf16.mxu0 %v1310
  %1811 = vmatpush2.bf16.msra.mxu0 %v1309
  %1812 = vmatprep.subr.bf16.mxu0 %v1302
  %1813 = vmatpush2.bf16.msra.mxu0 %v1301
  %1814 = vmatprep.subr.bf16.mxu0 %v1294
  %1815 = vmatpush2.bf16.msra.mxu0 %v1293
  %1816 = vmatprep.subr.bf16.mxu0 %v1286
  %1817 = vmatpush2.bf16.msra.mxu0 %v1285
  %1818 = vmatprep.subr.bf16.mxu0 %v1278
  %1819 = vmatpush2.bf16.msra.mxu0 %v1277
  %1820 = vmatprep.subr.bf16.mxu0 %v1270
  %1821 = vmatpush2.bf16.msra.mxu0 %v1269
  %1822 = vmatprep.subr.bf16.mxu0 %v1262
  %1823 = vmatpush2.bf16.msra.mxu0 %v1261
  %1824 = vmatprep.mubr.bf16.mxu0 %v292
  %1825 = vmatmul.mubr.bf16.gmra.mxu0 %v291
  %v1826 = vpop.f32.mrf.mxu0
  %v1827 = vadd.f32 %v1784, %v1826
  %v1828 = vpop.f32.mrf.mxu0
  %v1829 = vadd.f32 %v1786, %v1828
  %v1830 = vpop.f32.mrf.mxu0
  %v1831 = vadd.f32 %v1788, %v1830
  %v1832 = vpop.f32.mrf.mxu0
  %v1833 = vadd.f32 %v1790, %v1832
  %1834 = vdwg.mxu0
  %1835 = vmatprep.subr.bf16.mxu0 %v1128
  %1836 = vmatpush1.bf16.msra.mxu0 %v1127
  %1837 = vmatprep.subr.bf16.mxu0 %v1120
  %1838 = vmatpush1.bf16.msra.mxu0 %v1119
  %1839 = vmatprep.subr.bf16.mxu0 %v1112
  %1840 = vmatpush1.bf16.msra.mxu0 %v1111
  %1841 = vmatprep.subr.bf16.mxu0 %v1104
  %1842 = vmatpush1.bf16.msra.mxu0 %v1103
  %1843 = vmatprep.subr.bf16.mxu0 %v1096
  %1844 = vmatpush1.bf16.msra.mxu0 %v1095
  %1845 = vmatprep.subr.bf16.mxu0 %v1088
  %1846 = vmatpush1.bf16.msra.mxu0 %v1087
  %1847 = vmatprep.subr.bf16.mxu0 %v1080
  %1848 = vmatpush1.bf16.msra.mxu0 %v1079
  %1849 = vmatprep.subr.bf16.mxu0 %v1072
  %1850 = vmatpush1.bf16.msra.mxu0 %v1071
  %1851 = vmatprep.subr.bf16.mxu0 %v1192
  %1852 = vmatpush2.bf16.msra.mxu0 %v1191
  %1853 = vmatprep.subr.bf16.mxu0 %v1184
  %1854 = vmatpush2.bf16.msra.mxu0 %v1183
  %1855 = vmatprep.subr.bf16.mxu0 %v1176
  %1856 = vmatpush2.bf16.msra.mxu0 %v1175
  %1857 = vmatprep.subr.bf16.mxu0 %v1168
  %1858 = vmatpush2.bf16.msra.mxu0 %v1167
  %1859 = vmatprep.subr.bf16.mxu0 %v1160
  %1860 = vmatpush2.bf16.msra.mxu0 %v1159
  %1861 = vmatprep.subr.bf16.mxu0 %v1152
  %1862 = vmatpush2.bf16.msra.mxu0 %v1151
  %1863 = vmatprep.subr.bf16.mxu0 %v1144
  %1864 = vmatpush2.bf16.msra.mxu0 %v1143
  %1865 = vmatprep.subr.bf16.mxu0 %v1136
  %1866 = vmatpush2.bf16.msra.mxu0 %v1135
  %1867 = vmatprep.mubr.bf16.mxu0 %v290
  %1868 = vmatmul.mubr.bf16.gmra.mxu0 %v289
  %v1869 = vpop.f32.mrf.mxu0
  %v1870 = vadd.f32 0.0, %v1869
  %v1871 = vpop.f32.mrf.mxu0
  %v1872 = vadd.f32 0.0, %v1871
  %v1873 = vpop.f32.mrf.mxu0
  %v1874 = vadd.f32 0.0, %v1873
  %v1875 = vpop.f32.mrf.mxu0
  %v1876 = vadd.f32 0.0, %v1875
  %1877 = vdwg.mxu0
  %1878 = vmatprep.subr.bf16.mxu0 %v1256
  %1879 = vmatpush1.bf16.msra.mxu0 %v1255
  %1880 = vmatprep.subr.bf16.mxu0 %v1248
  %1881 = vmatpush1.bf16.msra.mxu0 %v1247
  %1882 = vmatprep.subr.bf16.mxu0 %v1240
  %1883 = vmatpush1.bf16.msra.mxu0 %v1239
  %1884 = vmatprep.subr.bf16.mxu0 %v1232
  %1885 = vmatpush1.bf16.msra.mxu0 %v1231
  %1886 = vmatprep.subr.bf16.mxu0 %v1224
  %1887 = vmatpush1.bf16.msra.mxu0 %v1223
  %1888 = vmatprep.subr.bf16.mxu0 %v1216
  %1889 = vmatpush1.bf16.msra.mxu0 %v1215
  %1890 = vmatprep.subr.bf16.mxu0 %v1208
  %1891 = vmatpush1.bf16.msra.mxu0 %v1207
  %1892 = vmatprep.subr.bf16.mxu0 %v1200
  %1893 = vmatpush1.bf16.msra.mxu0 %v1199
  %1894 = vmatprep.subr.bf16.mxu0 %v1320
  %1895 = vmatpush2.bf16.msra.mxu0 %v1319
  %1896 = vmatprep.subr.bf16.mxu0 %v1312
  %1897 = vmatpush2.bf16.msra.mxu0 %v1311
  %1898 = vmatprep.subr.bf16.mxu0 %v1304
  %1899 = vmatpush2.bf16.msra.mxu0 %v1303
  %1900 = vmatprep.subr.bf16.mxu0 %v1296
  %1901 = vmatpush2.bf16.msra.mxu0 %v1295
  %1902 = vmatprep.subr.bf16.mxu0 %v1288
  %1903 = vmatpush2.bf16.msra.mxu0 %v1287
  %1904 = vmatprep.subr.bf16.mxu0 %v1280
  %1905 = vmatpush2.bf16.msra.mxu0 %v1279
  %1906 = vmatprep.subr.bf16.mxu0 %v1272
  %1907 = vmatpush2.bf16.msra.mxu0 %v1271
  %1908 = vmatprep.subr.bf16.mxu0 %v1264
  %1909 = vmatpush2.bf16.msra.mxu0 %v1263
  %1910 = vmatprep.mubr.bf16.mxu0 %v292
  %1911 = vmatmul.mubr.bf16.gmra.mxu0 %v291
  %v1912 = vpop.f32.mrf.mxu0
  %v1913 = vadd.f32 %v1870, %v1912
  %v1914 = vpop.f32.mrf.mxu0
  %v1915 = vadd.f32 %v1872, %v1914
  %v1916 = vpop.f32.mrf.mxu0
  %v1917 = vadd.f32 %v1874, %v1916
  %v1918 = vpop.f32.mrf.mxu0
  %v1919 = vadd.f32 %v1876, %v1918
  %1920 = vdwg.mxu0
  %v1921 = vld [vmem:[%s2] sm:$0xff]
  %v1923 = vlaneseq
  %v1924 = vshrl.u32 %v1923, 7
  %v1925 = vsub.s32 0, %v1924
  %v1926 = vrot.slane %v1921, %v1925
  %v1927 = vlaneseq
  %v1928 = vshrl.u32 %v1927, 7
  %v1929 = vsub.s32 1, %v1928
  %v1930 = vrot.slane %v1921, %v1929
  %v1931 = vlaneseq
  %v1932 = vshrl.u32 %v1931, 7
  %v1933 = vsub.s32 2, %v1932
  %v1934 = vrot.slane %v1921, %v1933
  %v1935 = vlaneseq
  %v1936 = vshrl.u32 %v1935, 7
  %v1937 = vsub.s32 3, %v1936
  %v1938 = vrot.slane %v1921, %v1937
  %v1939 = vlaneseq
  %v1940 = vshrl.u32 %v1939, 7
  %v1941 = vsub.s32 4, %v1940
  %v1942 = vrot.slane %v1921, %v1941
  %v1943 = vlaneseq
  %v1944 = vshrl.u32 %v1943, 7
  %v1945 = vsub.s32 5, %v1944
  %v1946 = vrot.slane %v1921, %v1945
  %v1947 = vlaneseq
  %v1948 = vshrl.u32 %v1947, 7
  %v1949 = vsub.s32 6, %v1948
  %v1950 = vrot.slane %v1921, %v1949
  %v1951 = vlaneseq
  %v1952 = vshrl.u32 %v1951, 7
  %v1953 = vsub.s32 7, %v1952
  %v1954 = vrot.slane %v1921, %v1953
  %v1963 = vmul.f32 %v1655, %v1926
  %v1964 = vmul.f32 %v1657, %v1930
  %v1965 = vmul.f32 %v1741, %v1934
  %v1966 = vmul.f32 %v1743, %v1938
  %v1967 = vmul.f32 %v1827, %v1942
  %v1968 = vmul.f32 %v1829, %v1946
  %v1969 = vmul.f32 %v1913, %v1950
  %v1970 = vmul.f32 %v1915, %v1954
  %v1971 = vmul.f32 %v1659, %v1926
  %v1972 = vmul.f32 %v1661, %v1930
  %v1973 = vmul.f32 %v1745, %v1934
  %v1974 = vmul.f32 %v1747, %v1938
  %v1975 = vmul.f32 %v1831, %v1942
  %v1976 = vmul.f32 %v1833, %v1946
  %v1977 = vmul.f32 %v1917, %v1950
  %v1978 = vmul.f32 %v1919, %v1954
  %v1979 = vld [vmem:[%s3] sm:$0xff]
  %v1981 = vlaneseq
  %v1982 = vshrl.u32 %v1981, 7
  %v1983 = vsub.s32 0, %v1982
  %v1984 = vrot.slane %v1979, %v1983
  %v1985 = vlaneseq
  %v1986 = vshrl.u32 %v1985, 7
  %v1987 = vsub.s32 1, %v1986
  %v1988 = vrot.slane %v1979, %v1987
  %v1989 = vlaneseq
  %v1990 = vshrl.u32 %v1989, 7
  %v1991 = vsub.s32 2, %v1990
  %v1992 = vrot.slane %v1979, %v1991
  %v1993 = vlaneseq
  %v1994 = vshrl.u32 %v1993, 7
  %v1995 = vsub.s32 3, %v1994
  %v1996 = vrot.slane %v1979, %v1995
  %v1997 = vlaneseq
  %v1998 = vshrl.u32 %v1997, 7
  %v1999 = vsub.s32 4, %v1998
  %v2000 = vrot.slane %v1979, %v1999
  %v2001 = vlaneseq
  %v2002 = vshrl.u32 %v2001, 7
  %v2003 = vsub.s32 5, %v2002
  %v2004 = vrot.slane %v1979, %v2003
  %v2005 = vlaneseq
  %v2006 = vshrl.u32 %v2005, 7
  %v2007 = vsub.s32 6, %v2006
  %v2008 = vrot.slane %v1979, %v2007
  %v2009 = vlaneseq
  %v2010 = vshrl.u32 %v2009, 7
  %v2011 = vsub.s32 7, %v2010
  %v2012 = vrot.slane %v1979, %v2011
  %v2021 = vadd.f32 %v1963, %v1984
  %v2022 = vadd.f32 %v1964, %v1988
  %v2023 = vadd.f32 %v1965, %v1992
  %v2024 = vadd.f32 %v1966, %v1996
  %v2025 = vadd.f32 %v1967, %v2000
  %v2026 = vadd.f32 %v1968, %v2004
  %v2027 = vadd.f32 %v1969, %v2008
  %v2028 = vadd.f32 %v1970, %v2012
  %v2029 = vadd.f32 %v1971, %v1984
  %v2030 = vadd.f32 %v1972, %v1988
  %v2031 = vadd.f32 %v1973, %v1992
  %v2032 = vadd.f32 %v1974, %v1996
  %v2033 = vadd.f32 %v1975, %v2000
  %v2034 = vadd.f32 %v1976, %v2004
  %v2035 = vadd.f32 %v1977, %v2008
  %v2036 = vadd.f32 %v1978, %v2012
  %vm2037 = vcmp.ge.f32.partialorder %v2021, 0.0
  %vm2038 = vcmp.ge.f32.partialorder %v2022, 0.0
  %vm2039 = vcmp.ge.f32.partialorder %v2023, 0.0
  %vm2040 = vcmp.ge.f32.partialorder %v2024, 0.0
  %vm2041 = vcmp.ge.f32.partialorder %v2025, 0.0
  %vm2042 = vcmp.ge.f32.partialorder %v2026, 0.0
  %vm2043 = vcmp.ge.f32.partialorder %v2027, 0.0
  %vm2044 = vcmp.ge.f32.partialorder %v2028, 0.0
  %vm2045 = vcmp.ge.f32.partialorder %v2029, 0.0
  %vm2046 = vcmp.ge.f32.partialorder %v2030, 0.0
  %vm2047 = vcmp.ge.f32.partialorder %v2031, 0.0
  %vm2048 = vcmp.ge.f32.partialorder %v2032, 0.0
  %vm2049 = vcmp.ge.f32.partialorder %v2033, 0.0
  %vm2050 = vcmp.ge.f32.partialorder %v2034, 0.0
  %vm2051 = vcmp.ge.f32.partialorder %v2035, 0.0
  %vm2052 = vcmp.ge.f32.partialorder %v2036, 0.0
  %v2053 = vmul.f32 %v2021, 0.2
  %v2054 = vmul.f32 %v2022, 0.2
  %v2055 = vmul.f32 %v2023, 0.2
  %v2056 = vmul.f32 %v2024, 0.2
  %v2057 = vmul.f32 %v2025, 0.2
  %v2058 = vmul.f32 %v2026, 0.2
  %v2059 = vmul.f32 %v2027, 0.2
  %v2060 = vmul.f32 %v2028, 0.2
  %v2061 = vmul.f32 %v2029, 0.2
  %v2062 = vmul.f32 %v2030, 0.2
  %v2063 = vmul.f32 %v2031, 0.2
  %v2064 = vmul.f32 %v2032, 0.2
  %v2065 = vmul.f32 %v2033, 0.2
  %v2066 = vmul.f32 %v2034, 0.2
  %v2067 = vmul.f32 %v2035, 0.2
  %v2068 = vmul.f32 %v2036, 0.2
  %v2069 = vsel %vm2037, %v2021, %v2053
  %v2070 = vsel %vm2038, %v2022, %v2054
  %v2071 = vsel %vm2039, %v2023, %v2055
  %v2072 = vsel %vm2040, %v2024, %v2056
  %v2073 = vsel %vm2041, %v2025, %v2057
  %v2074 = vsel %vm2042, %v2026, %v2058
  %v2075 = vsel %vm2043, %v2027, %v2059
  %v2076 = vsel %vm2044, %v2028, %v2060
  %v2077 = vsel %vm2045, %v2029, %v2061
  %v2078 = vsel %vm2046, %v2030, %v2062
  %v2079 = vsel %vm2047, %v2031, %v2063
  %v2080 = vsel %vm2048, %v2032, %v2064
  %v2081 = vsel %vm2049, %v2033, %v2065
  %v2082 = vsel %vm2050, %v2034, %v2066
  %v2083 = vsel %vm2051, %v2035, %v2067
  %v2084 = vsel %vm2052, %v2036, %v2068
  %2085 = vst [vmem:[%s4] sm:$0xff] %v2069
  %2086 = vst [vmem:[%s4 + $0x8] sm:$0xff] %v2070
  %2087 = vst [vmem:[%s4 + $0x10] sm:$0xff] %v2071
  %2088 = vst [vmem:[%s4 + $0x18] sm:$0xff] %v2072
  %2089 = vst [vmem:[%s4 + $0x20] sm:$0xff] %v2073
  %2090 = vst [vmem:[%s4 + $0x28] sm:$0xff] %v2074
  %2091 = vst [vmem:[%s4 + $0x30] sm:$0xff] %v2075
  %2092 = vst [vmem:[%s4 + $0x38] sm:$0xff] %v2076
  %2093 = vst [vmem:[%s4 + $0x40] sm:$0xff] %v2077
  %2094 = vst [vmem:[%s4 + $0x48] sm:$0xff] %v2078
  %2095 = vst [vmem:[%s4 + $0x50] sm:$0xff] %v2079
  %2096 = vst [vmem:[%s4 + $0x58] sm:$0xff] %v2080
  %2097 = vst [vmem:[%s4 + $0x60] sm:$0xff] %v2081
  %2098 = vst [vmem:[%s4 + $0x68] sm:$0xff] %v2082
  %2099 = vst [vmem:[%s4 + $0x70] sm:$0xff] %v2083
  %2100 = vst [vmem:[%s4 + $0x78] sm:$0xff] %v2084
  // Predicated region
  $region18: #{vae_forward.12} parent=0 // pred_check
    _
  $region19: #{vae_forward.12} parent=0 // pred_check_branch
    %2102 = sbr.rel (0) target = $region21
  $region20: #{vae_forward.12} parent=0 // pred_region
    _
  $region21: #{vae_forward.12} parent=0 // pred_fallthru
    _
  // Predicated region
  $region22: #{vae_forward.12} parent=0 // pred_check
    _
  $region23: #{vae_forward.12} parent=0 // pred_check_branch
    %2104 = sbr.rel (0) target = $region25
  $region24: #{vae_forward.12} parent=0 // pred_region
    _
  $region25: #{vae_forward.12} parent=0 // pred_fallthru
    _

// kernel: vae_forward.13
$region0: #{vae_forward.13}
  #allocation0 [shape = 'u32[]', space=smem, size = 0x4, offset = 0x4, fixed_abs, tag = 'smem constant byte address 0x4 - core index']
  #allocation1 [shape = 'u32[144,128]{1,0:T(1,128)}', space=vmem, size = 0x12000, scoped, tag = 'internal scratch']
  %s0 = inlined_call_operand.vmem [shape: bf16[32,576], index: 0, kind: input, shape index: {}]
  %s1 = inlined_call_operand.vmem [shape: bf16[576,128], index: 1, kind: input, shape index: {}]
  %s2 = inlined_call_operand.vmem [shape: f32[1,128], index: 2, kind: input, shape index: {}]
  %s3 = inlined_call_operand.vmem [shape: f32[1,128], index: 3, kind: input, shape index: {}]
  %s4 = inlined_call_operand.vmem [shape: f32[32,128], index: 4, kind: output, shape index: {}]
  %s5 = sld [smem:[#allocation0]]
  $region49: #{vae_forward.13} parent=0
    _
  %s7 = ssub.s32 1, %s5
  %s8 = scalar_select 0, %s7, %s5
  loop: start=0, step=1, limit=4
  $region2: #{vae_forward.13} parent=0 // loop_pre_header
    _
  $region3: #{vae_forward.13} parent=0 // loop_header
    %s10 = sphi 0, %s14
    %p11 = scmp.ge.s32.totalorder %s10, 4
    %s20 = sphi 0, %s22
    %s23 = sphi 0, %s20
    %s24 = sphi 0, %s23
    %s40 = sphi 0, %s24
    %s44 = sphi 0, %s44
    %s46 = sphi 0, %s44
    %s47 = sphi 0, %s46
    %s61 = sphi 0, %s47
    %s65 = sphi 0, %s65
    %s67 = sphi 0, %s65
    %s68 = sphi 0, %s67
    %s82 = sphi 0, %s68
    %s86 = sphi 0, %s86
    %s88 = sphi 0, %s86
    %s89 = sphi 0, %s88
    %s103 = sphi 0, %s89
    %s109 = sphi 0, %s111
    %s112 = sphi 0, %s109
    %s113 = sphi 0, %s112
    %s129 = sphi 0, %s113
  $region4: #{vae_forward.13} parent=0 // loop_header_branch
    %13 = sbr.rel (%p11) target = $region8
  $region5: #{vae_forward.13} parent=0 // loop_body
    %s15 = ssub.s32 %s10, 1
    %s16 = ssub.s32 %s10, 2
    %s17 = sadd.s32 %s10, 1
    %s18 = ssub.s32 %s10, %s17
    %p19 = scmp.eq.s32.totalorder %s18, 0
    %s21 = sadd.s32 %s20, 1
    %s22 = scalar_select %p19, %s20, %s21
    %p25 = pneg %p19
    %p26 = scmp.eq.s32.totalorder %s10, 1
    %p27 = por %p25, %p26
    %p28 = scmp.ne.s32.totalorder %s20, %s23
    %p29 = scmp.eq.s32.totalorder %s10, 0
    %p30 = por %p28, %p29
    %p31 = scmp.ne.s32.totalorder %s20, %s23
    %p32 = scmp.eq.s32.totalorder %s15, 1
    %p33 = por %p31, %p32
    %p34 = scmp.ne.s32.totalorder %s23, %s24
    %p35 = scmp.eq.s32.totalorder %s15, 0
    %p36 = por %p34, %p35
    %p37 = scmp.ne.s32.totalorder %s23, %s24
    %p38 = scmp.eq.s32.totalorder %s16, 1
    %p39 = por %p37, %p38
    %p41 = scmp.ne.s32.totalorder %s24, %s40
    %p42 = scmp.eq.s32.totalorder %s16, 0
    %p43 = por %p41, %p42
    %s45 = sadd.s32 %s44, 1
    %p48 = scmp.eq.s32.totalorder %s10, 1
    %p49 = scmp.ne.s32.totalorder %s44, %s46
    %p50 = scmp.eq.s32.totalorder %s10, 0
    %p51 = por %p49, %p50
    %p52 = scmp.ne.s32.totalorder %s44, %s46
    %p53 = scmp.eq.s32.totalorder %s15, 1
    %p54 = por %p52, %p53
    %p55 = scmp.ne.s32.totalorder %s46, %s47
    %p56 = scmp.eq.s32.totalorder %s15, 0
    %p57 = por %p55, %p56
    %p58 = scmp.ne.s32.totalorder %s46, %s47
    %p59 = scmp.eq.s32.totalorder %s16, 1
    %p60 = por %p58, %p59
    %p62 = scmp.ne.s32.totalorder %s47, %s61
    %p63 = scmp.eq.s32.totalorder %s16, 0
    %p64 = por %p62, %p63
    %s66 = sadd.s32 %s65, 1
    %p69 = scmp.eq.s32.totalorder %s10, 1
    %p70 = scmp.ne.s32.totalorder %s65, %s67
    %p71 = scmp.eq.s32.totalorder %s10, 0
    %p72 = por %p70, %p71
    %p73 = scmp.ne.s32.totalorder %s65, %s67
    %p74 = scmp.eq.s32.totalorder %s15, 1
    %p75 = por %p73, %p74
    %p76 = scmp.ne.s32.totalorder %s67, %s68
    %p77 = scmp.eq.s32.totalorder %s15, 0
    %p78 = por %p76, %p77
    %p79 = scmp.ne.s32.totalorder %s67, %s68
    %p80 = scmp.eq.s32.totalorder %s16, 1
    %p81 = por %p79, %p80
    %p83 = scmp.ne.s32.totalorder %s68, %s82
    %p84 = scmp.eq.s32.totalorder %s16, 0
    %p85 = por %p83, %p84
    %s87 = sadd.s32 %s86, 1
    %p90 = scmp.eq.s32.totalorder %s10, 1
    %p91 = scmp.ne.s32.totalorder %s86, %s88
    %p92 = scmp.eq.s32.totalorder %s10, 0
    %p93 = por %p91, %p92
    %p94 = scmp.ne.s32.totalorder %s86, %s88
    %p95 = scmp.eq.s32.totalorder %s15, 1
    %p96 = por %p94, %p95
    %p97 = scmp.ne.s32.totalorder %s88, %s89
    %p98 = scmp.eq.s32.totalorder %s15, 0
    %p99 = por %p97, %p98
    %p100 = scmp.ne.s32.totalorder %s88, %s89
    %p101 = scmp.eq.s32.totalorder %s16, 1
    %p102 = por %p100, %p101
    %p104 = scmp.ne.s32.totalorder %s89, %s103
    %p105 = scmp.eq.s32.totalorder %s16, 0
    %p106 = por %p104, %p105
    %s107 = ssub.s32 %s10, %s17
    %p108 = scmp.eq.s32.totalorder %s107, 0
    %s110 = sadd.s32 %s109, 1
    %s111 = scalar_select %p108, %s109, %s110
    %p114 = pneg %p108
    %p115 = scmp.eq.s32.totalorder %s10, 1
    %p116 = por %p114, %p115
    %p117 = scmp.ne.s32.totalorder %s109, %s112
    %p118 = scmp.eq.s32.totalorder %s10, 0
    %p119 = por %p117, %p118
    %p120 = scmp.ne.s32.totalorder %s109, %s112
    %p121 = scmp.eq.s32.totalorder %s15, 1
    %p122 = por %p120, %p121
    %p123 = scmp.ne.s32.totalorder %s112, %s113
    %p124 = scmp.eq.s32.totalorder %s15, 0
    %p125 = por %p123, %p124
    %p126 = scmp.ne.s32.totalorder %s112, %s113
    %p127 = scmp.eq.s32.totalorder %s16, 1
    %p128 = por %p126, %p127
    %p130 = scmp.ne.s32.totalorder %s113, %s129
    %p131 = scmp.eq.s32.totalorder %s16, 0
    %p132 = por %p130, %p131
    %p133 = scmp.le.s32.totalorder 1, %s10
    %p134 = scmp.lt.s32.totalorder %s10, 3
    %p135 = pnand %p133, %p134
    %p136 = pneg %p135
    // Predicated region
    $region9: #{vae_forward.13} parent=5 // pred_check
      _
    $region10: #{vae_forward.13} parent=5 // pred_check_branch
      %138 = sbr.rel (%p135) target = $region12
    $region11: #{vae_forward.13} parent=5 // pred_region
      %s139 = ssub.s32 %s10, 1
      // Predicated region
      $region13: #{vae_forward.13} parent=11 // pred_check
        %p140 = pneg %p57
      $region14: #{vae_forward.13} parent=11 // pred_check_branch
        %142 = sbr.rel (%p140) target = $region16
      $region15: #{vae_forward.13} parent=11 // pred_region
        _
      $region16: #{vae_forward.13} parent=11 // pred_fallthru
        _
      // Predicated region
      $region17: #{vae_forward.13} parent=11 // pred_check
        %p143 = pneg %p78
      $region18: #{vae_forward.13} parent=11 // pred_check_branch
        %145 = sbr.rel (%p143) target = $region20
      $region19: #{vae_forward.13} parent=11 // pred_region
        _
      $region20: #{vae_forward.13} parent=11 // pred_fallthru
        _
      // Predicated region
      $region21: #{vae_forward.13} parent=11 // pred_check
        %p146 = pneg %p99
      $region22: #{vae_forward.13} parent=11 // pred_check_branch
        %148 = sbr.rel (%p146) target = $region24
      $region23: #{vae_forward.13} parent=11 // pred_region
        _
      $region24: #{vae_forward.13} parent=11 // pred_fallthru
        _
    $region12: #{vae_forward.13} parent=5 // pred_fallthru
      _
    %p149 = scmp.lt.s32.totalorder %s10, 2
    // Predicated region
    $region25: #{vae_forward.13} parent=5 // pred_check
      %p150 = pneg %p149
    $region26: #{vae_forward.13} parent=5 // pred_check_branch
      %152 = sbr.rel (%p150) target = $region28
    $region27: #{vae_forward.13} parent=5 // pred_region
      // Predicated region
      $region29: #{vae_forward.13} parent=27 // pred_check
        %p153 = pneg %p30
      $region30: #{vae_forward.13} parent=27 // pred_check_branch
        %155 = sbr.rel (%p153) target = $region32
      $region31: #{vae_forward.13} parent=27 // pred_region
        %s156 = smul.u32 2, %s10
        %p157 = scmp.lt.s32.totalorder %s156, 3
        %s158 = scalar_select %p157, %s156, 3
        %s159 = smul.addr %s158, 5
        %s160 = smul.addr %s159, 4
        %s161 = scalar_lea.vmem %s0, %s160
        %s162 = smul.u32 2, %s10
      $region32: #{vae_forward.13} parent=27 // pred_fallthru
        _
    $region28: #{vae_forward.13} parent=5 // pred_fallthru
      _
    %p163 = scmp.le.s32.totalorder 1, %s10
    %p164 = scmp.lt.s32.totalorder %s10, 3
    %p165 = pnand %p163, %p164
    %p166 = pneg %p165
    // Predicated region
    $region33: #{vae_forward.13} parent=5 // pred_check
      _
    $region34: #{vae_forward.13} parent=5 // pred_check_branch
      %168 = sbr.rel (%p165) target = $region36
    $region35: #{vae_forward.13} parent=5 // pred_region
      %s169 = ssub.s32 %s10, 1
      %s170 = smul.u32 2, %s15
      %p171 = scmp.lt.s32.totalorder %s170, 3
      %s172 = scalar_select %p171, %s170, 3
      %s173 = smul.addr %s172, 5
      %s174 = smul.addr %s173, 4
      %s175 = scalar_lea.vmem %s0, %s174
      %p176 = pneg %p36
      %p177 = pneg %p33
      %p178 = pneg %p57
      %p179 = pneg %p54
      %p180 = pneg %p78
      %p181 = pneg %p75
      %p182 = pneg %p99
      %p183 = pneg %p96
      %p184 = pneg %p125
      %p185 = pneg %p122
      %s186 = smul.u32 2, %s15
      %p187 = scmp.lt.s32.totalorder %s186, 3
      %s188 = scalar_select %p187, %s186, 3
      %s189 = smul.addr %s188, 8
      %s190 = scalar_lea.vmem %s4, %s189
      %s191 = smul.u32 2, %s15
      %p192 = scmp.lt.s32.totalorder %s191, 3
      %s193 = scalar_select %p192, %s191, 3
      %s194 = smul.addr %s193, 5
      %s195 = smul.addr %s194, 4
      %s196 = scalar_lea.vmem %s0, %s195
      %s197 = smul.u32 2, %s15
      %s198 = smul.u32 2, %s15
      %p199 = scmp.lt.s32.totalorder %s198, 3
      %s200 = scalar_select %p199, %s198, 3
      %s201 = smul.addr %s200, 8
      %s202 = scalar_lea.vmem %s4, %s201
      %s203 = smul.u32 2, %s15
      %v205 = vld [vmem:[%s196] sm:$0xff]
      %v206 = vld [vmem:[%s196 + $0x8] sm:$0xff]
      %v207 = vld [vmem:[%s196 + $0x10] sm:$0xf]
      %v208 = vld [vmem:[%s196 + $0x14] sm:$0xff]
      %v209 = vld [vmem:[%s196 + $0x1c] sm:$0xff]
      %v210 = vld [vmem:[%s196 + $0x24] sm:$0xf]
      %v211 = vld [vmem:[%s1] sm:$0xf]
      %v212 = vld [vmem:[%s1 + $0x4] sm:$0xf]
      %v213 = vld [vmem:[%s1 + $0x8] sm:$0xf]
      %v214 = vld [vmem:[%s1 + $0xc] sm:$0xf]
      %v215 = vld [vmem:[%s1 + $0x10] sm:$0xf]
      %v216 = vld [vmem:[%s1 + $0x14] sm:$0xf]
      %v217 = vld [vmem:[%s1 + $0x18] sm:$0xf]
      %v218 = vld [vmem:[%s1 + $0x1c] sm:$0xf]
      %v219 = vld [vmem:[%s1 + $0x20] sm:$0xf]
      %v220 = vld [vmem:[%s1 + $0x24] sm:$0xf]
      %v221 = vld [vmem:[%s1 + $0x28] sm:$0xf]
      %v222 = vld [vmem:[%s1 + $0x2c] sm:$0xf]
      %v223 = vld [vmem:[%s1 + $0x30] sm:$0xf]
      %v224 = vld [vmem:[%s1 + $0x34] sm:$0xf]
      %v225 = vld [vmem:[%s1 + $0x38] sm:$0xf]
      %v226 = vld [vmem:[%s1 + $0x3c] sm:$0xf]
      %v227 = vld [vmem:[%s1 + $0x40] sm:$0xf]
      %v228 = vld [vmem:[%s1 + $0x44] sm:$0xf]
      %v229 = vld [vmem:[%s1 + $0x48] sm:$0xf]
      %v230 = vld [vmem:[%s1 + $0x4c] sm:$0xf]
      %v231 = vld [vmem:[%s1 + $0x50] sm:$0xf]
      %v232 = vld [vmem:[%s1 + $0x54] sm:$0xf]
      %v233 = vld [vmem:[%s1 + $0x58] sm:$0xf]
      %v234 = vld [vmem:[%s1 + $0x5c] sm:$0xf]
      %v235 = vld [vmem:[%s1 + $0x60] sm:$0xf]
      %v236 = vld [vmem:[%s1 + $0x64] sm:$0xf]
      %v237 = vld [vmem:[%s1 + $0x68] sm:$0xf]
      %v238 = vld [vmem:[%s1 + $0x6c] sm:$0xf]
      %v239 = vld [vmem:[%s1 + $0x70] sm:$0xf]
      %v240 = vld [vmem:[%s1 + $0x74] sm:$0xf]
      %v241 = vld [vmem:[%s1 + $0x78] sm:$0xf]
      %v242 = vld [vmem:[%s1 + $0x7c] sm:$0xf]
      %v243 = vld [vmem:[%s1 + $0x80] sm:$0xf]
      %v244 = vld [vmem:[%s1 + $0x84] sm:$0xf]
      %v245 = vld [vmem:[%s1 + $0x88] sm:$0xf]
      %v246 = vld [vmem:[%s1 + $0x8c] sm:$0xf]
      %v247 = vld [vmem:[%s1 + $0x90] sm:$0xf]
      %v248 = vld [vmem:[%s1 + $0x94] sm:$0xf]
      %v249 = vld [vmem:[%s1 + $0x98] sm:$0xf]
      %v250 = vld [vmem:[%s1 + $0x9c] sm:$0xf]
      %v251 = vld [vmem:[%s1 + $0xa0] sm:$0xf]
      %v252 = vld [vmem:[%s1 + $0xa4] sm:$0xf]
      %v253 = vld [vmem:[%s1 + $0xa8] sm:$0xf]
      %v254 = vld [vmem:[%s1 + $0xac] sm:$0xf]
      %v255 = vld [vmem:[%s1 + $0xb0] sm:$0xf]
      %v256 = vld [vmem:[%s1 + $0xb4] sm:$0xf]
      %v257 = vld [vmem:[%s1 + $0xb8] sm:$0xf]
      %v258 = vld [vmem:[%s1 + $0xbc] sm:$0xf]
      %v259 = vld [vmem:[%s1 + $0xc0] sm:$0xf]
      %v260 = vld [vmem:[%s1 + $0xc4] sm:$0xf]
      %v261 = vld [vmem:[%s1 + $0xc8] sm:$0xf]
      %v262 = vld [vmem:[%s1 + $0xcc] sm:$0xf]
      %v263 = vld [vmem:[%s1 + $0xd0] sm:$0xf]
      %v264 = vld [vmem:[%s1 + $0xd4] sm:$0xf]
      %v265 = vld [vmem:[%s1 + $0xd8] sm:$0xf]
      %v266 = vld [vmem:[%s1 + $0xdc] sm:$0xf]
      %v267 = vld [vmem:[%s1 + $0xe0] sm:$0xf]
      %v268 = vld [vmem:[%s1 + $0xe4] sm:$0xf]
      %v269 = vld [vmem:[%s1 + $0xe8] sm:$0xf]
      %v270 = vld [vmem:[%s1 + $0xec] sm:$0xf]
      %v271 = vld [vmem:[%s1 + $0xf0] sm:$0xf]
      %v272 = vld [vmem:[%s1 + $0xf4] sm:$0xf]
      %v273 = vld [vmem:[%s1 + $0xf8] sm:$0xf]
      %v274 = vld [vmem:[%s1 + $0xfc] sm:$0xf]
      %v275 = vld [vmem:[%s1 + $0x100] sm:$0xf]
      %v276 = vld [vmem:[%s1 + $0x104] sm:$0xf]
      %v277 = vld [vmem:[%s1 + $0x108] sm:$0xf]
      %v278 = vld [vmem:[%s1 + $0x10c] sm:$0xf]
      %v279 = vld [vmem:[%s1 + $0x110] sm:$0xf]
      %v280 = vld [vmem:[%s1 + $0x114] sm:$0xf]
      %v281 = vld [vmem:[%s1 + $0x118] sm:$0xf]
      %v282 = vld [vmem:[%s1 + $0x11c] sm:$0xf]
      %v289 = vunpack.c.l.b16 %v205
      %v290 = vunpack.c.h.b16 %v205
      %v291 = vunpack.c.l.b16 %v206
      %v292 = vunpack.c.h.b16 %v206
      %v293 = vunpack.c.l.b16 %v207
      %v294 = vunpack.c.l.b16 %v208
      %v295 = vunpack.c.h.b16 %v208
      %v296 = vunpack.c.l.b16 %v209
      %v297 = vunpack.c.h.b16 %v209
      %v298 = vunpack.c.l.b16 %v210
      %v299 = vpack.c.b16 %v294, %v289
      %v300 = vpack.c.b16 %v295, %v290
      %v301 = vpack.c.b16 %v296, %v291
      %v302 = vpack.c.b16 %v297, %v292
      %v303 = vpack.c.b16 %v298, %v293
      %v380 = vunpack.c.l.b16 %v211
      %v381 = vunpack.c.l.b16 %v212
      %v382 = vunpack.c.l.b16 %v213
      %v383 = vunpack.c.l.b16 %v214
      %v384 = vunpack.c.l.b16 %v215
      %v385 = vunpack.c.l.b16 %v216
      %v386 = vunpack.c.l.b16 %v217
      %v387 = vunpack.c.l.b16 %v218
      %v388 = vunpack.c.l.b16 %v219
      %v389 = vunpack.c.l.b16 %v220
      %v390 = vunpack.c.l.b16 %v221
      %v391 = vunpack.c.l.b16 %v222
      %v392 = vunpack.c.l.b16 %v223
      %v393 = vunpack.c.l.b16 %v224
      %v394 = vunpack.c.l.b16 %v225
      %v395 = vunpack.c.l.b16 %v226
      %v396 = vunpack.c.l.b16 %v227
      %v397 = vunpack.c.l.b16 %v228
      %v398 = vunpack.c.l.b16 %v229
      %v399 = vunpack.c.l.b16 %v230
      %v400 = vunpack.c.l.b16 %v231
      %v401 = vunpack.c.l.b16 %v232
      %v402 = vunpack.c.l.b16 %v233
      %v403 = vunpack.c.l.b16 %v234
      %v404 = vunpack.c.l.b16 %v235
      %v405 = vunpack.c.l.b16 %v236
      %v406 = vunpack.c.l.b16 %v237
      %v407 = vunpack.c.l.b16 %v238
      %v408 = vunpack.c.l.b16 %v239
      %v409 = vunpack.c.l.b16 %v240
      %v410 = vunpack.c.l.b16 %v241
      %v411 = vunpack.c.l.b16 %v242
      %v412 = vunpack.c.l.b16 %v243
      %v413 = vunpack.c.l.b16 %v244
      %v414 = vunpack.c.l.b16 %v245
      %v415 = vunpack.c.l.b16 %v246
      %v416 = vunpack.c.l.b16 %v247
      %v417 = vunpack.c.l.b16 %v248
      %v418 = vunpack.c.l.b16 %v249
      %v419 = vunpack.c.l.b16 %v250
      %v420 = vunpack.c.l.b16 %v251
      %v421 = vunpack.c.l.b16 %v252
      %v422 = vunpack.c.l.b16 %v253
      %v423 = vunpack.c.l.b16 %v254
      %v424 = vunpack.c.l.b16 %v255
      %v425 = vunpack.c.l.b16 %v256
      %v426 = vunpack.c.l.b16 %v257
      %v427 = vunpack.c.l.b16 %v258
      %v428 = vunpack.c.l.b16 %v259
      %v429 = vunpack.c.l.b16 %v260
      %v430 = vunpack.c.l.b16 %v261
      %v431 = vunpack.c.l.b16 %v262
      %v432 = vunpack.c.l.b16 %v263
      %v433 = vunpack.c.l.b16 %v264
      %v434 = vunpack.c.l.b16 %v265
      %v435 = vunpack.c.l.b16 %v266
      %v436 = vunpack.c.l.b16 %v267
      %v437 = vunpack.c.l.b16 %v268
      %v438 = vunpack.c.l.b16 %v269
      %v439 = vunpack.c.l.b16 %v270
      %v440 = vunpack.c.l.b16 %v271
      %v441 = vunpack.c.l.b16 %v272
      %v442 = vunpack.c.l.b16 %v273
      %v443 = vunpack.c.l.b16 %v274
      %v444 = vunpack.c.l.b16 %v275
      %v445 = vunpack.c.l.b16 %v276
      %v446 = vunpack.c.l.b16 %v277
      %v447 = vunpack.c.l.b16 %v278
      %v448 = vunpack.c.l.b16 %v279
      %v449 = vunpack.c.l.b16 %v280
      %v450 = vunpack.c.l.b16 %v281
      %v451 = vunpack.c.l.b16 %v282
      %v452 = vpack.c.b16 %v381, %v380
      %v453 = vpack.c.b16 %v383, %v382
      %v454 = vpack.c.b16 %v385, %v384
      %v455 = vpack.c.b16 %v387, %v386
      %v456 = vpack.c.b16 %v389, %v388
      %v457 = vpack.c.b16 %v391, %v390
      %v458 = vpack.c.b16 %v393, %v392
      %v459 = vpack.c.b16 %v395, %v394
      %v460 = vpack.c.b16 %v397, %v396
      %v461 = vpack.c.b16 %v399, %v398
      %v462 = vpack.c.b16 %v401, %v400
      %v463 = vpack.c.b16 %v403, %v402
      %v464 = vpack.c.b16 %v405, %v404
      %v465 = vpack.c.b16 %v407, %v406
      %v466 = vpack.c.b16 %v409, %v408
      %v467 = vpack.c.b16 %v411, %v410
      %v468 = vpack.c.b16 %v413, %v412
      %v469 = vpack.c.b16 %v415, %v414
      %v470 = vpack.c.b16 %v417, %v416
      %v471 = vpack.c.b16 %v419, %v418
      %v472 = vpack.c.b16 %v421, %v420
      %v473 = vpack.c.b16 %v423, %v422
      %v474 = vpack.c.b16 %v425, %v424
      %v475 = vpack.c.b16 %v427, %v426
      %v476 = vpack.c.b16 %v429, %v428
      %v477 = vpack.c.b16 %v431, %v430
      %v478 = vpack.c.b16 %v433, %v432
      %v479 = vpack.c.b16 %v435, %v434
      %v480 = vpack.c.b16 %v437, %v436
      %v481 = vpack.c.b16 %v439, %v438
      %v482 = vpack.c.b16 %v441, %v440
      %v483 = vpack.c.b16 %v443, %v442
      %v484 = vpack.c.b16 %v445, %v444
      %v485 = vpack.c.b16 %v447, %v446
      %v486 = vpack.c.b16 %v449, %v448
      %v487 = vpack.c.b16 %v451, %v450
      %vm524 = vcmask 523264
      %v526 = vsel %vm524, %v303, 0
      %528 = vmatprep.subr.bf16.mxu0 0
      %529 = vmatpush1.bf16.msra.mxu0 %v459
      %530 = vmatprep.subr.bf16.mxu0 0
      %531 = vmatpush1.bf16.msra.mxu0 %v458
      %532 = vmatprep.subr.bf16.mxu0 0
      %533 = vmatpush1.bf16.msra.mxu0 %v457
      %534 = vmatprep.subr.bf16.mxu0 0
      %535 = vmatpush1.bf16.msra.mxu0 %v456
      %536 = vmatprep.subr.bf16.mxu0 0
      %537 = vmatpush1.bf16.msra.mxu0 %v455
      %538 = vmatprep.subr.bf16.mxu0 0
      %539 = vmatpush1.bf16.msra.mxu0 %v454
      %540 = vmatprep.subr.bf16.mxu0 0
      %541 = vmatpush1.bf16.msra.mxu0 %v453
      %542 = vmatprep.subr.bf16.mxu0 0
      %543 = vmatpush1.bf16.msra.mxu0 %v452
      %544 = vmatprep.subr.bf16.mxu0 0
      %545 = vmatpush2.bf16.msra.mxu0 %v467
      %546 = vmatprep.subr.bf16.mxu0 0
      %547 = vmatpush2.bf16.msra.mxu0 %v466
      %548 = vmatprep.subr.bf16.mxu0 0
      %549 = vmatpush2.bf16.msra.mxu0 %v465
      %550 = vmatprep.subr.bf16.mxu0 0
      %551 = vmatpush2.bf16.msra.mxu0 %v464
      %552 = vmatprep.subr.bf16.mxu0 0
      %553 = vmatpush2.bf16.msra.mxu0 %v463
      %554 = vmatprep.subr.bf16.mxu0 0
      %555 = vmatpush2.bf16.msra.mxu0 %v462
      %556 = vmatprep.subr.bf16.mxu0 0
      %557 = vmatpush2.bf16.msra.mxu0 %v461
      %558 = vmatprep.subr.bf16.mxu0 0
      %559 = vmatpush2.bf16.msra.mxu0 %v460
      %560 = vmatprep.mubr.bf16.mxu0 %v300
      %561 = vmatmul.mubr.bf16.gmra.mxu0 %v299
      %v562 = vpop.f32.mrf.mxu0
      %v563 = vadd.f32 0.0, %v562
      %v564 = vpop.f32.mrf.mxu0
      %v565 = vpop.f32.mrf.mxu0
      %v566 = vadd.f32 0.0, %v565
      %v567 = vpop.f32.mrf.mxu0
      %568 = vdwg.mxu0
      %569 = vmatprep.subr.bf16.mxu0 0
      %570 = vmatpush1.bf16.msra.mxu0 %v475
      %571 = vmatprep.subr.bf16.mxu0 0
      %572 = vmatpush1.bf16.msra.mxu0 %v474
      %573 = vmatprep.subr.bf16.mxu0 0
      %574 = vmatpush1.bf16.msra.mxu0 %v473
      %575 = vmatprep.subr.bf16.mxu0 0
      %576 = vmatpush1.bf16.msra.mxu0 %v472
      %577 = vmatprep.subr.bf16.mxu0 0
      %578 = vmatpush1.bf16.msra.mxu0 %v471
      %579 = vmatprep.subr.bf16.mxu0 0
      %580 = vmatpush1.bf16.msra.mxu0 %v470
      %581 = vmatprep.subr.bf16.mxu0 0
      %582 = vmatpush1.bf16.msra.mxu0 %v469
      %583 = vmatprep.subr.bf16.mxu0 0
      %584 = vmatpush1.bf16.msra.mxu0 %v468
      %585 = vmatprep.subr.bf16.mxu0 0
      %586 = vmatpush2.bf16.msra.mxu0 %v483
      %587 = vmatprep.subr.bf16.mxu0 0
      %588 = vmatpush2.bf16.msra.mxu0 %v482
      %589 = vmatprep.subr.bf16.mxu0 0
      %590 = vmatpush2.bf16.msra.mxu0 %v481
      %591 = vmatprep.subr.bf16.mxu0 0
      %592 = vmatpush2.bf16.msra.mxu0 %v480
      %593 = vmatprep.subr.bf16.mxu0 0
      %594 = vmatpush2.bf16.msra.mxu0 %v479
      %595 = vmatprep.subr.bf16.mxu0 0
      %596 = vmatpush2.bf16.msra.mxu0 %v478
      %597 = vmatprep.subr.bf16.mxu0 0
      %598 = vmatpush2.bf16.msra.mxu0 %v477
      %599 = vmatprep.subr.bf16.mxu0 0
      %600 = vmatpush2.bf16.msra.mxu0 %v476
      %601 = vmatprep.mubr.bf16.mxu0 %v302
      %602 = vmatmul.mubr.bf16.gmra.mxu0 %v301
      %v603 = vpop.f32.mrf.mxu0
      %v604 = vadd.f32 %v563, %v603
      %v605 = vpop.f32.mrf.mxu0
      %v606 = vpop.f32.mrf.mxu0
      %v607 = vadd.f32 %v566, %v606
      %v608 = vpop.f32.mrf.mxu0
      %609 = vdwg.mxu0
      %610 = vmatprep.subr.bf16.mxu0 0
      %611 = vmatpush1.bf16.msra.mxu0 0
      %612 = vmatprep.subr.bf16.mxu0 0
      %613 = vmatpush1.bf16.msra.mxu0 0
      %614 = vmatprep.subr.bf16.mxu0 0
      %615 = vmatpush1.bf16.msra.mxu0 0
      %616 = vmatprep.subr.bf16.mxu0 0
      %617 = vmatpush1.bf16.msra.mxu0 0
      %618 = vmatprep.subr.bf16.mxu0 0
      %619 = vmatpush1.bf16.msra.mxu0 %v487
      %620 = vmatprep.subr.bf16.mxu0 0
      %621 = vmatpush1.bf16.msra.mxu0 %v486
      %622 = vmatprep.subr.bf16.mxu0 0
      %623 = vmatpush1.bf16.msra.mxu0 %v485
      %624 = vmatprep.subr.bf16.mxu0 0
      %625 = vmatpush1.bf16.msra.mxu0 %v484
      %626 = vmatprep.subr.bf16.mxu0 0
      %627 = vmatpush2.bf16.msra.mxu0 0
      %628 = vmatprep.subr.bf16.mxu0 0
      %629 = vmatpush2.bf16.msra.mxu0 0
      %630 = vmatprep.subr.bf16.mxu0 0
      %631 = vmatpush2.bf16.msra.mxu0 0
      %632 = vmatprep.subr.bf16.mxu0 0
      %633 = vmatpush2.bf16.msra.mxu0 0
      %634 = vmatprep.subr.bf16.mxu0 0
      %635 = vmatpush2.bf16.msra.mxu0 0
      %636 = vmatprep.subr.bf16.mxu0 0
      %637 = vmatpush2.bf16.msra.mxu0 0
      %638 = vmatprep.subr.bf16.mxu0 0
      %639 = vmatpush2.bf16.msra.mxu0 0
      %640 = vmatprep.subr.bf16.mxu0 0
      %641 = vmatpush2.bf16.msra.mxu0 0
      %642 = vmatprep.mubr.bf16.mxu0 0
      %643 = vmatmul.mubr.bf16.gmra.mxu0 %v526
      %v644 = vpop.f32.mrf.mxu0
      %v645 = vadd.f32 %v604, %v644
      %v646 = vpop.f32.mrf.mxu0
      %v647 = vpop.f32.mrf.mxu0
      %v648 = vadd.f32 %v607, %v647
      %v649 = vpop.f32.mrf.mxu0
      %650 = vdwg.mxu0
      %v651 = vld [vmem:[%s2] sm:$0x1]
      %v653 = vlaneseq
      %v654 = vshrl.u32 %v653, 7
      %v655 = vsub.s32 0, %v654
      %v656 = vrot.slane %v651, %v655
      %v658 = vmul.f32 %v645, %v656
      %v659 = vmul.f32 %v648, %v656
      %v660 = vld [vmem:[%s3] sm:$0x1]
      %v662 = vlaneseq
      %v663 = vshrl.u32 %v662, 7
      %v664 = vsub.s32 0, %v663
      %v665 = vrot.slane %v660, %v664
      %v667 = vadd.f32 %v658, %v665
      %v668 = vadd.f32 %v659, %v665
      %vm669 = vcmp.ge.f32.partialorder %v667, 0.0
      %vm670 = vcmp.ge.f32.partialorder %v668, 0.0
      %v671 = vmul.f32 %v667, 0.2
      %v672 = vmul.f32 %v668, 0.2
      %v673 = vsel %vm669, %v667, %v671
      %v674 = vsel %vm670, %v668, %v672
      %675 = vst [vmem:[%s202] sm:$0xff] %v673
      %676 = vst [vmem:[%s202 + $0x8] sm:$0xff] %v674
      %s677 = smul.u32 2, %s15
      %p678 = scmp.lt.s32.totalorder %s677, 3
      %s679 = scalar_select %p678, %s677, 3
      %s680 = smul.addr %s679, 8
      %s681 = scalar_lea.vmem %s4, %s680
      // Predicated region
      $region37: #{vae_forward.13} parent=35 // pred_check
        %p682 = pneg %p122
      $region38: #{vae_forward.13} parent=35 // pred_check_branch
        %684 = sbr.rel (%p682) target = $region40
      $region39: #{vae_forward.13} parent=35 // pred_region
        %s685 = smul.u32 2, %s15
      $region40: #{vae_forward.13} parent=35 // pred_fallthru
        _
    $region36: #{vae_forward.13} parent=5 // pred_fallthru
      _
    %p686 = scmp.le.s32.totalorder 2, %s10
    // Predicated region
    $region41: #{vae_forward.13} parent=5 // pred_check
      %p687 = pneg %p686
    $region42: #{vae_forward.13} parent=5 // pred_check_branch
      %689 = sbr.rel (%p687) target = $region44
    $region43: #{vae_forward.13} parent=5 // pred_region
      %s690 = ssub.s32 %s10, 2
      // Predicated region
      $region45: #{vae_forward.13} parent=43 // pred_check
        %p691 = pneg %p128
      $region46: #{vae_forward.13} parent=43 // pred_check_branch
        %693 = sbr.rel (%p691) target = $region48
      $region47: #{vae_forward.13} parent=43 // pred_region
        %s694 = smul.u32 2, %s16
        %p695 = scmp.lt.s32.totalorder %s694, 3
        %s696 = scalar_select %p695, %s694, 3
        %s697 = smul.addr %s696, 8
        %s698 = scalar_lea.vmem %s4, %s697
      $region48: #{vae_forward.13} parent=43 // pred_fallthru
        _
    $region44: #{vae_forward.13} parent=5 // pred_fallthru
      _
  $region6: #{vae_forward.13} parent=0 // loop_footer
    %s14 = sadd.s32 1, %s10
  $region7: #{vae_forward.13} parent=0 // loop_footer_branch
    %9 = sbr.rel target = $region3
  $region8: #{vae_forward.13} parent=0 // loop_exit
    _

// kernel: vae_forward.11
$region0: #{vae_forward.11}
  #allocation0 [shape = 'u32[]', space=smem, size = 0x4, offset = 0x4, fixed_abs, tag = 'smem constant byte address 0x4 - core index']
  #allocation1 [shape = 'u32[144,128]{1,0:T(1,128)}', space=vmem, size = 0x12000, scoped, tag = 'internal scratch']
  %s0 = inlined_call_operand.vmem [shape: bf16[16,1024], index: 0, kind: input, shape index: {}]
  %s1 = inlined_call_operand.vmem [shape: bf16[1024,1024], index: 1, kind: input, shape index: {}]
  %s2 = inlined_call_operand.vmem [shape: f32[1,1024], index: 2, kind: input, shape index: {}]
  %s3 = inlined_call_operand.vmem [shape: f32[1,1024], index: 3, kind: input, shape index: {}]
  %s4 = inlined_call_operand.vmem [shape: f32[16,1024], index: 4, kind: output, shape index: {}]
  %s5 = sld [smem:[#allocation0]]
  $region26: #{vae_forward.11} parent=0
    _
  %s7 = ssub.s32 1, %s5
  %s8 = scalar_select 0, %s7, %s5
  // Predicated region
  $region2: #{vae_forward.11} parent=0 // pred_check
    _
  $region3: #{vae_forward.11} parent=0 // pred_check_branch
    %10 = sbr.rel (0) target = $region5
  $region4: #{vae_forward.11} parent=0 // pred_region
    _
  $region5: #{vae_forward.11} parent=0 // pred_fallthru
    _
  // Predicated region
  $region6: #{vae_forward.11} parent=0 // pred_check
    _
  $region7: #{vae_forward.11} parent=0 // pred_check_branch
    %12 = sbr.rel (0) target = $region9
  $region8: #{vae_forward.11} parent=0 // pred_region
    _
  $region9: #{vae_forward.11} parent=0 // pred_fallthru
    _
  // Predicated region
  $region10: #{vae_forward.11} parent=0 // pred_check
    _
  $region11: #{vae_forward.11} parent=0 // pred_check_branch
    %14 = sbr.rel (0) target = $region13
  $region12: #{vae_forward.11} parent=0 // pred_region
    _
  $region13: #{vae_forward.11} parent=0 // pred_fallthru
    _
  // Predicated region
  $region14: #{vae_forward.11} parent=0 // pred_check
    _
  $region15: #{vae_forward.11} parent=0 // pred_check_branch
    %16 = sbr.rel (0) target = $region17
  $region16: #{vae_forward.11} parent=0 // pred_region
    _
  $region17: #{vae_forward.11} parent=0 // pred_fallthru
    _
  %v17 = vld [vmem:[%s0] sm:$0xff]
  %v18 = vld [vmem:[%s0 + $0x8] sm:$0xff]
  %v19 = vld [vmem:[%s0 + $0x10] sm:$0xff]
  %v20 = vld [vmem:[%s0 + $0x18] sm:$0xff]
  %v21 = vld [vmem:[%s0 + $0x20] sm:$0xff]
  %v22 = vld [vmem:[%s0 + $0x28] sm:$0xff]
  %v23 = vld [vmem:[%s0 + $0x30] sm:$0xff]
  %v24 = vld [vmem:[%s0 + $0x38] sm:$0xff]
  %v25 = vld [vmem:[%s1] sm:$0xff]
  %v26 = vld [vmem:[%s1 + $0x8] sm:$0xff]
  %v27 = vld [vmem:[%s1 + $0x10] sm:$0xff]
  %v28 = vld [vmem:[%s1 + $0x18] sm:$0xff]
  %v29 = vld [vmem:[%s1 + $0x20] sm:$0xff]
  %v30 = vld [vmem:[%s1 + $0x28] sm:$0xff]
  %v31 = vld [vmem:[%s1 + $0x30] sm:$0xff]
  %v32 = vld [vmem:[%s1 + $0x38] sm:$0xff]
  %v33 = vld [vmem:[%s1 + $0x40] sm:$0xff]
  %v34 = vld [vmem:[%s1 + $0x48] sm:$0xff]
  %v35 = vld [vmem:[%s1 + $0x50] sm:$0xff]
  %v36 = vld [vmem:[%s1 + $0x58] sm:$0xff]
  %v37 = vld [vmem:[%s1 + $0x60] sm:$0xff]
  %v38 = vld [vmem:[%s1 + $0x68] sm:$0xff]
  %v39 = vld [vmem:[%s1 + $0x70] sm:$0xff]
  %v40 = vld [vmem:[%s1 + $0x78] sm:$0xff]
  %v41 = vld [vmem:[%s1 + $0x80] sm:$0xff]
  %v42 = vld [vmem:[%s1 + $0x88] sm:$0xff]
  %v43 = vld [vmem:[%s1 + $0x90] sm:$0xff]
  %v44 = vld [vmem:[%s1 + $0x98] sm:$0xff]
  %v45 = vld [vmem:[%s1 + $0xa0] sm:$0xff]
  %v46 = vld [vmem:[%s1 + $0xa8] sm:$0xff]
  %v47 = vld [vmem:[%s1 + $0xb0] sm:$0xff]
  %v48 = vld [vmem:[%s1 + $0xb8] sm:$0xff]
  %v49 = vld [vmem:[%s1 + $0xc0] sm:$0xff]
  %v50 = vld [vmem:[%s1 + $0xc8] sm:$0xff]
  %v51 = vld [vmem:[%s1 + $0xd0] sm:$0xff]
  %v52 = vld [vmem:[%s1 + $0xd8] sm:$0xff]
  %v53 = vld [vmem:[%s1 + $0xe0] sm:$0xff]
  %v54 = vld [vmem:[%s1 + $0xe8] sm:$0xff]
  %v55 = vld [vmem:[%s1 + $0xf0] sm:$0xff]
  %v56 = vld [vmem:[%s1 + $0xf8] sm:$0xff]
  %v57 = vld [vmem:[%s1 + $0x100] sm:$0xff]
  %v58 = vld [vmem:[%s1 + $0x108] sm:$0xff]
  %v59 = vld [vmem:[%s1 + $0x110] sm:$0xff]
  %v60 = vld [vmem:[%s1 + $0x118] sm:$0xff]
  %v61 = vld [vmem:[%s1 + $0x120] sm:$0xff]
  %v62 = vld [vmem:[%s1 + $0x128] sm:$0xff]
  %v63 = vld [vmem:[%s1 + $0x130] sm:$0xff]
  %v64 = vld [vmem:[%s1 + $0x138] sm:$0xff]
  %v65 = vld [vmem:[%s1 + $0x140] sm:$0xff]
  %v66 = vld [vmem:[%s1 + $0x148] sm:$0xff]
  %v67 = vld [vmem:[%s1 + $0x150] sm:$0xff]
  %v68 = vld [vmem:[%s1 + $0x158] sm:$0xff]
  %v69 = vld [vmem:[%s1 + $0x160] sm:$0xff]
  %v70 = vld [vmem:[%s1 + $0x168] sm:$0xff]
  %v71 = vld [vmem:[%s1 + $0x170] sm:$0xff]
  %v72 = vld [vmem:[%s1 + $0x178] sm:$0xff]
  %v73 = vld [vmem:[%s1 + $0x180] sm:$0xff]
  %v74 = vld [vmem:[%s1 + $0x188] sm:$0xff]
  %v75 = vld [vmem:[%s1 + $0x190] sm:$0xff]
  %v76 = vld [vmem:[%s1 + $0x198] sm:$0xff]
  %v77 = vld [vmem:[%s1 + $0x1a0] sm:$0xff]
  %v78 = vld [vmem:[%s1 + $0x1a8] sm:$0xff]
  %v79 = vld [vmem:[%s1 + $0x1b0] sm:$0xff]
  %v80 = vld [vmem:[%s1 + $0x1b8] sm:$0xff]
  %v81 = vld [vmem:[%s1 + $0x1c0] sm:$0xff]
  %v82 = vld [vmem:[%s1 + $0x1c8] sm:$0xff]
  %v83 = vld [vmem:[%s1 + $0x1d0] sm:$0xff]
  %v84 = vld [vmem:[%s1 + $0x1d8] sm:$0xff]
  %v85 = vld [vmem:[%s1 + $0x1e0] sm:$0xff]
  %v86 = vld [vmem:[%s1 + $0x1e8] sm:$0xff]
  %v87 = vld [vmem:[%s1 + $0x1f0] sm:$0xff]
  %v88 = vld [vmem:[%s1 + $0x1f8] sm:$0xff]
  %v89 = vld [vmem:[%s1 + $0x200] sm:$0xff]
  %v90 = vld [vmem:[%s1 + $0x208] sm:$0xff]
  %v91 = vld [vmem:[%s1 + $0x210] sm:$0xff]
  %v92 = vld [vmem:[%s1 + $0x218] sm:$0xff]
  %v93 = vld [vmem:[%s1 + $0x220] sm:$0xff]
  %v94 = vld [vmem:[%s1 + $0x228] sm:$0xff]
  %v95 = vld [vmem:[%s1 + $0x230] sm:$0xff]
  %v96 = vld [vmem:[%s1 + $0x238] sm:$0xff]
  %v97 = vld [vmem:[%s1 + $0x240] sm:$0xff]
  %v98 = vld [vmem:[%s1 + $0x248] sm:$0xff]
  %v99 = vld [vmem:[%s1 + $0x250] sm:$0xff]
  %v100 = vld [vmem:[%s1 + $0x258] sm:$0xff]
  %v101 = vld [vmem:[%s1 + $0x260] sm:$0xff]
  %v102 = vld [vmem:[%s1 + $0x268] sm:$0xff]
  %v103 = vld [vmem:[%s1 + $0x270] sm:$0xff]
  %v104 = vld [vmem:[%s1 + $0x278] sm:$0xff]
  %v105 = vld [vmem:[%s1 + $0x280] sm:$0xff]
  %v106 = vld [vmem:[%s1 + $0x288] sm:$0xff]
  %v107 = vld [vmem:[%s1 + $0x290] sm:$0xff]
  %v108 = vld [vmem:[%s1 + $0x298] sm:$0xff]
  %v109 = vld [vmem:[%s1 + $0x2a0] sm:$0xff]
  %v110 = vld [vmem:[%s1 + $0x2a8] sm:$0xff]
  %v111 = vld [vmem:[%s1 + $0x2b0] sm:$0xff]
  %v112 = vld [vmem:[%s1 + $0x2b8] sm:$0xff]
  %v113 = vld [vmem:[%s1 + $0x2c0] sm:$0xff]
  %v114 = vld [vmem:[%s1 + $0x2c8] sm:$0xff]
  %v115 = vld [vmem:[%s1 + $0x2d0] sm:$0xff]
  %v116 = vld [vmem:[%s1 + $0x2d8] sm:$0xff]
  %v117 = vld [vmem:[%s1 + $0x2e0] sm:$0xff]
  %v118 = vld [vmem:[%s1 + $0x2e8] sm:$0xff]
  %v119 = vld [vmem:[%s1 + $0x2f0] sm:$0xff]
  %v120 = vld [vmem:[%s1 + $0x2f8] sm:$0xff]
  %v121 = vld [vmem:[%s1 + $0x300] sm:$0xff]
  %v122 = vld [vmem:[%s1 + $0x308] sm:$0xff]
  %v123 = vld [vmem:[%s1 + $0x310] sm:$0xff]
  %v124 = vld [vmem:[%s1 + $0x318] sm:$0xff]
  %v125 = vld [vmem:[%s1 + $0x320] sm:$0xff]
  %v126 = vld [vmem:[%s1 + $0x328] sm:$0xff]
  %v127 = vld [vmem:[%s1 + $0x330] sm:$0xff]
  %v128 = vld [vmem:[%s1 + $0x338] sm:$0xff]
  %v129 = vld [vmem:[%s1 + $0x340] sm:$0xff]
  %v130 = vld [vmem:[%s1 + $0x348] sm:$0xff]
  %v131 = vld [vmem:[%s1 + $0x350] sm:$0xff]
  %v132 = vld [vmem:[%s1 + $0x358] sm:$0xff]
  %v133 = vld [vmem:[%s1 + $0x360] sm:$0xff]
  %v134 = vld [vmem:[%s1 + $0x368] sm:$0xff]
  %v135 = vld [vmem:[%s1 + $0x370] sm:$0xff]
  %v136 = vld [vmem:[%s1 + $0x378] sm:$0xff]
  %v137 = vld [vmem:[%s1 + $0x380] sm:$0xff]
  %v138 = vld [vmem:[%s1 + $0x388] sm:$0xff]
  %v139 = vld [vmem:[%s1 + $0x390] sm:$0xff]
  %v140 = vld [vmem:[%s1 + $0x398] sm:$0xff]
  %v141 = vld [vmem:[%s1 + $0x3a0] sm:$0xff]
  %v142 = vld [vmem:[%s1 + $0x3a8] sm:$0xff]
  %v143 = vld [vmem:[%s1 + $0x3b0] sm:$0xff]
  %v144 = vld [vmem:[%s1 + $0x3b8] sm:$0xff]
  %v145 = vld [vmem:[%s1 + $0x3c0] sm:$0xff]
  %v146 = vld [vmem:[%s1 + $0x3c8] sm:$0xff]
  %v147 = vld [vmem:[%s1 + $0x3d0] sm:$0xff]
  %v148 = vld [vmem:[%s1 + $0x3d8] sm:$0xff]
  %v149 = vld [vmem:[%s1 + $0x3e0] sm:$0xff]
  %v150 = vld [vmem:[%s1 + $0x3e8] sm:$0xff]
  %v151 = vld [vmem:[%s1 + $0x3f0] sm:$0xff]
  %v152 = vld [vmem:[%s1 + $0x3f8] sm:$0xff]
  %v153 = vld [vmem:[%s1 + $0x400] sm:$0xff]
  %v154 = vld [vmem:[%s1 + $0x408] sm:$0xff]
  %v155 = vld [vmem:[%s1 + $0x410] sm:$0xff]
  %v156 = vld [vmem:[%s1 + $0x418] sm:$0xff]
  %v157 = vld [vmem:[%s1 + $0x420] sm:$0xff]
  %v158 = vld [vmem:[%s1 + $0x428] sm:$0xff]
  %v159 = vld [vmem:[%s1 + $0x430] sm:$0xff]
  %v160 = vld [vmem:[%s1 + $0x438] sm:$0xff]
  %v161 = vld [vmem:[%s1 + $0x440] sm:$0xff]
  %v162 = vld [vmem:[%s1 + $0x448] sm:$0xff]
  %v163 = vld [vmem:[%s1 + $0x450] sm:$0xff]
  %v164 = vld [vmem:[%s1 + $0x458] sm:$0xff]
  %v165 = vld [vmem:[%s1 + $0x460] sm:$0xff]
  %v166 = vld [vmem:[%s1 + $0x468] sm:$0xff]
  %v167 = vld [vmem:[%s1 + $0x470] sm:$0xff]
  %v168 = vld [vmem:[%s1 + $0x478] sm:$0xff]
  %v169 = vld [vmem:[%s1 + $0x480] sm:$0xff]
  %v170 = vld [vmem:[%s1 + $0x488] sm:$0xff]
  %v171 = vld [vmem:[%s1 + $0x490] sm:$0xff]
  %v172 = vld [vmem:[%s1 + $0x498] sm:$0xff]
  %v173 = vld [vmem:[%s1 + $0x4a0] sm:$0xff]
  %v174 = vld [vmem:[%s1 + $0x4a8] sm:$0xff]
  %v175 = vld [vmem:[%s1 + $0x4b0] sm:$0xff]
  %v176 = vld [vmem:[%s1 + $0x4b8] sm:$0xff]
  %v177 = vld [vmem:[%s1 + $0x4c0] sm:$0xff]
  %v178 = vld [vmem:[%s1 + $0x4c8] sm:$0xff]
  %v179 = vld [vmem:[%s1 + $0x4d0] sm:$0xff]
  %v180 = vld [vmem:[%s1 + $0x4d8] sm:$0xff]
  %v181 = vld [vmem:[%s1 + $0x4e0] sm:$0xff]
  %v182 = vld [vmem:[%s1 + $0x4e8] sm:$0xff]
  %v183 = vld [vmem:[%s1 + $0x4f0] sm:$0xff]
  %v184 = vld [vmem:[%s1 + $0x4f8] sm:$0xff]
  %v185 = vld [vmem:[%s1 + $0x500] sm:$0xff]
  %v186 = vld [vmem:[%s1 + $0x508] sm:$0xff]
  %v187 = vld [vmem:[%s1 + $0x510] sm:$0xff]
  %v188 = vld [vmem:[%s1 + $0x518] sm:$0xff]
  %v189 = vld [vmem:[%s1 + $0x520] sm:$0xff]
  %v190 = vld [vmem:[%s1 + $0x528] sm:$0xff]
  %v191 = vld [vmem:[%s1 + $0x530] sm:$0xff]
  %v192 = vld [vmem:[%s1 + $0x538] sm:$0xff]
  %v193 = vld [vmem:[%s1 + $0x540] sm:$0xff]
  %v194 = vld [vmem:[%s1 + $0x548] sm:$0xff]
  %v195 = vld [vmem:[%s1 + $0x550] sm:$0xff]
  %v196 = vld [vmem:[%s1 + $0x558] sm:$0xff]
  %v197 = vld [vmem:[%s1 + $0x560] sm:$0xff]
  %v198 = vld [vmem:[%s1 + $0x568] sm:$0xff]
  %v199 = vld [vmem:[%s1 + $0x570] sm:$0xff]
  %v200 = vld [vmem:[%s1 + $0x578] sm:$0xff]
  %v201 = vld [vmem:[%s1 + $0x580] sm:$0xff]
  %v202 = vld [vmem:[%s1 + $0x588] sm:$0xff]
  %v203 = vld [vmem:[%s1 + $0x590] sm:$0xff]
  %v204 = vld [vmem:[%s1 + $0x598] sm:$0xff]
  %v205 = vld [vmem:[%s1 + $0x5a0] sm:$0xff]
  %v206 = vld [vmem:[%s1 + $0x5a8] sm:$0xff]
  %v207 = vld [vmem:[%s1 + $0x5b0] sm:$0xff]
  %v208 = vld [vmem:[%s1 + $0x5b8] sm:$0xff]
  %v209 = vld [vmem:[%s1 + $0x5c0] sm:$0xff]
  %v210 = vld [vmem:[%s1 + $0x5c8] sm:$0xff]
  %v211 = vld [vmem:[%s1 + $0x5d0] sm:$0xff]
  %v212 = vld [vmem:[%s1 + $0x5d8] sm:$0xff]
  %v213 = vld [vmem:[%s1 + $0x5e0] sm:$0xff]
  %v214 = vld [vmem:[%s1 + $0x5e8] sm:$0xff]
  %v215 = vld [vmem:[%s1 + $0x5f0] sm:$0xff]
  %v216 = vld [vmem:[%s1 + $0x5f8] sm:$0xff]
  %v217 = vld [vmem:[%s1 + $0x600] sm:$0xff]
  %v218 = vld [vmem:[%s1 + $0x608] sm:$0xff]
  %v219 = vld [vmem:[%s1 + $0x610] sm:$0xff]
  %v220 = vld [vmem:[%s1 + $0x618] sm:$0xff]
  %v221 = vld [vmem:[%s1 + $0x620] sm:$0xff]
  %v222 = vld [vmem:[%s1 + $0x628] sm:$0xff]
  %v223 = vld [vmem:[%s1 + $0x630] sm:$0xff]
  %v224 = vld [vmem:[%s1 + $0x638] sm:$0xff]
  %v225 = vld [vmem:[%s1 + $0x640] sm:$0xff]
  %v226 = vld [vmem:[%s1 + $0x648] sm:$0xff]
  %v227 = vld [vmem:[%s1 + $0x650] sm:$0xff]
  %v228 = vld [vmem:[%s1 + $0x658] sm:$0xff]
  %v229 = vld [vmem:[%s1 + $0x660] sm:$0xff]
  %v230 = vld [vmem:[%s1 + $0x668] sm:$0xff]
  %v231 = vld [vmem:[%s1 + $0x670] sm:$0xff]
  %v232 = vld [vmem:[%s1 + $0x678] sm:$0xff]
  %v233 = vld [vmem:[%s1 + $0x680] sm:$0xff]
  %v234 = vld [vmem:[%s1 + $0x688] sm:$0xff]
  %v235 = vld [vmem:[%s1 + $0x690] sm:$0xff]
  %v236 = vld [vmem:[%s1 + $0x698] sm:$0xff]
  %v237 = vld [vmem:[%s1 + $0x6a0] sm:$0xff]
  %v238 = vld [vmem:[%s1 + $0x6a8] sm:$0xff]
  %v239 = vld [vmem:[%s1 + $0x6b0] sm:$0xff]
  %v240 = vld [vmem:[%s1 + $0x6b8] sm:$0xff]
  %v241 = vld [vmem:[%s1 + $0x6c0] sm:$0xff]
  %v242 = vld [vmem:[%s1 + $0x6c8] sm:$0xff]
  %v243 = vld [vmem:[%s1 + $0x6d0] sm:$0xff]
  %v244 = vld [vmem:[%s1 + $0x6d8] sm:$0xff]
  %v245 = vld [vmem:[%s1 + $0x6e0] sm:$0xff]
  %v246 = vld [vmem:[%s1 + $0x6e8] sm:$0xff]
  %v247 = vld [vmem:[%s1 + $0x6f0] sm:$0xff]
  %v248 = vld [vmem:[%s1 + $0x6f8] sm:$0xff]
  %v249 = vld [vmem:[%s1 + $0x700] sm:$0xff]
  %v250 = vld [vmem:[%s1 + $0x708] sm:$0xff]
  %v251 = vld [vmem:[%s1 + $0x710] sm:$0xff]
  %v252 = vld [vmem:[%s1 + $0x718] sm:$0xff]
  %v253 = vld [vmem:[%s1 + $0x720] sm:$0xff]
  %v254 = vld [vmem:[%s1 + $0x728] sm:$0xff]
  %v255 = vld [vmem:[%s1 + $0x730] sm:$0xff]
  %v256 = vld [vmem:[%s1 + $0x738] sm:$0xff]
  %v257 = vld [vmem:[%s1 + $0x740] sm:$0xff]
  %v258 = vld [vmem:[%s1 + $0x748] sm:$0xff]
  %v259 = vld [vmem:[%s1 + $0x750] sm:$0xff]
  %v260 = vld [vmem:[%s1 + $0x758] sm:$0xff]
  %v261 = vld [vmem:[%s1 + $0x760] sm:$0xff]
  %v262 = vld [vmem:[%s1 + $0x768] sm:$0xff]
  %v263 = vld [vmem:[%s1 + $0x770] sm:$0xff]
  %v264 = vld [vmem:[%s1 + $0x778] sm:$0xff]
  %v265 = vld [vmem:[%s1 + $0x780] sm:$0xff]
  %v266 = vld [vmem:[%s1 + $0x788] sm:$0xff]
  %v267 = vld [vmem:[%s1 + $0x790] sm:$0xff]
  %v268 = vld [vmem:[%s1 + $0x798] sm:$0xff]
  %v269 = vld [vmem:[%s1 + $0x7a0] sm:$0xff]
  %v270 = vld [vmem:[%s1 + $0x7a8] sm:$0xff]
  %v271 = vld [vmem:[%s1 + $0x7b0] sm:$0xff]
  %v272 = vld [vmem:[%s1 + $0x7b8] sm:$0xff]
  %v273 = vld [vmem:[%s1 + $0x7c0] sm:$0xff]
  %v274 = vld [vmem:[%s1 + $0x7c8] sm:$0xff]
  %v275 = vld [vmem:[%s1 + $0x7d0] sm:$0xff]
  %v276 = vld [vmem:[%s1 + $0x7d8] sm:$0xff]
  %v277 = vld [vmem:[%s1 + $0x7e0] sm:$0xff]
  %v278 = vld [vmem:[%s1 + $0x7e8] sm:$0xff]
  %v279 = vld [vmem:[%s1 + $0x7f0] sm:$0xff]
  %v280 = vld [vmem:[%s1 + $0x7f8] sm:$0xff]
  %v281 = vld [vmem:[%s1 + $0x800] sm:$0xff]
  %v282 = vld [vmem:[%s1 + $0x808] sm:$0xff]
  %v283 = vld [vmem:[%s1 + $0x810] sm:$0xff]
  %v284 = vld [vmem:[%s1 + $0x818] sm:$0xff]
  %v285 = vld [vmem:[%s1 + $0x820] sm:$0xff]
  %v286 = vld [vmem:[%s1 + $0x828] sm:$0xff]
  %v287 = vld [vmem:[%s1 + $0x830] sm:$0xff]
  %v288 = vld [vmem:[%s1 + $0x838] sm:$0xff]
  %v289 = vld [vmem:[%s1 + $0x840] sm:$0xff]
  %v290 = vld [vmem:[%s1 + $0x848] sm:$0xff]
  %v291 = vld [vmem:[%s1 + $0x850] sm:$0xff]
  %v292 = vld [vmem:[%s1 + $0x858] sm:$0xff]
  %v293 = vld [vmem:[%s1 + $0x860] sm:$0xff]
  %v294 = vld [vmem:[%s1 + $0x868] sm:$0xff]
  %v295 = vld [vmem:[%s1 + $0x870] sm:$0xff]
  %v296 = vld [vmem:[%s1 + $0x878] sm:$0xff]
  %v297 = vld [vmem:[%s1 + $0x880] sm:$0xff]
  %v298 = vld [vmem:[%s1 + $0x888] sm:$0xff]
  %v299 = vld [vmem:[%s1 + $0x890] sm:$0xff]
  %v300 = vld [vmem:[%s1 + $0x898] sm:$0xff]
  %v301 = vld [vmem:[%s1 + $0x8a0] sm:$0xff]
  %v302 = vld [vmem:[%s1 + $0x8a8] sm:$0xff]
  %v303 = vld [vmem:[%s1 + $0x8b0] sm:$0xff]
  %v304 = vld [vmem:[%s1 + $0x8b8] sm:$0xff]
  %v305 = vld [vmem:[%s1 + $0x8c0] sm:$0xff]
  %v306 = vld [vmem:[%s1 + $0x8c8] sm:$0xff]
  %v307 = vld [vmem:[%s1 + $0x8d0] sm:$0xff]
  %v308 = vld [vmem:[%s1 + $0x8d8] sm:$0xff]
  %v309 = vld [vmem:[%s1 + $0x8e0] sm:$0xff]
  %v310 = vld [vmem:[%s1 + $0x8e8] sm:$0xff]
  %v311 = vld [vmem:[%s1 + $0x8f0] sm:$0xff]
  %v312 = vld [vmem:[%s1 + $0x8f8] sm:$0xff]
  %v313 = vld [vmem:[%s1 + $0x900] sm:$0xff]
  %v314 = vld [vmem:[%s1 + $0x908] sm:$0xff]
  %v315 = vld [vmem:[%s1 + $0x910] sm:$0xff]
  %v316 = vld [vmem:[%s1 + $0x918] sm:$0xff]
  %v317 = vld [vmem:[%s1 + $0x920] sm:$0xff]
  %v318 = vld [vmem:[%s1 + $0x928] sm:$0xff]
  %v319 = vld [vmem:[%s1 + $0x930] sm:$0xff]
  %v320 = vld [vmem:[%s1 + $0x938] sm:$0xff]
  %v321 = vld [vmem:[%s1 + $0x940] sm:$0xff]
  %v322 = vld [vmem:[%s1 + $0x948] sm:$0xff]
  %v323 = vld [vmem:[%s1 + $0x950] sm:$0xff]
  %v324 = vld [vmem:[%s1 + $0x958] sm:$0xff]
  %v325 = vld [vmem:[%s1 + $0x960] sm:$0xff]
  %v326 = vld [vmem:[%s1 + $0x968] sm:$0xff]
  %v327 = vld [vmem:[%s1 + $0x970] sm:$0xff]
  %v328 = vld [vmem:[%s1 + $0x978] sm:$0xff]
  %v329 = vld [vmem:[%s1 + $0x980] sm:$0xff]
  %v330 = vld [vmem:[%s1 + $0x988] sm:$0xff]
  %v331 = vld [vmem:[%s1 + $0x990] sm:$0xff]
  %v332 = vld [vmem:[%s1 + $0x998] sm:$0xff]
  %v333 = vld [vmem:[%s1 + $0x9a0] sm:$0xff]
  %v334 = vld [vmem:[%s1 + $0x9a8] sm:$0xff]
  %v335 = vld [vmem:[%s1 + $0x9b0] sm:$0xff]
  %v336 = vld [vmem:[%s1 + $0x9b8] sm:$0xff]
  %v337 = vld [vmem:[%s1 + $0x9c0] sm:$0xff]
  %v338 = vld [vmem:[%s1 + $0x9c8] sm:$0xff]
  %v339 = vld [vmem:[%s1 + $0x9d0] sm:$0xff]
  %v340 = vld [vmem:[%s1 + $0x9d8] sm:$0xff]
  %v341 = vld [vmem:[%s1 + $0x9e0] sm:$0xff]
  %v342 = vld [vmem:[%s1 + $0x9e8] sm:$0xff]
  %v343 = vld [vmem:[%s1 + $0x9f0] sm:$0xff]
  %v344 = vld [vmem:[%s1 + $0x9f8] sm:$0xff]
  %v345 = vld [vmem:[%s1 + $0xa00] sm:$0xff]
  %v346 = vld [vmem:[%s1 + $0xa08] sm:$0xff]
  %v347 = vld [vmem:[%s1 + $0xa10] sm:$0xff]
  %v348 = vld [vmem:[%s1 + $0xa18] sm:$0xff]
  %v349 = vld [vmem:[%s1 + $0xa20] sm:$0xff]
  %v350 = vld [vmem:[%s1 + $0xa28] sm:$0xff]
  %v351 = vld [vmem:[%s1 + $0xa30] sm:$0xff]
  %v352 = vld [vmem:[%s1 + $0xa38] sm:$0xff]
  %v353 = vld [vmem:[%s1 + $0xa40] sm:$0xff]
  %v354 = vld [vmem:[%s1 + $0xa48] sm:$0xff]
  %v355 = vld [vmem:[%s1 + $0xa50] sm:$0xff]
  %v356 = vld [vmem:[%s1 + $0xa58] sm:$0xff]
  %v357 = vld [vmem:[%s1 + $0xa60] sm:$0xff]
  %v358 = vld [vmem:[%s1 + $0xa68] sm:$0xff]
  %v359 = vld [vmem:[%s1 + $0xa70] sm:$0xff]
  %v360 = vld [vmem:[%s1 + $0xa78] sm:$0xff]
  %v361 = vld [vmem:[%s1 + $0xa80] sm:$0xff]
  %v362 = vld [vmem:[%s1 + $0xa88] sm:$0xff]
  %v363 = vld [vmem:[%s1 + $0xa90] sm:$0xff]
  %v364 = vld [vmem:[%s1 + $0xa98] sm:$0xff]
  %v365 = vld [vmem:[%s1 + $0xaa0] sm:$0xff]
  %v366 = vld [vmem:[%s1 + $0xaa8] sm:$0xff]
  %v367 = vld [vmem:[%s1 + $0xab0] sm:$0xff]
  %v368 = vld [vmem:[%s1 + $0xab8] sm:$0xff]
  %v369 = vld [vmem:[%s1 + $0xac0] sm:$0xff]
  %v370 = vld [vmem:[%s1 + $0xac8] sm:$0xff]
  %v371 = vld [vmem:[%s1 + $0xad0] sm:$0xff]
  %v372 = vld [vmem:[%s1 + $0xad8] sm:$0xff]
  %v373 = vld [vmem:[%s1 + $0xae0] sm:$0xff]
  %v374 = vld [vmem:[%s1 + $0xae8] sm:$0xff]
  %v375 = vld [vmem:[%s1 + $0xaf0] sm:$0xff]
  %v376 = vld [vmem:[%s1 + $0xaf8] sm:$0xff]
  %v377 = vld [vmem:[%s1 + $0xb00] sm:$0xff]
  %v378 = vld [vmem:[%s1 + $0xb08] sm:$0xff]
  %v379 = vld [vmem:[%s1 + $0xb10] sm:$0xff]
  %v380 = vld [vmem:[%s1 + $0xb18] sm:$0xff]
  %v381 = vld [vmem:[%s1 + $0xb20] sm:$0xff]
  %v382 = vld [vmem:[%s1 + $0xb28] sm:$0xff]
  %v383 = vld [vmem:[%s1 + $0xb30] sm:$0xff]
  %v384 = vld [vmem:[%s1 + $0xb38] sm:$0xff]
  %v385 = vld [vmem:[%s1 + $0xb40] sm:$0xff]
  %v386 = vld [vmem:[%s1 + $0xb48] sm:$0xff]
  %v387 = vld [vmem:[%s1 + $0xb50] sm:$0xff]
  %v388 = vld [vmem:[%s1 + $0xb58] sm:$0xff]
  %v389 = vld [vmem:[%s1 + $0xb60] sm:$0xff]
  %v390 = vld [vmem:[%s1 + $0xb68] sm:$0xff]
  %v391 = vld [vmem:[%s1 + $0xb70] sm:$0xff]
  %v392 = vld [vmem:[%s1 + $0xb78] sm:$0xff]
  %v393 = vld [vmem:[%s1 + $0xb80] sm:$0xff]
  %v394 = vld [vmem:[%s1 + $0xb88] sm:$0xff]
  %v395 = vld [vmem:[%s1 + $0xb90] sm:$0xff]
  %v396 = vld [vmem:[%s1 + $0xb98] sm:$0xff]
  %v397 = vld [vmem:[%s1 + $0xba0] sm:$0xff]
  %v398 = vld [vmem:[%s1 + $0xba8] sm:$0xff]
  %v399 = vld [vmem:[%s1 + $0xbb0] sm:$0xff]
  %v400 = vld [vmem:[%s1 + $0xbb8] sm:$0xff]
  %v401 = vld [vmem:[%s1 + $0xbc0] sm:$0xff]
  %v402 = vld [vmem:[%s1 + $0xbc8] sm:$0xff]
  %v403 = vld [vmem:[%s1 + $0xbd0] sm:$0xff]
  %v404 = vld [vmem:[%s1 + $0xbd8] sm:$0xff]
  %v405 = vld [vmem:[%s1 + $0xbe0] sm:$0xff]
  %v406 = vld [vmem:[%s1 + $0xbe8] sm:$0xff]
  %v407 = vld [vmem:[%s1 + $0xbf0] sm:$0xff]
  %v408 = vld [vmem:[%s1 + $0xbf8] sm:$0xff]
  %v409 = vld [vmem:[%s1 + $0xc00] sm:$0xff]
  %v410 = vld [vmem:[%s1 + $0xc08] sm:$0xff]
  %v411 = vld [vmem:[%s1 + $0xc10] sm:$0xff]
  %v412 = vld [vmem:[%s1 + $0xc18] sm:$0xff]
  %v413 = vld [vmem:[%s1 + $0xc20] sm:$0xff]
  %v414 = vld [vmem:[%s1 + $0xc28] sm:$0xff]
  %v415 = vld [vmem:[%s1 + $0xc30] sm:$0xff]
  %v416 = vld [vmem:[%s1 + $0xc38] sm:$0xff]
  %v417 = vld [vmem:[%s1 + $0xc40] sm:$0xff]
  %v418 = vld [vmem:[%s1 + $0xc48] sm:$0xff]
  %v419 = vld [vmem:[%s1 + $0xc50] sm:$0xff]
  %v420 = vld [vmem:[%s1 + $0xc58] sm:$0xff]
  %v421 = vld [vmem:[%s1 + $0xc60] sm:$0xff]
  %v422 = vld [vmem:[%s1 + $0xc68] sm:$0xff]
  %v423 = vld [vmem:[%s1 + $0xc70] sm:$0xff]
  %v424 = vld [vmem:[%s1 + $0xc78] sm:$0xff]
  %v425 = vld [vmem:[%s1 + $0xc80] sm:$0xff]
  %v426 = vld [vmem:[%s1 + $0xc88] sm:$0xff]
  %v427 = vld [vmem:[%s1 + $0xc90] sm:$0xff]
  %v428 = vld [vmem:[%s1 + $0xc98] sm:$0xff]
  %v429 = vld [vmem:[%s1 + $0xca0] sm:$0xff]
  %v430 = vld [vmem:[%s1 + $0xca8] sm:$0xff]
  %v431 = vld [vmem:[%s1 + $0xcb0] sm:$0xff]
  %v432 = vld [vmem:[%s1 + $0xcb8] sm:$0xff]
  %v433 = vld [vmem:[%s1 + $0xcc0] sm:$0xff]
  %v434 = vld [vmem:[%s1 + $0xcc8] sm:$0xff]
  %v435 = vld [vmem:[%s1 + $0xcd0] sm:$0xff]
  %v436 = vld [vmem:[%s1 + $0xcd8] sm:$0xff]
  %v437 = vld [vmem:[%s1 + $0xce0] sm:$0xff]
  %v438 = vld [vmem:[%s1 + $0xce8] sm:$0xff]
  %v439 = vld [vmem:[%s1 + $0xcf0] sm:$0xff]
  %v440 = vld [vmem:[%s1 + $0xcf8] sm:$0xff]
  %v441 = vld [vmem:[%s1 + $0xd00] sm:$0xff]
  %v442 = vld [vmem:[%s1 + $0xd08] sm:$0xff]
  %v443 = vld [vmem:[%s1 + $0xd10] sm:$0xff]
  %v444 = vld [vmem:[%s1 + $0xd18] sm:$0xff]
  %v445 = vld [vmem:[%s1 + $0xd20] sm:$0xff]
  %v446 = vld [vmem:[%s1 + $0xd28] sm:$0xff]
  %v447 = vld [vmem:[%s1 + $0xd30] sm:$0xff]
  %v448 = vld [vmem:[%s1 + $0xd38] sm:$0xff]
  %v449 = vld [vmem:[%s1 + $0xd40] sm:$0xff]
  %v450 = vld [vmem:[%s1 + $0xd48] sm:$0xff]
  %v451 = vld [vmem:[%s1 + $0xd50] sm:$0xff]
  %v452 = vld [vmem:[%s1 + $0xd58] sm:$0xff]
  %v453 = vld [vmem:[%s1 + $0xd60] sm:$0xff]
  %v454 = vld [vmem:[%s1 + $0xd68] sm:$0xff]
  %v455 = vld [vmem:[%s1 + $0xd70] sm:$0xff]
  %v456 = vld [vmem:[%s1 + $0xd78] sm:$0xff]
  %v457 = vld [vmem:[%s1 + $0xd80] sm:$0xff]
  %v458 = vld [vmem:[%s1 + $0xd88] sm:$0xff]
  %v459 = vld [vmem:[%s1 + $0xd90] sm:$0xff]
  %v460 = vld [vmem:[%s1 + $0xd98] sm:$0xff]
  %v461 = vld [vmem:[%s1 + $0xda0] sm:$0xff]
  %v462 = vld [vmem:[%s1 + $0xda8] sm:$0xff]
  %v463 = vld [vmem:[%s1 + $0xdb0] sm:$0xff]
  %v464 = vld [vmem:[%s1 + $0xdb8] sm:$0xff]
  %v465 = vld [vmem:[%s1 + $0xdc0] sm:$0xff]
  %v466 = vld [vmem:[%s1 + $0xdc8] sm:$0xff]
  %v467 = vld [vmem:[%s1 + $0xdd0] sm:$0xff]
  %v468 = vld [vmem:[%s1 + $0xdd8] sm:$0xff]
  %v469 = vld [vmem:[%s1 + $0xde0] sm:$0xff]
  %v470 = vld [vmem:[%s1 + $0xde8] sm:$0xff]
  %v471 = vld [vmem:[%s1 + $0xdf0] sm:$0xff]
  %v472 = vld [vmem:[%s1 + $0xdf8] sm:$0xff]
  %v473 = vld [vmem:[%s1 + $0xe00] sm:$0xff]
  %v474 = vld [vmem:[%s1 + $0xe08] sm:$0xff]
  %v475 = vld [vmem:[%s1 + $0xe10] sm:$0xff]
  %v476 = vld [vmem:[%s1 + $0xe18] sm:$0xff]
  %v477 = vld [vmem:[%s1 + $0xe20] sm:$0xff]
  %v478 = vld [vmem:[%s1 + $0xe28] sm:$0xff]
  %v479 = vld [vmem:[%s1 + $0xe30] sm:$0xff]
  %v480 = vld [vmem:[%s1 + $0xe38] sm:$0xff]
  %v481 = vld [vmem:[%s1 + $0xe40] sm:$0xff]
  %v482 = vld [vmem:[%s1 + $0xe48] sm:$0xff]
  %v483 = vld [vmem:[%s1 + $0xe50] sm:$0xff]
  %v484 = vld [vmem:[%s1 + $0xe58] sm:$0xff]
  %v485 = vld [vmem:[%s1 + $0xe60] sm:$0xff]
  %v486 = vld [vmem:[%s1 + $0xe68] sm:$0xff]
  %v487 = vld [vmem:[%s1 + $0xe70] sm:$0xff]
  %v488 = vld [vmem:[%s1 + $0xe78] sm:$0xff]
  %v489 = vld [vmem:[%s1 + $0xe80] sm:$0xff]
  %v490 = vld [vmem:[%s1 + $0xe88] sm:$0xff]
  %v491 = vld [vmem:[%s1 + $0xe90] sm:$0xff]
  %v492 = vld [vmem:[%s1 + $0xe98] sm:$0xff]
  %v493 = vld [vmem:[%s1 + $0xea0] sm:$0xff]
  %v494 = vld [vmem:[%s1 + $0xea8] sm:$0xff]
  %v495 = vld [vmem:[%s1 + $0xeb0] sm:$0xff]
  %v496 = vld [vmem:[%s1 + $0xeb8] sm:$0xff]
  %v497 = vld [vmem:[%s1 + $0xec0] sm:$0xff]
  %v498 = vld [vmem:[%s1 + $0xec8] sm:$0xff]
  %v499 = vld [vmem:[%s1 + $0xed0] sm:$0xff]
  %v500 = vld [vmem:[%s1 + $0xed8] sm:$0xff]
  %v501 = vld [vmem:[%s1 + $0xee0] sm:$0xff]
  %v502 = vld [vmem:[%s1 + $0xee8] sm:$0xff]
  %v503 = vld [vmem:[%s1 + $0xef0] sm:$0xff]
  %v504 = vld [vmem:[%s1 + $0xef8] sm:$0xff]
  %v505 = vld [vmem:[%s1 + $0xf00] sm:$0xff]
  %v506 = vld [vmem:[%s1 + $0xf08] sm:$0xff]
  %v507 = vld [vmem:[%s1 + $0xf10] sm:$0xff]
  %v508 = vld [vmem:[%s1 + $0xf18] sm:$0xff]
  %v509 = vld [vmem:[%s1 + $0xf20] sm:$0xff]
  %v510 = vld [vmem:[%s1 + $0xf28] sm:$0xff]
  %v511 = vld [vmem:[%s1 + $0xf30] sm:$0xff]
  %v512 = vld [vmem:[%s1 + $0xf38] sm:$0xff]
  %v513 = vld [vmem:[%s1 + $0xf40] sm:$0xff]
  %v514 = vld [vmem:[%s1 + $0xf48] sm:$0xff]
  %v515 = vld [vmem:[%s1 + $0xf50] sm:$0xff]
  %v516 = vld [vmem:[%s1 + $0xf58] sm:$0xff]
  %v517 = vld [vmem:[%s1 + $0xf60] sm:$0xff]
  %v518 = vld [vmem:[%s1 + $0xf68] sm:$0xff]
  %v519 = vld [vmem:[%s1 + $0xf70] sm:$0xff]
  %v520 = vld [vmem:[%s1 + $0xf78] sm:$0xff]
  %v521 = vld [vmem:[%s1 + $0xf80] sm:$0xff]
  %v522 = vld [vmem:[%s1 + $0xf88] sm:$0xff]
  %v523 = vld [vmem:[%s1 + $0xf90] sm:$0xff]
  %v524 = vld [vmem:[%s1 + $0xf98] sm:$0xff]
  %v525 = vld [vmem:[%s1 + $0xfa0] sm:$0xff]
  %v526 = vld [vmem:[%s1 + $0xfa8] sm:$0xff]
  %v527 = vld [vmem:[%s1 + $0xfb0] sm:$0xff]
  %v528 = vld [vmem:[%s1 + $0xfb8] sm:$0xff]
  %v529 = vld [vmem:[%s1 + $0xfc0] sm:$0xff]
  %v530 = vld [vmem:[%s1 + $0xfc8] sm:$0xff]
  %v531 = vld [vmem:[%s1 + $0xfd0] sm:$0xff]
  %v532 = vld [vmem:[%s1 + $0xfd8] sm:$0xff]
  %v533 = vld [vmem:[%s1 + $0xfe0] sm:$0xff]
  %v534 = vld [vmem:[%s1 + $0xfe8] sm:$0xff]
  %v535 = vld [vmem:[%s1 + $0xff0] sm:$0xff]
  %v536 = vld [vmem:[%s1 + $0xff8] sm:$0xff]
  %v545 = vunpack.c.l.b16 %v17
  %v546 = vunpack.c.h.b16 %v17
  %v547 = vunpack.c.l.b16 %v18
  %v548 = vunpack.c.h.b16 %v18
  %v549 = vunpack.c.l.b16 %v19
  %v550 = vunpack.c.h.b16 %v19
  %v551 = vunpack.c.l.b16 %v20
  %v552 = vunpack.c.h.b16 %v20
  %v553 = vunpack.c.l.b16 %v21
  %v554 = vunpack.c.h.b16 %v21
  %v555 = vunpack.c.l.b16 %v22
  %v556 = vunpack.c.h.b16 %v22
  %v557 = vunpack.c.l.b16 %v23
  %v558 = vunpack.c.h.b16 %v23
  %v559 = vunpack.c.l.b16 %v24
  %v560 = vunpack.c.h.b16 %v24
  %v561 = vpack.c.b16 %v553, %v545
  %v562 = vpack.c.b16 %v554, %v546
  %v563 = vpack.c.b16 %v555, %v547
  %v564 = vpack.c.b16 %v556, %v548
  %v565 = vpack.c.b16 %v557, %v549
  %v566 = vpack.c.b16 %v558, %v550
  %v567 = vpack.c.b16 %v559, %v551
  %v568 = vpack.c.b16 %v560, %v552
  %v1089 = vunpack.c.l.b16 %v25
  %v1090 = vunpack.c.h.b16 %v25
  %v1091 = vunpack.c.l.b16 %v26
  %v1092 = vunpack.c.h.b16 %v26
  %v1093 = vunpack.c.l.b16 %v27
  %v1094 = vunpack.c.h.b16 %v27
  %v1095 = vunpack.c.l.b16 %v28
  %v1096 = vunpack.c.h.b16 %v28
  %v1097 = vunpack.c.l.b16 %v29
  %v1098 = vunpack.c.h.b16 %v29
  %v1099 = vunpack.c.l.b16 %v30
  %v1100 = vunpack.c.h.b16 %v30
  %v1101 = vunpack.c.l.b16 %v31
  %v1102 = vunpack.c.h.b16 %v31
  %v1103 = vunpack.c.l.b16 %v32
  %v1104 = vunpack.c.h.b16 %v32
  %v1105 = vunpack.c.l.b16 %v33
  %v1106 = vunpack.c.h.b16 %v33
  %v1107 = vunpack.c.l.b16 %v34
  %v1108 = vunpack.c.h.b16 %v34
  %v1109 = vunpack.c.l.b16 %v35
  %v1110 = vunpack.c.h.b16 %v35
  %v1111 = vunpack.c.l.b16 %v36
  %v1112 = vunpack.c.h.b16 %v36
  %v1113 = vunpack.c.l.b16 %v37
  %v1114 = vunpack.c.h.b16 %v37
  %v1115 = vunpack.c.l.b16 %v38
  %v1116 = vunpack.c.h.b16 %v38
  %v1117 = vunpack.c.l.b16 %v39
  %v1118 = vunpack.c.h.b16 %v39
  %v1119 = vunpack.c.l.b16 %v40
  %v1120 = vunpack.c.h.b16 %v40
  %v1121 = vunpack.c.l.b16 %v41
  %v1122 = vunpack.c.h.b16 %v41
  %v1123 = vunpack.c.l.b16 %v42
  %v1124 = vunpack.c.h.b16 %v42
  %v1125 = vunpack.c.l.b16 %v43
  %v1126 = vunpack.c.h.b16 %v43
  %v1127 = vunpack.c.l.b16 %v44
  %v1128 = vunpack.c.h.b16 %v44
  %v1129 = vunpack.c.l.b16 %v45
  %v1130 = vunpack.c.h.b16 %v45
  %v1131 = vunpack.c.l.b16 %v46
  %v1132 = vunpack.c.h.b16 %v46
  %v1133 = vunpack.c.l.b16 %v47
  %v1134 = vunpack.c.h.b16 %v47
  %v1135 = vunpack.c.l.b16 %v48
  %v1136 = vunpack.c.h.b16 %v48
  %v1137 = vunpack.c.l.b16 %v49
  %v1138 = vunpack.c.h.b16 %v49
  %v1139 = vunpack.c.l.b16 %v50
  %v1140 = vunpack.c.h.b16 %v50
  %v1141 = vunpack.c.l.b16 %v51
  %v1142 = vunpack.c.h.b16 %v51
  %v1143 = vunpack.c.l.b16 %v52
  %v1144 = vunpack.c.h.b16 %v52
  %v1145 = vunpack.c.l.b16 %v53
  %v1146 = vunpack.c.h.b16 %v53
  %v1147 = vunpack.c.l.b16 %v54
  %v1148 = vunpack.c.h.b16 %v54
  %v1149 = vunpack.c.l.b16 %v55
  %v1150 = vunpack.c.h.b16 %v55
  %v1151 = vunpack.c.l.b16 %v56
  %v1152 = vunpack.c.h.b16 %v56
  %v1153 = vunpack.c.l.b16 %v57
  %v1154 = vunpack.c.h.b16 %v57
  %v1155 = vunpack.c.l.b16 %v58
  %v1156 = vunpack.c.h.b16 %v58
  %v1157 = vunpack.c.l.b16 %v59
  %v1158 = vunpack.c.h.b16 %v59
  %v1159 = vunpack.c.l.b16 %v60
  %v1160 = vunpack.c.h.b16 %v60
  %v1161 = vunpack.c.l.b16 %v61
  %v1162 = vunpack.c.h.b16 %v61
  %v1163 = vunpack.c.l.b16 %v62
  %v1164 = vunpack.c.h.b16 %v62
  %v1165 = vunpack.c.l.b16 %v63
  %v1166 = vunpack.c.h.b16 %v63
  %v1167 = vunpack.c.l.b16 %v64
  %v1168 = vunpack.c.h.b16 %v64
  %v1169 = vunpack.c.l.b16 %v65
  %v1170 = vunpack.c.h.b16 %v65
  %v1171 = vunpack.c.l.b16 %v66
  %v1172 = vunpack.c.h.b16 %v66
  %v1173 = vunpack.c.l.b16 %v67
  %v1174 = vunpack.c.h.b16 %v67
  %v1175 = vunpack.c.l.b16 %v68
  %v1176 = vunpack.c.h.b16 %v68
  %v1177 = vunpack.c.l.b16 %v69
  %v1178 = vunpack.c.h.b16 %v69
  %v1179 = vunpack.c.l.b16 %v70
  %v1180 = vunpack.c.h.b16 %v70
  %v1181 = vunpack.c.l.b16 %v71
  %v1182 = vunpack.c.h.b16 %v71
  %v1183 = vunpack.c.l.b16 %v72
  %v1184 = vunpack.c.h.b16 %v72
  %v1185 = vunpack.c.l.b16 %v73
  %v1186 = vunpack.c.h.b16 %v73
  %v1187 = vunpack.c.l.b16 %v74
  %v1188 = vunpack.c.h.b16 %v74
  %v1189 = vunpack.c.l.b16 %v75
  %v1190 = vunpack.c.h.b16 %v75
  %v1191 = vunpack.c.l.b16 %v76
  %v1192 = vunpack.c.h.b16 %v76
  %v1193 = vunpack.c.l.b16 %v77
  %v1194 = vunpack.c.h.b16 %v77
  %v1195 = vunpack.c.l.b16 %v78
  %v1196 = vunpack.c.h.b16 %v78
  %v1197 = vunpack.c.l.b16 %v79
  %v1198 = vunpack.c.h.b16 %v79
  %v1199 = vunpack.c.l.b16 %v80
  %v1200 = vunpack.c.h.b16 %v80
  %v1201 = vunpack.c.l.b16 %v81
  %v1202 = vunpack.c.h.b16 %v81
  %v1203 = vunpack.c.l.b16 %v82
  %v1204 = vunpack.c.h.b16 %v82
  %v1205 = vunpack.c.l.b16 %v83
  %v1206 = vunpack.c.h.b16 %v83
  %v1207 = vunpack.c.l.b16 %v84
  %v1208 = vunpack.c.h.b16 %v84
  %v1209 = vunpack.c.l.b16 %v85
  %v1210 = vunpack.c.h.b16 %v85
  %v1211 = vunpack.c.l.b16 %v86
  %v1212 = vunpack.c.h.b16 %v86
  %v1213 = vunpack.c.l.b16 %v87
  %v1214 = vunpack.c.h.b16 %v87
  %v1215 = vunpack.c.l.b16 %v88
  %v1216 = vunpack.c.h.b16 %v88
  %v1217 = vunpack.c.l.b16 %v89
  %v1218 = vunpack.c.h.b16 %v89
  %v1219 = vunpack.c.l.b16 %v90
  %v1220 = vunpack.c.h.b16 %v90
  %v1221 = vunpack.c.l.b16 %v91
  %v1222 = vunpack.c.h.b16 %v91
  %v1223 = vunpack.c.l.b16 %v92
  %v1224 = vunpack.c.h.b16 %v92
  %v1225 = vunpack.c.l.b16 %v93
  %v1226 = vunpack.c.h.b16 %v93
  %v1227 = vunpack.c.l.b16 %v94
  %v1228 = vunpack.c.h.b16 %v94
  %v1229 = vunpack.c.l.b16 %v95
  %v1230 = vunpack.c.h.b16 %v95
  %v1231 = vunpack.c.l.b16 %v96
  %v1232 = vunpack.c.h.b16 %v96
  %v1233 = vunpack.c.l.b16 %v97
  %v1234 = vunpack.c.h.b16 %v97
  %v1235 = vunpack.c.l.b16 %v98
  %v1236 = vunpack.c.h.b16 %v98
  %v1237 = vunpack.c.l.b16 %v99
  %v1238 = vunpack.c.h.b16 %v99
  %v1239 = vunpack.c.l.b16 %v100
  %v1240 = vunpack.c.h.b16 %v100
  %v1241 = vunpack.c.l.b16 %v101
  %v1242 = vunpack.c.h.b16 %v101
  %v1243 = vunpack.c.l.b16 %v102
  %v1244 = vunpack.c.h.b16 %v102
  %v1245 = vunpack.c.l.b16 %v103
  %v1246 = vunpack.c.h.b16 %v103
  %v1247 = vunpack.c.l.b16 %v104
  %v1248 = vunpack.c.h.b16 %v104
  %v1249 = vunpack.c.l.b16 %v105
  %v1250 = vunpack.c.h.b16 %v105
  %v1251 = vunpack.c.l.b16 %v106
  %v1252 = vunpack.c.h.b16 %v106
  %v1253 = vunpack.c.l.b16 %v107
  %v1254 = vunpack.c.h.b16 %v107
  %v1255 = vunpack.c.l.b16 %v108
  %v1256 = vunpack.c.h.b16 %v108
  %v1257 = vunpack.c.l.b16 %v109
  %v1258 = vunpack.c.h.b16 %v109
  %v1259 = vunpack.c.l.b16 %v110
  %v1260 = vunpack.c.h.b16 %v110
  %v1261 = vunpack.c.l.b16 %v111
  %v1262 = vunpack.c.h.b16 %v111
  %v1263 = vunpack.c.l.b16 %v112
  %v1264 = vunpack.c.h.b16 %v112
  %v1265 = vunpack.c.l.b16 %v113
  %v1266 = vunpack.c.h.b16 %v113
  %v1267 = vunpack.c.l.b16 %v114
  %v1268 = vunpack.c.h.b16 %v114
  %v1269 = vunpack.c.l.b16 %v115
  %v1270 = vunpack.c.h.b16 %v115
  %v1271 = vunpack.c.l.b16 %v116
  %v1272 = vunpack.c.h.b16 %v116
  %v1273 = vunpack.c.l.b16 %v117
  %v1274 = vunpack.c.h.b16 %v117
  %v1275 = vunpack.c.l.b16 %v118
  %v1276 = vunpack.c.h.b16 %v118
  %v1277 = vunpack.c.l.b16 %v119
  %v1278 = vunpack.c.h.b16 %v119
  %v1279 = vunpack.c.l.b16 %v120
  %v1280 = vunpack.c.h.b16 %v120
  %v1281 = vunpack.c.l.b16 %v121
  %v1282 = vunpack.c.h.b16 %v121
  %v1283 = vunpack.c.l.b16 %v122
  %v1284 = vunpack.c.h.b16 %v122
  %v1285 = vunpack.c.l.b16 %v123
  %v1286 = vunpack.c.h.b16 %v123
  %v1287 = vunpack.c.l.b16 %v124
  %v1288 = vunpack.c.h.b16 %v124
  %v1289 = vunpack.c.l.b16 %v125
  %v1290 = vunpack.c.h.b16 %v125
  %v1291 = vunpack.c.l.b16 %v126
  %v1292 = vunpack.c.h.b16 %v126
  %v1293 = vunpack.c.l.b16 %v127
  %v1294 = vunpack.c.h.b16 %v127
  %v1295 = vunpack.c.l.b16 %v128
  %v1296 = vunpack.c.h.b16 %v128
  %v1297 = vunpack.c.l.b16 %v129
  %v1298 = vunpack.c.h.b16 %v129
  %v1299 = vunpack.c.l.b16 %v130
  %v1300 = vunpack.c.h.b16 %v130
  %v1301 = vunpack.c.l.b16 %v131
  %v1302 = vunpack.c.h.b16 %v131
  %v1303 = vunpack.c.l.b16 %v132
  %v1304 = vunpack.c.h.b16 %v132
  %v1305 = vunpack.c.l.b16 %v133
  %v1306 = vunpack.c.h.b16 %v133
  %v1307 = vunpack.c.l.b16 %v134
  %v1308 = vunpack.c.h.b16 %v134
  %v1309 = vunpack.c.l.b16 %v135
  %v1310 = vunpack.c.h.b16 %v135
  %v1311 = vunpack.c.l.b16 %v136
  %v1312 = vunpack.c.h.b16 %v136
  %v1313 = vunpack.c.l.b16 %v137
  %v1314 = vunpack.c.h.b16 %v137
  %v1315 = vunpack.c.l.b16 %v138
  %v1316 = vunpack.c.h.b16 %v138
  %v1317 = vunpack.c.l.b16 %v139
  %v1318 = vunpack.c.h.b16 %v139
  %v1319 = vunpack.c.l.b16 %v140
  %v1320 = vunpack.c.h.b16 %v140
  %v1321 = vunpack.c.l.b16 %v141
  %v1322 = vunpack.c.h.b16 %v141
  %v1323 = vunpack.c.l.b16 %v142
  %v1324 = vunpack.c.h.b16 %v142
  %v1325 = vunpack.c.l.b16 %v143
  %v1326 = vunpack.c.h.b16 %v143
  %v1327 = vunpack.c.l.b16 %v144
  %v1328 = vunpack.c.h.b16 %v144
  %v1329 = vunpack.c.l.b16 %v145
  %v1330 = vunpack.c.h.b16 %v145
  %v1331 = vunpack.c.l.b16 %v146
  %v1332 = vunpack.c.h.b16 %v146
  %v1333 = vunpack.c.l.b16 %v147
  %v1334 = vunpack.c.h.b16 %v147
  %v1335 = vunpack.c.l.b16 %v148
  %v1336 = vunpack.c.h.b16 %v148
  %v1337 = vunpack.c.l.b16 %v149
  %v1338 = vunpack.c.h.b16 %v149
  %v1339 = vunpack.c.l.b16 %v150
  %v1340 = vunpack.c.h.b16 %v150
  %v1341 = vunpack.c.l.b16 %v151
  %v1342 = vunpack.c.h.b16 %v151
  %v1343 = vunpack.c.l.b16 %v152
  %v1344 = vunpack.c.h.b16 %v152
  %v1345 = vunpack.c.l.b16 %v153
  %v1346 = vunpack.c.h.b16 %v153
  %v1347 = vunpack.c.l.b16 %v154
  %v1348 = vunpack.c.h.b16 %v154
  %v1349 = vunpack.c.l.b16 %v155
  %v1350 = vunpack.c.h.b16 %v155
  %v1351 = vunpack.c.l.b16 %v156
  %v1352 = vunpack.c.h.b16 %v156
  %v1353 = vunpack.c.l.b16 %v157
  %v1354 = vunpack.c.h.b16 %v157
  %v1355 = vunpack.c.l.b16 %v158
  %v1356 = vunpack.c.h.b16 %v158
  %v1357 = vunpack.c.l.b16 %v159
  %v1358 = vunpack.c.h.b16 %v159
  %v1359 = vunpack.c.l.b16 %v160
  %v1360 = vunpack.c.h.b16 %v160
  %v1361 = vunpack.c.l.b16 %v161
  %v1362 = vunpack.c.h.b16 %v161
  %v1363 = vunpack.c.l.b16 %v162
  %v1364 = vunpack.c.h.b16 %v162
  %v1365 = vunpack.c.l.b16 %v163
  %v1366 = vunpack.c.h.b16 %v163
  %v1367 = vunpack.c.l.b16 %v164
  %v1368 = vunpack.c.h.b16 %v164
  %v1369 = vunpack.c.l.b16 %v165
  %v1370 = vunpack.c.h.b16 %v165
  %v1371 = vunpack.c.l.b16 %v166
  %v1372 = vunpack.c.h.b16 %v166
  %v1373 = vunpack.c.l.b16 %v167
  %v1374 = vunpack.c.h.b16 %v167
  %v1375 = vunpack.c.l.b16 %v168
  %v1376 = vunpack.c.h.b16 %v168
  %v1377 = vunpack.c.l.b16 %v169
  %v1378 = vunpack.c.h.b16 %v169
  %v1379 = vunpack.c.l.b16 %v170
  %v1380 = vunpack.c.h.b16 %v170
  %v1381 = vunpack.c.l.b16 %v171
  %v1382 = vunpack.c.h.b16 %v171
  %v1383 = vunpack.c.l.b16 %v172
  %v1384 = vunpack.c.h.b16 %v172
  %v1385 = vunpack.c.l.b16 %v173
  %v1386 = vunpack.c.h.b16 %v173
  %v1387 = vunpack.c.l.b16 %v174
  %v1388 = vunpack.c.h.b16 %v174
  %v1389 = vunpack.c.l.b16 %v175
  %v1390 = vunpack.c.h.b16 %v175
  %v1391 = vunpack.c.l.b16 %v176
  %v1392 = vunpack.c.h.b16 %v176
  %v1393 = vunpack.c.l.b16 %v177
  %v1394 = vunpack.c.h.b16 %v177
  %v1395 = vunpack.c.l.b16 %v178
  %v1396 = vunpack.c.h.b16 %v178
  %v1397 = vunpack.c.l.b16 %v179
  %v1398 = vunpack.c.h.b16 %v179
  %v1399 = vunpack.c.l.b16 %v180
  %v1400 = vunpack.c.h.b16 %v180
  %v1401 = vunpack.c.l.b16 %v181
  %v1402 = vunpack.c.h.b16 %v181
  %v1403 = vunpack.c.l.b16 %v182
  %v1404 = vunpack.c.h.b16 %v182
  %v1405 = vunpack.c.l.b16 %v183
  %v1406 = vunpack.c.h.b16 %v183
  %v1407 = vunpack.c.l.b16 %v184
  %v1408 = vunpack.c.h.b16 %v184
  %v1409 = vunpack.c.l.b16 %v185
  %v1410 = vunpack.c.h.b16 %v185
  %v1411 = vunpack.c.l.b16 %v186
  %v1412 = vunpack.c.h.b16 %v186
  %v1413 = vunpack.c.l.b16 %v187
  %v1414 = vunpack.c.h.b16 %v187
  %v1415 = vunpack.c.l.b16 %v188
  %v1416 = vunpack.c.h.b16 %v188
  %v1417 = vunpack.c.l.b16 %v189
  %v1418 = vunpack.c.h.b16 %v189
  %v1419 = vunpack.c.l.b16 %v190
  %v1420 = vunpack.c.h.b16 %v190
  %v1421 = vunpack.c.l.b16 %v191
  %v1422 = vunpack.c.h.b16 %v191
  %v1423 = vunpack.c.l.b16 %v192
  %v1424 = vunpack.c.h.b16 %v192
  %v1425 = vunpack.c.l.b16 %v193
  %v1426 = vunpack.c.h.b16 %v193
  %v1427 = vunpack.c.l.b16 %v194
  %v1428 = vunpack.c.h.b16 %v194
  %v1429 = vunpack.c.l.b16 %v195
  %v1430 = vunpack.c.h.b16 %v195
  %v1431 = vunpack.c.l.b16 %v196
  %v1432 = vunpack.c.h.b16 %v196
  %v1433 = vunpack.c.l.b16 %v197
  %v1434 = vunpack.c.h.b16 %v197
  %v1435 = vunpack.c.l.b16 %v198
  %v1436 = vunpack.c.h.b16 %v198
  %v1437 = vunpack.c.l.b16 %v199
  %v1438 = vunpack.c.h.b16 %v199
  %v1439 = vunpack.c.l.b16 %v200
  %v1440 = vunpack.c.h.b16 %v200
  %v1441 = vunpack.c.l.b16 %v201
  %v1442 = vunpack.c.h.b16 %v201
  %v1443 = vunpack.c.l.b16 %v202
  %v1444 = vunpack.c.h.b16 %v202
  %v1445 = vunpack.c.l.b16 %v203
  %v1446 = vunpack.c.h.b16 %v203
  %v1447 = vunpack.c.l.b16 %v204
  %v1448 = vunpack.c.h.b16 %v204
  %v1449 = vunpack.c.l.b16 %v205
  %v1450 = vunpack.c.h.b16 %v205
  %v1451 = vunpack.c.l.b16 %v206
  %v1452 = vunpack.c.h.b16 %v206
  %v1453 = vunpack.c.l.b16 %v207
  %v1454 = vunpack.c.h.b16 %v207
  %v1455 = vunpack.c.l.b16 %v208
  %v1456 = vunpack.c.h.b16 %v208
  %v1457 = vunpack.c.l.b16 %v209
  %v1458 = vunpack.c.h.b16 %v209
  %v1459 = vunpack.c.l.b16 %v210
  %v1460 = vunpack.c.h.b16 %v210
  %v1461 = vunpack.c.l.b16 %v211
  %v1462 = vunpack.c.h.b16 %v211
  %v1463 = vunpack.c.l.b16 %v212
  %v1464 = vunpack.c.h.b16 %v212
  %v1465 = vunpack.c.l.b16 %v213
  %v1466 = vunpack.c.h.b16 %v213
  %v1467 = vunpack.c.l.b16 %v214
  %v1468 = vunpack.c.h.b16 %v214
  %v1469 = vunpack.c.l.b16 %v215
  %v1470 = vunpack.c.h.b16 %v215
  %v1471 = vunpack.c.l.b16 %v216
  %v1472 = vunpack.c.h.b16 %v216
  %v1473 = vunpack.c.l.b16 %v217
  %v1474 = vunpack.c.h.b16 %v217
  %v1475 = vunpack.c.l.b16 %v218
  %v1476 = vunpack.c.h.b16 %v218
  %v1477 = vunpack.c.l.b16 %v219
  %v1478 = vunpack.c.h.b16 %v219
  %v1479 = vunpack.c.l.b16 %v220
  %v1480 = vunpack.c.h.b16 %v220
  %v1481 = vunpack.c.l.b16 %v221
  %v1482 = vunpack.c.h.b16 %v221
  %v1483 = vunpack.c.l.b16 %v222
  %v1484 = vunpack.c.h.b16 %v222
  %v1485 = vunpack.c.l.b16 %v223
  %v1486 = vunpack.c.h.b16 %v223
  %v1487 = vunpack.c.l.b16 %v224
  %v1488 = vunpack.c.h.b16 %v224
  %v1489 = vunpack.c.l.b16 %v225
  %v1490 = vunpack.c.h.b16 %v225
  %v1491 = vunpack.c.l.b16 %v226
  %v1492 = vunpack.c.h.b16 %v226
  %v1493 = vunpack.c.l.b16 %v227
  %v1494 = vunpack.c.h.b16 %v227
  %v1495 = vunpack.c.l.b16 %v228
  %v1496 = vunpack.c.h.b16 %v228
  %v1497 = vunpack.c.l.b16 %v229
  %v1498 = vunpack.c.h.b16 %v229
  %v1499 = vunpack.c.l.b16 %v230
  %v1500 = vunpack.c.h.b16 %v230
  %v1501 = vunpack.c.l.b16 %v231
  %v1502 = vunpack.c.h.b16 %v231
  %v1503 = vunpack.c.l.b16 %v232
  %v1504 = vunpack.c.h.b16 %v232
  %v1505 = vunpack.c.l.b16 %v233
  %v1506 = vunpack.c.h.b16 %v233
  %v1507 = vunpack.c.l.b16 %v234
  %v1508 = vunpack.c.h.b16 %v234
  %v1509 = vunpack.c.l.b16 %v235
  %v1510 = vunpack.c.h.b16 %v235
  %v1511 = vunpack.c.l.b16 %v236
  %v1512 = vunpack.c.h.b16 %v236
  %v1513 = vunpack.c.l.b16 %v237
  %v1514 = vunpack.c.h.b16 %v237
  %v1515 = vunpack.c.l.b16 %v238
  %v1516 = vunpack.c.h.b16 %v238
  %v1517 = vunpack.c.l.b16 %v239
  %v1518 = vunpack.c.h.b16 %v239
  %v1519 = vunpack.c.l.b16 %v240
  %v1520 = vunpack.c.h.b16 %v240
  %v1521 = vunpack.c.l.b16 %v241
  %v1522 = vunpack.c.h.b16 %v241
  %v1523 = vunpack.c.l.b16 %v242
  %v1524 = vunpack.c.h.b16 %v242
  %v1525 = vunpack.c.l.b16 %v243
  %v1526 = vunpack.c.h.b16 %v243
  %v1527 = vunpack.c.l.b16 %v244
  %v1528 = vunpack.c.h.b16 %v244
  %v1529 = vunpack.c.l.b16 %v245
  %v1530 = vunpack.c.h.b16 %v245
  %v1531 = vunpack.c.l.b16 %v246
  %v1532 = vunpack.c.h.b16 %v246
  %v1533 = vunpack.c.l.b16 %v247
  %v1534 = vunpack.c.h.b16 %v247
  %v1535 = vunpack.c.l.b16 %v248
  %v1536 = vunpack.c.h.b16 %v248
  %v1537 = vunpack.c.l.b16 %v249
  %v1538 = vunpack.c.h.b16 %v249
  %v1539 = vunpack.c.l.b16 %v250
  %v1540 = vunpack.c.h.b16 %v250
  %v1541 = vunpack.c.l.b16 %v251
  %v1542 = vunpack.c.h.b16 %v251
  %v1543 = vunpack.c.l.b16 %v252
  %v1544 = vunpack.c.h.b16 %v252
  %v1545 = vunpack.c.l.b16 %v253
  %v1546 = vunpack.c.h.b16 %v253
  %v1547 = vunpack.c.l.b16 %v254
  %v1548 = vunpack.c.h.b16 %v254
  %v1549 = vunpack.c.l.b16 %v255
  %v1550 = vunpack.c.h.b16 %v255
  %v1551 = vunpack.c.l.b16 %v256
  %v1552 = vunpack.c.h.b16 %v256
  %v1553 = vunpack.c.l.b16 %v257
  %v1554 = vunpack.c.h.b16 %v257
  %v1555 = vunpack.c.l.b16 %v258
  %v1556 = vunpack.c.h.b16 %v258
  %v1557 = vunpack.c.l.b16 %v259
  %v1558 = vunpack.c.h.b16 %v259
  %v1559 = vunpack.c.l.b16 %v260
  %v1560 = vunpack.c.h.b16 %v260
  %v1561 = vunpack.c.l.b16 %v261
  %v1562 = vunpack.c.h.b16 %v261
  %v1563 = vunpack.c.l.b16 %v262
  %v1564 = vunpack.c.h.b16 %v262
  %v1565 = vunpack.c.l.b16 %v263
  %v1566 = vunpack.c.h.b16 %v263
  %v1567 = vunpack.c.l.b16 %v264
  %v1568 = vunpack.c.h.b16 %v264
  %v1569 = vunpack.c.l.b16 %v265
  %v1570 = vunpack.c.h.b16 %v265
  %v1571 = vunpack.c.l.b16 %v266
  %v1572 = vunpack.c.h.b16 %v266
  %v1573 = vunpack.c.l.b16 %v267
  %v1574 = vunpack.c.h.b16 %v267
  %v1575 = vunpack.c.l.b16 %v268
  %v1576 = vunpack.c.h.b16 %v268
  %v1577 = vunpack.c.l.b16 %v269
  %v1578 = vunpack.c.h.b16 %v269
  %v1579 = vunpack.c.l.b16 %v270
  %v1580 = vunpack.c.h.b16 %v270
  %v1581 = vunpack.c.l.b16 %v271
  %v1582 = vunpack.c.h.b16 %v271
  %v1583 = vunpack.c.l.b16 %v272
  %v1584 = vunpack.c.h.b16 %v272
  %v1585 = vunpack.c.l.b16 %v273
  %v1586 = vunpack.c.h.b16 %v273
  %v1587 = vunpack.c.l.b16 %v274
  %v1588 = vunpack.c.h.b16 %v274
  %v1589 = vunpack.c.l.b16 %v275
  %v1590 = vunpack.c.h.b16 %v275
  %v1591 = vunpack.c.l.b16 %v276
  %v1592 = vunpack.c.h.b16 %v276
  %v1593 = vunpack.c.l.b16 %v277
  %v1594 = vunpack.c.h.b16 %v277
  %v1595 = vunpack.c.l.b16 %v278
  %v1596 = vunpack.c.h.b16 %v278
  %v1597 = vunpack.c.l.b16 %v279
  %v1598 = vunpack.c.h.b16 %v279
  %v1599 = vunpack.c.l.b16 %v280
  %v1600 = vunpack.c.h.b16 %v280
  %v1601 = vunpack.c.l.b16 %v281
  %v1602 = vunpack.c.h.b16 %v281
  %v1603 = vunpack.c.l.b16 %v282
  %v1604 = vunpack.c.h.b16 %v282
  %v1605 = vunpack.c.l.b16 %v283
  %v1606 = vunpack.c.h.b16 %v283
  %v1607 = vunpack.c.l.b16 %v284
  %v1608 = vunpack.c.h.b16 %v284
  %v1609 = vunpack.c.l.b16 %v285
  %v1610 = vunpack.c.h.b16 %v285
  %v1611 = vunpack.c.l.b16 %v286
  %v1612 = vunpack.c.h.b16 %v286
  %v1613 = vunpack.c.l.b16 %v287
  %v1614 = vunpack.c.h.b16 %v287
  %v1615 = vunpack.c.l.b16 %v288
  %v1616 = vunpack.c.h.b16 %v288
  %v1617 = vunpack.c.l.b16 %v289
  %v1618 = vunpack.c.h.b16 %v289
  %v1619 = vunpack.c.l.b16 %v290
  %v1620 = vunpack.c.h.b16 %v290
  %v1621 = vunpack.c.l.b16 %v291
  %v1622 = vunpack.c.h.b16 %v291
  %v1623 = vunpack.c.l.b16 %v292
  %v1624 = vunpack.c.h.b16 %v292
  %v1625 = vunpack.c.l.b16 %v293
  %v1626 = vunpack.c.h.b16 %v293
  %v1627 = vunpack.c.l.b16 %v294
  %v1628 = vunpack.c.h.b16 %v294
  %v1629 = vunpack.c.l.b16 %v295
  %v1630 = vunpack.c.h.b16 %v295
  %v1631 = vunpack.c.l.b16 %v296
  %v1632 = vunpack.c.h.b16 %v296
  %v1633 = vunpack.c.l.b16 %v297
  %v1634 = vunpack.c.h.b16 %v297
  %v1635 = vunpack.c.l.b16 %v298
  %v1636 = vunpack.c.h.b16 %v298
  %v1637 = vunpack.c.l.b16 %v299
  %v1638 = vunpack.c.h.b16 %v299
  %v1639 = vunpack.c.l.b16 %v300
  %v1640 = vunpack.c.h.b16 %v300
  %v1641 = vunpack.c.l.b16 %v301
  %v1642 = vunpack.c.h.b16 %v301
  %v1643 = vunpack.c.l.b16 %v302
  %v1644 = vunpack.c.h.b16 %v302
  %v1645 = vunpack.c.l.b16 %v303
  %v1646 = vunpack.c.h.b16 %v303
  %v1647 = vunpack.c.l.b16 %v304
  %v1648 = vunpack.c.h.b16 %v304
  %v1649 = vunpack.c.l.b16 %v305
  %v1650 = vunpack.c.h.b16 %v305
  %v1651 = vunpack.c.l.b16 %v306
  %v1652 = vunpack.c.h.b16 %v306
  %v1653 = vunpack.c.l.b16 %v307
  %v1654 = vunpack.c.h.b16 %v307
  %v1655 = vunpack.c.l.b16 %v308
  %v1656 = vunpack.c.h.b16 %v308
  %v1657 = vunpack.c.l.b16 %v309
  %v1658 = vunpack.c.h.b16 %v309
  %v1659 = vunpack.c.l.b16 %v310
  %v1660 = vunpack.c.h.b16 %v310
  %v1661 = vunpack.c.l.b16 %v311
  %v1662 = vunpack.c.h.b16 %v311
  %v1663 = vunpack.c.l.b16 %v312
  %v1664 = vunpack.c.h.b16 %v312
  %v1665 = vunpack.c.l.b16 %v313
  %v1666 = vunpack.c.h.b16 %v313
  %v1667 = vunpack.c.l.b16 %v314
  %v1668 = vunpack.c.h.b16 %v314
  %v1669 = vunpack.c.l.b16 %v315
  %v1670 = vunpack.c.h.b16 %v315
  %v1671 = vunpack.c.l.b16 %v316
  %v1672 = vunpack.c.h.b16 %v316
  %v1673 = vunpack.c.l.b16 %v317
  %v1674 = vunpack.c.h.b16 %v317
  %v1675 = vunpack.c.l.b16 %v318
  %v1676 = vunpack.c.h.b16 %v318
  %v1677 = vunpack.c.l.b16 %v319
  %v1678 = vunpack.c.h.b16 %v319
  %v1679 = vunpack.c.l.b16 %v320
  %v1680 = vunpack.c.h.b16 %v320
  %v1681 = vunpack.c.l.b16 %v321
  %v1682 = vunpack.c.h.b16 %v321
  %v1683 = vunpack.c.l.b16 %v322
  %v1684 = vunpack.c.h.b16 %v322
  %v1685 = vunpack.c.l.b16 %v323
  %v1686 = vunpack.c.h.b16 %v323
  %v1687 = vunpack.c.l.b16 %v324
  %v1688 = vunpack.c.h.b16 %v324
  %v1689 = vunpack.c.l.b16 %v325
  %v1690 = vunpack.c.h.b16 %v325
  %v1691 = vunpack.c.l.b16 %v326
  %v1692 = vunpack.c.h.b16 %v326
  %v1693 = vunpack.c.l.b16 %v327
  %v1694 = vunpack.c.h.b16 %v327
  %v1695 = vunpack.c.l.b16 %v328
  %v1696 = vunpack.c.h.b16 %v328
  %v1697 = vunpack.c.l.b16 %v329
  %v1698 = vunpack.c.h.b16 %v329
  %v1699 = vunpack.c.l.b16 %v330
  %v1700 = vunpack.c.h.b16 %v330
  %v1701 = vunpack.c.l.b16 %v331
  %v1702 = vunpack.c.h.b16 %v331
  %v1703 = vunpack.c.l.b16 %v332
  %v1704 = vunpack.c.h.b16 %v332
  %v1705 = vunpack.c.l.b16 %v333
  %v1706 = vunpack.c.h.b16 %v333
  %v1707 = vunpack.c.l.b16 %v334
  %v1708 = vunpack.c.h.b16 %v334
  %v1709 = vunpack.c.l.b16 %v335
  %v1710 = vunpack.c.h.b16 %v335
  %v1711 = vunpack.c.l.b16 %v336
  %v1712 = vunpack.c.h.b16 %v336
  %v1713 = vunpack.c.l.b16 %v337
  %v1714 = vunpack.c.h.b16 %v337
  %v1715 = vunpack.c.l.b16 %v338
  %v1716 = vunpack.c.h.b16 %v338
  %v1717 = vunpack.c.l.b16 %v339
  %v1718 = vunpack.c.h.b16 %v339
  %v1719 = vunpack.c.l.b16 %v340
  %v1720 = vunpack.c.h.b16 %v340
  %v1721 = vunpack.c.l.b16 %v341
  %v1722 = vunpack.c.h.b16 %v341
  %v1723 = vunpack.c.l.b16 %v342
  %v1724 = vunpack.c.h.b16 %v342
  %v1725 = vunpack.c.l.b16 %v343
  %v1726 = vunpack.c.h.b16 %v343
  %v1727 = vunpack.c.l.b16 %v344
  %v1728 = vunpack.c.h.b16 %v344
  %v1729 = vunpack.c.l.b16 %v345
  %v1730 = vunpack.c.h.b16 %v345
  %v1731 = vunpack.c.l.b16 %v346
  %v1732 = vunpack.c.h.b16 %v346
  %v1733 = vunpack.c.l.b16 %v347
  %v1734 = vunpack.c.h.b16 %v347
  %v1735 = vunpack.c.l.b16 %v348
  %v1736 = vunpack.c.h.b16 %v348
  %v1737 = vunpack.c.l.b16 %v349
  %v1738 = vunpack.c.h.b16 %v349
  %v1739 = vunpack.c.l.b16 %v350
  %v1740 = vunpack.c.h.b16 %v350
  %v1741 = vunpack.c.l.b16 %v351
  %v1742 = vunpack.c.h.b16 %v351
  %v1743 = vunpack.c.l.b16 %v352
  %v1744 = vunpack.c.h.b16 %v352
  %v1745 = vunpack.c.l.b16 %v353
  %v1746 = vunpack.c.h.b16 %v353
  %v1747 = vunpack.c.l.b16 %v354
  %v1748 = vunpack.c.h.b16 %v354
  %v1749 = vunpack.c.l.b16 %v355
  %v1750 = vunpack.c.h.b16 %v355
  %v1751 = vunpack.c.l.b16 %v356
  %v1752 = vunpack.c.h.b16 %v356
  %v1753 = vunpack.c.l.b16 %v357
  %v1754 = vunpack.c.h.b16 %v357
  %v1755 = vunpack.c.l.b16 %v358
  %v1756 = vunpack.c.h.b16 %v358
  %v1757 = vunpack.c.l.b16 %v359
  %v1758 = vunpack.c.h.b16 %v359
  %v1759 = vunpack.c.l.b16 %v360
  %v1760 = vunpack.c.h.b16 %v360
  %v1761 = vunpack.c.l.b16 %v361
  %v1762 = vunpack.c.h.b16 %v361
  %v1763 = vunpack.c.l.b16 %v362
  %v1764 = vunpack.c.h.b16 %v362
  %v1765 = vunpack.c.l.b16 %v363
  %v1766 = vunpack.c.h.b16 %v363
  %v1767 = vunpack.c.l.b16 %v364
  %v1768 = vunpack.c.h.b16 %v364
  %v1769 = vunpack.c.l.b16 %v365
  %v1770 = vunpack.c.h.b16 %v365
  %v1771 = vunpack.c.l.b16 %v366
  %v1772 = vunpack.c.h.b16 %v366
  %v1773 = vunpack.c.l.b16 %v367
  %v1774 = vunpack.c.h.b16 %v367
  %v1775 = vunpack.c.l.b16 %v368
  %v1776 = vunpack.c.h.b16 %v368
  %v1777 = vunpack.c.l.b16 %v369
  %v1778 = vunpack.c.h.b16 %v369
  %v1779 = vunpack.c.l.b16 %v370
  %v1780 = vunpack.c.h.b16 %v370
  %v1781 = vunpack.c.l.b16 %v371
  %v1782 = vunpack.c.h.b16 %v371
  %v1783 = vunpack.c.l.b16 %v372
  %v1784 = vunpack.c.h.b16 %v372
  %v1785 = vunpack.c.l.b16 %v373
  %v1786 = vunpack.c.h.b16 %v373
  %v1787 = vunpack.c.l.b16 %v374
  %v1788 = vunpack.c.h.b16 %v374
  %v1789 = vunpack.c.l.b16 %v375
  %v1790 = vunpack.c.h.b16 %v375
  %v1791 = vunpack.c.l.b16 %v376
  %v1792 = vunpack.c.h.b16 %v376
  %v1793 = vunpack.c.l.b16 %v377
  %v1794 = vunpack.c.h.b16 %v377
  %v1795 = vunpack.c.l.b16 %v378
  %v1796 = vunpack.c.h.b16 %v378
  %v1797 = vunpack.c.l.b16 %v379
  %v1798 = vunpack.c.h.b16 %v379
  %v1799 = vunpack.c.l.b16 %v380
  %v1800 = vunpack.c.h.b16 %v380
  %v1801 = vunpack.c.l.b16 %v381
  %v1802 = vunpack.c.h.b16 %v381
  %v1803 = vunpack.c.l.b16 %v382
  %v1804 = vunpack.c.h.b16 %v382
  %v1805 = vunpack.c.l.b16 %v383
  %v1806 = vunpack.c.h.b16 %v383
  %v1807 = vunpack.c.l.b16 %v384
  %v1808 = vunpack.c.h.b16 %v384
  %v1809 = vunpack.c.l.b16 %v385
  %v1810 = vunpack.c.h.b16 %v385
  %v1811 = vunpack.c.l.b16 %v386
  %v1812 = vunpack.c.h.b16 %v386
  %v1813 = vunpack.c.l.b16 %v387
  %v1814 = vunpack.c.h.b16 %v387
  %v1815 = vunpack.c.l.b16 %v388
  %v1816 = vunpack.c.h.b16 %v388
  %v1817 = vunpack.c.l.b16 %v389
  %v1818 = vunpack.c.h.b16 %v389
  %v1819 = vunpack.c.l.b16 %v390
  %v1820 = vunpack.c.h.b16 %v390
  %v1821 = vunpack.c.l.b16 %v391
  %v1822 = vunpack.c.h.b16 %v391
  %v1823 = vunpack.c.l.b16 %v392
  %v1824 = vunpack.c.h.b16 %v392
  %v1825 = vunpack.c.l.b16 %v393
  %v1826 = vunpack.c.h.b16 %v393
  %v1827 = vunpack.c.l.b16 %v394
  %v1828 = vunpack.c.h.b16 %v394
  %v1829 = vunpack.c.l.b16 %v395
  %v1830 = vunpack.c.h.b16 %v395
  %v1831 = vunpack.c.l.b16 %v396
  %v1832 = vunpack.c.h.b16 %v396
  %v1833 = vunpack.c.l.b16 %v397
  %v1834 = vunpack.c.h.b16 %v397
  %v1835 = vunpack.c.l.b16 %v398
  %v1836 = vunpack.c.h.b16 %v398
  %v1837 = vunpack.c.l.b16 %v399
  %v1838 = vunpack.c.h.b16 %v399
  %v1839 = vunpack.c.l.b16 %v400
  %v1840 = vunpack.c.h.b16 %v400
  %v1841 = vunpack.c.l.b16 %v401
  %v1842 = vunpack.c.h.b16 %v401
  %v1843 = vunpack.c.l.b16 %v402
  %v1844 = vunpack.c.h.b16 %v402
  %v1845 = vunpack.c.l.b16 %v403
  %v1846 = vunpack.c.h.b16 %v403
  %v1847 = vunpack.c.l.b16 %v404
  %v1848 = vunpack.c.h.b16 %v404
  %v1849 = vunpack.c.l.b16 %v405
  %v1850 = vunpack.c.h.b16 %v405
  %v1851 = vunpack.c.l.b16 %v406
  %v1852 = vunpack.c.h.b16 %v406
  %v1853 = vunpack.c.l.b16 %v407
  %v1854 = vunpack.c.h.b16 %v407
  %v1855 = vunpack.c.l.b16 %v408
  %v1856 = vunpack.c.h.b16 %v408
  %v1857 = vunpack.c.l.b16 %v409
  %v1858 = vunpack.c.h.b16 %v409
  %v1859 = vunpack.c.l.b16 %v410
  %v1860 = vunpack.c.h.b16 %v410
  %v1861 = vunpack.c.l.b16 %v411
  %v1862 = vunpack.c.h.b16 %v411
  %v1863 = vunpack.c.l.b16 %v412
  %v1864 = vunpack.c.h.b16 %v412
  %v1865 = vunpack.c.l.b16 %v413
  %v1866 = vunpack.c.h.b16 %v413
  %v1867 = vunpack.c.l.b16 %v414
  %v1868 = vunpack.c.h.b16 %v414
  %v1869 = vunpack.c.l.b16 %v415
  %v1870 = vunpack.c.h.b16 %v415
  %v1871 = vunpack.c.l.b16 %v416
  %v1872 = vunpack.c.h.b16 %v416
  %v1873 = vunpack.c.l.b16 %v417
  %v1874 = vunpack.c.h.b16 %v417
  %v1875 = vunpack.c.l.b16 %v418
  %v1876 = vunpack.c.h.b16 %v418
  %v1877 = vunpack.c.l.b16 %v419
  %v1878 = vunpack.c.h.b16 %v419
  %v1879 = vunpack.c.l.b16 %v420
  %v1880 = vunpack.c.h.b16 %v420
  %v1881 = vunpack.c.l.b16 %v421
  %v1882 = vunpack.c.h.b16 %v421
  %v1883 = vunpack.c.l.b16 %v422
  %v1884 = vunpack.c.h.b16 %v422
  %v1885 = vunpack.c.l.b16 %v423
  %v1886 = vunpack.c.h.b16 %v423
  %v1887 = vunpack.c.l.b16 %v424
  %v1888 = vunpack.c.h.b16 %v424
  %v1889 = vunpack.c.l.b16 %v425
  %v1890 = vunpack.c.h.b16 %v425
  %v1891 = vunpack.c.l.b16 %v426
  %v1892 = vunpack.c.h.b16 %v426
  %v1893 = vunpack.c.l.b16 %v427
  %v1894 = vunpack.c.h.b16 %v427
  %v1895 = vunpack.c.l.b16 %v428
  %v1896 = vunpack.c.h.b16 %v428
  %v1897 = vunpack.c.l.b16 %v429
  %v1898 = vunpack.c.h.b16 %v429
  %v1899 = vunpack.c.l.b16 %v430
  %v1900 = vunpack.c.h.b16 %v430
  %v1901 = vunpack.c.l.b16 %v431
  %v1902 = vunpack.c.h.b16 %v431
  %v1903 = vunpack.c.l.b16 %v432
  %v1904 = vunpack.c.h.b16 %v432
  %v1905 = vunpack.c.l.b16 %v433
  %v1906 = vunpack.c.h.b16 %v433
  %v1907 = vunpack.c.l.b16 %v434
  %v1908 = vunpack.c.h.b16 %v434
  %v1909 = vunpack.c.l.b16 %v435
  %v1910 = vunpack.c.h.b16 %v435
  %v1911 = vunpack.c.l.b16 %v436
  %v1912 = vunpack.c.h.b16 %v436
  %v1913 = vunpack.c.l.b16 %v437
  %v1914 = vunpack.c.h.b16 %v437
  %v1915 = vunpack.c.l.b16 %v438
  %v1916 = vunpack.c.h.b16 %v438
  %v1917 = vunpack.c.l.b16 %v439
  %v1918 = vunpack.c.h.b16 %v439
  %v1919 = vunpack.c.l.b16 %v440
  %v1920 = vunpack.c.h.b16 %v440
  %v1921 = vunpack.c.l.b16 %v441
  %v1922 = vunpack.c.h.b16 %v441
  %v1923 = vunpack.c.l.b16 %v442
  %v1924 = vunpack.c.h.b16 %v442
  %v1925 = vunpack.c.l.b16 %v443
  %v1926 = vunpack.c.h.b16 %v443
  %v1927 = vunpack.c.l.b16 %v444
  %v1928 = vunpack.c.h.b16 %v444
  %v1929 = vunpack.c.l.b16 %v445
  %v1930 = vunpack.c.h.b16 %v445
  %v1931 = vunpack.c.l.b16 %v446
  %v1932 = vunpack.c.h.b16 %v446
  %v1933 = vunpack.c.l.b16 %v447
  %v1934 = vunpack.c.h.b16 %v447
  %v1935 = vunpack.c.l.b16 %v448
  %v1936 = vunpack.c.h.b16 %v448
  %v1937 = vunpack.c.l.b16 %v449
  %v1938 = vunpack.c.h.b16 %v449
  %v1939 = vunpack.c.l.b16 %v450
  %v1940 = vunpack.c.h.b16 %v450
  %v1941 = vunpack.c.l.b16 %v451
  %v1942 = vunpack.c.h.b16 %v451
  %v1943 = vunpack.c.l.b16 %v452
  %v1944 = vunpack.c.h.b16 %v452
  %v1945 = vunpack.c.l.b16 %v453
  %v1946 = vunpack.c.h.b16 %v453
  %v1947 = vunpack.c.l.b16 %v454
  %v1948 = vunpack.c.h.b16 %v454
  %v1949 = vunpack.c.l.b16 %v455
  %v1950 = vunpack.c.h.b16 %v455
  %v1951 = vunpack.c.l.b16 %v456
  %v1952 = vunpack.c.h.b16 %v456
  %v1953 = vunpack.c.l.b16 %v457
  %v1954 = vunpack.c.h.b16 %v457
  %v1955 = vunpack.c.l.b16 %v458
  %v1956 = vunpack.c.h.b16 %v458
  %v1957 = vunpack.c.l.b16 %v459
  %v1958 = vunpack.c.h.b16 %v459
  %v1959 = vunpack.c.l.b16 %v460
  %v1960 = vunpack.c.h.b16 %v460
  %v1961 = vunpack.c.l.b16 %v461
  %v1962 = vunpack.c.h.b16 %v461
  %v1963 = vunpack.c.l.b16 %v462
  %v1964 = vunpack.c.h.b16 %v462
  %v1965 = vunpack.c.l.b16 %v463
  %v1966 = vunpack.c.h.b16 %v463
  %v1967 = vunpack.c.l.b16 %v464
  %v1968 = vunpack.c.h.b16 %v464
  %v1969 = vunpack.c.l.b16 %v465
  %v1970 = vunpack.c.h.b16 %v465
  %v1971 = vunpack.c.l.b16 %v466
  %v1972 = vunpack.c.h.b16 %v466
  %v1973 = vunpack.c.l.b16 %v467
  %v1974 = vunpack.c.h.b16 %v467
  %v1975 = vunpack.c.l.b16 %v468
  %v1976 = vunpack.c.h.b16 %v468
  %v1977 = vunpack.c.l.b16 %v469
  %v1978 = vunpack.c.h.b16 %v469
  %v1979 = vunpack.c.l.b16 %v470
  %v1980 = vunpack.c.h.b16 %v470
  %v1981 = vunpack.c.l.b16 %v471
  %v1982 = vunpack.c.h.b16 %v471
  %v1983 = vunpack.c.l.b16 %v472
  %v1984 = vunpack.c.h.b16 %v472
  %v1985 = vunpack.c.l.b16 %v473
  %v1986 = vunpack.c.h.b16 %v473
  %v1987 = vunpack.c.l.b16 %v474
  %v1988 = vunpack.c.h.b16 %v474
  %v1989 = vunpack.c.l.b16 %v475
  %v1990 = vunpack.c.h.b16 %v475
  %v1991 = vunpack.c.l.b16 %v476
  %v1992 = vunpack.c.h.b16 %v476
  %v1993 = vunpack.c.l.b16 %v477
  %v1994 = vunpack.c.h.b16 %v477
  %v1995 = vunpack.c.l.b16 %v478
  %v1996 = vunpack.c.h.b16 %v478
  %v1997 = vunpack.c.l.b16 %v479
  %v1998 = vunpack.c.h.b16 %v479
  %v1999 = vunpack.c.l.b16 %v480
  %v2000 = vunpack.c.h.b16 %v480
  %v2001 = vunpack.c.l.b16 %v481
  %v2002 = vunpack.c.h.b16 %v481
  %v2003 = vunpack.c.l.b16 %v482
  %v2004 = vunpack.c.h.b16 %v482
  %v2005 = vunpack.c.l.b16 %v483
  %v2006 = vunpack.c.h.b16 %v483
  %v2007 = vunpack.c.l.b16 %v484
  %v2008 = vunpack.c.h.b16 %v484
  %v2009 = vunpack.c.l.b16 %v485
  %v2010 = vunpack.c.h.b16 %v485
  %v2011 = vunpack.c.l.b16 %v486
  %v2012 = vunpack.c.h.b16 %v486
  %v2013 = vunpack.c.l.b16 %v487
  %v2014 = vunpack.c.h.b16 %v487
  %v2015 = vunpack.c.l.b16 %v488
  %v2016 = vunpack.c.h.b16 %v488
  %v2017 = vunpack.c.l.b16 %v489
  %v2018 = vunpack.c.h.b16 %v489
  %v2019 = vunpack.c.l.b16 %v490
  %v2020 = vunpack.c.h.b16 %v490
  %v2021 = vunpack.c.l.b16 %v491
  %v2022 = vunpack.c.h.b16 %v491
  %v2023 = vunpack.c.l.b16 %v492
  %v2024 = vunpack.c.h.b16 %v492
  %v2025 = vunpack.c.l.b16 %v493
  %v2026 = vunpack.c.h.b16 %v493
  %v2027 = vunpack.c.l.b16 %v494
  %v2028 = vunpack.c.h.b16 %v494
  %v2029 = vunpack.c.l.b16 %v495
  %v2030 = vunpack.c.h.b16 %v495
  %v2031 = vunpack.c.l.b16 %v496
  %v2032 = vunpack.c.h.b16 %v496
  %v2033 = vunpack.c.l.b16 %v497
  %v2034 = vunpack.c.h.b16 %v497
  %v2035 = vunpack.c.l.b16 %v498
  %v2036 = vunpack.c.h.b16 %v498
  %v2037 = vunpack.c.l.b16 %v499
  %v2038 = vunpack.c.h.b16 %v499
  %v2039 = vunpack.c.l.b16 %v500
  %v2040 = vunpack.c.h.b16 %v500
  %v2041 = vunpack.c.l.b16 %v501
  %v2042 = vunpack.c.h.b16 %v501
  %v2043 = vunpack.c.l.b16 %v502
  %v2044 = vunpack.c.h.b16 %v502
  %v2045 = vunpack.c.l.b16 %v503
  %v2046 = vunpack.c.h.b16 %v503
  %v2047 = vunpack.c.l.b16 %v504
  %v2048 = vunpack.c.h.b16 %v504
  %v2049 = vunpack.c.l.b16 %v505
  %v2050 = vunpack.c.h.b16 %v505
  %v2051 = vunpack.c.l.b16 %v506
  %v2052 = vunpack.c.h.b16 %v506
  %v2053 = vunpack.c.l.b16 %v507
  %v2054 = vunpack.c.h.b16 %v507
  %v2055 = vunpack.c.l.b16 %v508
  %v2056 = vunpack.c.h.b16 %v508
  %v2057 = vunpack.c.l.b16 %v509
  %v2058 = vunpack.c.h.b16 %v509
  %v2059 = vunpack.c.l.b16 %v510
  %v2060 = vunpack.c.h.b16 %v510
  %v2061 = vunpack.c.l.b16 %v511
  %v2062 = vunpack.c.h.b16 %v511
  %v2063 = vunpack.c.l.b16 %v512
  %v2064 = vunpack.c.h.b16 %v512
  %v2065 = vunpack.c.l.b16 %v513
  %v2066 = vunpack.c.h.b16 %v513
  %v2067 = vunpack.c.l.b16 %v514
  %v2068 = vunpack.c.h.b16 %v514
  %v2069 = vunpack.c.l.b16 %v515
  %v2070 = vunpack.c.h.b16 %v515
  %v2071 = vunpack.c.l.b16 %v516
  %v2072 = vunpack.c.h.b16 %v516
  %v2073 = vunpack.c.l.b16 %v517
  %v2074 = vunpack.c.h.b16 %v517
  %v2075 = vunpack.c.l.b16 %v518
  %v2076 = vunpack.c.h.b16 %v518
  %v2077 = vunpack.c.l.b16 %v519
  %v2078 = vunpack.c.h.b16 %v519
  %v2079 = vunpack.c.l.b16 %v520
  %v2080 = vunpack.c.h.b16 %v520
  %v2081 = vunpack.c.l.b16 %v521
  %v2082 = vunpack.c.h.b16 %v521
  %v2083 = vunpack.c.l.b16 %v522
  %v2084 = vunpack.c.h.b16 %v522
  %v2085 = vunpack.c.l.b16 %v523
  %v2086 = vunpack.c.h.b16 %v523
  %v2087 = vunpack.c.l.b16 %v524
  %v2088 = vunpack.c.h.b16 %v524
  %v2089 = vunpack.c.l.b16 %v525
  %v2090 = vunpack.c.h.b16 %v525
  %v2091 = vunpack.c.l.b16 %v526
  %v2092 = vunpack.c.h.b16 %v526
  %v2093 = vunpack.c.l.b16 %v527
  %v2094 = vunpack.c.h.b16 %v527
  %v2095 = vunpack.c.l.b16 %v528
  %v2096 = vunpack.c.h.b16 %v528
  %v2097 = vunpack.c.l.b16 %v529
  %v2098 = vunpack.c.h.b16 %v529
  %v2099 = vunpack.c.l.b16 %v530
  %v2100 = vunpack.c.h.b16 %v530
  %v2101 = vunpack.c.l.b16 %v531
  %v2102 = vunpack.c.h.b16 %v531
  %v2103 = vunpack.c.l.b16 %v532
  %v2104 = vunpack.c.h.b16 %v532
  %v2105 = vunpack.c.l.b16 %v533
  %v2106 = vunpack.c.h.b16 %v533
  %v2107 = vunpack.c.l.b16 %v534
  %v2108 = vunpack.c.h.b16 %v534
  %v2109 = vunpack.c.l.b16 %v535
  %v2110 = vunpack.c.h.b16 %v535
  %v2111 = vunpack.c.l.b16 %v536
  %v2112 = vunpack.c.h.b16 %v536
  %v2113 = vpack.c.b16 %v1097, %v1089
  %v2114 = vpack.c.b16 %v1098, %v1090
  %v2115 = vpack.c.b16 %v1099, %v1091
  %v2116 = vpack.c.b16 %v1100, %v1092
  %v2117 = vpack.c.b16 %v1101, %v1093
  %v2118 = vpack.c.b16 %v1102, %v1094
  %v2119 = vpack.c.b16 %v1103, %v1095
  %v2120 = vpack.c.b16 %v1104, %v1096
  %v2121 = vpack.c.b16 %v1113, %v1105
  %v2122 = vpack.c.b16 %v1114, %v1106
  %v2123 = vpack.c.b16 %v1115, %v1107
  %v2124 = vpack.c.b16 %v1116, %v1108
  %v2125 = vpack.c.b16 %v1117, %v1109
  %v2126 = vpack.c.b16 %v1118, %v1110
  %v2127 = vpack.c.b16 %v1119, %v1111
  %v2128 = vpack.c.b16 %v1120, %v1112
  %v2129 = vpack.c.b16 %v1129, %v1121
  %v2130 = vpack.c.b16 %v1130, %v1122
  %v2131 = vpack.c.b16 %v1131, %v1123
  %v2132 = vpack.c.b16 %v1132, %v1124
  %v2133 = vpack.c.b16 %v1133, %v1125
  %v2134 = vpack.c.b16 %v1134, %v1126
  %v2135 = vpack.c.b16 %v1135, %v1127
  %v2136 = vpack.c.b16 %v1136, %v1128
  %v2137 = vpack.c.b16 %v1145, %v1137
  %v2138 = vpack.c.b16 %v1146, %v1138
  %v2139 = vpack.c.b16 %v1147, %v1139
  %v2140 = vpack.c.b16 %v1148, %v1140
  %v2141 = vpack.c.b16 %v1149, %v1141
  %v2142 = vpack.c.b16 %v1150, %v1142
  %v2143 = vpack.c.b16 %v1151, %v1143
  %v2144 = vpack.c.b16 %v1152, %v1144
  %v2145 = vpack.c.b16 %v1161, %v1153
  %v2146 = vpack.c.b16 %v1162, %v1154
  %v2147 = vpack.c.b16 %v1163, %v1155
  %v2148 = vpack.c.b16 %v1164, %v1156
  %v2149 = vpack.c.b16 %v1165, %v1157
  %v2150 = vpack.c.b16 %v1166, %v1158
  %v2151 = vpack.c.b16 %v1167, %v1159
  %v2152 = vpack.c.b16 %v1168, %v1160
  %v2153 = vpack.c.b16 %v1177, %v1169
  %v2154 = vpack.c.b16 %v1178, %v1170
  %v2155 = vpack.c.b16 %v1179, %v1171
  %v2156 = vpack.c.b16 %v1180, %v1172
  %v2157 = vpack.c.b16 %v1181, %v1173
  %v2158 = vpack.c.b16 %v1182, %v1174
  %v2159 = vpack.c.b16 %v1183, %v1175
  %v2160 = vpack.c.b16 %v1184, %v1176
  %v2161 = vpack.c.b16 %v1193, %v1185
  %v2162 = vpack.c.b16 %v1194, %v1186
  %v2163 = vpack.c.b16 %v1195, %v1187
  %v2164 = vpack.c.b16 %v1196, %v1188
  %v2165 = vpack.c.b16 %v1197, %v1189
  %v2166 = vpack.c.b16 %v1198, %v1190
  %v2167 = vpack.c.b16 %v1199, %v1191
  %v2168 = vpack.c.b16 %v1200, %v1192
  %v2169 = vpack.c.b16 %v1209, %v1201
  %v2170 = vpack.c.b16 %v1210, %v1202
  %v2171 = vpack.c.b16 %v1211, %v1203
  %v2172 = vpack.c.b16 %v1212, %v1204
  %v2173 = vpack.c.b16 %v1213, %v1205
  %v2174 = vpack.c.b16 %v1214, %v1206
  %v2175 = vpack.c.b16 %v1215, %v1207
  %v2176 = vpack.c.b16 %v1216, %v1208
  %v2177 = vpack.c.b16 %v1225, %v1217
  %v2178 = vpack.c.b16 %v1226, %v1218
  %v2179 = vpack.c.b16 %v1227, %v1219
  %v2180 = vpack.c.b16 %v1228, %v1220
  %v2181 = vpack.c.b16 %v1229, %v1221
  %v2182 = vpack.c.b16 %v1230, %v1222
  %v2183 = vpack.c.b16 %v1231, %v1223
  %v2184 = vpack.c.b16 %v1232, %v1224
  %v2185 = vpack.c.b16 %v1241, %v1233
  %v2186 = vpack.c.b16 %v1242, %v1234
  %v2187 = vpack.c.b16 %v1243, %v1235
  %v2188 = vpack.c.b16 %v1244, %v1236
  %v2189 = vpack.c.b16 %v1245, %v1237
  %v2190 = vpack.c.b16 %v1246, %v1238
  %v2191 = vpack.c.b16 %v1247, %v1239
  %v2192 = vpack.c.b16 %v1248, %v1240
  %v2193 = vpack.c.b16 %v1257, %v1249
  %v2194 = vpack.c.b16 %v1258, %v1250
  %v2195 = vpack.c.b16 %v1259, %v1251
  %v2196 = vpack.c.b16 %v1260, %v1252
  %v2197 = vpack.c.b16 %v1261, %v1253
  %v2198 = vpack.c.b16 %v1262, %v1254
  %v2199 = vpack.c.b16 %v1263, %v1255
  %v2200 = vpack.c.b16 %v1264, %v1256
  %v2201 = vpack.c.b16 %v1273, %v1265
  %v2202 = vpack.c.b16 %v1274, %v1266
  %v2203 = vpack.c.b16 %v1275, %v1267
  %v2204 = vpack.c.b16 %v1276, %v1268
  %v2205 = vpack.c.b16 %v1277, %v1269
  %v2206 = vpack.c.b16 %v1278, %v1270
  %v2207 = vpack.c.b16 %v1279, %v1271
  %v2208 = vpack.c.b16 %v1280, %v1272
  %v2209 = vpack.c.b16 %v1289, %v1281
  %v2210 = vpack.c.b16 %v1290, %v1282
  %v2211 = vpack.c.b16 %v1291, %v1283
  %v2212 = vpack.c.b16 %v1292, %v1284
  %v2213 = vpack.c.b16 %v1293, %v1285
  %v2214 = vpack.c.b16 %v1294, %v1286
  %v2215 = vpack.c.b16 %v1295, %v1287
  %v2216 = vpack.c.b16 %v1296, %v1288
  %v2217 = vpack.c.b16 %v1305, %v1297
  %v2218 = vpack.c.b16 %v1306, %v1298
  %v2219 = vpack.c.b16 %v1307, %v1299
  %v2220 = vpack.c.b16 %v1308, %v1300
  %v2221 = vpack.c.b16 %v1309, %v1301
  %v2222 = vpack.c.b16 %v1310, %v1302
  %v2223 = vpack.c.b16 %v1311, %v1303
  %v2224 = vpack.c.b16 %v1312, %v1304
  %v2225 = vpack.c.b16 %v1321, %v1313
  %v2226 = vpack.c.b16 %v1322, %v1314
  %v2227 = vpack.c.b16 %v1323, %v1315
  %v2228 = vpack.c.b16 %v1324, %v1316
  %v2229 = vpack.c.b16 %v1325, %v1317
  %v2230 = vpack.c.b16 %v1326, %v1318
  %v2231 = vpack.c.b16 %v1327, %v1319
  %v2232 = vpack.c.b16 %v1328, %v1320
  %v2233 = vpack.c.b16 %v1337, %v1329
  %v2234 = vpack.c.b16 %v1338, %v1330
  %v2235 = vpack.c.b16 %v1339, %v1331
  %v2236 = vpack.c.b16 %v1340, %v1332
  %v2237 = vpack.c.b16 %v1341, %v1333
  %v2238 = vpack.c.b16 %v1342, %v1334
  %v2239 = vpack.c.b16 %v1343, %v1335
  %v2240 = vpack.c.b16 %v1344, %v1336
  %v2241 = vpack.c.b16 %v1353, %v1345
  %v2242 = vpack.c.b16 %v1354, %v1346
  %v2243 = vpack.c.b16 %v1355, %v1347
  %v2244 = vpack.c.b16 %v1356, %v1348
  %v2245 = vpack.c.b16 %v1357, %v1349
  %v2246 = vpack.c.b16 %v1358, %v1350
  %v2247 = vpack.c.b16 %v1359, %v1351
  %v2248 = vpack.c.b16 %v1360, %v1352
  %v2249 = vpack.c.b16 %v1369, %v1361
  %v2250 = vpack.c.b16 %v1370, %v1362
  %v2251 = vpack.c.b16 %v1371, %v1363
  %v2252 = vpack.c.b16 %v1372, %v1364
  %v2253 = vpack.c.b16 %v1373, %v1365
  %v2254 = vpack.c.b16 %v1374, %v1366
  %v2255 = vpack.c.b16 %v1375, %v1367
  %v2256 = vpack.c.b16 %v1376, %v1368
  %v2257 = vpack.c.b16 %v1385, %v1377
  %v2258 = vpack.c.b16 %v1386, %v1378
  %v2259 = vpack.c.b16 %v1387, %v1379
  %v2260 = vpack.c.b16 %v1388, %v1380
  %v2261 = vpack.c.b16 %v1389, %v1381
  %v2262 = vpack.c.b16 %v1390, %v1382
  %v2263 = vpack.c.b16 %v1391, %v1383
  %v2264 = vpack.c.b16 %v1392, %v1384
  %v2265 = vpack.c.b16 %v1401, %v1393
  %v2266 = vpack.c.b16 %v1402, %v1394
  %v2267 = vpack.c.b16 %v1403, %v1395
  %v2268 = vpack.c.b16 %v1404, %v1396
  %v2269 = vpack.c.b16 %v1405, %v1397
  %v2270 = vpack.c.b16 %v1406, %v1398
  %v2271 = vpack.c.b16 %v1407, %v1399
  %v2272 = vpack.c.b16 %v1408, %v1400
  %v2273 = vpack.c.b16 %v1417, %v1409
  %v2274 = vpack.c.b16 %v1418, %v1410
  %v2275 = vpack.c.b16 %v1419, %v1411
  %v2276 = vpack.c.b16 %v1420, %v1412
  %v2277 = vpack.c.b16 %v1421, %v1413
  %v2278 = vpack.c.b16 %v1422, %v1414
  %v2279 = vpack.c.b16 %v1423, %v1415
  %v2280 = vpack.c.b16 %v1424, %v1416
  %v2281 = vpack.c.b16 %v1433, %v1425
  %v2282 = vpack.c.b16 %v1434, %v1426
  %v2283 = vpack.c.b16 %v1435, %v1427
  %v2284 = vpack.c.b16 %v1436, %v1428
  %v2285 = vpack.c.b16 %v1437, %v1429
  %v2286 = vpack.c.b16 %v1438, %v1430
  %v2287 = vpack.c.b16 %v1439, %v1431
  %v2288 = vpack.c.b16 %v1440, %v1432
  %v2289 = vpack.c.b16 %v1449, %v1441
  %v2290 = vpack.c.b16 %v1450, %v1442
  %v2291 = vpack.c.b16 %v1451, %v1443
  %v2292 = vpack.c.b16 %v1452, %v1444
  %v2293 = vpack.c.b16 %v1453, %v1445
  %v2294 = vpack.c.b16 %v1454, %v1446
  %v2295 = vpack.c.b16 %v1455, %v1447
  %v2296 = vpack.c.b16 %v1456, %v1448
  %v2297 = vpack.c.b16 %v1465, %v1457
  %v2298 = vpack.c.b16 %v1466, %v1458
  %v2299 = vpack.c.b16 %v1467, %v1459
  %v2300 = vpack.c.b16 %v1468, %v1460
  %v2301 = vpack.c.b16 %v1469, %v1461
  %v2302 = vpack.c.b16 %v1470, %v1462
  %v2303 = vpack.c.b16 %v1471, %v1463
  %v2304 = vpack.c.b16 %v1472, %v1464
  %v2305 = vpack.c.b16 %v1481, %v1473
  %v2306 = vpack.c.b16 %v1482, %v1474
  %v2307 = vpack.c.b16 %v1483, %v1475
  %v2308 = vpack.c.b16 %v1484, %v1476
  %v2309 = vpack.c.b16 %v1485, %v1477
  %v2310 = vpack.c.b16 %v1486, %v1478
  %v2311 = vpack.c.b16 %v1487, %v1479
  %v2312 = vpack.c.b16 %v1488, %v1480
  %v2313 = vpack.c.b16 %v1497, %v1489
  %v2314 = vpack.c.b16 %v1498, %v1490
  %v2315 = vpack.c.b16 %v1499, %v1491
  %v2316 = vpack.c.b16 %v1500, %v1492
  %v2317 = vpack.c.b16 %v1501, %v1493
  %v2318 = vpack.c.b16 %v1502, %v1494
  %v2319 = vpack.c.b16 %v1503, %v1495
  %v2320 = vpack.c.b16 %v1504, %v1496
  %v2321 = vpack.c.b16 %v1513, %v1505
  %v2322 = vpack.c.b16 %v1514, %v1506
  %v2323 = vpack.c.b16 %v1515, %v1507
  %v2324 = vpack.c.b16 %v1516, %v1508
  %v2325 = vpack.c.b16 %v1517, %v1509
  %v2326 = vpack.c.b16 %v1518, %v1510
  %v2327 = vpack.c.b16 %v1519, %v1511
  %v2328 = vpack.c.b16 %v1520, %v1512
  %v2329 = vpack.c.b16 %v1529, %v1521
  %v2330 = vpack.c.b16 %v1530, %v1522
  %v2331 = vpack.c.b16 %v1531, %v1523
  %v2332 = vpack.c.b16 %v1532, %v1524
  %v2333 = vpack.c.b16 %v1533, %v1525
  %v2334 = vpack.c.b16 %v1534, %v1526
  %v2335 = vpack.c.b16 %v1535, %v1527
  %v2336 = vpack.c.b16 %v1536, %v1528
  %v2337 = vpack.c.b16 %v1545, %v1537
  %v2338 = vpack.c.b16 %v1546, %v1538
  %v2339 = vpack.c.b16 %v1547, %v1539
  %v2340 = vpack.c.b16 %v1548, %v1540
  %v2341 = vpack.c.b16 %v1549, %v1541
  %v2342 = vpack.c.b16 %v1550, %v1542
  %v2343 = vpack.c.b16 %v1551, %v1543
  %v2344 = vpack.c.b16 %v1552, %v1544
  %v2345 = vpack.c.b16 %v1561, %v1553
  %v2346 = vpack.c.b16 %v1562, %v1554
  %v2347 = vpack.c.b16 %v1563, %v1555
  %v2348 = vpack.c.b16 %v1564, %v1556
  %v2349 = vpack.c.b16 %v1565, %v1557
  %v2350 = vpack.c.b16 %v1566, %v1558
  %v2351 = vpack.c.b16 %v1567, %v1559
  %v2352 = vpack.c.b16 %v1568, %v1560
  %v2353 = vpack.c.b16 %v1577, %v1569
  %v2354 = vpack.c.b16 %v1578, %v1570
  %v2355 = vpack.c.b16 %v1579, %v1571
  %v2356 = vpack.c.b16 %v1580, %v1572
  %v2357 = vpack.c.b16 %v1581, %v1573
  %v2358 = vpack.c.b16 %v1582, %v1574
  %v2359 = vpack.c.b16 %v1583, %v1575
  %v2360 = vpack.c.b16 %v1584, %v1576
  %v2361 = vpack.c.b16 %v1593, %v1585
  %v2362 = vpack.c.b16 %v1594, %v1586
  %v2363 = vpack.c.b16 %v1595, %v1587
  %v2364 = vpack.c.b16 %v1596, %v1588
  %v2365 = vpack.c.b16 %v1597, %v1589
  %v2366 = vpack.c.b16 %v1598, %v1590
  %v2367 = vpack.c.b16 %v1599, %v1591
  %v2368 = vpack.c.b16 %v1600, %v1592
  %v2369 = vpack.c.b16 %v1609, %v1601
  %v2370 = vpack.c.b16 %v1610, %v1602
  %v2371 = vpack.c.b16 %v1611, %v1603
  %v2372 = vpack.c.b16 %v1612, %v1604
  %v2373 = vpack.c.b16 %v1613, %v1605
  %v2374 = vpack.c.b16 %v1614, %v1606
  %v2375 = vpack.c.b16 %v1615, %v1607
  %v2376 = vpack.c.b16 %v1616, %v1608
  %v2377 = vpack.c.b16 %v1625, %v1617
  %v2378 = vpack.c.b16 %v1626, %v1618
  %v2379 = vpack.c.b16 %v1627, %v1619
  %v2380 = vpack.c.b16 %v1628, %v1620
  %v2381 = vpack.c.b16 %v1629, %v1621
  %v2382 = vpack.c.b16 %v1630, %v1622
  %v2383 = vpack.c.b16 %v1631, %v1623
  %v2384 = vpack.c.b16 %v1632, %v1624
  %v2385 = vpack.c.b16 %v1641, %v1633
  %v2386 = vpack.c.b16 %v1642, %v1634
  %v2387 = vpack.c.b16 %v1643, %v1635
  %v2388 = vpack.c.b16 %v1644, %v1636
  %v2389 = vpack.c.b16 %v1645, %v1637
  %v2390 = vpack.c.b16 %v1646, %v1638
  %v2391 = vpack.c.b16 %v1647, %v1639
  %v2392 = vpack.c.b16 %v1648, %v1640
  %v2393 = vpack.c.b16 %v1657, %v1649
  %v2394 = vpack.c.b16 %v1658, %v1650
  %v2395 = vpack.c.b16 %v1659, %v1651
  %v2396 = vpack.c.b16 %v1660, %v1652
  %v2397 = vpack.c.b16 %v1661, %v1653
  %v2398 = vpack.c.b16 %v1662, %v1654
  %v2399 = vpack.c.b16 %v1663, %v1655
  %v2400 = vpack.c.b16 %v1664, %v1656
  %v2401 = vpack.c.b16 %v1673, %v1665
  %v2402 = vpack.c.b16 %v1674, %v1666
  %v2403 = vpack.c.b16 %v1675, %v1667
  %v2404 = vpack.c.b16 %v1676, %v1668
  %v2405 = vpack.c.b16 %v1677, %v1669
  %v2406 = vpack.c.b16 %v1678, %v1670
  %v2407 = vpack.c.b16 %v1679, %v1671
  %v2408 = vpack.c.b16 %v1680, %v1672
  %v2409 = vpack.c.b16 %v1689, %v1681
  %v2410 = vpack.c.b16 %v1690, %v1682
  %v2411 = vpack.c.b16 %v1691, %v1683
  %v2412 = vpack.c.b16 %v1692, %v1684
  %v2413 = vpack.c.b16 %v1693, %v1685
  %v2414 = vpack.c.b16 %v1694, %v1686
  %v2415 = vpack.c.b16 %v1695, %v1687
  %v2416 = vpack.c.b16 %v1696, %v1688
  %v2417 = vpack.c.b16 %v1705, %v1697
  %v2418 = vpack.c.b16 %v1706, %v1698
  %v2419 = vpack.c.b16 %v1707, %v1699
  %v2420 = vpack.c.b16 %v1708, %v1700
  %v2421 = vpack.c.b16 %v1709, %v1701
  %v2422 = vpack.c.b16 %v1710, %v1702
  %v2423 = vpack.c.b16 %v1711, %v1703
  %v2424 = vpack.c.b16 %v1712, %v1704
  %v2425 = vpack.c.b16 %v1721, %v1713
  %v2426 = vpack.c.b16 %v1722, %v1714
  %v2427 = vpack.c.b16 %v1723, %v1715
  %v2428 = vpack.c.b16 %v1724, %v1716
  %v2429 = vpack.c.b16 %v1725, %v1717
  %v2430 = vpack.c.b16 %v1726, %v1718
  %v2431 = vpack.c.b16 %v1727, %v1719
  %v2432 = vpack.c.b16 %v1728, %v1720
  %v2433 = vpack.c.b16 %v1737, %v1729
  %v2434 = vpack.c.b16 %v1738, %v1730
  %v2435 = vpack.c.b16 %v1739, %v1731
  %v2436 = vpack.c.b16 %v1740, %v1732
  %v2437 = vpack.c.b16 %v1741, %v1733
  %v2438 = vpack.c.b16 %v1742, %v1734
  %v2439 = vpack.c.b16 %v1743, %v1735
  %v2440 = vpack.c.b16 %v1744, %v1736
  %v2441 = vpack.c.b16 %v1753, %v1745
  %v2442 = vpack.c.b16 %v1754, %v1746
  %v2443 = vpack.c.b16 %v1755, %v1747
  %v2444 = vpack.c.b16 %v1756, %v1748
  %v2445 = vpack.c.b16 %v1757, %v1749
  %v2446 = vpack.c.b16 %v1758, %v1750
  %v2447 = vpack.c.b16 %v1759, %v1751
  %v2448 = vpack.c.b16 %v1760, %v1752
  %v2449 = vpack.c.b16 %v1769, %v1761
  %v2450 = vpack.c.b16 %v1770, %v1762
  %v2451 = vpack.c.b16 %v1771, %v1763
  %v2452 = vpack.c.b16 %v1772, %v1764
  %v2453 = vpack.c.b16 %v1773, %v1765
  %v2454 = vpack.c.b16 %v1774, %v1766
  %v2455 = vpack.c.b16 %v1775, %v1767
  %v2456 = vpack.c.b16 %v1776, %v1768
  %v2457 = vpack.c.b16 %v1785, %v1777
  %v2458 = vpack.c.b16 %v1786, %v1778
  %v2459 = vpack.c.b16 %v1787, %v1779
  %v2460 = vpack.c.b16 %v1788, %v1780
  %v2461 = vpack.c.b16 %v1789, %v1781
  %v2462 = vpack.c.b16 %v1790, %v1782
  %v2463 = vpack.c.b16 %v1791, %v1783
  %v2464 = vpack.c.b16 %v1792, %v1784
  %v2465 = vpack.c.b16 %v1801, %v1793
  %v2466 = vpack.c.b16 %v1802, %v1794
  %v2467 = vpack.c.b16 %v1803, %v1795
  %v2468 = vpack.c.b16 %v1804, %v1796
  %v2469 = vpack.c.b16 %v1805, %v1797
  %v2470 = vpack.c.b16 %v1806, %v1798
  %v2471 = vpack.c.b16 %v1807, %v1799
  %v2472 = vpack.c.b16 %v1808, %v1800
  %v2473 = vpack.c.b16 %v1817, %v1809
  %v2474 = vpack.c.b16 %v1818, %v1810
  %v2475 = vpack.c.b16 %v1819, %v1811
  %v2476 = vpack.c.b16 %v1820, %v1812
  %v2477 = vpack.c.b16 %v1821, %v1813
  %v2478 = vpack.c.b16 %v1822, %v1814
  %v2479 = vpack.c.b16 %v1823, %v1815
  %v2480 = vpack.c.b16 %v1824, %v1816
  %v2481 = vpack.c.b16 %v1833, %v1825
  %v2482 = vpack.c.b16 %v1834, %v1826
  %v2483 = vpack.c.b16 %v1835, %v1827
  %v2484 = vpack.c.b16 %v1836, %v1828
  %v2485 = vpack.c.b16 %v1837, %v1829
  %v2486 = vpack.c.b16 %v1838, %v1830
  %v2487 = vpack.c.b16 %v1839, %v1831
  %v2488 = vpack.c.b16 %v1840, %v1832
  %v2489 = vpack.c.b16 %v1849, %v1841
  %v2490 = vpack.c.b16 %v1850, %v1842
  %v2491 = vpack.c.b16 %v1851, %v1843
  %v2492 = vpack.c.b16 %v1852, %v1844
  %v2493 = vpack.c.b16 %v1853, %v1845
  %v2494 = vpack.c.b16 %v1854, %v1846
  %v2495 = vpack.c.b16 %v1855, %v1847
  %v2496 = vpack.c.b16 %v1856, %v1848
  %v2497 = vpack.c.b16 %v1865, %v1857
  %v2498 = vpack.c.b16 %v1866, %v1858
  %v2499 = vpack.c.b16 %v1867, %v1859
  %v2500 = vpack.c.b16 %v1868, %v1860
  %v2501 = vpack.c.b16 %v1869, %v1861
  %v2502 = vpack.c.b16 %v1870, %v1862
  %v2503 = vpack.c.b16 %v1871, %v1863
  %v2504 = vpack.c.b16 %v1872, %v1864
  %v2505 = vpack.c.b16 %v1881, %v1873
  %v2506 = vpack.c.b16 %v1882, %v1874
  %v2507 = vpack.c.b16 %v1883, %v1875
  %v2508 = vpack.c.b16 %v1884, %v1876
  %v2509 = vpack.c.b16 %v1885, %v1877
  %v2510 = vpack.c.b16 %v1886, %v1878
  %v2511 = vpack.c.b16 %v1887, %v1879
  %v2512 = vpack.c.b16 %v1888, %v1880
  %v2513 = vpack.c.b16 %v1897, %v1889
  %v2514 = vpack.c.b16 %v1898, %v1890
  %v2515 = vpack.c.b16 %v1899, %v1891
  %v2516 = vpack.c.b16 %v1900, %v1892
  %v2517 = vpack.c.b16 %v1901, %v1893
  %v2518 = vpack.c.b16 %v1902, %v1894
  %v2519 = vpack.c.b16 %v1903, %v1895
  %v2520 = vpack.c.b16 %v1904, %v1896
  %v2521 = vpack.c.b16 %v1913, %v1905
  %v2522 = vpack.c.b16 %v1914, %v1906
  %v2523 = vpack.c.b16 %v1915, %v1907
  %v2524 = vpack.c.b16 %v1916, %v1908
  %v2525 = vpack.c.b16 %v1917, %v1909
  %v2526 = vpack.c.b16 %v1918, %v1910
  %v2527 = vpack.c.b16 %v1919, %v1911
  %v2528 = vpack.c.b16 %v1920, %v1912
  %v2529 = vpack.c.b16 %v1929, %v1921
  %v2530 = vpack.c.b16 %v1930, %v1922
  %v2531 = vpack.c.b16 %v1931, %v1923
  %v2532 = vpack.c.b16 %v1932, %v1924
  %v2533 = vpack.c.b16 %v1933, %v1925
  %v2534 = vpack.c.b16 %v1934, %v1926
  %v2535 = vpack.c.b16 %v1935, %v1927
  %v2536 = vpack.c.b16 %v1936, %v1928
  %v2537 = vpack.c.b16 %v1945, %v1937
  %v2538 = vpack.c.b16 %v1946, %v1938
  %v2539 = vpack.c.b16 %v1947, %v1939
  %v2540 = vpack.c.b16 %v1948, %v1940
  %v2541 = vpack.c.b16 %v1949, %v1941
  %v2542 = vpack.c.b16 %v1950, %v1942
  %v2543 = vpack.c.b16 %v1951, %v1943
  %v2544 = vpack.c.b16 %v1952, %v1944
  %v2545 = vpack.c.b16 %v1961, %v1953
  %v2546 = vpack.c.b16 %v1962, %v1954
  %v2547 = vpack.c.b16 %v1963, %v1955
  %v2548 = vpack.c.b16 %v1964, %v1956
  %v2549 = vpack.c.b16 %v1965, %v1957
  %v2550 = vpack.c.b16 %v1966, %v1958
  %v2551 = vpack.c.b16 %v1967, %v1959
  %v2552 = vpack.c.b16 %v1968, %v1960
  %v2553 = vpack.c.b16 %v1977, %v1969
  %v2554 = vpack.c.b16 %v1978, %v1970
  %v2555 = vpack.c.b16 %v1979, %v1971
  %v2556 = vpack.c.b16 %v1980, %v1972
  %v2557 = vpack.c.b16 %v1981, %v1973
  %v2558 = vpack.c.b16 %v1982, %v1974
  %v2559 = vpack.c.b16 %v1983, %v1975
  %v2560 = vpack.c.b16 %v1984, %v1976
  %v2561 = vpack.c.b16 %v1993, %v1985
  %v2562 = vpack.c.b16 %v1994, %v1986
  %v2563 = vpack.c.b16 %v1995, %v1987
  %v2564 = vpack.c.b16 %v1996, %v1988
  %v2565 = vpack.c.b16 %v1997, %v1989
  %v2566 = vpack.c.b16 %v1998, %v1990
  %v2567 = vpack.c.b16 %v1999, %v1991
  %v2568 = vpack.c.b16 %v2000, %v1992
  %v2569 = vpack.c.b16 %v2009, %v2001
  %v2570 = vpack.c.b16 %v2010, %v2002
  %v2571 = vpack.c.b16 %v2011, %v2003
  %v2572 = vpack.c.b16 %v2012, %v2004
  %v2573 = vpack.c.b16 %v2013, %v2005
  %v2574 = vpack.c.b16 %v2014, %v2006
  %v2575 = vpack.c.b16 %v2015, %v2007
  %v2576 = vpack.c.b16 %v2016, %v2008
  %v2577 = vpack.c.b16 %v2025, %v2017
  %v2578 = vpack.c.b16 %v2026, %v2018
  %v2579 = vpack.c.b16 %v2027, %v2019
  %v2580 = vpack.c.b16 %v2028, %v2020
  %v2581 = vpack.c.b16 %v2029, %v2021
  %v2582 = vpack.c.b16 %v2030, %v2022
  %v2583 = vpack.c.b16 %v2031, %v2023
  %v2584 = vpack.c.b16 %v2032, %v2024
  %v2585 = vpack.c.b16 %v2041, %v2033
  %v2586 = vpack.c.b16 %v2042, %v2034
  %v2587 = vpack.c.b16 %v2043, %v2035
  %v2588 = vpack.c.b16 %v2044, %v2036
  %v2589 = vpack.c.b16 %v2045, %v2037
  %v2590 = vpack.c.b16 %v2046, %v2038
  %v2591 = vpack.c.b16 %v2047, %v2039
  %v2592 = vpack.c.b16 %v2048, %v2040
  %v2593 = vpack.c.b16 %v2057, %v2049
  %v2594 = vpack.c.b16 %v2058, %v2050
  %v2595 = vpack.c.b16 %v2059, %v2051
  %v2596 = vpack.c.b16 %v2060, %v2052
  %v2597 = vpack.c.b16 %v2061, %v2053
  %v2598 = vpack.c.b16 %v2062, %v2054
  %v2599 = vpack.c.b16 %v2063, %v2055
  %v2600 = vpack.c.b16 %v2064, %v2056
  %v2601 = vpack.c.b16 %v2073, %v2065
  %v2602 = vpack.c.b16 %v2074, %v2066
  %v2603 = vpack.c.b16 %v2075, %v2067
  %v2604 = vpack.c.b16 %v2076, %v2068
  %v2605 = vpack.c.b16 %v2077, %v2069
  %v2606 = vpack.c.b16 %v2078, %v2070
  %v2607 = vpack.c.b16 %v2079, %v2071
  %v2608 = vpack.c.b16 %v2080, %v2072
  %v2609 = vpack.c.b16 %v2089, %v2081
  %v2610 = vpack.c.b16 %v2090, %v2082
  %v2611 = vpack.c.b16 %v2091, %v2083
  %v2612 = vpack.c.b16 %v2092, %v2084
  %v2613 = vpack.c.b16 %v2093, %v2085
  %v2614 = vpack.c.b16 %v2094, %v2086
  %v2615 = vpack.c.b16 %v2095, %v2087
  %v2616 = vpack.c.b16 %v2096, %v2088
  %v2617 = vpack.c.b16 %v2105, %v2097
  %v2618 = vpack.c.b16 %v2106, %v2098
  %v2619 = vpack.c.b16 %v2107, %v2099
  %v2620 = vpack.c.b16 %v2108, %v2100
  %v2621 = vpack.c.b16 %v2109, %v2101
  %v2622 = vpack.c.b16 %v2110, %v2102
  %v2623 = vpack.c.b16 %v2111, %v2103
  %v2624 = vpack.c.b16 %v2112, %v2104
  %3137 = vmatprep.subr.bf16.mxu0 %v2170
  %3138 = vmatpush1.bf16.msra.mxu0 %v2169
  %3139 = vmatprep.subr.bf16.mxu0 %v2162
  %3140 = vmatpush1.bf16.msra.mxu0 %v2161
  %3141 = vmatprep.subr.bf16.mxu0 %v2154
  %3142 = vmatpush1.bf16.msra.mxu0 %v2153
  %3143 = vmatprep.subr.bf16.mxu0 %v2146
  %3144 = vmatpush1.bf16.msra.mxu0 %v2145
  %3145 = vmatprep.subr.bf16.mxu0 %v2138
  %3146 = vmatpush1.bf16.msra.mxu0 %v2137
  %3147 = vmatprep.subr.bf16.mxu0 %v2130
  %3148 = vmatpush1.bf16.msra.mxu0 %v2129
  %3149 = vmatprep.subr.bf16.mxu0 %v2122
  %3150 = vmatpush1.bf16.msra.mxu0 %v2121
  %3151 = vmatprep.subr.bf16.mxu0 %v2114
  %3152 = vmatpush1.bf16.msra.mxu0 %v2113
  %3153 = vmatprep.subr.bf16.mxu0 %v2234
  %3154 = vmatpush2.bf16.msra.mxu0 %v2233
  %3155 = vmatprep.subr.bf16.mxu0 %v2226
  %3156 = vmatpush2.bf16.msra.mxu0 %v2225
  %3157 = vmatprep.subr.bf16.mxu0 %v2218
  %3158 = vmatpush2.bf16.msra.mxu0 %v2217
  %3159 = vmatprep.subr.bf16.mxu0 %v2210
  %3160 = vmatpush2.bf16.msra.mxu0 %v2209
  %3161 = vmatprep.subr.bf16.mxu0 %v2202
  %3162 = vmatpush2.bf16.msra.mxu0 %v2201
  %3163 = vmatprep.subr.bf16.mxu0 %v2194
  %3164 = vmatpush2.bf16.msra.mxu0 %v2193
  %3165 = vmatprep.subr.bf16.mxu0 %v2186
  %3166 = vmatpush2.bf16.msra.mxu0 %v2185
  %3167 = vmatprep.subr.bf16.mxu0 %v2178
  %3168 = vmatpush2.bf16.msra.mxu0 %v2177
  %3169 = vmatprep.mubr.bf16.mxu0 %v562
  %3170 = vmatmul.mubr.bf16.gmra.mxu0 %v561
  %v3171 = vpop.f32.mrf.mxu0
  %v3172 = vadd.f32 0.0, %v3171
  %v3173 = vpop.f32.mrf.mxu0
  %v3174 = vadd.f32 0.0, %v3173
  %v3175 = vpop.f32.mrf.mxu0
  %v3176 = vadd.f32 0.0, %v3175
  %v3177 = vpop.f32.mrf.mxu0
  %v3178 = vadd.f32 0.0, %v3177
  %3179 = vdwg.mxu0
  %3180 = vmatprep.subr.bf16.mxu0 %v2298
  %3181 = vmatpush1.bf16.msra.mxu0 %v2297
  %3182 = vmatprep.subr.bf16.mxu0 %v2290
  %3183 = vmatpush1.bf16.msra.mxu0 %v2289
  %3184 = vmatprep.subr.bf16.mxu0 %v2282
  %3185 = vmatpush1.bf16.msra.mxu0 %v2281
  %3186 = vmatprep.subr.bf16.mxu0 %v2274
  %3187 = vmatpush1.bf16.msra.mxu0 %v2273
  %3188 = vmatprep.subr.bf16.mxu0 %v2266
  %3189 = vmatpush1.bf16.msra.mxu0 %v2265
  %3190 = vmatprep.subr.bf16.mxu0 %v2258
  %3191 = vmatpush1.bf16.msra.mxu0 %v2257
  %3192 = vmatprep.subr.bf16.mxu0 %v2250
  %3193 = vmatpush1.bf16.msra.mxu0 %v2249
  %3194 = vmatprep.subr.bf16.mxu0 %v2242
  %3195 = vmatpush1.bf16.msra.mxu0 %v2241
  %3196 = vmatprep.subr.bf16.mxu0 %v2362
  %3197 = vmatpush2.bf16.msra.mxu0 %v2361
  %3198 = vmatprep.subr.bf16.mxu0 %v2354
  %3199 = vmatpush2.bf16.msra.mxu0 %v2353
  %3200 = vmatprep.subr.bf16.mxu0 %v2346
  %3201 = vmatpush2.bf16.msra.mxu0 %v2345
  %3202 = vmatprep.subr.bf16.mxu0 %v2338
  %3203 = vmatpush2.bf16.msra.mxu0 %v2337
  %3204 = vmatprep.subr.bf16.mxu0 %v2330
  %3205 = vmatpush2.bf16.msra.mxu0 %v2329
  %3206 = vmatprep.subr.bf16.mxu0 %v2322
  %3207 = vmatpush2.bf16.msra.mxu0 %v2321
  %3208 = vmatprep.subr.bf16.mxu0 %v2314
  %3209 = vmatpush2.bf16.msra.mxu0 %v2313
  %3210 = vmatprep.subr.bf16.mxu0 %v2306
  %3211 = vmatpush2.bf16.msra.mxu0 %v2305
  %3212 = vmatprep.mubr.bf16.mxu0 %v564
  %3213 = vmatmul.mubr.bf16.gmra.mxu0 %v563
  %v3214 = vpop.f32.mrf.mxu0
  %v3215 = vadd.f32 %v3172, %v3214
  %v3216 = vpop.f32.mrf.mxu0
  %v3217 = vadd.f32 %v3174, %v3216
  %v3218 = vpop.f32.mrf.mxu0
  %v3219 = vadd.f32 %v3176, %v3218
  %v3220 = vpop.f32.mrf.mxu0
  %v3221 = vadd.f32 %v3178, %v3220
  %3222 = vdwg.mxu0
  %3223 = vmatprep.subr.bf16.mxu0 %v2426
  %3224 = vmatpush1.bf16.msra.mxu0 %v2425
  %3225 = vmatprep.subr.bf16.mxu0 %v2418
  %3226 = vmatpush1.bf16.msra.mxu0 %v2417
  %3227 = vmatprep.subr.bf16.mxu0 %v2410
  %3228 = vmatpush1.bf16.msra.mxu0 %v2409
  %3229 = vmatprep.subr.bf16.mxu0 %v2402
  %3230 = vmatpush1.bf16.msra.mxu0 %v2401
  %3231 = vmatprep.subr.bf16.mxu0 %v2394
  %3232 = vmatpush1.bf16.msra.mxu0 %v2393
  %3233 = vmatprep.subr.bf16.mxu0 %v2386
  %3234 = vmatpush1.bf16.msra.mxu0 %v2385
  %3235 = vmatprep.subr.bf16.mxu0 %v2378
  %3236 = vmatpush1.bf16.msra.mxu0 %v2377
  %3237 = vmatprep.subr.bf16.mxu0 %v2370
  %3238 = vmatpush1.bf16.msra.mxu0 %v2369
  %3239 = vmatprep.subr.bf16.mxu0 %v2490
  %3240 = vmatpush2.bf16.msra.mxu0 %v2489
  %3241 = vmatprep.subr.bf16.mxu0 %v2482
  %3242 = vmatpush2.bf16.msra.mxu0 %v2481
  %3243 = vmatprep.subr.bf16.mxu0 %v2474
  %3244 = vmatpush2.bf16.msra.mxu0 %v2473
  %3245 = vmatprep.subr.bf16.mxu0 %v2466
  %3246 = vmatpush2.bf16.msra.mxu0 %v2465
  %3247 = vmatprep.subr.bf16.mxu0 %v2458
  %3248 = vmatpush2.bf16.msra.mxu0 %v2457
  %3249 = vmatprep.subr.bf16.mxu0 %v2450
  %3250 = vmatpush2.bf16.msra.mxu0 %v2449
  %3251 = vmatprep.subr.bf16.mxu0 %v2442
  %3252 = vmatpush2.bf16.msra.mxu0 %v2441
  %3253 = vmatprep.subr.bf16.mxu0 %v2434
  %3254 = vmatpush2.bf16.msra.mxu0 %v2433
  %3255 = vmatprep.mubr.bf16.mxu0 %v566
  %3256 = vmatmul.mubr.bf16.gmra.mxu0 %v565
  %v3257 = vpop.f32.mrf.mxu0
  %v3258 = vadd.f32 %v3215, %v3257
  %v3259 = vpop.f32.mrf.mxu0
  %v3260 = vadd.f32 %v3217, %v3259
  %v3261 = vpop.f32.mrf.mxu0
  %v3262 = vadd.f32 %v3219, %v3261
  %v3263 = vpop.f32.mrf.mxu0
  %v3264 = vadd.f32 %v3221, %v3263
  %3265 = vdwg.mxu0
  %3266 = vmatprep.subr.bf16.mxu0 %v2554
  %3267 = vmatpush1.bf16.msra.mxu0 %v2553
  %3268 = vmatprep.subr.bf16.mxu0 %v2546
  %3269 = vmatpush1.bf16.msra.mxu0 %v2545
  %3270 = vmatprep.subr.bf16.mxu0 %v2538
  %3271 = vmatpush1.bf16.msra.mxu0 %v2537
  %3272 = vmatprep.subr.bf16.mxu0 %v2530
  %3273 = vmatpush1.bf16.msra.mxu0 %v2529
  %3274 = vmatprep.subr.bf16.mxu0 %v2522
  %3275 = vmatpush1.bf16.msra.mxu0 %v2521
  %3276 = vmatprep.subr.bf16.mxu0 %v2514
  %3277 = vmatpush1.bf16.msra.mxu0 %v2513
  %3278 = vmatprep.subr.bf16.mxu0 %v2506
  %3279 = vmatpush1.bf16.msra.mxu0 %v2505
  %3280 = vmatprep.subr.bf16.mxu0 %v2498
  %3281 = vmatpush1.bf16.msra.mxu0 %v2497
  %3282 = vmatprep.subr.bf16.mxu0 %v2618
  %3283 = vmatpush2.bf16.msra.mxu0 %v2617
  %3284 = vmatprep.subr.bf16.mxu0 %v2610
  %3285 = vmatpush2.bf16.msra.mxu0 %v2609
  %3286 = vmatprep.subr.bf16.mxu0 %v2602
  %3287 = vmatpush2.bf16.msra.mxu0 %v2601
  %3288 = vmatprep.subr.bf16.mxu0 %v2594
  %3289 = vmatpush2.bf16.msra.mxu0 %v2593
  %3290 = vmatprep.subr.bf16.mxu0 %v2586
  %3291 = vmatpush2.bf16.msra.mxu0 %v2585
  %3292 = vmatprep.subr.bf16.mxu0 %v2578
  %3293 = vmatpush2.bf16.msra.mxu0 %v2577
  %3294 = vmatprep.subr.bf16.mxu0 %v2570
  %3295 = vmatpush2.bf16.msra.mxu0 %v2569
  %3296 = vmatprep.subr.bf16.mxu0 %v2562
  %3297 = vmatpush2.bf16.msra.mxu0 %v2561
  %3298 = vmatprep.mubr.bf16.mxu0 %v568
  %3299 = vmatmul.mubr.bf16.gmra.mxu0 %v567
  %v3300 = vpop.f32.mrf.mxu0
  %v3301 = vadd.f32 %v3258, %v3300
  %v3302 = vpop.f32.mrf.mxu0
  %v3303 = vadd.f32 %v3260, %v3302
  %v3304 = vpop.f32.mrf.mxu0
  %v3305 = vadd.f32 %v3262, %v3304
  %v3306 = vpop.f32.mrf.mxu0
  %v3307 = vadd.f32 %v3264, %v3306
  %3308 = vdwg.mxu0
  %3309 = vmatprep.subr.bf16.mxu0 %v2172
  %3310 = vmatpush1.bf16.msra.mxu0 %v2171
  %3311 = vmatprep.subr.bf16.mxu0 %v2164
  %3312 = vmatpush1.bf16.msra.mxu0 %v2163
  %3313 = vmatprep.subr.bf16.mxu0 %v2156
  %3314 = vmatpush1.bf16.msra.mxu0 %v2155
  %3315 = vmatprep.subr.bf16.mxu0 %v2148
  %3316 = vmatpush1.bf16.msra.mxu0 %v2147
  %3317 = vmatprep.subr.bf16.mxu0 %v2140
  %3318 = vmatpush1.bf16.msra.mxu0 %v2139
  %3319 = vmatprep.subr.bf16.mxu0 %v2132
  %3320 = vmatpush1.bf16.msra.mxu0 %v2131
  %3321 = vmatprep.subr.bf16.mxu0 %v2124
  %3322 = vmatpush1.bf16.msra.mxu0 %v2123
  %3323 = vmatprep.subr.bf16.mxu0 %v2116
  %3324 = vmatpush1.bf16.msra.mxu0 %v2115
  %3325 = vmatprep.subr.bf16.mxu0 %v2236
  %3326 = vmatpush2.bf16.msra.mxu0 %v2235
  %3327 = vmatprep.subr.bf16.mxu0 %v2228
  %3328 = vmatpush2.bf16.msra.mxu0 %v2227
  %3329 = vmatprep.subr.bf16.mxu0 %v2220
  %3330 = vmatpush2.bf16.msra.mxu0 %v2219
  %3331 = vmatprep.subr.bf16.mxu0 %v2212
  %3332 = vmatpush2.bf16.msra.mxu0 %v2211
  %3333 = vmatprep.subr.bf16.mxu0 %v2204
  %3334 = vmatpush2.bf16.msra.mxu0 %v2203
  %3335 = vmatprep.subr.bf16.mxu0 %v2196
  %3336 = vmatpush2.bf16.msra.mxu0 %v2195
  %3337 = vmatprep.subr.bf16.mxu0 %v2188
  %3338 = vmatpush2.bf16.msra.mxu0 %v2187
  %3339 = vmatprep.subr.bf16.mxu0 %v2180
  %3340 = vmatpush2.bf16.msra.mxu0 %v2179
  %3341 = vmatprep.mubr.bf16.mxu0 %v562
  %3342 = vmatmul.mubr.bf16.gmra.mxu0 %v561
  %v3343 = vpop.f32.mrf.mxu0
  %v3344 = vadd.f32 0.0, %v3343
  %v3345 = vpop.f32.mrf.mxu0
  %v3346 = vadd.f32 0.0, %v3345
  %v3347 = vpop.f32.mrf.mxu0
  %v3348 = vadd.f32 0.0, %v3347
  %v3349 = vpop.f32.mrf.mxu0
  %v3350 = vadd.f32 0.0, %v3349
  %3351 = vdwg.mxu0
  %3352 = vmatprep.subr.bf16.mxu0 %v2300
  %3353 = vmatpush1.bf16.msra.mxu0 %v2299
  %3354 = vmatprep.subr.bf16.mxu0 %v2292
  %3355 = vmatpush1.bf16.msra.mxu0 %v2291
  %3356 = vmatprep.subr.bf16.mxu0 %v2284
  %3357 = vmatpush1.bf16.msra.mxu0 %v2283
  %3358 = vmatprep.subr.bf16.mxu0 %v2276
  %3359 = vmatpush1.bf16.msra.mxu0 %v2275
  %3360 = vmatprep.subr.bf16.mxu0 %v2268
  %3361 = vmatpush1.bf16.msra.mxu0 %v2267
  %3362 = vmatprep.subr.bf16.mxu0 %v2260
  %3363 = vmatpush1.bf16.msra.mxu0 %v2259
  %3364 = vmatprep.subr.bf16.mxu0 %v2252
  %3365 = vmatpush1.bf16.msra.mxu0 %v2251
  %3366 = vmatprep.subr.bf16.mxu0 %v2244
  %3367 = vmatpush1.bf16.msra.mxu0 %v2243
  %3368 = vmatprep.subr.bf16.mxu0 %v2364
  %3369 = vmatpush2.bf16.msra.mxu0 %v2363
  %3370 = vmatprep.subr.bf16.mxu0 %v2356
  %3371 = vmatpush2.bf16.msra.mxu0 %v2355
  %3372 = vmatprep.subr.bf16.mxu0 %v2348
  %3373 = vmatpush2.bf16.msra.mxu0 %v2347
  %3374 = vmatprep.subr.bf16.mxu0 %v2340
  %3375 = vmatpush2.bf16.msra.mxu0 %v2339
  %3376 = vmatprep.subr.bf16.mxu0 %v2332
  %3377 = vmatpush2.bf16.msra.mxu0 %v2331
  %3378 = vmatprep.subr.bf16.mxu0 %v2324
  %3379 = vmatpush2.bf16.msra.mxu0 %v2323
  %3380 = vmatprep.subr.bf16.mxu0 %v2316
  %3381 = vmatpush2.bf16.msra.mxu0 %v2315
  %3382 = vmatprep.subr.bf16.mxu0 %v2308
  %3383 = vmatpush2.bf16.msra.mxu0 %v2307
  %3384 = vmatprep.mubr.bf16.mxu0 %v564
  %3385 = vmatmul.mubr.bf16.gmra.mxu0 %v563
  %v3386 = vpop.f32.mrf.mxu0
  %v3387 = vadd.f32 %v3344, %v3386
  %v3388 = vpop.f32.mrf.mxu0
  %v3389 = vadd.f32 %v3346, %v3388
  %v3390 = vpop.f32.mrf.mxu0
  %v3391 = vadd.f32 %v3348, %v3390
  %v3392 = vpop.f32.mrf.mxu0
  %v3393 = vadd.f32 %v3350, %v3392
  %3394 = vdwg.mxu0
  %3395 = vmatprep.subr.bf16.mxu0 %v2428
  %3396 = vmatpush1.bf16.msra.mxu0 %v2427
  %3397 = vmatprep.subr.bf16.mxu0 %v2420
  %3398 = vmatpush1.bf16.msra.mxu0 %v2419
  %3399 = vmatprep.subr.bf16.mxu0 %v2412
  %3400 = vmatpush1.bf16.msra.mxu0 %v2411
  %3401 = vmatprep.subr.bf16.mxu0 %v2404
  %3402 = vmatpush1.bf16.msra.mxu0 %v2403
  %3403 = vmatprep.subr.bf16.mxu0 %v2396
  %3404 = vmatpush1.bf16.msra.mxu0 %v2395
  %3405 = vmatprep.subr.bf16.mxu0 %v2388
  %3406 = vmatpush1.bf16.msra.mxu0 %v2387
  %3407 = vmatprep.subr.bf16.mxu0 %v2380
  %3408 = vmatpush1.bf16.msra.mxu0 %v2379
  %3409 = vmatprep.subr.bf16.mxu0 %v2372
  %3410 = vmatpush1.bf16.msra.mxu0 %v2371
  %3411 = vmatprep.subr.bf16.mxu0 %v2492
  %3412 = vmatpush2.bf16.msra.mxu0 %v2491
  %3413 = vmatprep.subr.bf16.mxu0 %v2484
  %3414 = vmatpush2.bf16.msra.mxu0 %v2483
  %3415 = vmatprep.subr.bf16.mxu0 %v2476
  %3416 = vmatpush2.bf16.msra.mxu0 %v2475
  %3417 = vmatprep.subr.bf16.mxu0 %v2468
  %3418 = vmatpush2.bf16.msra.mxu0 %v2467
  %3419 = vmatprep.subr.bf16.mxu0 %v2460
  %3420 = vmatpush2.bf16.msra.mxu0 %v2459
  %3421 = vmatprep.subr.bf16.mxu0 %v2452
  %3422 = vmatpush2.bf16.msra.mxu0 %v2451
  %3423 = vmatprep.subr.bf16.mxu0 %v2444
  %3424 = vmatpush2.bf16.msra.mxu0 %v2443
  %3425 = vmatprep.subr.bf16.mxu0 %v2436
  %3426 = vmatpush2.bf16.msra.mxu0 %v2435
  %3427 = vmatprep.mubr.bf16.mxu0 %v566
  %3428 = vmatmul.mubr.bf16.gmra.mxu0 %v565
  %v3429 = vpop.f32.mrf.mxu0
  %v3430 = vadd.f32 %v3387, %v3429
  %v3431 = vpop.f32.mrf.mxu0
  %v3432 = vadd.f32 %v3389, %v3431
  %v3433 = vpop.f32.mrf.mxu0
  %v3434 = vadd.f32 %v3391, %v3433
  %v3435 = vpop.f32.mrf.mxu0
  %v3436 = vadd.f32 %v3393, %v3435
  %3437 = vdwg.mxu0
  %3438 = vmatprep.subr.bf16.mxu0 %v2556
  %3439 = vmatpush1.bf16.msra.mxu0 %v2555
  %3440 = vmatprep.subr.bf16.mxu0 %v2548
  %3441 = vmatpush1.bf16.msra.mxu0 %v2547
  %3442 = vmatprep.subr.bf16.mxu0 %v2540
  %3443 = vmatpush1.bf16.msra.mxu0 %v2539
  %3444 = vmatprep.subr.bf16.mxu0 %v2532
  %3445 = vmatpush1.bf16.msra.mxu0 %v2531
  %3446 = vmatprep.subr.bf16.mxu0 %v2524
  %3447 = vmatpush1.bf16.msra.mxu0 %v2523
  %3448 = vmatprep.subr.bf16.mxu0 %v2516
  %3449 = vmatpush1.bf16.msra.mxu0 %v2515
  %3450 = vmatprep.subr.bf16.mxu0 %v2508
  %3451 = vmatpush1.bf16.msra.mxu0 %v2507
  %3452 = vmatprep.subr.bf16.mxu0 %v2500
  %3453 = vmatpush1.bf16.msra.mxu0 %v2499
  %3454 = vmatprep.subr.bf16.mxu0 %v2620
  %3455 = vmatpush2.bf16.msra.mxu0 %v2619
  %3456 = vmatprep.subr.bf16.mxu0 %v2612
  %3457 = vmatpush2.bf16.msra.mxu0 %v2611
  %3458 = vmatprep.subr.bf16.mxu0 %v2604
  %3459 = vmatpush2.bf16.msra.mxu0 %v2603
  %3460 = vmatprep.subr.bf16.mxu0 %v2596
  %3461 = vmatpush2.bf16.msra.mxu0 %v2595
  %3462 = vmatprep.subr.bf16.mxu0 %v2588
  %3463 = vmatpush2.bf16.msra.mxu0 %v2587
  %3464 = vmatprep.subr.bf16.mxu0 %v2580
  %3465 = vmatpush2.bf16.msra.mxu0 %v2579
  %3466 = vmatprep.subr.bf16.mxu0 %v2572
  %3467 = vmatpush2.bf16.msra.mxu0 %v2571
  %3468 = vmatprep.subr.bf16.mxu0 %v2564
  %3469 = vmatpush2.bf16.msra.mxu0 %v2563
  %3470 = vmatprep.mubr.bf16.mxu0 %v568
  %3471 = vmatmul.mubr.bf16.gmra.mxu0 %v567
  %v3472 = vpop.f32.mrf.mxu0
  %v3473 = vadd.f32 %v3430, %v3472
  %v3474 = vpop.f32.mrf.mxu0
  %v3475 = vadd.f32 %v3432, %v3474
  %v3476 = vpop.f32.mrf.mxu0
  %v3477 = vadd.f32 %v3434, %v3476
  %v3478 = vpop.f32.mrf.mxu0
  %v3479 = vadd.f32 %v3436, %v3478
  %3480 = vdwg.mxu0
  %3481 = vmatprep.subr.bf16.mxu0 %v2174
  %3482 = vmatpush1.bf16.msra.mxu0 %v2173
  %3483 = vmatprep.subr.bf16.mxu0 %v2166
  %3484 = vmatpush1.bf16.msra.mxu0 %v2165
  %3485 = vmatprep.subr.bf16.mxu0 %v2158
  %3486 = vmatpush1.bf16.msra.mxu0 %v2157
  %3487 = vmatprep.subr.bf16.mxu0 %v2150
  %3488 = vmatpush1.bf16.msra.mxu0 %v2149
  %3489 = vmatprep.subr.bf16.mxu0 %v2142
  %3490 = vmatpush1.bf16.msra.mxu0 %v2141
  %3491 = vmatprep.subr.bf16.mxu0 %v2134
  %3492 = vmatpush1.bf16.msra.mxu0 %v2133
  %3493 = vmatprep.subr.bf16.mxu0 %v2126
  %3494 = vmatpush1.bf16.msra.mxu0 %v2125
  %3495 = vmatprep.subr.bf16.mxu0 %v2118
  %3496 = vmatpush1.bf16.msra.mxu0 %v2117
  %3497 = vmatprep.subr.bf16.mxu0 %v2238
  %3498 = vmatpush2.bf16.msra.mxu0 %v2237
  %3499 = vmatprep.subr.bf16.mxu0 %v2230
  %3500 = vmatpush2.bf16.msra.mxu0 %v2229
  %3501 = vmatprep.subr.bf16.mxu0 %v2222
  %3502 = vmatpush2.bf16.msra.mxu0 %v2221
  %3503 = vmatprep.subr.bf16.mxu0 %v2214
  %3504 = vmatpush2.bf16.msra.mxu0 %v2213
  %3505 = vmatprep.subr.bf16.mxu0 %v2206
  %3506 = vmatpush2.bf16.msra.mxu0 %v2205
  %3507 = vmatprep.subr.bf16.mxu0 %v2198
  %3508 = vmatpush2.bf16.msra.mxu0 %v2197
  %3509 = vmatprep.subr.bf16.mxu0 %v2190
  %3510 = vmatpush2.bf16.msra.mxu0 %v2189
  %3511 = vmatprep.subr.bf16.mxu0 %v2182
  %3512 = vmatpush2.bf16.msra.mxu0 %v2181
  %3513 = vmatprep.mubr.bf16.mxu0 %v562
  %3514 = vmatmul.mubr.bf16.gmra.mxu0 %v561
  %v3515 = vpop.f32.mrf.mxu0
  %v3516 = vadd.f32 0.0, %v3515
  %v3517 = vpop.f32.mrf.mxu0
  %v3518 = vadd.f32 0.0, %v3517
  %v3519 = vpop.f32.mrf.mxu0
  %v3520 = vadd.f32 0.0, %v3519
  %v3521 = vpop.f32.mrf.mxu0
  %v3522 = vadd.f32 0.0, %v3521
  %3523 = vdwg.mxu0
  %3524 = vmatprep.subr.bf16.mxu0 %v2302
  %3525 = vmatpush1.bf16.msra.mxu0 %v2301
  %3526 = vmatprep.subr.bf16.mxu0 %v2294
  %3527 = vmatpush1.bf16.msra.mxu0 %v2293
  %3528 = vmatprep.subr.bf16.mxu0 %v2286
  %3529 = vmatpush1.bf16.msra.mxu0 %v2285
  %3530 = vmatprep.subr.bf16.mxu0 %v2278
  %3531 = vmatpush1.bf16.msra.mxu0 %v2277
  %3532 = vmatprep.subr.bf16.mxu0 %v2270
  %3533 = vmatpush1.bf16.msra.mxu0 %v2269
  %3534 = vmatprep.subr.bf16.mxu0 %v2262
  %3535 = vmatpush1.bf16.msra.mxu0 %v2261
  %3536 = vmatprep.subr.bf16.mxu0 %v2254
  %3537 = vmatpush1.bf16.msra.mxu0 %v2253
  %3538 = vmatprep.subr.bf16.mxu0 %v2246
  %3539 = vmatpush1.bf16.msra.mxu0 %v2245
  %3540 = vmatprep.subr.bf16.mxu0 %v2366
  %3541 = vmatpush2.bf16.msra.mxu0 %v2365
  %3542 = vmatprep.subr.bf16.mxu0 %v2358
  %3543 = vmatpush2.bf16.msra.mxu0 %v2357
  %3544 = vmatprep.subr.bf16.mxu0 %v2350
  %3545 = vmatpush2.bf16.msra.mxu0 %v2349
  %3546 = vmatprep.subr.bf16.mxu0 %v2342
  %3547 = vmatpush2.bf16.msra.mxu0 %v2341
  %3548 = vmatprep.subr.bf16.mxu0 %v2334
  %3549 = vmatpush2.bf16.msra.mxu0 %v2333
  %3550 = vmatprep.subr.bf16.mxu0 %v2326
  %3551 = vmatpush2.bf16.msra.mxu0 %v2325
  %3552 = vmatprep.subr.bf16.mxu0 %v2318
  %3553 = vmatpush2.bf16.msra.mxu0 %v2317
  %3554 = vmatprep.subr.bf16.mxu0 %v2310
  %3555 = vmatpush2.bf16.msra.mxu0 %v2309
  %3556 = vmatprep.mubr.bf16.mxu0 %v564
  %3557 = vmatmul.mubr.bf16.gmra.mxu0 %v563
  %v3558 = vpop.f32.mrf.mxu0
  %v3559 = vadd.f32 %v3516, %v3558
  %v3560 = vpop.f32.mrf.mxu0
  %v3561 = vadd.f32 %v3518, %v3560
  %v3562 = vpop.f32.mrf.mxu0
  %v3563 = vadd.f32 %v3520, %v3562
  %v3564 = vpop.f32.mrf.mxu0
  %v3565 = vadd.f32 %v3522, %v3564
  %3566 = vdwg.mxu0
  %3567 = vmatprep.subr.bf16.mxu0 %v2430
  %3568 = vmatpush1.bf16.msra.mxu0 %v2429
  %3569 = vmatprep.subr.bf16.mxu0 %v2422
  %3570 = vmatpush1.bf16.msra.mxu0 %v2421
  %3571 = vmatprep.subr.bf16.mxu0 %v2414
  %3572 = vmatpush1.bf16.msra.mxu0 %v2413
  %3573 = vmatprep.subr.bf16.mxu0 %v2406
  %3574 = vmatpush1.bf16.msra.mxu0 %v2405
  %3575 = vmatprep.subr.bf16.mxu0 %v2398
  %3576 = vmatpush1.bf16.msra.mxu0 %v2397
  %3577 = vmatprep.subr.bf16.mxu0 %v2390
  %3578 = vmatpush1.bf16.msra.mxu0 %v2389
  %3579 = vmatprep.subr.bf16.mxu0 %v2382
  %3580 = vmatpush1.bf16.msra.mxu0 %v2381
  %3581 = vmatprep.subr.bf16.mxu0 %v2374
  %3582 = vmatpush1.bf16.msra.mxu0 %v2373
  %3583 = vmatprep.subr.bf16.mxu0 %v2494
  %3584 = vmatpush2.bf16.msra.mxu0 %v2493
  %3585 = vmatprep.subr.bf16.mxu0 %v2486
  %3586 = vmatpush2.bf16.msra.mxu0 %v2485
  %3587 = vmatprep.subr.bf16.mxu0 %v2478
  %3588 = vmatpush2.bf16.msra.mxu0 %v2477
  %3589 = vmatprep.subr.bf16.mxu0 %v2470
  %3590 = vmatpush2.bf16.msra.mxu0 %v2469
  %3591 = vmatprep.subr.bf16.mxu0 %v2462
  %3592 = vmatpush2.bf16.msra.mxu0 %v2461
  %3593 = vmatprep.subr.bf16.mxu0 %v2454
  %3594 = vmatpush2.bf16.msra.mxu0 %v2453
  %3595 = vmatprep.subr.bf16.mxu0 %v2446
  %3596 = vmatpush2.bf16.msra.mxu0 %v2445
  %3597 = vmatprep.subr.bf16.mxu0 %v2438
  %3598 = vmatpush2.bf16.msra.mxu0 %v2437
  %3599 = vmatprep.mubr.bf16.mxu0 %v566
  %3600 = vmatmul.mubr.bf16.gmra.mxu0 %v565
  %v3601 = vpop.f32.mrf.mxu0
  %v3602 = vadd.f32 %v3559, %v3601
  %v3603 = vpop.f32.mrf.mxu0
  %v3604 = vadd.f32 %v3561, %v3603
  %v3605 = vpop.f32.mrf.mxu0
  %v3606 = vadd.f32 %v3563, %v3605
  %v3607 = vpop.f32.mrf.mxu0
  %v3608 = vadd.f32 %v3565, %v3607
  %3609 = vdwg.mxu0
  %3610 = vmatprep.subr.bf16.mxu0 %v2558
  %3611 = vmatpush1.bf16.msra.mxu0 %v2557
  %3612 = vmatprep.subr.bf16.mxu0 %v2550
  %3613 = vmatpush1.bf16.msra.mxu0 %v2549
  %3614 = vmatprep.subr.bf16.mxu0 %v2542
  %3615 = vmatpush1.bf16.msra.mxu0 %v2541
  %3616 = vmatprep.subr.bf16.mxu0 %v2534
  %3617 = vmatpush1.bf16.msra.mxu0 %v2533
  %3618 = vmatprep.subr.bf16.mxu0 %v2526
  %3619 = vmatpush1.bf16.msra.mxu0 %v2525
  %3620 = vmatprep.subr.bf16.mxu0 %v2518
  %3621 = vmatpush1.bf16.msra.mxu0 %v2517
  %3622 = vmatprep.subr.bf16.mxu0 %v2510
  %3623 = vmatpush1.bf16.msra.mxu0 %v2509
  %3624 = vmatprep.subr.bf16.mxu0 %v2502
  %3625 = vmatpush1.bf16.msra.mxu0 %v2501
  %3626 = vmatprep.subr.bf16.mxu0 %v2622
  %3627 = vmatpush2.bf16.msra.mxu0 %v2621
  %3628 = vmatprep.subr.bf16.mxu0 %v2614
  %3629 = vmatpush2.bf16.msra.mxu0 %v2613
  %3630 = vmatprep.subr.bf16.mxu0 %v2606
  %3631 = vmatpush2.bf16.msra.mxu0 %v2605
  %3632 = vmatprep.subr.bf16.mxu0 %v2598
  %3633 = vmatpush2.bf16.msra.mxu0 %v2597
  %3634 = vmatprep.subr.bf16.mxu0 %v2590
  %3635 = vmatpush2.bf16.msra.mxu0 %v2589
  %3636 = vmatprep.subr.bf16.mxu0 %v2582
  %3637 = vmatpush2.bf16.msra.mxu0 %v2581
  %3638 = vmatprep.subr.bf16.mxu0 %v2574
  %3639 = vmatpush2.bf16.msra.mxu0 %v2573
  %3640 = vmatprep.subr.bf16.mxu0 %v2566
  %3641 = vmatpush2.bf16.msra.mxu0 %v2565
  %3642 = vmatprep.mubr.bf16.mxu0 %v568
  %3643 = vmatmul.mubr.bf16.gmra.mxu0 %v567
  %v3644 = vpop.f32.mrf.mxu0
  %v3645 = vadd.f32 %v3602, %v3644
  %v3646 = vpop.f32.mrf.mxu0
  %v3647 = vadd.f32 %v3604, %v3646
  %v3648 = vpop.f32.mrf.mxu0
  %v3649 = vadd.f32 %v3606, %v3648
  %v3650 = vpop.f32.mrf.mxu0
  %v3651 = vadd.f32 %v3608, %v3650
  %3652 = vdwg.mxu0
  %3653 = vmatprep.subr.bf16.mxu0 %v2176
  %3654 = vmatpush1.bf16.msra.mxu0 %v2175
  %3655 = vmatprep.subr.bf16.mxu0 %v2168
  %3656 = vmatpush1.bf16.msra.mxu0 %v2167
  %3657 = vmatprep.subr.bf16.mxu0 %v2160
  %3658 = vmatpush1.bf16.msra.mxu0 %v2159
  %3659 = vmatprep.subr.bf16.mxu0 %v2152
  %3660 = vmatpush1.bf16.msra.mxu0 %v2151
  %3661 = vmatprep.subr.bf16.mxu0 %v2144
  %3662 = vmatpush1.bf16.msra.mxu0 %v2143
  %3663 = vmatprep.subr.bf16.mxu0 %v2136
  %3664 = vmatpush1.bf16.msra.mxu0 %v2135
  %3665 = vmatprep.subr.bf16.mxu0 %v2128
  %3666 = vmatpush1.bf16.msra.mxu0 %v2127
  %3667 = vmatprep.subr.bf16.mxu0 %v2120
  %3668 = vmatpush1.bf16.msra.mxu0 %v2119
  %3669 = vmatprep.subr.bf16.mxu0 %v2240
  %3670 = vmatpush2.bf16.msra.mxu0 %v2239
  %3671 = vmatprep.subr.bf16.mxu0 %v2232
  %3672 = vmatpush2.bf16.msra.mxu0 %v2231
  %3673 = vmatprep.subr.bf16.mxu0 %v2224
  %3674 = vmatpush2.bf16.msra.mxu0 %v2223
  %3675 = vmatprep.subr.bf16.mxu0 %v2216
  %3676 = vmatpush2.bf16.msra.mxu0 %v2215
  %3677 = vmatprep.subr.bf16.mxu0 %v2208
  %3678 = vmatpush2.bf16.msra.mxu0 %v2207
  %3679 = vmatprep.subr.bf16.mxu0 %v2200
  %3680 = vmatpush2.bf16.msra.mxu0 %v2199
  %3681 = vmatprep.subr.bf16.mxu0 %v2192
  %3682 = vmatpush2.bf16.msra.mxu0 %v2191
  %3683 = vmatprep.subr.bf16.mxu0 %v2184
  %3684 = vmatpush2.bf16.msra.mxu0 %v2183
  %3685 = vmatprep.mubr.bf16.mxu0 %v562
  %3686 = vmatmul.mubr.bf16.gmra.mxu0 %v561
  %v3687 = vpop.f32.mrf.mxu0
  %v3688 = vadd.f32 0.0, %v3687
  %v3689 = vpop.f32.mrf.mxu0
  %v3690 = vadd.f32 0.0, %v3689
  %v3691 = vpop.f32.mrf.mxu0
  %v3692 = vadd.f32 0.0, %v3691
  %v3693 = vpop.f32.mrf.mxu0
  %v3694 = vadd.f32 0.0, %v3693
  %3695 = vdwg.mxu0
  %3696 = vmatprep.subr.bf16.mxu0 %v2304
  %3697 = vmatpush1.bf16.msra.mxu0 %v2303
  %3698 = vmatprep.subr.bf16.mxu0 %v2296
  %3699 = vmatpush1.bf16.msra.mxu0 %v2295
  %3700 = vmatprep.subr.bf16.mxu0 %v2288
  %3701 = vmatpush1.bf16.msra.mxu0 %v2287
  %3702 = vmatprep.subr.bf16.mxu0 %v2280
  %3703 = vmatpush1.bf16.msra.mxu0 %v2279
  %3704 = vmatprep.subr.bf16.mxu0 %v2272
  %3705 = vmatpush1.bf16.msra.mxu0 %v2271
  %3706 = vmatprep.subr.bf16.mxu0 %v2264
  %3707 = vmatpush1.bf16.msra.mxu0 %v2263
  %3708 = vmatprep.subr.bf16.mxu0 %v2256
  %3709 = vmatpush1.bf16.msra.mxu0 %v2255
  %3710 = vmatprep.subr.bf16.mxu0 %v2248
  %3711 = vmatpush1.bf16.msra.mxu0 %v2247
  %3712 = vmatprep.subr.bf16.mxu0 %v2368
  %3713 = vmatpush2.bf16.msra.mxu0 %v2367
  %3714 = vmatprep.subr.bf16.mxu0 %v2360
  %3715 = vmatpush2.bf16.msra.mxu0 %v2359
  %3716 = vmatprep.subr.bf16.mxu0 %v2352
  %3717 = vmatpush2.bf16.msra.mxu0 %v2351
  %3718 = vmatprep.subr.bf16.mxu0 %v2344
  %3719 = vmatpush2.bf16.msra.mxu0 %v2343
  %3720 = vmatprep.subr.bf16.mxu0 %v2336
  %3721 = vmatpush2.bf16.msra.mxu0 %v2335
  %3722 = vmatprep.subr.bf16.mxu0 %v2328
  %3723 = vmatpush2.bf16.msra.mxu0 %v2327
  %3724 = vmatprep.subr.bf16.mxu0 %v2320
  %3725 = vmatpush2.bf16.msra.mxu0 %v2319
  %3726 = vmatprep.subr.bf16.mxu0 %v2312
  %3727 = vmatpush2.bf16.msra.mxu0 %v2311
  %3728 = vmatprep.mubr.bf16.mxu0 %v564
  %3729 = vmatmul.mubr.bf16.gmra.mxu0 %v563
  %v3730 = vpop.f32.mrf.mxu0
  %v3731 = vadd.f32 %v3688, %v3730
  %v3732 = vpop.f32.mrf.mxu0
  %v3733 = vadd.f32 %v3690, %v3732
  %v3734 = vpop.f32.mrf.mxu0
  %v3735 = vadd.f32 %v3692, %v3734
  %v3736 = vpop.f32.mrf.mxu0
  %v3737 = vadd.f32 %v3694, %v3736
  %3738 = vdwg.mxu0
  %3739 = vmatprep.subr.bf16.mxu0 %v2432
  %3740 = vmatpush1.bf16.msra.mxu0 %v2431
  %3741 = vmatprep.subr.bf16.mxu0 %v2424
  %3742 = vmatpush1.bf16.msra.mxu0 %v2423
  %3743 = vmatprep.subr.bf16.mxu0 %v2416
  %3744 = vmatpush1.bf16.msra.mxu0 %v2415
  %3745 = vmatprep.subr.bf16.mxu0 %v2408
  %3746 = vmatpush1.bf16.msra.mxu0 %v2407
  %3747 = vmatprep.subr.bf16.mxu0 %v2400
  %3748 = vmatpush1.bf16.msra.mxu0 %v2399
  %3749 = vmatprep.subr.bf16.mxu0 %v2392
  %3750 = vmatpush1.bf16.msra.mxu0 %v2391
  %3751 = vmatprep.subr.bf16.mxu0 %v2384
  %3752 = vmatpush1.bf16.msra.mxu0 %v2383
  %3753 = vmatprep.subr.bf16.mxu0 %v2376
  %3754 = vmatpush1.bf16.msra.mxu0 %v2375
  %3755 = vmatprep.subr.bf16.mxu0 %v2496
  %3756 = vmatpush2.bf16.msra.mxu0 %v2495
  %3757 = vmatprep.subr.bf16.mxu0 %v2488
  %3758 = vmatpush2.bf16.msra.mxu0 %v2487
  %3759 = vmatprep.subr.bf16.mxu0 %v2480
  %3760 = vmatpush2.bf16.msra.mxu0 %v2479
  %3761 = vmatprep.subr.bf16.mxu0 %v2472
  %3762 = vmatpush2.bf16.msra.mxu0 %v2471
  %3763 = vmatprep.subr.bf16.mxu0 %v2464
  %3764 = vmatpush2.bf16.msra.mxu0 %v2463
  %3765 = vmatprep.subr.bf16.mxu0 %v2456
  %3766 = vmatpush2.bf16.msra.mxu0 %v2455
  %3767 = vmatprep.subr.bf16.mxu0 %v2448
  %3768 = vmatpush2.bf16.msra.mxu0 %v2447
  %3769 = vmatprep.subr.bf16.mxu0 %v2440
  %3770 = vmatpush2.bf16.msra.mxu0 %v2439
  %3771 = vmatprep.mubr.bf16.mxu0 %v566
  %3772 = vmatmul.mubr.bf16.gmra.mxu0 %v565
  %v3773 = vpop.f32.mrf.mxu0
  %v3774 = vadd.f32 %v3731, %v3773
  %v3775 = vpop.f32.mrf.mxu0
  %v3776 = vadd.f32 %v3733, %v3775
  %v3777 = vpop.f32.mrf.mxu0
  %v3778 = vadd.f32 %v3735, %v3777
  %v3779 = vpop.f32.mrf.mxu0
  %v3780 = vadd.f32 %v3737, %v3779
  %3781 = vdwg.mxu0
  %3782 = vmatprep.subr.bf16.mxu0 %v2560
  %3783 = vmatpush1.bf16.msra.mxu0 %v2559
  %3784 = vmatprep.subr.bf16.mxu0 %v2552
  %3785 = vmatpush1.bf16.msra.mxu0 %v2551
  %3786 = vmatprep.subr.bf16.mxu0 %v2544
  %3787 = vmatpush1.bf16.msra.mxu0 %v2543
  %3788 = vmatprep.subr.bf16.mxu0 %v2536
  %3789 = vmatpush1.bf16.msra.mxu0 %v2535
  %3790 = vmatprep.subr.bf16.mxu0 %v2528
  %3791 = vmatpush1.bf16.msra.mxu0 %v2527
  %3792 = vmatprep.subr.bf16.mxu0 %v2520
  %3793 = vmatpush1.bf16.msra.mxu0 %v2519
  %3794 = vmatprep.subr.bf16.mxu0 %v2512
  %3795 = vmatpush1.bf16.msra.mxu0 %v2511
  %3796 = vmatprep.subr.bf16.mxu0 %v2504
  %3797 = vmatpush1.bf16.msra.mxu0 %v2503
  %3798 = vmatprep.subr.bf16.mxu0 %v2624
  %3799 = vmatpush2.bf16.msra.mxu0 %v2623
  %3800 = vmatprep.subr.bf16.mxu0 %v2616
  %3801 = vmatpush2.bf16.msra.mxu0 %v2615
  %3802 = vmatprep.subr.bf16.mxu0 %v2608
  %3803 = vmatpush2.bf16.msra.mxu0 %v2607
  %3804 = vmatprep.subr.bf16.mxu0 %v2600
  %3805 = vmatpush2.bf16.msra.mxu0 %v2599
  %3806 = vmatprep.subr.bf16.mxu0 %v2592
  %3807 = vmatpush2.bf16.msra.mxu0 %v2591
  %3808 = vmatprep.subr.bf16.mxu0 %v2584
  %3809 = vmatpush2.bf16.msra.mxu0 %v2583
  %3810 = vmatprep.subr.bf16.mxu0 %v2576
  %3811 = vmatpush2.bf16.msra.mxu0 %v2575
  %3812 = vmatprep.subr.bf16.mxu0 %v2568
  %3813 = vmatpush2.bf16.msra.mxu0 %v2567
  %3814 = vmatprep.mubr.bf16.mxu0 %v568
  %3815 = vmatmul.mubr.bf16.gmra.mxu0 %v567
  %v3816 = vpop.f32.mrf.mxu0
  %v3817 = vadd.f32 %v3774, %v3816
  %v3818 = vpop.f32.mrf.mxu0
  %v3819 = vadd.f32 %v3776, %v3818
  %v3820 = vpop.f32.mrf.mxu0
  %v3821 = vadd.f32 %v3778, %v3820
  %v3822 = vpop.f32.mrf.mxu0
  %v3823 = vadd.f32 %v3780, %v3822
  %3824 = vdwg.mxu0
  %v3825 = vld [vmem:[%s2] sm:$0xff]
  %v3827 = vlaneseq
  %v3828 = vshrl.u32 %v3827, 7
  %v3829 = vsub.s32 0, %v3828
  %v3830 = vrot.slane %v3825, %v3829
  %v3831 = vlaneseq
  %v3832 = vshrl.u32 %v3831, 7
  %v3833 = vsub.s32 1, %v3832
  %v3834 = vrot.slane %v3825, %v3833
  %v3835 = vlaneseq
  %v3836 = vshrl.u32 %v3835, 7
  %v3837 = vsub.s32 2, %v3836
  %v3838 = vrot.slane %v3825, %v3837
  %v3839 = vlaneseq
  %v3840 = vshrl.u32 %v3839, 7
  %v3841 = vsub.s32 3, %v3840
  %v3842 = vrot.slane %v3825, %v3841
  %v3843 = vlaneseq
  %v3844 = vshrl.u32 %v3843, 7
  %v3845 = vsub.s32 4, %v3844
  %v3846 = vrot.slane %v3825, %v3845
  %v3847 = vlaneseq
  %v3848 = vshrl.u32 %v3847, 7
  %v3849 = vsub.s32 5, %v3848
  %v3850 = vrot.slane %v3825, %v3849
  %v3851 = vlaneseq
  %v3852 = vshrl.u32 %v3851, 7
  %v3853 = vsub.s32 6, %v3852
  %v3854 = vrot.slane %v3825, %v3853
  %v3855 = vlaneseq
  %v3856 = vshrl.u32 %v3855, 7
  %v3857 = vsub.s32 7, %v3856
  %v3858 = vrot.slane %v3825, %v3857
  %v3867 = vmul.f32 %v3301, %v3830
  %v3868 = vmul.f32 %v3303, %v3834
  %v3869 = vmul.f32 %v3473, %v3838
  %v3870 = vmul.f32 %v3475, %v3842
  %v3871 = vmul.f32 %v3645, %v3846
  %v3872 = vmul.f32 %v3647, %v3850
  %v3873 = vmul.f32 %v3817, %v3854
  %v3874 = vmul.f32 %v3819, %v3858
  %v3875 = vmul.f32 %v3305, %v3830
  %v3876 = vmul.f32 %v3307, %v3834
  %v3877 = vmul.f32 %v3477, %v3838
  %v3878 = vmul.f32 %v3479, %v3842
  %v3879 = vmul.f32 %v3649, %v3846
  %v3880 = vmul.f32 %v3651, %v3850
  %v3881 = vmul.f32 %v3821, %v3854
  %v3882 = vmul.f32 %v3823, %v3858
  %v3883 = vld [vmem:[%s3] sm:$0xff]
  %v3885 = vlaneseq
  %v3886 = vshrl.u32 %v3885, 7
  %v3887 = vsub.s32 0, %v3886
  %v3888 = vrot.slane %v3883, %v3887
  %v3889 = vlaneseq
  %v3890 = vshrl.u32 %v3889, 7
  %v3891 = vsub.s32 1, %v3890
  %v3892 = vrot.slane %v3883, %v3891
  %v3893 = vlaneseq
  %v3894 = vshrl.u32 %v3893, 7
  %v3895 = vsub.s32 2, %v3894
  %v3896 = vrot.slane %v3883, %v3895
  %v3897 = vlaneseq
  %v3898 = vshrl.u32 %v3897, 7
  %v3899 = vsub.s32 3, %v3898
  %v3900 = vrot.slane %v3883, %v3899
  %v3901 = vlaneseq
  %v3902 = vshrl.u32 %v3901, 7
  %v3903 = vsub.s32 4, %v3902
  %v3904 = vrot.slane %v3883, %v3903
  %v3905 = vlaneseq
  %v3906 = vshrl.u32 %v3905, 7
  %v3907 = vsub.s32 5, %v3906
  %v3908 = vrot.slane %v3883, %v3907
  %v3909 = vlaneseq
  %v3910 = vshrl.u32 %v3909, 7
  %v3911 = vsub.s32 6, %v3910
  %v3912 = vrot.slane %v3883, %v3911
  %v3913 = vlaneseq
  %v3914 = vshrl.u32 %v3913, 7
  %v3915 = vsub.s32 7, %v3914
  %v3916 = vrot.slane %v3883, %v3915
  %v3925 = vadd.f32 %v3867, %v3888
  %v3926 = vadd.f32 %v3868, %v3892
  %v3927 = vadd.f32 %v3869, %v3896
  %v3928 = vadd.f32 %v3870, %v3900
  %v3929 = vadd.f32 %v3871, %v3904
  %v3930 = vadd.f32 %v3872, %v3908
  %v3931 = vadd.f32 %v3873, %v3912
  %v3932 = vadd.f32 %v3874, %v3916
  %v3933 = vadd.f32 %v3875, %v3888
  %v3934 = vadd.f32 %v3876, %v3892
  %v3935 = vadd.f32 %v3877, %v3896
  %v3936 = vadd.f32 %v3878, %v3900
  %v3937 = vadd.f32 %v3879, %v3904
  %v3938 = vadd.f32 %v3880, %v3908
  %v3939 = vadd.f32 %v3881, %v3912
  %v3940 = vadd.f32 %v3882, %v3916
  %3941 = vst [vmem:[%s4] sm:$0xff] %v3925
  %3942 = vst [vmem:[%s4 + $0x8] sm:$0xff] %v3926
  %3943 = vst [vmem:[%s4 + $0x10] sm:$0xff] %v3927
  %3944 = vst [vmem:[%s4 + $0x18] sm:$0xff] %v3928
  %3945 = vst [vmem:[%s4 + $0x20] sm:$0xff] %v3929
  %3946 = vst [vmem:[%s4 + $0x28] sm:$0xff] %v3930
  %3947 = vst [vmem:[%s4 + $0x30] sm:$0xff] %v3931
  %3948 = vst [vmem:[%s4 + $0x38] sm:$0xff] %v3932
  %3949 = vst [vmem:[%s4 + $0x40] sm:$0xff] %v3933
  %3950 = vst [vmem:[%s4 + $0x48] sm:$0xff] %v3934
  %3951 = vst [vmem:[%s4 + $0x50] sm:$0xff] %v3935
  %3952 = vst [vmem:[%s4 + $0x58] sm:$0xff] %v3936
  %3953 = vst [vmem:[%s4 + $0x60] sm:$0xff] %v3937
  %3954 = vst [vmem:[%s4 + $0x68] sm:$0xff] %v3938
  %3955 = vst [vmem:[%s4 + $0x70] sm:$0xff] %v3939
  %3956 = vst [vmem:[%s4 + $0x78] sm:$0xff] %v3940
  // Predicated region
  $region18: #{vae_forward.11} parent=0 // pred_check
    _
  $region19: #{vae_forward.11} parent=0 // pred_check_branch
    %3958 = sbr.rel (0) target = $region21
  $region20: #{vae_forward.11} parent=0 // pred_region
    _
  $region21: #{vae_forward.11} parent=0 // pred_fallthru
    _
  // Predicated region
  $region22: #{vae_forward.11} parent=0 // pred_check
    _
  $region23: #{vae_forward.11} parent=0 // pred_check_branch
    %3960 = sbr.rel (0) target = $region25
  $region24: #{vae_forward.11} parent=0 // pred_region
    _
  $region25: #{vae_forward.11} parent=0 // pred_fallthru
    _

// kernel: vae_forward.14
$region0: #{vae_forward.14}
  #allocation0 [shape = 'u32[]', space=smem, size = 0x4, offset = 0x4, fixed_abs, tag = 'smem constant byte address 0x4 - core index']
  #allocation1 [shape = 'u32[144,128]{1,0:T(1,128)}', space=vmem, size = 0x12000, scoped, tag = 'internal scratch']
  %s0 = inlined_call_operand.vmem [shape: bf16[512,288], index: 0, kind: input, shape index: {}]
  %s1 = inlined_call_operand.vmem [shape: bf16[288,128], index: 1, kind: input, shape index: {}]
  %s2 = inlined_call_operand.vmem [shape: f32[1,128], index: 2, kind: input, shape index: {}]
  %s3 = inlined_call_operand.vmem [shape: f32[1,128], index: 3, kind: input, shape index: {}]
  %s4 = inlined_call_operand.vmem [shape: f32[512,128], index: 4, kind: output, shape index: {}]
  %s5 = sld [smem:[#allocation0]]
  $region49: #{vae_forward.14} parent=0
    _
  %s7 = ssub.s32 1, %s5
  %s8 = scalar_select 0, %s7, %s5
  loop: start=0, step=1, limit=4
  $region2: #{vae_forward.14} parent=0 // loop_pre_header
    _
  $region3: #{vae_forward.14} parent=0 // loop_header
    %s10 = sphi 0, %s14
    %p11 = scmp.ge.s32.totalorder %s10, 4
    %s20 = sphi 0, %s22
    %s23 = sphi 0, %s20
    %s24 = sphi 0, %s23
    %s40 = sphi 0, %s24
    %s44 = sphi 0, %s44
    %s46 = sphi 0, %s44
    %s47 = sphi 0, %s46
    %s61 = sphi 0, %s47
    %s65 = sphi 0, %s65
    %s67 = sphi 0, %s65
    %s68 = sphi 0, %s67
    %s82 = sphi 0, %s68
    %s86 = sphi 0, %s86
    %s88 = sphi 0, %s86
    %s89 = sphi 0, %s88
    %s103 = sphi 0, %s89
    %s109 = sphi 0, %s111
    %s112 = sphi 0, %s109
    %s113 = sphi 0, %s112
    %s129 = sphi 0, %s113
  $region4: #{vae_forward.14} parent=0 // loop_header_branch
    %13 = sbr.rel (%p11) target = $region8
  $region5: #{vae_forward.14} parent=0 // loop_body
    %s15 = ssub.s32 %s10, 1
    %s16 = ssub.s32 %s10, 2
    %s17 = sadd.s32 %s10, 1
    %s18 = ssub.s32 %s10, %s17
    %p19 = scmp.eq.s32.totalorder %s18, 0
    %s21 = sadd.s32 %s20, 1
    %s22 = scalar_select %p19, %s20, %s21
    %p25 = pneg %p19
    %p26 = scmp.eq.s32.totalorder %s10, 1
    %p27 = por %p25, %p26
    %p28 = scmp.ne.s32.totalorder %s20, %s23
    %p29 = scmp.eq.s32.totalorder %s10, 0
    %p30 = por %p28, %p29
    %p31 = scmp.ne.s32.totalorder %s20, %s23
    %p32 = scmp.eq.s32.totalorder %s15, 1
    %p33 = por %p31, %p32
    %p34 = scmp.ne.s32.totalorder %s23, %s24
    %p35 = scmp.eq.s32.totalorder %s15, 0
    %p36 = por %p34, %p35
    %p37 = scmp.ne.s32.totalorder %s23, %s24
    %p38 = scmp.eq.s32.totalorder %s16, 1
    %p39 = por %p37, %p38
    %p41 = scmp.ne.s32.totalorder %s24, %s40
    %p42 = scmp.eq.s32.totalorder %s16, 0
    %p43 = por %p41, %p42
    %s45 = sadd.s32 %s44, 1
    %p48 = scmp.eq.s32.totalorder %s10, 1
    %p49 = scmp.ne.s32.totalorder %s44, %s46
    %p50 = scmp.eq.s32.totalorder %s10, 0
    %p51 = por %p49, %p50
    %p52 = scmp.ne.s32.totalorder %s44, %s46
    %p53 = scmp.eq.s32.totalorder %s15, 1
    %p54 = por %p52, %p53
    %p55 = scmp.ne.s32.totalorder %s46, %s47
    %p56 = scmp.eq.s32.totalorder %s15, 0
    %p57 = por %p55, %p56
    %p58 = scmp.ne.s32.totalorder %s46, %s47
    %p59 = scmp.eq.s32.totalorder %s16, 1
    %p60 = por %p58, %p59
    %p62 = scmp.ne.s32.totalorder %s47, %s61
    %p63 = scmp.eq.s32.totalorder %s16, 0
    %p64 = por %p62, %p63
    %s66 = sadd.s32 %s65, 1
    %p69 = scmp.eq.s32.totalorder %s10, 1
    %p70 = scmp.ne.s32.totalorder %s65, %s67
    %p71 = scmp.eq.s32.totalorder %s10, 0
    %p72 = por %p70, %p71
    %p73 = scmp.ne.s32.totalorder %s65, %s67
    %p74 = scmp.eq.s32.totalorder %s15, 1
    %p75 = por %p73, %p74
    %p76 = scmp.ne.s32.totalorder %s67, %s68
    %p77 = scmp.eq.s32.totalorder %s15, 0
    %p78 = por %p76, %p77
    %p79 = scmp.ne.s32.totalorder %s67, %s68
    %p80 = scmp.eq.s32.totalorder %s16, 1
    %p81 = por %p79, %p80
    %p83 = scmp.ne.s32.totalorder %s68, %s82
    %p84 = scmp.eq.s32.totalorder %s16, 0
    %p85 = por %p83, %p84
    %s87 = sadd.s32 %s86, 1
    %p90 = scmp.eq.s32.totalorder %s10, 1
    %p91 = scmp.ne.s32.totalorder %s86, %s88
    %p92 = scmp.eq.s32.totalorder %s10, 0
    %p93 = por %p91, %p92
    %p94 = scmp.ne.s32.totalorder %s86, %s88
    %p95 = scmp.eq.s32.totalorder %s15, 1
    %p96 = por %p94, %p95
    %p97 = scmp.ne.s32.totalorder %s88, %s89
    %p98 = scmp.eq.s32.totalorder %s15, 0
    %p99 = por %p97, %p98
    %p100 = scmp.ne.s32.totalorder %s88, %s89
    %p101 = scmp.eq.s32.totalorder %s16, 1
    %p102 = por %p100, %p101
    %p104 = scmp.ne.s32.totalorder %s89, %s103
    %p105 = scmp.eq.s32.totalorder %s16, 0
    %p106 = por %p104, %p105
    %s107 = ssub.s32 %s10, %s17
    %p108 = scmp.eq.s32.totalorder %s107, 0
    %s110 = sadd.s32 %s109, 1
    %s111 = scalar_select %p108, %s109, %s110
    %p114 = pneg %p108
    %p115 = scmp.eq.s32.totalorder %s10, 1
    %p116 = por %p114, %p115
    %p117 = scmp.ne.s32.totalorder %s109, %s112
    %p118 = scmp.eq.s32.totalorder %s10, 0
    %p119 = por %p117, %p118
    %p120 = scmp.ne.s32.totalorder %s109, %s112
    %p121 = scmp.eq.s32.totalorder %s15, 1
    %p122 = por %p120, %p121
    %p123 = scmp.ne.s32.totalorder %s112, %s113
    %p124 = scmp.eq.s32.totalorder %s15, 0
    %p125 = por %p123, %p124
    %p126 = scmp.ne.s32.totalorder %s112, %s113
    %p127 = scmp.eq.s32.totalorder %s16, 1
    %p128 = por %p126, %p127
    %p130 = scmp.ne.s32.totalorder %s113, %s129
    %p131 = scmp.eq.s32.totalorder %s16, 0
    %p132 = por %p130, %p131
    %p133 = scmp.le.s32.totalorder 1, %s10
    %p134 = scmp.lt.s32.totalorder %s10, 3
    %p135 = pnand %p133, %p134
    %p136 = pneg %p135
    // Predicated region
    $region9: #{vae_forward.14} parent=5 // pred_check
      _
    $region10: #{vae_forward.14} parent=5 // pred_check_branch
      %138 = sbr.rel (%p135) target = $region12
    $region11: #{vae_forward.14} parent=5 // pred_region
      %s139 = ssub.s32 %s10, 1
      // Predicated region
      $region13: #{vae_forward.14} parent=11 // pred_check
        %p140 = pneg %p57
      $region14: #{vae_forward.14} parent=11 // pred_check_branch
        %142 = sbr.rel (%p140) target = $region16
      $region15: #{vae_forward.14} parent=11 // pred_region
        _
      $region16: #{vae_forward.14} parent=11 // pred_fallthru
        _
      // Predicated region
      $region17: #{vae_forward.14} parent=11 // pred_check
        %p143 = pneg %p78
      $region18: #{vae_forward.14} parent=11 // pred_check_branch
        %145 = sbr.rel (%p143) target = $region20
      $region19: #{vae_forward.14} parent=11 // pred_region
        _
      $region20: #{vae_forward.14} parent=11 // pred_fallthru
        _
      // Predicated region
      $region21: #{vae_forward.14} parent=11 // pred_check
        %p146 = pneg %p99
      $region22: #{vae_forward.14} parent=11 // pred_check_branch
        %148 = sbr.rel (%p146) target = $region24
      $region23: #{vae_forward.14} parent=11 // pred_region
        _
      $region24: #{vae_forward.14} parent=11 // pred_fallthru
        _
    $region12: #{vae_forward.14} parent=5 // pred_fallthru
      _
    %p149 = scmp.lt.s32.totalorder %s10, 2
    // Predicated region
    $region25: #{vae_forward.14} parent=5 // pred_check
      %p150 = pneg %p149
    $region26: #{vae_forward.14} parent=5 // pred_check_branch
      %152 = sbr.rel (%p150) target = $region28
    $region27: #{vae_forward.14} parent=5 // pred_region
      // Predicated region
      $region29: #{vae_forward.14} parent=27 // pred_check
        %p153 = pneg %p30
      $region30: #{vae_forward.14} parent=27 // pred_check_branch
        %155 = sbr.rel (%p153) target = $region32
      $region31: #{vae_forward.14} parent=27 // pred_region
        %s156 = smul.u32 32, %s10
        %p157 = scmp.lt.s32.totalorder %s156, 63
        %s158 = scalar_select %p157, %s156, 63
        %s159 = smul.addr %s158, 3
        %s160 = smul.addr %s159, 4
        %s161 = scalar_lea.vmem %s0, %s160
        %s162 = smul.u32 32, %s10
      $region32: #{vae_forward.14} parent=27 // pred_fallthru
        _
    $region28: #{vae_forward.14} parent=5 // pred_fallthru
      _
    %p163 = scmp.le.s32.totalorder 1, %s10
    %p164 = scmp.lt.s32.totalorder %s10, 3
    %p165 = pnand %p163, %p164
    %p166 = pneg %p165
    // Predicated region
    $region33: #{vae_forward.14} parent=5 // pred_check
      _
    $region34: #{vae_forward.14} parent=5 // pred_check_branch
      %168 = sbr.rel (%p165) target = $region36
    $region35: #{vae_forward.14} parent=5 // pred_region
      %s169 = ssub.s32 %s10, 1
      %s170 = smul.u32 32, %s15
      %p171 = scmp.lt.s32.totalorder %s170, 63
      %s172 = scalar_select %p171, %s170, 63
      %s173 = smul.addr %s172, 3
      %s174 = smul.addr %s173, 4
      %s175 = scalar_lea.vmem %s0, %s174
      %p176 = pneg %p36
      %p177 = pneg %p33
      %p178 = pneg %p57
      %p179 = pneg %p54
      %p180 = pneg %p78
      %p181 = pneg %p75
      %p182 = pneg %p99
      %p183 = pneg %p96
      %p184 = pneg %p125
      %p185 = pneg %p122
      %s186 = smul.u32 32, %s15
      %p187 = scmp.lt.s32.totalorder %s186, 63
      %s188 = scalar_select %p187, %s186, 63
      %s189 = smul.addr %s188, 8
      %s190 = scalar_lea.vmem %s4, %s189
      %s191 = smul.u32 32, %s15
      %p192 = scmp.lt.s32.totalorder %s191, 63
      %s193 = scalar_select %p192, %s191, 63
      %s194 = smul.addr %s193, 3
      %s195 = smul.addr %s194, 4
      %s196 = scalar_lea.vmem %s0, %s195
      %s197 = smul.u32 32, %s15
      %s198 = smul.u32 32, %s15
      %p199 = scmp.lt.s32.totalorder %s198, 63
      %s200 = scalar_select %p199, %s198, 63
      %s201 = smul.addr %s200, 8
      %s202 = scalar_lea.vmem %s4, %s201
      %s203 = smul.u32 32, %s15
      %v205 = vld [vmem:[%s196] sm:$0xff]
      %v206 = vld [vmem:[%s196 + $0x8] sm:$0xf]
      %v207 = vld [vmem:[%s196 + $0xc] sm:$0xff]
      %v208 = vld [vmem:[%s196 + $0x14] sm:$0xf]
      %v209 = vld [vmem:[%s196 + $0x18] sm:$0xff]
      %v210 = vld [vmem:[%s196 + $0x20] sm:$0xf]
      %v211 = vld [vmem:[%s196 + $0x24] sm:$0xff]
      %v212 = vld [vmem:[%s196 + $0x2c] sm:$0xf]
      %v213 = vld [vmem:[%s196 + $0x30] sm:$0xff]
      %v214 = vld [vmem:[%s196 + $0x38] sm:$0xf]
      %v215 = vld [vmem:[%s196 + $0x3c] sm:$0xff]
      %v216 = vld [vmem:[%s196 + $0x44] sm:$0xf]
      %v217 = vld [vmem:[%s196 + $0x48] sm:$0xff]
      %v218 = vld [vmem:[%s196 + $0x50] sm:$0xf]
      %v219 = vld [vmem:[%s196 + $0x54] sm:$0xff]
      %v220 = vld [vmem:[%s196 + $0x5c] sm:$0xf]
      %v221 = vld [vmem:[%s196 + $0x60] sm:$0xff]
      %v222 = vld [vmem:[%s196 + $0x68] sm:$0xf]
      %v223 = vld [vmem:[%s196 + $0x6c] sm:$0xff]
      %v224 = vld [vmem:[%s196 + $0x74] sm:$0xf]
      %v225 = vld [vmem:[%s196 + $0x78] sm:$0xff]
      %v226 = vld [vmem:[%s196 + $0x80] sm:$0xf]
      %v227 = vld [vmem:[%s196 + $0x84] sm:$0xff]
      %v228 = vld [vmem:[%s196 + $0x8c] sm:$0xf]
      %v229 = vld [vmem:[%s196 + $0x90] sm:$0xff]
      %v230 = vld [vmem:[%s196 + $0x98] sm:$0xf]
      %v231 = vld [vmem:[%s196 + $0x9c] sm:$0xff]
      %v232 = vld [vmem:[%s196 + $0xa4] sm:$0xf]
      %v233 = vld [vmem:[%s196 + $0xa8] sm:$0xff]
      %v234 = vld [vmem:[%s196 + $0xb0] sm:$0xf]
      %v235 = vld [vmem:[%s196 + $0xb4] sm:$0xff]
      %v236 = vld [vmem:[%s196 + $0xbc] sm:$0xf]
      %v237 = vld [vmem:[%s196 + $0xc0] sm:$0xff]
      %v238 = vld [vmem:[%s196 + $0xc8] sm:$0xf]
      %v239 = vld [vmem:[%s196 + $0xcc] sm:$0xff]
      %v240 = vld [vmem:[%s196 + $0xd4] sm:$0xf]
      %v241 = vld [vmem:[%s196 + $0xd8] sm:$0xff]
      %v242 = vld [vmem:[%s196 + $0xe0] sm:$0xf]
      %v243 = vld [vmem:[%s196 + $0xe4] sm:$0xff]
      %v244 = vld [vmem:[%s196 + $0xec] sm:$0xf]
      %v245 = vld [vmem:[%s196 + $0xf0] sm:$0xff]
      %v246 = vld [vmem:[%s196 + $0xf8] sm:$0xf]
      %v247 = vld [vmem:[%s196 + $0xfc] sm:$0xff]
      %v248 = vld [vmem:[%s196 + $0x104] sm:$0xf]
      %v249 = vld [vmem:[%s196 + $0x108] sm:$0xff]
      %v250 = vld [vmem:[%s196 + $0x110] sm:$0xf]
      %v251 = vld [vmem:[%s196 + $0x114] sm:$0xff]
      %v252 = vld [vmem:[%s196 + $0x11c] sm:$0xf]
      %v253 = vld [vmem:[%s196 + $0x120] sm:$0xff]
      %v254 = vld [vmem:[%s196 + $0x128] sm:$0xf]
      %v255 = vld [vmem:[%s196 + $0x12c] sm:$0xff]
      %v256 = vld [vmem:[%s196 + $0x134] sm:$0xf]
      %v257 = vld [vmem:[%s196 + $0x138] sm:$0xff]
      %v258 = vld [vmem:[%s196 + $0x140] sm:$0xf]
      %v259 = vld [vmem:[%s196 + $0x144] sm:$0xff]
      %v260 = vld [vmem:[%s196 + $0x14c] sm:$0xf]
      %v261 = vld [vmem:[%s196 + $0x150] sm:$0xff]
      %v262 = vld [vmem:[%s196 + $0x158] sm:$0xf]
      %v263 = vld [vmem:[%s196 + $0x15c] sm:$0xff]
      %v264 = vld [vmem:[%s196 + $0x164] sm:$0xf]
      %v265 = vld [vmem:[%s196 + $0x168] sm:$0xff]
      %v266 = vld [vmem:[%s196 + $0x170] sm:$0xf]
      %v267 = vld [vmem:[%s196 + $0x174] sm:$0xff]
      %v268 = vld [vmem:[%s196 + $0x17c] sm:$0xf]
      %v269 = vld [vmem:[%s1] sm:$0xf]
      %v270 = vld [vmem:[%s1 + $0x4] sm:$0xf]
      %v271 = vld [vmem:[%s1 + $0x8] sm:$0xf]
      %v272 = vld [vmem:[%s1 + $0xc] sm:$0xf]
      %v273 = vld [vmem:[%s1 + $0x10] sm:$0xf]
      %v274 = vld [vmem:[%s1 + $0x14] sm:$0xf]
      %v275 = vld [vmem:[%s1 + $0x18] sm:$0xf]
      %v276 = vld [vmem:[%s1 + $0x1c] sm:$0xf]
      %v277 = vld [vmem:[%s1 + $0x20] sm:$0xf]
      %v278 = vld [vmem:[%s1 + $0x24] sm:$0xf]
      %v279 = vld [vmem:[%s1 + $0x28] sm:$0xf]
      %v280 = vld [vmem:[%s1 + $0x2c] sm:$0xf]
      %v281 = vld [vmem:[%s1 + $0x30] sm:$0xf]
      %v282 = vld [vmem:[%s1 + $0x34] sm:$0xf]
      %v283 = vld [vmem:[%s1 + $0x38] sm:$0xf]
      %v284 = vld [vmem:[%s1 + $0x3c] sm:$0xf]
      %v285 = vld [vmem:[%s1 + $0x40] sm:$0xf]
      %v286 = vld [vmem:[%s1 + $0x44] sm:$0xf]
      %v287 = vld [vmem:[%s1 + $0x48] sm:$0xf]
      %v288 = vld [vmem:[%s1 + $0x4c] sm:$0xf]
      %v289 = vld [vmem:[%s1 + $0x50] sm:$0xf]
      %v290 = vld [vmem:[%s1 + $0x54] sm:$0xf]
      %v291 = vld [vmem:[%s1 + $0x58] sm:$0xf]
      %v292 = vld [vmem:[%s1 + $0x5c] sm:$0xf]
      %v293 = vld [vmem:[%s1 + $0x60] sm:$0xf]
      %v294 = vld [vmem:[%s1 + $0x64] sm:$0xf]
      %v295 = vld [vmem:[%s1 + $0x68] sm:$0xf]
      %v296 = vld [vmem:[%s1 + $0x6c] sm:$0xf]
      %v297 = vld [vmem:[%s1 + $0x70] sm:$0xf]
      %v298 = vld [vmem:[%s1 + $0x74] sm:$0xf]
      %v299 = vld [vmem:[%s1 + $0x78] sm:$0xf]
      %v300 = vld [vmem:[%s1 + $0x7c] sm:$0xf]
      %v301 = vld [vmem:[%s1 + $0x80] sm:$0xf]
      %v302 = vld [vmem:[%s1 + $0x84] sm:$0xf]
      %v303 = vld [vmem:[%s1 + $0x88] sm:$0xf]
      %v304 = vld [vmem:[%s1 + $0x8c] sm:$0xf]
      %v369 = vunpack.c.l.b16 %v205
      %v370 = vunpack.c.h.b16 %v205
      %v371 = vunpack.c.l.b16 %v206
      %v372 = vunpack.c.l.b16 %v207
      %v373 = vunpack.c.h.b16 %v207
      %v374 = vunpack.c.l.b16 %v208
      %v375 = vunpack.c.l.b16 %v209
      %v376 = vunpack.c.h.b16 %v209
      %v377 = vunpack.c.l.b16 %v210
      %v378 = vunpack.c.l.b16 %v211
      %v379 = vunpack.c.h.b16 %v211
      %v380 = vunpack.c.l.b16 %v212
      %v381 = vunpack.c.l.b16 %v213
      %v382 = vunpack.c.h.b16 %v213
      %v383 = vunpack.c.l.b16 %v214
      %v384 = vunpack.c.l.b16 %v215
      %v385 = vunpack.c.h.b16 %v215
      %v386 = vunpack.c.l.b16 %v216
      %v387 = vunpack.c.l.b16 %v217
      %v388 = vunpack.c.h.b16 %v217
      %v389 = vunpack.c.l.b16 %v218
      %v390 = vunpack.c.l.b16 %v219
      %v391 = vunpack.c.h.b16 %v219
      %v392 = vunpack.c.l.b16 %v220
      %v393 = vunpack.c.l.b16 %v221
      %v394 = vunpack.c.h.b16 %v221
      %v395 = vunpack.c.l.b16 %v222
      %v396 = vunpack.c.l.b16 %v223
      %v397 = vunpack.c.h.b16 %v223
      %v398 = vunpack.c.l.b16 %v224
      %v399 = vunpack.c.l.b16 %v225
      %v400 = vunpack.c.h.b16 %v225
      %v401 = vunpack.c.l.b16 %v226
      %v402 = vunpack.c.l.b16 %v227
      %v403 = vunpack.c.h.b16 %v227
      %v404 = vunpack.c.l.b16 %v228
      %v405 = vunpack.c.l.b16 %v229
      %v406 = vunpack.c.h.b16 %v229
      %v407 = vunpack.c.l.b16 %v230
      %v408 = vunpack.c.l.b16 %v231
      %v409 = vunpack.c.h.b16 %v231
      %v410 = vunpack.c.l.b16 %v232
      %v411 = vunpack.c.l.b16 %v233
      %v412 = vunpack.c.h.b16 %v233
      %v413 = vunpack.c.l.b16 %v234
      %v414 = vunpack.c.l.b16 %v235
      %v415 = vunpack.c.h.b16 %v235
      %v416 = vunpack.c.l.b16 %v236
      %v417 = vunpack.c.l.b16 %v237
      %v418 = vunpack.c.h.b16 %v237
      %v419 = vunpack.c.l.b16 %v238
      %v420 = vunpack.c.l.b16 %v239
      %v421 = vunpack.c.h.b16 %v239
      %v422 = vunpack.c.l.b16 %v240
      %v423 = vunpack.c.l.b16 %v241
      %v424 = vunpack.c.h.b16 %v241
      %v425 = vunpack.c.l.b16 %v242
      %v426 = vunpack.c.l.b16 %v243
      %v427 = vunpack.c.h.b16 %v243
      %v428 = vunpack.c.l.b16 %v244
      %v429 = vunpack.c.l.b16 %v245
      %v430 = vunpack.c.h.b16 %v245
      %v431 = vunpack.c.l.b16 %v246
      %v432 = vunpack.c.l.b16 %v247
      %v433 = vunpack.c.h.b16 %v247
      %v434 = vunpack.c.l.b16 %v248
      %v435 = vunpack.c.l.b16 %v249
      %v436 = vunpack.c.h.b16 %v249
      %v437 = vunpack.c.l.b16 %v250
      %v438 = vunpack.c.l.b16 %v251
      %v439 = vunpack.c.h.b16 %v251
      %v440 = vunpack.c.l.b16 %v252
      %v441 = vunpack.c.l.b16 %v253
      %v442 = vunpack.c.h.b16 %v253
      %v443 = vunpack.c.l.b16 %v254
      %v444 = vunpack.c.l.b16 %v255
      %v445 = vunpack.c.h.b16 %v255
      %v446 = vunpack.c.l.b16 %v256
      %v447 = vunpack.c.l.b16 %v257
      %v448 = vunpack.c.h.b16 %v257
      %v449 = vunpack.c.l.b16 %v258
      %v450 = vunpack.c.l.b16 %v259
      %v451 = vunpack.c.h.b16 %v259
      %v452 = vunpack.c.l.b16 %v260
      %v453 = vunpack.c.l.b16 %v261
      %v454 = vunpack.c.h.b16 %v261
      %v455 = vunpack.c.l.b16 %v262
      %v456 = vunpack.c.l.b16 %v263
      %v457 = vunpack.c.h.b16 %v263
      %v458 = vunpack.c.l.b16 %v264
      %v459 = vunpack.c.l.b16 %v265
      %v460 = vunpack.c.h.b16 %v265
      %v461 = vunpack.c.l.b16 %v266
      %v462 = vunpack.c.l.b16 %v267
      %v463 = vunpack.c.h.b16 %v267
      %v464 = vunpack.c.l.b16 %v268
      %v465 = vpack.c.b16 %v372, %v369
      %v466 = vpack.c.b16 %v373, %v370
      %v467 = vpack.c.b16 %v374, %v371
      %v468 = vpack.c.b16 %v378, %v375
      %v469 = vpack.c.b16 %v379, %v376
      %v470 = vpack.c.b16 %v380, %v377
      %v471 = vpack.c.b16 %v384, %v381
      %v472 = vpack.c.b16 %v385, %v382
      %v473 = vpack.c.b16 %v386, %v383
      %v474 = vpack.c.b16 %v390, %v387
      %v475 = vpack.c.b16 %v391, %v388
      %v476 = vpack.c.b16 %v392, %v389
      %v477 = vpack.c.b16 %v396, %v393
      %v478 = vpack.c.b16 %v397, %v394
      %v479 = vpack.c.b16 %v398, %v395
      %v480 = vpack.c.b16 %v402, %v399
      %v481 = vpack.c.b16 %v403, %v400
      %v482 = vpack.c.b16 %v404, %v401
      %v483 = vpack.c.b16 %v408, %v405
      %v484 = vpack.c.b16 %v409, %v406
      %v485 = vpack.c.b16 %v410, %v407
      %v486 = vpack.c.b16 %v414, %v411
      %v487 = vpack.c.b16 %v415, %v412
      %v488 = vpack.c.b16 %v416, %v413
      %v489 = vpack.c.b16 %v420, %v417
      %v490 = vpack.c.b16 %v421, %v418
      %v491 = vpack.c.b16 %v422, %v419
      %v492 = vpack.c.b16 %v426, %v423
      %v493 = vpack.c.b16 %v427, %v424
      %v494 = vpack.c.b16 %v428, %v425
      %v495 = vpack.c.b16 %v432, %v429
      %v496 = vpack.c.b16 %v433, %v430
      %v497 = vpack.c.b16 %v434, %v431
      %v498 = vpack.c.b16 %v438, %v435
      %v499 = vpack.c.b16 %v439, %v436
      %v500 = vpack.c.b16 %v440, %v437
      %v501 = vpack.c.b16 %v444, %v441
      %v502 = vpack.c.b16 %v445, %v442
      %v503 = vpack.c.b16 %v446, %v443
      %v504 = vpack.c.b16 %v450, %v447
      %v505 = vpack.c.b16 %v451, %v448
      %v506 = vpack.c.b16 %v452, %v449
      %v507 = vpack.c.b16 %v456, %v453
      %v508 = vpack.c.b16 %v457, %v454
      %v509 = vpack.c.b16 %v458, %v455
      %v510 = vpack.c.b16 %v462, %v459
      %v511 = vpack.c.b16 %v463, %v460
      %v512 = vpack.c.b16 %v464, %v461
      %v581 = vunpack.c.l.b16 %v269
      %v582 = vunpack.c.l.b16 %v270
      %v583 = vunpack.c.l.b16 %v271
      %v584 = vunpack.c.l.b16 %v272
      %v585 = vunpack.c.l.b16 %v273
      %v586 = vunpack.c.l.b16 %v274
      %v587 = vunpack.c.l.b16 %v275
      %v588 = vunpack.c.l.b16 %v276
      %v589 = vunpack.c.l.b16 %v277
      %v590 = vunpack.c.l.b16 %v278
      %v591 = vunpack.c.l.b16 %v279
      %v592 = vunpack.c.l.b16 %v280
      %v593 = vunpack.c.l.b16 %v281
      %v594 = vunpack.c.l.b16 %v282
      %v595 = vunpack.c.l.b16 %v283
      %v596 = vunpack.c.l.b16 %v284
      %v597 = vunpack.c.l.b16 %v285
      %v598 = vunpack.c.l.b16 %v286
      %v599 = vunpack.c.l.b16 %v287
      %v600 = vunpack.c.l.b16 %v288
      %v601 = vunpack.c.l.b16 %v289
      %v602 = vunpack.c.l.b16 %v290
      %v603 = vunpack.c.l.b16 %v291
      %v604 = vunpack.c.l.b16 %v292
      %v605 = vunpack.c.l.b16 %v293
      %v606 = vunpack.c.l.b16 %v294
      %v607 = vunpack.c.l.b16 %v295
      %v608 = vunpack.c.l.b16 %v296
      %v609 = vunpack.c.l.b16 %v297
      %v610 = vunpack.c.l.b16 %v298
      %v611 = vunpack.c.l.b16 %v299
      %v612 = vunpack.c.l.b16 %v300
      %v613 = vunpack.c.l.b16 %v301
      %v614 = vunpack.c.l.b16 %v302
      %v615 = vunpack.c.l.b16 %v303
      %v616 = vunpack.c.l.b16 %v304
      %v617 = vpack.c.b16 %v582, %v581
      %v618 = vpack.c.b16 %v584, %v583
      %v619 = vpack.c.b16 %v586, %v585
      %v620 = vpack.c.b16 %v588, %v587
      %v621 = vpack.c.b16 %v590, %v589
      %v622 = vpack.c.b16 %v592, %v591
      %v623 = vpack.c.b16 %v594, %v593
      %v624 = vpack.c.b16 %v596, %v595
      %v625 = vpack.c.b16 %v598, %v597
      %v626 = vpack.c.b16 %v600, %v599
      %v627 = vpack.c.b16 %v602, %v601
      %v628 = vpack.c.b16 %v604, %v603
      %v629 = vpack.c.b16 %v606, %v605
      %v630 = vpack.c.b16 %v608, %v607
      %v631 = vpack.c.b16 %v610, %v609
      %v632 = vpack.c.b16 %v612, %v611
      %v633 = vpack.c.b16 %v614, %v613
      %v634 = vpack.c.b16 %v616, %v615
      %vm653 = vcmask 261120
      %v655 = vsel %vm653, %v467, 0
      %v658 = vsel %vm653, %v470, 0
      %v661 = vsel %vm653, %v473, 0
      %v664 = vsel %vm653, %v476, 0
      %v667 = vsel %vm653, %v479, 0
      %v670 = vsel %vm653, %v482, 0
      %v673 = vsel %vm653, %v485, 0
      %v676 = vsel %vm653, %v488, 0
      %v679 = vsel %vm653, %v491, 0
      %v682 = vsel %vm653, %v494, 0
      %v685 = vsel %vm653, %v497, 0
      %v688 = vsel %vm653, %v500, 0
      %v691 = vsel %vm653, %v503, 0
      %v694 = vsel %vm653, %v506, 0
      %v697 = vsel %vm653, %v509, 0
      %v700 = vsel %vm653, %v512, 0
      %702 = vmatprep.subr.bf16.mxu0 0
      %703 = vmatpush1.bf16.msra.mxu0 %v624
      %704 = vmatprep.subr.bf16.mxu0 0
      %705 = vmatpush1.bf16.msra.mxu0 %v623
      %706 = vmatprep.subr.bf16.mxu0 0
      %707 = vmatpush1.bf16.msra.mxu0 %v622
      %708 = vmatprep.subr.bf16.mxu0 0
      %709 = vmatpush1.bf16.msra.mxu0 %v621
      %710 = vmatprep.subr.bf16.mxu0 0
      %711 = vmatpush1.bf16.msra.mxu0 %v620
      %712 = vmatprep.subr.bf16.mxu0 0
      %713 = vmatpush1.bf16.msra.mxu0 %v619
      %714 = vmatprep.subr.bf16.mxu0 0
      %715 = vmatpush1.bf16.msra.mxu0 %v618
      %716 = vmatprep.subr.bf16.mxu0 0
      %717 = vmatpush1.bf16.msra.mxu0 %v617
      %718 = vmatprep.subr.bf16.mxu0 0
      %719 = vmatpush2.bf16.msra.mxu0 %v632
      %720 = vmatprep.subr.bf16.mxu0 0
      %721 = vmatpush2.bf16.msra.mxu0 %v631
      %722 = vmatprep.subr.bf16.mxu0 0
      %723 = vmatpush2.bf16.msra.mxu0 %v630
      %724 = vmatprep.subr.bf16.mxu0 0
      %725 = vmatpush2.bf16.msra.mxu0 %v629
      %726 = vmatprep.subr.bf16.mxu0 0
      %727 = vmatpush2.bf16.msra.mxu0 %v628
      %728 = vmatprep.subr.bf16.mxu0 0
      %729 = vmatpush2.bf16.msra.mxu0 %v627
      %730 = vmatprep.subr.bf16.mxu0 0
      %731 = vmatpush2.bf16.msra.mxu0 %v626
      %732 = vmatprep.subr.bf16.mxu0 0
      %733 = vmatpush2.bf16.msra.mxu0 %v625
      %734 = vmatprep.mubr.bf16.mxu0 %v466
      %735 = vmatmul.mubr.bf16.gmra.mxu0 %v465
      %v736 = vpop.f32.mrf.mxu0
      %v737 = vadd.f32 0.0, %v736
      %v738 = vpop.f32.mrf.mxu0
      %v739 = vpop.f32.mrf.mxu0
      %v740 = vadd.f32 0.0, %v739
      %v741 = vpop.f32.mrf.mxu0
      %742 = vmatprep.mubr.bf16.mxu0 %v469
      %743 = vmatmul.mubr.bf16.gmra.mxu0 %v468
      %v744 = vpop.f32.mrf.mxu0
      %v745 = vadd.f32 0.0, %v744
      %v746 = vpop.f32.mrf.mxu0
      %v747 = vpop.f32.mrf.mxu0
      %v748 = vadd.f32 0.0, %v747
      %v749 = vpop.f32.mrf.mxu0
      %750 = vmatprep.mubr.bf16.mxu0 %v472
      %751 = vmatmul.mubr.bf16.gmra.mxu0 %v471
      %v752 = vpop.f32.mrf.mxu0
      %v753 = vadd.f32 0.0, %v752
      %v754 = vpop.f32.mrf.mxu0
      %v755 = vpop.f32.mrf.mxu0
      %v756 = vadd.f32 0.0, %v755
      %v757 = vpop.f32.mrf.mxu0
      %758 = vmatprep.mubr.bf16.mxu0 %v475
      %759 = vmatmul.mubr.bf16.gmra.mxu0 %v474
      %v760 = vpop.f32.mrf.mxu0
      %v761 = vadd.f32 0.0, %v760
      %v762 = vpop.f32.mrf.mxu0
      %v763 = vpop.f32.mrf.mxu0
      %v764 = vadd.f32 0.0, %v763
      %v765 = vpop.f32.mrf.mxu0
      %766 = vmatprep.mubr.bf16.mxu0 %v478
      %767 = vmatmul.mubr.bf16.gmra.mxu0 %v477
      %v768 = vpop.f32.mrf.mxu0
      %v769 = vadd.f32 0.0, %v768
      %v770 = vpop.f32.mrf.mxu0
      %v771 = vpop.f32.mrf.mxu0
      %v772 = vadd.f32 0.0, %v771
      %v773 = vpop.f32.mrf.mxu0
      %774 = vmatprep.mubr.bf16.mxu0 %v481
      %775 = vmatmul.mubr.bf16.gmra.mxu0 %v480
      %v776 = vpop.f32.mrf.mxu0
      %v777 = vadd.f32 0.0, %v776
      %v778 = vpop.f32.mrf.mxu0
      %v779 = vpop.f32.mrf.mxu0
      %v780 = vadd.f32 0.0, %v779
      %v781 = vpop.f32.mrf.mxu0
      %782 = vmatprep.mubr.bf16.mxu0 %v484
      %783 = vmatmul.mubr.bf16.gmra.mxu0 %v483
      %v784 = vpop.f32.mrf.mxu0
      %v785 = vadd.f32 0.0, %v784
      %v786 = vpop.f32.mrf.mxu0
      %v787 = vpop.f32.mrf.mxu0
      %v788 = vadd.f32 0.0, %v787
      %v789 = vpop.f32.mrf.mxu0
      %790 = vmatprep.mubr.bf16.mxu0 %v487
      %791 = vmatmul.mubr.bf16.gmra.mxu0 %v486
      %v792 = vpop.f32.mrf.mxu0
      %v793 = vadd.f32 0.0, %v792
      %v794 = vpop.f32.mrf.mxu0
      %v795 = vpop.f32.mrf.mxu0
      %v796 = vadd.f32 0.0, %v795
      %v797 = vpop.f32.mrf.mxu0
      %798 = vmatprep.mubr.bf16.mxu0 %v490
      %799 = vmatmul.mubr.bf16.gmra.mxu0 %v489
      %v800 = vpop.f32.mrf.mxu0
      %v801 = vadd.f32 0.0, %v800
      %v802 = vpop.f32.mrf.mxu0
      %v803 = vpop.f32.mrf.mxu0
      %v804 = vadd.f32 0.0, %v803
      %v805 = vpop.f32.mrf.mxu0
      %806 = vmatprep.mubr.bf16.mxu0 %v493
      %807 = vmatmul.mubr.bf16.gmra.mxu0 %v492
      %v808 = vpop.f32.mrf.mxu0
      %v809 = vadd.f32 0.0, %v808
      %v810 = vpop.f32.mrf.mxu0
      %v811 = vpop.f32.mrf.mxu0
      %v812 = vadd.f32 0.0, %v811
      %v813 = vpop.f32.mrf.mxu0
      %814 = vmatprep.mubr.bf16.mxu0 %v496
      %815 = vmatmul.mubr.bf16.gmra.mxu0 %v495
      %v816 = vpop.f32.mrf.mxu0
      %v817 = vadd.f32 0.0, %v816
      %v818 = vpop.f32.mrf.mxu0
      %v819 = vpop.f32.mrf.mxu0
      %v820 = vadd.f32 0.0, %v819
      %v821 = vpop.f32.mrf.mxu0
      %822 = vmatprep.mubr.bf16.mxu0 %v499
      %823 = vmatmul.mubr.bf16.gmra.mxu0 %v498
      %v824 = vpop.f32.mrf.mxu0
      %v825 = vadd.f32 0.0, %v824
      %v826 = vpop.f32.mrf.mxu0
      %v827 = vpop.f32.mrf.mxu0
      %v828 = vadd.f32 0.0, %v827
      %v829 = vpop.f32.mrf.mxu0
      %830 = vmatprep.mubr.bf16.mxu0 %v502
      %831 = vmatmul.mubr.bf16.gmra.mxu0 %v501
      %v832 = vpop.f32.mrf.mxu0
      %v833 = vadd.f32 0.0, %v832
      %v834 = vpop.f32.mrf.mxu0
      %v835 = vpop.f32.mrf.mxu0
      %v836 = vadd.f32 0.0, %v835
      %v837 = vpop.f32.mrf.mxu0
      %838 = vmatprep.mubr.bf16.mxu0 %v505
      %839 = vmatmul.mubr.bf16.gmra.mxu0 %v504
      %v840 = vpop.f32.mrf.mxu0
      %v841 = vadd.f32 0.0, %v840
      %v842 = vpop.f32.mrf.mxu0
      %v843 = vpop.f32.mrf.mxu0
      %v844 = vadd.f32 0.0, %v843
      %v845 = vpop.f32.mrf.mxu0
      %846 = vmatprep.mubr.bf16.mxu0 %v508
      %847 = vmatmul.mubr.bf16.gmra.mxu0 %v507
      %v848 = vpop.f32.mrf.mxu0
      %v849 = vadd.f32 0.0, %v848
      %v850 = vpop.f32.mrf.mxu0
      %v851 = vpop.f32.mrf.mxu0
      %v852 = vadd.f32 0.0, %v851
      %v853 = vpop.f32.mrf.mxu0
      %854 = vmatprep.mubr.bf16.mxu0 %v511
      %855 = vmatmul.mubr.bf16.gmra.mxu0 %v510
      %v856 = vpop.f32.mrf.mxu0
      %v857 = vadd.f32 0.0, %v856
      %v858 = vpop.f32.mrf.mxu0
      %v859 = vpop.f32.mrf.mxu0
      %v860 = vadd.f32 0.0, %v859
      %v861 = vpop.f32.mrf.mxu0
      %862 = vdwg.mxu0
      %863 = vmatprep.subr.bf16.mxu0 0
      %864 = vmatpush1.bf16.msra.mxu0 0
      %865 = vmatprep.subr.bf16.mxu0 0
      %866 = vmatpush1.bf16.msra.mxu0 0
      %867 = vmatprep.subr.bf16.mxu0 0
      %868 = vmatpush1.bf16.msra.mxu0 0
      %869 = vmatprep.subr.bf16.mxu0 0
      %870 = vmatpush1.bf16.msra.mxu0 0
      %871 = vmatprep.subr.bf16.mxu0 0
      %872 = vmatpush1.bf16.msra.mxu0 0
      %873 = vmatprep.subr.bf16.mxu0 0
      %874 = vmatpush1.bf16.msra.mxu0 0
      %875 = vmatprep.subr.bf16.mxu0 0
      %876 = vmatpush1.bf16.msra.mxu0 %v634
      %877 = vmatprep.subr.bf16.mxu0 0
      %878 = vmatpush1.bf16.msra.mxu0 %v633
      %879 = vmatprep.subr.bf16.mxu0 0
      %880 = vmatpush2.bf16.msra.mxu0 0
      %881 = vmatprep.subr.bf16.mxu0 0
      %882 = vmatpush2.bf16.msra.mxu0 0
      %883 = vmatprep.subr.bf16.mxu0 0
      %884 = vmatpush2.bf16.msra.mxu0 0
      %885 = vmatprep.subr.bf16.mxu0 0
      %886 = vmatpush2.bf16.msra.mxu0 0
      %887 = vmatprep.subr.bf16.mxu0 0
      %888 = vmatpush2.bf16.msra.mxu0 0
      %889 = vmatprep.subr.bf16.mxu0 0
      %890 = vmatpush2.bf16.msra.mxu0 0
      %891 = vmatprep.subr.bf16.mxu0 0
      %892 = vmatpush2.bf16.msra.mxu0 0
      %893 = vmatprep.subr.bf16.mxu0 0
      %894 = vmatpush2.bf16.msra.mxu0 0
      %895 = vmatprep.mubr.bf16.mxu0 0
      %896 = vmatmul.mubr.bf16.gmra.mxu0 %v655
      %v897 = vpop.f32.mrf.mxu0
      %v898 = vadd.f32 %v737, %v897
      %v899 = vpop.f32.mrf.mxu0
      %v900 = vpop.f32.mrf.mxu0
      %v901 = vadd.f32 %v740, %v900
      %v902 = vpop.f32.mrf.mxu0
      %903 = vmatprep.mubr.bf16.mxu0 0
      %904 = vmatmul.mubr.bf16.gmra.mxu0 %v658
      %v905 = vpop.f32.mrf.mxu0
      %v906 = vadd.f32 %v745, %v905
      %v907 = vpop.f32.mrf.mxu0
      %v908 = vpop.f32.mrf.mxu0
      %v909 = vadd.f32 %v748, %v908
      %v910 = vpop.f32.mrf.mxu0
      %911 = vmatprep.mubr.bf16.mxu0 0
      %912 = vmatmul.mubr.bf16.gmra.mxu0 %v661
      %v913 = vpop.f32.mrf.mxu0
      %v914 = vadd.f32 %v753, %v913
      %v915 = vpop.f32.mrf.mxu0
      %v916 = vpop.f32.mrf.mxu0
      %v917 = vadd.f32 %v756, %v916
      %v918 = vpop.f32.mrf.mxu0
      %919 = vmatprep.mubr.bf16.mxu0 0
      %920 = vmatmul.mubr.bf16.gmra.mxu0 %v664
      %v921 = vpop.f32.mrf.mxu0
      %v922 = vadd.f32 %v761, %v921
      %v923 = vpop.f32.mrf.mxu0
      %v924 = vpop.f32.mrf.mxu0
      %v925 = vadd.f32 %v764, %v924
      %v926 = vpop.f32.mrf.mxu0
      %927 = vmatprep.mubr.bf16.mxu0 0
      %928 = vmatmul.mubr.bf16.gmra.mxu0 %v667
      %v929 = vpop.f32.mrf.mxu0
      %v930 = vadd.f32 %v769, %v929
      %v931 = vpop.f32.mrf.mxu0
      %v932 = vpop.f32.mrf.mxu0
      %v933 = vadd.f32 %v772, %v932
      %v934 = vpop.f32.mrf.mxu0
      %935 = vmatprep.mubr.bf16.mxu0 0
      %936 = vmatmul.mubr.bf16.gmra.mxu0 %v670
      %v937 = vpop.f32.mrf.mxu0
      %v938 = vadd.f32 %v777, %v937
      %v939 = vpop.f32.mrf.mxu0
      %v940 = vpop.f32.mrf.mxu0
      %v941 = vadd.f32 %v780, %v940
      %v942 = vpop.f32.mrf.mxu0
      %943 = vmatprep.mubr.bf16.mxu0 0
      %944 = vmatmul.mubr.bf16.gmra.mxu0 %v673
      %v945 = vpop.f32.mrf.mxu0
      %v946 = vadd.f32 %v785, %v945
      %v947 = vpop.f32.mrf.mxu0
      %v948 = vpop.f32.mrf.mxu0
      %v949 = vadd.f32 %v788, %v948
      %v950 = vpop.f32.mrf.mxu0
      %951 = vmatprep.mubr.bf16.mxu0 0
      %952 = vmatmul.mubr.bf16.gmra.mxu0 %v676
      %v953 = vpop.f32.mrf.mxu0
      %v954 = vadd.f32 %v793, %v953
      %v955 = vpop.f32.mrf.mxu0
      %v956 = vpop.f32.mrf.mxu0
      %v957 = vadd.f32 %v796, %v956
      %v958 = vpop.f32.mrf.mxu0
      %959 = vmatprep.mubr.bf16.mxu0 0
      %960 = vmatmul.mubr.bf16.gmra.mxu0 %v679
      %v961 = vpop.f32.mrf.mxu0
      %v962 = vadd.f32 %v801, %v961
      %v963 = vpop.f32.mrf.mxu0
      %v964 = vpop.f32.mrf.mxu0
      %v965 = vadd.f32 %v804, %v964
      %v966 = vpop.f32.mrf.mxu0
      %967 = vmatprep.mubr.bf16.mxu0 0
      %968 = vmatmul.mubr.bf16.gmra.mxu0 %v682
      %v969 = vpop.f32.mrf.mxu0
      %v970 = vadd.f32 %v809, %v969
      %v971 = vpop.f32.mrf.mxu0
      %v972 = vpop.f32.mrf.mxu0
      %v973 = vadd.f32 %v812, %v972
      %v974 = vpop.f32.mrf.mxu0
      %975 = vmatprep.mubr.bf16.mxu0 0
      %976 = vmatmul.mubr.bf16.gmra.mxu0 %v685
      %v977 = vpop.f32.mrf.mxu0
      %v978 = vadd.f32 %v817, %v977
      %v979 = vpop.f32.mrf.mxu0
      %v980 = vpop.f32.mrf.mxu0
      %v981 = vadd.f32 %v820, %v980
      %v982 = vpop.f32.mrf.mxu0
      %983 = vmatprep.mubr.bf16.mxu0 0
      %984 = vmatmul.mubr.bf16.gmra.mxu0 %v688
      %v985 = vpop.f32.mrf.mxu0
      %v986 = vadd.f32 %v825, %v985
      %v987 = vpop.f32.mrf.mxu0
      %v988 = vpop.f32.mrf.mxu0
      %v989 = vadd.f32 %v828, %v988
      %v990 = vpop.f32.mrf.mxu0
      %991 = vmatprep.mubr.bf16.mxu0 0
      %992 = vmatmul.mubr.bf16.gmra.mxu0 %v691
      %v993 = vpop.f32.mrf.mxu0
      %v994 = vadd.f32 %v833, %v993
      %v995 = vpop.f32.mrf.mxu0
      %v996 = vpop.f32.mrf.mxu0
      %v997 = vadd.f32 %v836, %v996
      %v998 = vpop.f32.mrf.mxu0
      %999 = vmatprep.mubr.bf16.mxu0 0
      %1000 = vmatmul.mubr.bf16.gmra.mxu0 %v694
      %v1001 = vpop.f32.mrf.mxu0
      %v1002 = vadd.f32 %v841, %v1001
      %v1003 = vpop.f32.mrf.mxu0
      %v1004 = vpop.f32.mrf.mxu0
      %v1005 = vadd.f32 %v844, %v1004
      %v1006 = vpop.f32.mrf.mxu0
      %1007 = vmatprep.mubr.bf16.mxu0 0
      %1008 = vmatmul.mubr.bf16.gmra.mxu0 %v697
      %v1009 = vpop.f32.mrf.mxu0
      %v1010 = vadd.f32 %v849, %v1009
      %v1011 = vpop.f32.mrf.mxu0
      %v1012 = vpop.f32.mrf.mxu0
      %v1013 = vadd.f32 %v852, %v1012
      %v1014 = vpop.f32.mrf.mxu0
      %1015 = vmatprep.mubr.bf16.mxu0 0
      %1016 = vmatmul.mubr.bf16.gmra.mxu0 %v700
      %v1017 = vpop.f32.mrf.mxu0
      %v1018 = vadd.f32 %v857, %v1017
      %v1019 = vpop.f32.mrf.mxu0
      %v1020 = vpop.f32.mrf.mxu0
      %v1021 = vadd.f32 %v860, %v1020
      %v1022 = vpop.f32.mrf.mxu0
      %1023 = vdwg.mxu0
      %v1024 = vld [vmem:[%s2] sm:$0x1]
      %v1026 = vlaneseq
      %v1027 = vshrl.u32 %v1026, 7
      %v1028 = vsub.s32 0, %v1027
      %v1029 = vrot.slane %v1024, %v1028
      %v1031 = vmul.f32 %v898, %v1029
      %v1032 = vmul.f32 %v901, %v1029
      %v1033 = vmul.f32 %v906, %v1029
      %v1034 = vmul.f32 %v909, %v1029
      %v1035 = vmul.f32 %v914, %v1029
      %v1036 = vmul.f32 %v917, %v1029
      %v1037 = vmul.f32 %v922, %v1029
      %v1038 = vmul.f32 %v925, %v1029
      %v1039 = vmul.f32 %v930, %v1029
      %v1040 = vmul.f32 %v933, %v1029
      %v1041 = vmul.f32 %v938, %v1029
      %v1042 = vmul.f32 %v941, %v1029
      %v1043 = vmul.f32 %v946, %v1029
      %v1044 = vmul.f32 %v949, %v1029
      %v1045 = vmul.f32 %v954, %v1029
      %v1046 = vmul.f32 %v957, %v1029
      %v1047 = vmul.f32 %v962, %v1029
      %v1048 = vmul.f32 %v965, %v1029
      %v1049 = vmul.f32 %v970, %v1029
      %v1050 = vmul.f32 %v973, %v1029
      %v1051 = vmul.f32 %v978, %v1029
      %v1052 = vmul.f32 %v981, %v1029
      %v1053 = vmul.f32 %v986, %v1029
      %v1054 = vmul.f32 %v989, %v1029
      %v1055 = vmul.f32 %v994, %v1029
      %v1056 = vmul.f32 %v997, %v1029
      %v1057 = vmul.f32 %v1002, %v1029
      %v1058 = vmul.f32 %v1005, %v1029
      %v1059 = vmul.f32 %v1010, %v1029
      %v1060 = vmul.f32 %v1013, %v1029
      %v1061 = vmul.f32 %v1018, %v1029
      %v1062 = vmul.f32 %v1021, %v1029
      %v1063 = vld [vmem:[%s3] sm:$0x1]
      %v1065 = vlaneseq
      %v1066 = vshrl.u32 %v1065, 7
      %v1067 = vsub.s32 0, %v1066
      %v1068 = vrot.slane %v1063, %v1067
      %v1070 = vadd.f32 %v1031, %v1068
      %v1071 = vadd.f32 %v1032, %v1068
      %v1072 = vadd.f32 %v1033, %v1068
      %v1073 = vadd.f32 %v1034, %v1068
      %v1074 = vadd.f32 %v1035, %v1068
      %v1075 = vadd.f32 %v1036, %v1068
      %v1076 = vadd.f32 %v1037, %v1068
      %v1077 = vadd.f32 %v1038, %v1068
      %v1078 = vadd.f32 %v1039, %v1068
      %v1079 = vadd.f32 %v1040, %v1068
      %v1080 = vadd.f32 %v1041, %v1068
      %v1081 = vadd.f32 %v1042, %v1068
      %v1082 = vadd.f32 %v1043, %v1068
      %v1083 = vadd.f32 %v1044, %v1068
      %v1084 = vadd.f32 %v1045, %v1068
      %v1085 = vadd.f32 %v1046, %v1068
      %v1086 = vadd.f32 %v1047, %v1068
      %v1087 = vadd.f32 %v1048, %v1068
      %v1088 = vadd.f32 %v1049, %v1068
      %v1089 = vadd.f32 %v1050, %v1068
      %v1090 = vadd.f32 %v1051, %v1068
      %v1091 = vadd.f32 %v1052, %v1068
      %v1092 = vadd.f32 %v1053, %v1068
      %v1093 = vadd.f32 %v1054, %v1068
      %v1094 = vadd.f32 %v1055, %v1068
      %v1095 = vadd.f32 %v1056, %v1068
      %v1096 = vadd.f32 %v1057, %v1068
      %v1097 = vadd.f32 %v1058, %v1068
      %v1098 = vadd.f32 %v1059, %v1068
      %v1099 = vadd.f32 %v1060, %v1068
      %v1100 = vadd.f32 %v1061, %v1068
      %v1101 = vadd.f32 %v1062, %v1068
      %vm1102 = vcmp.ge.f32.partialorder %v1070, 0.0
      %vm1103 = vcmp.ge.f32.partialorder %v1071, 0.0
      %vm1104 = vcmp.ge.f32.partialorder %v1072, 0.0
      %vm1105 = vcmp.ge.f32.partialorder %v1073, 0.0
      %vm1106 = vcmp.ge.f32.partialorder %v1074, 0.0
      %vm1107 = vcmp.ge.f32.partialorder %v1075, 0.0
      %vm1108 = vcmp.ge.f32.partialorder %v1076, 0.0
      %vm1109 = vcmp.ge.f32.partialorder %v1077, 0.0
      %vm1110 = vcmp.ge.f32.partialorder %v1078, 0.0
      %vm1111 = vcmp.ge.f32.partialorder %v1079, 0.0
      %vm1112 = vcmp.ge.f32.partialorder %v1080, 0.0
      %vm1113 = vcmp.ge.f32.partialorder %v1081, 0.0
      %vm1114 = vcmp.ge.f32.partialorder %v1082, 0.0
      %vm1115 = vcmp.ge.f32.partialorder %v1083, 0.0
      %vm1116 = vcmp.ge.f32.partialorder %v1084, 0.0
      %vm1117 = vcmp.ge.f32.partialorder %v1085, 0.0
      %vm1118 = vcmp.ge.f32.partialorder %v1086, 0.0
      %vm1119 = vcmp.ge.f32.partialorder %v1087, 0.0
      %vm1120 = vcmp.ge.f32.partialorder %v1088, 0.0
      %vm1121 = vcmp.ge.f32.partialorder %v1089, 0.0
      %vm1122 = vcmp.ge.f32.partialorder %v1090, 0.0
      %vm1123 = vcmp.ge.f32.partialorder %v1091, 0.0
      %vm1124 = vcmp.ge.f32.partialorder %v1092, 0.0
      %vm1125 = vcmp.ge.f32.partialorder %v1093, 0.0
      %vm1126 = vcmp.ge.f32.partialorder %v1094, 0.0
      %vm1127 = vcmp.ge.f32.partialorder %v1095, 0.0
      %vm1128 = vcmp.ge.f32.partialorder %v1096, 0.0
      %vm1129 = vcmp.ge.f32.partialorder %v1097, 0.0
      %vm1130 = vcmp.ge.f32.partialorder %v1098, 0.0
      %vm1131 = vcmp.ge.f32.partialorder %v1099, 0.0
      %vm1132 = vcmp.ge.f32.partialorder %v1100, 0.0
      %vm1133 = vcmp.ge.f32.partialorder %v1101, 0.0
      %v1134 = vmul.f32 %v1070, 0.2
      %v1135 = vmul.f32 %v1071, 0.2
      %v1136 = vmul.f32 %v1072, 0.2
      %v1137 = vmul.f32 %v1073, 0.2
      %v1138 = vmul.f32 %v1074, 0.2
      %v1139 = vmul.f32 %v1075, 0.2
      %v1140 = vmul.f32 %v1076, 0.2
      %v1141 = vmul.f32 %v1077, 0.2
      %v1142 = vmul.f32 %v1078, 0.2
      %v1143 = vmul.f32 %v1079, 0.2
      %v1144 = vmul.f32 %v1080, 0.2
      %v1145 = vmul.f32 %v1081, 0.2
      %v1146 = vmul.f32 %v1082, 0.2
      %v1147 = vmul.f32 %v1083, 0.2
      %v1148 = vmul.f32 %v1084, 0.2
      %v1149 = vmul.f32 %v1085, 0.2
      %v1150 = vmul.f32 %v1086, 0.2
      %v1151 = vmul.f32 %v1087, 0.2
      %v1152 = vmul.f32 %v1088, 0.2
      %v1153 = vmul.f32 %v1089, 0.2
      %v1154 = vmul.f32 %v1090, 0.2
      %v1155 = vmul.f32 %v1091, 0.2
      %v1156 = vmul.f32 %v1092, 0.2
      %v1157 = vmul.f32 %v1093, 0.2
      %v1158 = vmul.f32 %v1094, 0.2
      %v1159 = vmul.f32 %v1095, 0.2
      %v1160 = vmul.f32 %v1096, 0.2
      %v1161 = vmul.f32 %v1097, 0.2
      %v1162 = vmul.f32 %v1098, 0.2
      %v1163 = vmul.f32 %v1099, 0.2
      %v1164 = vmul.f32 %v1100, 0.2
      %v1165 = vmul.f32 %v1101, 0.2
      %v1166 = vsel %vm1102, %v1070, %v1134
      %v1167 = vsel %vm1103, %v1071, %v1135
      %v1168 = vsel %vm1104, %v1072, %v1136
      %v1169 = vsel %vm1105, %v1073, %v1137
      %v1170 = vsel %vm1106, %v1074, %v1138
      %v1171 = vsel %vm1107, %v1075, %v1139
      %v1172 = vsel %vm1108, %v1076, %v1140
      %v1173 = vsel %vm1109, %v1077, %v1141
      %v1174 = vsel %vm1110, %v1078, %v1142
      %v1175 = vsel %vm1111, %v1079, %v1143
      %v1176 = vsel %vm1112, %v1080, %v1144
      %v1177 = vsel %vm1113, %v1081, %v1145
      %v1178 = vsel %vm1114, %v1082, %v1146
      %v1179 = vsel %vm1115, %v1083, %v1147
      %v1180 = vsel %vm1116, %v1084, %v1148
      %v1181 = vsel %vm1117, %v1085, %v1149
      %v1182 = vsel %vm1118, %v1086, %v1150
      %v1183 = vsel %vm1119, %v1087, %v1151
      %v1184 = vsel %vm1120, %v1088, %v1152
      %v1185 = vsel %vm1121, %v1089, %v1153
      %v1186 = vsel %vm1122, %v1090, %v1154
      %v1187 = vsel %vm1123, %v1091, %v1155
      %v1188 = vsel %vm1124, %v1092, %v1156
      %v1189 = vsel %vm1125, %v1093, %v1157
      %v1190 = vsel %vm1126, %v1094, %v1158
      %v1191 = vsel %vm1127, %v1095, %v1159
      %v1192 = vsel %vm1128, %v1096, %v1160
      %v1193 = vsel %vm1129, %v1097, %v1161
      %v1194 = vsel %vm1130, %v1098, %v1162
      %v1195 = vsel %vm1131, %v1099, %v1163
      %v1196 = vsel %vm1132, %v1100, %v1164
      %v1197 = vsel %vm1133, %v1101, %v1165
      %1198 = vst [vmem:[%s202] sm:$0xff] %v1166
      %1199 = vst [vmem:[%s202 + $0x8] sm:$0xff] %v1167
      %1200 = vst [vmem:[%s202 + $0x10] sm:$0xff] %v1168
      %1201 = vst [vmem:[%s202 + $0x18] sm:$0xff] %v1169
      %1202 = vst [vmem:[%s202 + $0x20] sm:$0xff] %v1170
      %1203 = vst [vmem:[%s202 + $0x28] sm:$0xff] %v1171
      %1204 = vst [vmem:[%s202 + $0x30] sm:$0xff] %v1172
      %1205 = vst [vmem:[%s202 + $0x38] sm:$0xff] %v1173
      %1206 = vst [vmem:[%s202 + $0x40] sm:$0xff] %v1174
      %1207 = vst [vmem:[%s202 + $0x48] sm:$0xff] %v1175
      %1208 = vst [vmem:[%s202 + $0x50] sm:$0xff] %v1176
      %1209 = vst [vmem:[%s202 + $0x58] sm:$0xff] %v1177
      %1210 = vst [vmem:[%s202 + $0x60] sm:$0xff] %v1178
      %1211 = vst [vmem:[%s202 + $0x68] sm:$0xff] %v1179
      %1212 = vst [vmem:[%s202 + $0x70] sm:$0xff] %v1180
      %1213 = vst [vmem:[%s202 + $0x78] sm:$0xff] %v1181
      %1214 = vst [vmem:[%s202 + $0x80] sm:$0xff] %v1182
      %1215 = vst [vmem:[%s202 + $0x88] sm:$0xff] %v1183
      %1216 = vst [vmem:[%s202 + $0x90] sm:$0xff] %v1184
      %1217 = vst [vmem:[%s202 + $0x98] sm:$0xff] %v1185
      %1218 = vst [vmem:[%s202 + $0xa0] sm:$0xff] %v1186
      %1219 = vst [vmem:[%s202 + $0xa8] sm:$0xff] %v1187
      %1220 = vst [vmem:[%s202 + $0xb0] sm:$0xff] %v1188
      %1221 = vst [vmem:[%s202 + $0xb8] sm:$0xff] %v1189
      %1222 = vst [vmem:[%s202 + $0xc0] sm:$0xff] %v1190
      %1223 = vst [vmem:[%s202 + $0xc8] sm:$0xff] %v1191
      %1224 = vst [vmem:[%s202 + $0xd0] sm:$0xff] %v1192
      %1225 = vst [vmem:[%s202 + $0xd8] sm:$0xff] %v1193
      %1226 = vst [vmem:[%s202 + $0xe0] sm:$0xff] %v1194
      %1227 = vst [vmem:[%s202 + $0xe8] sm:$0xff] %v1195
      %1228 = vst [vmem:[%s202 + $0xf0] sm:$0xff] %v1196
      %1229 = vst [vmem:[%s202 + $0xf8] sm:$0xff] %v1197
      %s1230 = smul.u32 32, %s15
      %p1231 = scmp.lt.s32.totalorder %s1230, 63
      %s1232 = scalar_select %p1231, %s1230, 63
      %s1233 = smul.addr %s1232, 8
      %s1234 = scalar_lea.vmem %s4, %s1233
      // Predicated region
      $region37: #{vae_forward.14} parent=35 // pred_check
        %p1235 = pneg %p122
      $region38: #{vae_forward.14} parent=35 // pred_check_branch
        %1237 = sbr.rel (%p1235) target = $region40
      $region39: #{vae_forward.14} parent=35 // pred_region
        %s1238 = smul.u32 32, %s15
      $region40: #{vae_forward.14} parent=35 // pred_fallthru
        _
    $region36: #{vae_forward.14} parent=5 // pred_fallthru
      _
    %p1239 = scmp.le.s32.totalorder 2, %s10
    // Predicated region
    $region41: #{vae_forward.14} parent=5 // pred_check
      %p1240 = pneg %p1239
    $region42: #{vae_forward.14} parent=5 // pred_check_branch
      %1242 = sbr.rel (%p1240) target = $region44
    $region43: #{vae_forward.14} parent=5 // pred_region
      %s1243 = ssub.s32 %s10, 2
      // Predicated region
      $region45: #{vae_forward.14} parent=43 // pred_check
        %p1244 = pneg %p128
      $region46: #{vae_forward.14} parent=43 // pred_check_branch
        %1246 = sbr.rel (%p1244) target = $region48
      $region47: #{vae_forward.14} parent=43 // pred_region
        %s1247 = smul.u32 32, %s16
        %p1248 = scmp.lt.s32.totalorder %s1247, 63
        %s1249 = scalar_select %p1248, %s1247, 63
        %s1250 = smul.addr %s1249, 8
        %s1251 = scalar_lea.vmem %s4, %s1250
      $region48: #{vae_forward.14} parent=43 // pred_fallthru
        _
    $region44: #{vae_forward.14} parent=5 // pred_fallthru
      _
  $region6: #{vae_forward.14} parent=0 // loop_footer
    %s14 = sadd.s32 1, %s10
  $region7: #{vae_forward.14} parent=0 // loop_footer_branch
    %9 = sbr.rel target = $region3
  $region8: #{vae_forward.14} parent=0 // loop_exit
    _

// kernel: vae_forward.15
$region0: #{vae_forward.15}
  #allocation0 [shape = 'u32[]', space=smem, size = 0x4, offset = 0x4, fixed_abs, tag = 'smem constant byte address 0x4 - core index']
  #allocation1 [shape = 'u32[144,128]{1,0:T(1,128)}', space=vmem, size = 0x12000, scoped, tag = 'internal scratch']
  %s0 = inlined_call_operand.vmem [shape: bf16[8192,144], index: 0, kind: input, shape index: {}]
  %s1 = inlined_call_operand.vmem [shape: bf16[144,128], index: 1, kind: input, shape index: {}]
  %s2 = inlined_call_operand.vmem [shape: f32[1,128], index: 2, kind: input, shape index: {}]
  %s3 = inlined_call_operand.vmem [shape: f32[1,128], index: 3, kind: input, shape index: {}]
  %s4 = inlined_call_operand.vmem [shape: f32[8192,128], index: 4, kind: output, shape index: {}]
  %s5 = sld [smem:[#allocation0]]
  $region49: #{vae_forward.15} parent=0
    _
  %s7 = ssub.s32 1, %s5
  %s8 = scalar_select 0, %s7, %s5
  loop: start=0, step=1, limit=18
  $region2: #{vae_forward.15} parent=0 // loop_pre_header
    _
  $region3: #{vae_forward.15} parent=0 // loop_header
    %s10 = sphi 0, %s14
    %p11 = scmp.ge.s32.totalorder %s10, 18
    %s20 = sphi 0, %s22
    %s23 = sphi 0, %s20
    %s24 = sphi 0, %s23
    %s40 = sphi 0, %s24
    %s44 = sphi 0, %s44
    %s46 = sphi 0, %s44
    %s47 = sphi 0, %s46
    %s61 = sphi 0, %s47
    %s65 = sphi 0, %s65
    %s67 = sphi 0, %s65
    %s68 = sphi 0, %s67
    %s82 = sphi 0, %s68
    %s86 = sphi 0, %s86
    %s88 = sphi 0, %s86
    %s89 = sphi 0, %s88
    %s103 = sphi 0, %s89
    %s109 = sphi 0, %s111
    %s112 = sphi 0, %s109
    %s113 = sphi 0, %s112
    %s129 = sphi 0, %s113
  $region4: #{vae_forward.15} parent=0 // loop_header_branch
    %13 = sbr.rel (%p11) target = $region8
  $region5: #{vae_forward.15} parent=0 // loop_body
    %s15 = ssub.s32 %s10, 1
    %s16 = ssub.s32 %s10, 2
    %s17 = sadd.s32 %s10, 1
    %s18 = ssub.s32 %s10, %s17
    %p19 = scmp.eq.s32.totalorder %s18, 0
    %s21 = sadd.s32 %s20, 1
    %s22 = scalar_select %p19, %s20, %s21
    %p25 = pneg %p19
    %p26 = scmp.eq.s32.totalorder %s10, 15
    %p27 = por %p25, %p26
    %p28 = scmp.ne.s32.totalorder %s20, %s23
    %p29 = scmp.eq.s32.totalorder %s10, 0
    %p30 = por %p28, %p29
    %p31 = scmp.ne.s32.totalorder %s20, %s23
    %p32 = scmp.eq.s32.totalorder %s15, 15
    %p33 = por %p31, %p32
    %p34 = scmp.ne.s32.totalorder %s23, %s24
    %p35 = scmp.eq.s32.totalorder %s15, 0
    %p36 = por %p34, %p35
    %p37 = scmp.ne.s32.totalorder %s23, %s24
    %p38 = scmp.eq.s32.totalorder %s16, 15
    %p39 = por %p37, %p38
    %p41 = scmp.ne.s32.totalorder %s24, %s40
    %p42 = scmp.eq.s32.totalorder %s16, 0
    %p43 = por %p41, %p42
    %s45 = sadd.s32 %s44, 1
    %p48 = scmp.eq.s32.totalorder %s10, 15
    %p49 = scmp.ne.s32.totalorder %s44, %s46
    %p50 = scmp.eq.s32.totalorder %s10, 0
    %p51 = por %p49, %p50
    %p52 = scmp.ne.s32.totalorder %s44, %s46
    %p53 = scmp.eq.s32.totalorder %s15, 15
    %p54 = por %p52, %p53
    %p55 = scmp.ne.s32.totalorder %s46, %s47
    %p56 = scmp.eq.s32.totalorder %s15, 0
    %p57 = por %p55, %p56
    %p58 = scmp.ne.s32.totalorder %s46, %s47
    %p59 = scmp.eq.s32.totalorder %s16, 15
    %p60 = por %p58, %p59
    %p62 = scmp.ne.s32.totalorder %s47, %s61
    %p63 = scmp.eq.s32.totalorder %s16, 0
    %p64 = por %p62, %p63
    %s66 = sadd.s32 %s65, 1
    %p69 = scmp.eq.s32.totalorder %s10, 15
    %p70 = scmp.ne.s32.totalorder %s65, %s67
    %p71 = scmp.eq.s32.totalorder %s10, 0
    %p72 = por %p70, %p71
    %p73 = scmp.ne.s32.totalorder %s65, %s67
    %p74 = scmp.eq.s32.totalorder %s15, 15
    %p75 = por %p73, %p74
    %p76 = scmp.ne.s32.totalorder %s67, %s68
    %p77 = scmp.eq.s32.totalorder %s15, 0
    %p78 = por %p76, %p77
    %p79 = scmp.ne.s32.totalorder %s67, %s68
    %p80 = scmp.eq.s32.totalorder %s16, 15
    %p81 = por %p79, %p80
    %p83 = scmp.ne.s32.totalorder %s68, %s82
    %p84 = scmp.eq.s32.totalorder %s16, 0
    %p85 = por %p83, %p84
    %s87 = sadd.s32 %s86, 1
    %p90 = scmp.eq.s32.totalorder %s10, 15
    %p91 = scmp.ne.s32.totalorder %s86, %s88
    %p92 = scmp.eq.s32.totalorder %s10, 0
    %p93 = por %p91, %p92
    %p94 = scmp.ne.s32.totalorder %s86, %s88
    %p95 = scmp.eq.s32.totalorder %s15, 15
    %p96 = por %p94, %p95
    %p97 = scmp.ne.s32.totalorder %s88, %s89
    %p98 = scmp.eq.s32.totalorder %s15, 0
    %p99 = por %p97, %p98
    %p100 = scmp.ne.s32.totalorder %s88, %s89
    %p101 = scmp.eq.s32.totalorder %s16, 15
    %p102 = por %p100, %p101
    %p104 = scmp.ne.s32.totalorder %s89, %s103
    %p105 = scmp.eq.s32.totalorder %s16, 0
    %p106 = por %p104, %p105
    %s107 = ssub.s32 %s10, %s17
    %p108 = scmp.eq.s32.totalorder %s107, 0
    %s110 = sadd.s32 %s109, 1
    %s111 = scalar_select %p108, %s109, %s110
    %p114 = pneg %p108
    %p115 = scmp.eq.s32.totalorder %s10, 15
    %p116 = por %p114, %p115
    %p117 = scmp.ne.s32.totalorder %s109, %s112
    %p118 = scmp.eq.s32.totalorder %s10, 0
    %p119 = por %p117, %p118
    %p120 = scmp.ne.s32.totalorder %s109, %s112
    %p121 = scmp.eq.s32.totalorder %s15, 15
    %p122 = por %p120, %p121
    %p123 = scmp.ne.s32.totalorder %s112, %s113
    %p124 = scmp.eq.s32.totalorder %s15, 0
    %p125 = por %p123, %p124
    %p126 = scmp.ne.s32.totalorder %s112, %s113
    %p127 = scmp.eq.s32.totalorder %s16, 15
    %p128 = por %p126, %p127
    %p130 = scmp.ne.s32.totalorder %s113, %s129
    %p131 = scmp.eq.s32.totalorder %s16, 0
    %p132 = por %p130, %p131
    %p133 = scmp.le.s32.totalorder 1, %s10
    %p134 = scmp.lt.s32.totalorder %s10, 17
    %p135 = pnand %p133, %p134
    %p136 = pneg %p135
    // Predicated region
    $region9: #{vae_forward.15} parent=5 // pred_check
      _
    $region10: #{vae_forward.15} parent=5 // pred_check_branch
      %138 = sbr.rel (%p135) target = $region12
    $region11: #{vae_forward.15} parent=5 // pred_region
      %s139 = ssub.s32 %s10, 1
      // Predicated region
      $region13: #{vae_forward.15} parent=11 // pred_check
        %p140 = pneg %p57
      $region14: #{vae_forward.15} parent=11 // pred_check_branch
        %142 = sbr.rel (%p140) target = $region16
      $region15: #{vae_forward.15} parent=11 // pred_region
        _
      $region16: #{vae_forward.15} parent=11 // pred_fallthru
        _
      // Predicated region
      $region17: #{vae_forward.15} parent=11 // pred_check
        %p143 = pneg %p78
      $region18: #{vae_forward.15} parent=11 // pred_check_branch
        %145 = sbr.rel (%p143) target = $region20
      $region19: #{vae_forward.15} parent=11 // pred_region
        _
      $region20: #{vae_forward.15} parent=11 // pred_fallthru
        _
      // Predicated region
      $region21: #{vae_forward.15} parent=11 // pred_check
        %p146 = pneg %p99
      $region22: #{vae_forward.15} parent=11 // pred_check_branch
        %148 = sbr.rel (%p146) target = $region24
      $region23: #{vae_forward.15} parent=11 // pred_region
        _
      $region24: #{vae_forward.15} parent=11 // pred_fallthru
        _
    $region12: #{vae_forward.15} parent=5 // pred_fallthru
      _
    %p149 = scmp.lt.s32.totalorder %s10, 16
    // Predicated region
    $region25: #{vae_forward.15} parent=5 // pred_check
      %p150 = pneg %p149
    $region26: #{vae_forward.15} parent=5 // pred_check_branch
      %152 = sbr.rel (%p150) target = $region28
    $region27: #{vae_forward.15} parent=5 // pred_region
      // Predicated region
      $region29: #{vae_forward.15} parent=27 // pred_check
        %p153 = pneg %p30
      $region30: #{vae_forward.15} parent=27 // pred_check_branch
        %155 = sbr.rel (%p153) target = $region32
      $region31: #{vae_forward.15} parent=27 // pred_region
        %s156 = smul.u32 64, %s10
        %p157 = scmp.lt.s32.totalorder %s156, 1023
        %s158 = scalar_select %p157, %s156, 1023
        %s159 = smul.addr %s158, 2
        %s160 = smul.addr %s159, 4
        %s161 = scalar_lea.vmem %s0, %s160
        %s162 = smul.u32 64, %s10
      $region32: #{vae_forward.15} parent=27 // pred_fallthru
        _
    $region28: #{vae_forward.15} parent=5 // pred_fallthru
      _
    %p163 = scmp.le.s32.totalorder 1, %s10
    %p164 = scmp.lt.s32.totalorder %s10, 17
    %p165 = pnand %p163, %p164
    %p166 = pneg %p165
    // Predicated region
    $region33: #{vae_forward.15} parent=5 // pred_check
      _
    $region34: #{vae_forward.15} parent=5 // pred_check_branch
      %168 = sbr.rel (%p165) target = $region36
    $region35: #{vae_forward.15} parent=5 // pred_region
      %s169 = ssub.s32 %s10, 1
      %s170 = smul.u32 64, %s15
      %p171 = scmp.lt.s32.totalorder %s170, 1023
      %s172 = scalar_select %p171, %s170, 1023
      %s173 = smul.addr %s172, 2
      %s174 = smul.addr %s173, 4
      %s175 = scalar_lea.vmem %s0, %s174
      %p176 = pneg %p36
      %p177 = pneg %p33
      %p178 = pneg %p57
      %p179 = pneg %p54
      %p180 = pneg %p78
      %p181 = pneg %p75
      %p182 = pneg %p99
      %p183 = pneg %p96
      %p184 = pneg %p125
      %p185 = pneg %p122
      %s186 = smul.u32 64, %s15
      %p187 = scmp.lt.s32.totalorder %s186, 1023
      %s188 = scalar_select %p187, %s186, 1023
      %s189 = smul.addr %s188, 8
      %s190 = scalar_lea.vmem %s4, %s189
      %s191 = smul.u32 64, %s15
      %p192 = scmp.lt.s32.totalorder %s191, 1023
      %s193 = scalar_select %p192, %s191, 1023
      %s194 = smul.addr %s193, 2
      %s195 = smul.addr %s194, 4
      %s196 = scalar_lea.vmem %s0, %s195
      %s197 = smul.u32 64, %s15
      %s198 = smul.u32 64, %s15
      %p199 = scmp.lt.s32.totalorder %s198, 1023
      %s200 = scalar_select %p199, %s198, 1023
      %s201 = smul.addr %s200, 8
      %s202 = scalar_lea.vmem %s4, %s201
      %s203 = smul.u32 64, %s15
      %v205 = vld [vmem:[%s196] sm:$0xff]
      %v206 = vld [vmem:[%s196 + $0x8] sm:$0xff]
      %v207 = vld [vmem:[%s196 + $0x10] sm:$0xff]
      %v208 = vld [vmem:[%s196 + $0x18] sm:$0xff]
      %v209 = vld [vmem:[%s196 + $0x20] sm:$0xff]
      %v210 = vld [vmem:[%s196 + $0x28] sm:$0xff]
      %v211 = vld [vmem:[%s196 + $0x30] sm:$0xff]
      %v212 = vld [vmem:[%s196 + $0x38] sm:$0xff]
      %v213 = vld [vmem:[%s196 + $0x40] sm:$0xff]
      %v214 = vld [vmem:[%s196 + $0x48] sm:$0xff]
      %v215 = vld [vmem:[%s196 + $0x50] sm:$0xff]
      %v216 = vld [vmem:[%s196 + $0x58] sm:$0xff]
      %v217 = vld [vmem:[%s196 + $0x60] sm:$0xff]
      %v218 = vld [vmem:[%s196 + $0x68] sm:$0xff]
      %v219 = vld [vmem:[%s196 + $0x70] sm:$0xff]
      %v220 = vld [vmem:[%s196 + $0x78] sm:$0xff]
      %v221 = vld [vmem:[%s196 + $0x80] sm:$0xff]
      %v222 = vld [vmem:[%s196 + $0x88] sm:$0xff]
      %v223 = vld [vmem:[%s196 + $0x90] sm:$0xff]
      %v224 = vld [vmem:[%s196 + $0x98] sm:$0xff]
      %v225 = vld [vmem:[%s196 + $0xa0] sm:$0xff]
      %v226 = vld [vmem:[%s196 + $0xa8] sm:$0xff]
      %v227 = vld [vmem:[%s196 + $0xb0] sm:$0xff]
      %v228 = vld [vmem:[%s196 + $0xb8] sm:$0xff]
      %v229 = vld [vmem:[%s196 + $0xc0] sm:$0xff]
      %v230 = vld [vmem:[%s196 + $0xc8] sm:$0xff]
      %v231 = vld [vmem:[%s196 + $0xd0] sm:$0xff]
      %v232 = vld [vmem:[%s196 + $0xd8] sm:$0xff]
      %v233 = vld [vmem:[%s196 + $0xe0] sm:$0xff]
      %v234 = vld [vmem:[%s196 + $0xe8] sm:$0xff]
      %v235 = vld [vmem:[%s196 + $0xf0] sm:$0xff]
      %v236 = vld [vmem:[%s196 + $0xf8] sm:$0xff]
      %v237 = vld [vmem:[%s196 + $0x100] sm:$0xff]
      %v238 = vld [vmem:[%s196 + $0x108] sm:$0xff]
      %v239 = vld [vmem:[%s196 + $0x110] sm:$0xff]
      %v240 = vld [vmem:[%s196 + $0x118] sm:$0xff]
      %v241 = vld [vmem:[%s196 + $0x120] sm:$0xff]
      %v242 = vld [vmem:[%s196 + $0x128] sm:$0xff]
      %v243 = vld [vmem:[%s196 + $0x130] sm:$0xff]
      %v244 = vld [vmem:[%s196 + $0x138] sm:$0xff]
      %v245 = vld [vmem:[%s196 + $0x140] sm:$0xff]
      %v246 = vld [vmem:[%s196 + $0x148] sm:$0xff]
      %v247 = vld [vmem:[%s196 + $0x150] sm:$0xff]
      %v248 = vld [vmem:[%s196 + $0x158] sm:$0xff]
      %v249 = vld [vmem:[%s196 + $0x160] sm:$0xff]
      %v250 = vld [vmem:[%s196 + $0x168] sm:$0xff]
      %v251 = vld [vmem:[%s196 + $0x170] sm:$0xff]
      %v252 = vld [vmem:[%s196 + $0x178] sm:$0xff]
      %v253 = vld [vmem:[%s196 + $0x180] sm:$0xff]
      %v254 = vld [vmem:[%s196 + $0x188] sm:$0xff]
      %v255 = vld [vmem:[%s196 + $0x190] sm:$0xff]
      %v256 = vld [vmem:[%s196 + $0x198] sm:$0xff]
      %v257 = vld [vmem:[%s196 + $0x1a0] sm:$0xff]
      %v258 = vld [vmem:[%s196 + $0x1a8] sm:$0xff]
      %v259 = vld [vmem:[%s196 + $0x1b0] sm:$0xff]
      %v260 = vld [vmem:[%s196 + $0x1b8] sm:$0xff]
      %v261 = vld [vmem:[%s196 + $0x1c0] sm:$0xff]
      %v262 = vld [vmem:[%s196 + $0x1c8] sm:$0xff]
      %v263 = vld [vmem:[%s196 + $0x1d0] sm:$0xff]
      %v264 = vld [vmem:[%s196 + $0x1d8] sm:$0xff]
      %v265 = vld [vmem:[%s196 + $0x1e0] sm:$0xff]
      %v266 = vld [vmem:[%s196 + $0x1e8] sm:$0xff]
      %v267 = vld [vmem:[%s196 + $0x1f0] sm:$0xff]
      %v268 = vld [vmem:[%s196 + $0x1f8] sm:$0xff]
      %v269 = vld [vmem:[%s1] sm:$0xf]
      %v270 = vld [vmem:[%s1 + $0x4] sm:$0xf]
      %v271 = vld [vmem:[%s1 + $0x8] sm:$0xf]
      %v272 = vld [vmem:[%s1 + $0xc] sm:$0xf]
      %v273 = vld [vmem:[%s1 + $0x10] sm:$0xf]
      %v274 = vld [vmem:[%s1 + $0x14] sm:$0xf]
      %v275 = vld [vmem:[%s1 + $0x18] sm:$0xf]
      %v276 = vld [vmem:[%s1 + $0x1c] sm:$0xf]
      %v277 = vld [vmem:[%s1 + $0x20] sm:$0xf]
      %v278 = vld [vmem:[%s1 + $0x24] sm:$0xf]
      %v279 = vld [vmem:[%s1 + $0x28] sm:$0xf]
      %v280 = vld [vmem:[%s1 + $0x2c] sm:$0xf]
      %v281 = vld [vmem:[%s1 + $0x30] sm:$0xf]
      %v282 = vld [vmem:[%s1 + $0x34] sm:$0xf]
      %v283 = vld [vmem:[%s1 + $0x38] sm:$0xf]
      %v284 = vld [vmem:[%s1 + $0x3c] sm:$0xf]
      %v285 = vld [vmem:[%s1 + $0x40] sm:$0xf]
      %v286 = vld [vmem:[%s1 + $0x44] sm:$0xf]
      %v351 = vunpack.c.l.b16 %v205
      %v352 = vunpack.c.h.b16 %v205
      %v353 = vunpack.c.l.b16 %v206
      %v354 = vunpack.c.h.b16 %v206
      %v355 = vunpack.c.l.b16 %v207
      %v356 = vunpack.c.h.b16 %v207
      %v357 = vunpack.c.l.b16 %v208
      %v358 = vunpack.c.h.b16 %v208
      %v359 = vunpack.c.l.b16 %v209
      %v360 = vunpack.c.h.b16 %v209
      %v361 = vunpack.c.l.b16 %v210
      %v362 = vunpack.c.h.b16 %v210
      %v363 = vunpack.c.l.b16 %v211
      %v364 = vunpack.c.h.b16 %v211
      %v365 = vunpack.c.l.b16 %v212
      %v366 = vunpack.c.h.b16 %v212
      %v367 = vunpack.c.l.b16 %v213
      %v368 = vunpack.c.h.b16 %v213
      %v369 = vunpack.c.l.b16 %v214
      %v370 = vunpack.c.h.b16 %v214
      %v371 = vunpack.c.l.b16 %v215
      %v372 = vunpack.c.h.b16 %v215
      %v373 = vunpack.c.l.b16 %v216
      %v374 = vunpack.c.h.b16 %v216
      %v375 = vunpack.c.l.b16 %v217
      %v376 = vunpack.c.h.b16 %v217
      %v377 = vunpack.c.l.b16 %v218
      %v378 = vunpack.c.h.b16 %v218
      %v379 = vunpack.c.l.b16 %v219
      %v380 = vunpack.c.h.b16 %v219
      %v381 = vunpack.c.l.b16 %v220
      %v382 = vunpack.c.h.b16 %v220
      %v383 = vunpack.c.l.b16 %v221
      %v384 = vunpack.c.h.b16 %v221
      %v385 = vunpack.c.l.b16 %v222
      %v386 = vunpack.c.h.b16 %v222
      %v387 = vunpack.c.l.b16 %v223
      %v388 = vunpack.c.h.b16 %v223
      %v389 = vunpack.c.l.b16 %v224
      %v390 = vunpack.c.h.b16 %v224
      %v391 = vunpack.c.l.b16 %v225
      %v392 = vunpack.c.h.b16 %v225
      %v393 = vunpack.c.l.b16 %v226
      %v394 = vunpack.c.h.b16 %v226
      %v395 = vunpack.c.l.b16 %v227
      %v396 = vunpack.c.h.b16 %v227
      %v397 = vunpack.c.l.b16 %v228
      %v398 = vunpack.c.h.b16 %v228
      %v399 = vunpack.c.l.b16 %v229
      %v400 = vunpack.c.h.b16 %v229
      %v401 = vunpack.c.l.b16 %v230
      %v402 = vunpack.c.h.b16 %v230
      %v403 = vunpack.c.l.b16 %v231
      %v404 = vunpack.c.h.b16 %v231
      %v405 = vunpack.c.l.b16 %v232
      %v406 = vunpack.c.h.b16 %v232
      %v407 = vunpack.c.l.b16 %v233
      %v408 = vunpack.c.h.b16 %v233
      %v409 = vunpack.c.l.b16 %v234
      %v410 = vunpack.c.h.b16 %v234
      %v411 = vunpack.c.l.b16 %v235
      %v412 = vunpack.c.h.b16 %v235
      %v413 = vunpack.c.l.b16 %v236
      %v414 = vunpack.c.h.b16 %v236
      %v415 = vunpack.c.l.b16 %v237
      %v416 = vunpack.c.h.b16 %v237
      %v417 = vunpack.c.l.b16 %v238
      %v418 = vunpack.c.h.b16 %v238
      %v419 = vunpack.c.l.b16 %v239
      %v420 = vunpack.c.h.b16 %v239
      %v421 = vunpack.c.l.b16 %v240
      %v422 = vunpack.c.h.b16 %v240
      %v423 = vunpack.c.l.b16 %v241
      %v424 = vunpack.c.h.b16 %v241
      %v425 = vunpack.c.l.b16 %v242
      %v426 = vunpack.c.h.b16 %v242
      %v427 = vunpack.c.l.b16 %v243
      %v428 = vunpack.c.h.b16 %v243
      %v429 = vunpack.c.l.b16 %v244
      %v430 = vunpack.c.h.b16 %v244
      %v431 = vunpack.c.l.b16 %v245
      %v432 = vunpack.c.h.b16 %v245
      %v433 = vunpack.c.l.b16 %v246
      %v434 = vunpack.c.h.b16 %v246
      %v435 = vunpack.c.l.b16 %v247
      %v436 = vunpack.c.h.b16 %v247
      %v437 = vunpack.c.l.b16 %v248
      %v438 = vunpack.c.h.b16 %v248
      %v439 = vunpack.c.l.b16 %v249
      %v440 = vunpack.c.h.b16 %v249
      %v441 = vunpack.c.l.b16 %v250
      %v442 = vunpack.c.h.b16 %v250
      %v443 = vunpack.c.l.b16 %v251
      %v444 = vunpack.c.h.b16 %v251
      %v445 = vunpack.c.l.b16 %v252
      %v446 = vunpack.c.h.b16 %v252
      %v447 = vunpack.c.l.b16 %v253
      %v448 = vunpack.c.h.b16 %v253
      %v449 = vunpack.c.l.b16 %v254
      %v450 = vunpack.c.h.b16 %v254
      %v451 = vunpack.c.l.b16 %v255
      %v452 = vunpack.c.h.b16 %v255
      %v453 = vunpack.c.l.b16 %v256
      %v454 = vunpack.c.h.b16 %v256
      %v455 = vunpack.c.l.b16 %v257
      %v456 = vunpack.c.h.b16 %v257
      %v457 = vunpack.c.l.b16 %v258
      %v458 = vunpack.c.h.b16 %v258
      %v459 = vunpack.c.l.b16 %v259
      %v460 = vunpack.c.h.b16 %v259
      %v461 = vunpack.c.l.b16 %v260
      %v462 = vunpack.c.h.b16 %v260
      %v463 = vunpack.c.l.b16 %v261
      %v464 = vunpack.c.h.b16 %v261
      %v465 = vunpack.c.l.b16 %v262
      %v466 = vunpack.c.h.b16 %v262
      %v467 = vunpack.c.l.b16 %v263
      %v468 = vunpack.c.h.b16 %v263
      %v469 = vunpack.c.l.b16 %v264
      %v470 = vunpack.c.h.b16 %v264
      %v471 = vunpack.c.l.b16 %v265
      %v472 = vunpack.c.h.b16 %v265
      %v473 = vunpack.c.l.b16 %v266
      %v474 = vunpack.c.h.b16 %v266
      %v475 = vunpack.c.l.b16 %v267
      %v476 = vunpack.c.h.b16 %v267
      %v477 = vunpack.c.l.b16 %v268
      %v478 = vunpack.c.h.b16 %v268
      %v479 = vpack.c.b16 %v353, %v351
      %v480 = vpack.c.b16 %v354, %v352
      %v481 = vpack.c.b16 %v357, %v355
      %v482 = vpack.c.b16 %v358, %v356
      %v483 = vpack.c.b16 %v361, %v359
      %v484 = vpack.c.b16 %v362, %v360
      %v485 = vpack.c.b16 %v365, %v363
      %v486 = vpack.c.b16 %v366, %v364
      %v487 = vpack.c.b16 %v369, %v367
      %v488 = vpack.c.b16 %v370, %v368
      %v489 = vpack.c.b16 %v373, %v371
      %v490 = vpack.c.b16 %v374, %v372
      %v491 = vpack.c.b16 %v377, %v375
      %v492 = vpack.c.b16 %v378, %v376
      %v493 = vpack.c.b16 %v381, %v379
      %v494 = vpack.c.b16 %v382, %v380
      %v495 = vpack.c.b16 %v385, %v383
      %v496 = vpack.c.b16 %v386, %v384
      %v497 = vpack.c.b16 %v389, %v387
      %v498 = vpack.c.b16 %v390, %v388
      %v499 = vpack.c.b16 %v393, %v391
      %v500 = vpack.c.b16 %v394, %v392
      %v501 = vpack.c.b16 %v397, %v395
      %v502 = vpack.c.b16 %v398, %v396
      %v503 = vpack.c.b16 %v401, %v399
      %v504 = vpack.c.b16 %v402, %v400
      %v505 = vpack.c.b16 %v405, %v403
      %v506 = vpack.c.b16 %v406, %v404
      %v507 = vpack.c.b16 %v409, %v407
      %v508 = vpack.c.b16 %v410, %v408
      %v509 = vpack.c.b16 %v413, %v411
      %v510 = vpack.c.b16 %v414, %v412
      %v511 = vpack.c.b16 %v417, %v415
      %v512 = vpack.c.b16 %v418, %v416
      %v513 = vpack.c.b16 %v421, %v419
      %v514 = vpack.c.b16 %v422, %v420
      %v515 = vpack.c.b16 %v425, %v423
      %v516 = vpack.c.b16 %v426, %v424
      %v517 = vpack.c.b16 %v429, %v427
      %v518 = vpack.c.b16 %v430, %v428
      %v519 = vpack.c.b16 %v433, %v431
      %v520 = vpack.c.b16 %v434, %v432
      %v521 = vpack.c.b16 %v437, %v435
      %v522 = vpack.c.b16 %v438, %v436
      %v523 = vpack.c.b16 %v441, %v439
      %v524 = vpack.c.b16 %v442, %v440
      %v525 = vpack.c.b16 %v445, %v443
      %v526 = vpack.c.b16 %v446, %v444
      %v527 = vpack.c.b16 %v449, %v447
      %v528 = vpack.c.b16 %v450, %v448
      %v529 = vpack.c.b16 %v453, %v451
      %v530 = vpack.c.b16 %v454, %v452
      %v531 = vpack.c.b16 %v457, %v455
      %v532 = vpack.c.b16 %v458, %v456
      %v533 = vpack.c.b16 %v461, %v459
      %v534 = vpack.c.b16 %v462, %v460
      %v535 = vpack.c.b16 %v465, %v463
      %v536 = vpack.c.b16 %v466, %v464
      %v537 = vpack.c.b16 %v469, %v467
      %v538 = vpack.c.b16 %v470, %v468
      %v539 = vpack.c.b16 %v473, %v471
      %v540 = vpack.c.b16 %v474, %v472
      %v541 = vpack.c.b16 %v477, %v475
      %v542 = vpack.c.b16 %v478, %v476
      %v593 = vunpack.c.l.b16 %v269
      %v594 = vunpack.c.l.b16 %v270
      %v595 = vunpack.c.l.b16 %v271
      %v596 = vunpack.c.l.b16 %v272
      %v597 = vunpack.c.l.b16 %v273
      %v598 = vunpack.c.l.b16 %v274
      %v599 = vunpack.c.l.b16 %v275
      %v600 = vunpack.c.l.b16 %v276
      %v601 = vunpack.c.l.b16 %v277
      %v602 = vunpack.c.l.b16 %v278
      %v603 = vunpack.c.l.b16 %v279
      %v604 = vunpack.c.l.b16 %v280
      %v605 = vunpack.c.l.b16 %v281
      %v606 = vunpack.c.l.b16 %v282
      %v607 = vunpack.c.l.b16 %v283
      %v608 = vunpack.c.l.b16 %v284
      %v609 = vunpack.c.l.b16 %v285
      %v610 = vunpack.c.l.b16 %v286
      %v611 = vpack.c.b16 %v594, %v593
      %v612 = vpack.c.b16 %v596, %v595
      %v613 = vpack.c.b16 %v598, %v597
      %v614 = vpack.c.b16 %v600, %v599
      %v615 = vpack.c.b16 %v602, %v601
      %v616 = vpack.c.b16 %v604, %v603
      %v617 = vpack.c.b16 %v606, %v605
      %v618 = vpack.c.b16 %v608, %v607
      %v619 = vpack.c.b16 %v610, %v609
      %vm629 = vcmask 130048
      %v631 = vsel %vm629, %v480, 0
      %v634 = vsel %vm629, %v482, 0
      %v637 = vsel %vm629, %v484, 0
      %v640 = vsel %vm629, %v486, 0
      %v643 = vsel %vm629, %v488, 0
      %v646 = vsel %vm629, %v490, 0
      %v649 = vsel %vm629, %v492, 0
      %v652 = vsel %vm629, %v494, 0
      %v655 = vsel %vm629, %v496, 0
      %v658 = vsel %vm629, %v498, 0
      %v661 = vsel %vm629, %v500, 0
      %v664 = vsel %vm629, %v502, 0
      %v667 = vsel %vm629, %v504, 0
      %v670 = vsel %vm629, %v506, 0
      %v673 = vsel %vm629, %v508, 0
      %v676 = vsel %vm629, %v510, 0
      %v679 = vsel %vm629, %v512, 0
      %v682 = vsel %vm629, %v514, 0
      %v685 = vsel %vm629, %v516, 0
      %v688 = vsel %vm629, %v518, 0
      %v691 = vsel %vm629, %v520, 0
      %v694 = vsel %vm629, %v522, 0
      %v697 = vsel %vm629, %v524, 0
      %v700 = vsel %vm629, %v526, 0
      %v703 = vsel %vm629, %v528, 0
      %v706 = vsel %vm629, %v530, 0
      %v709 = vsel %vm629, %v532, 0
      %v712 = vsel %vm629, %v534, 0
      %v715 = vsel %vm629, %v536, 0
      %v718 = vsel %vm629, %v538, 0
      %v721 = vsel %vm629, %v540, 0
      %v724 = vsel %vm629, %v542, 0
      %726 = vmatprep.subr.bf16.mxu0 0
      %727 = vmatpush1.bf16.msra.mxu0 %v618
      %728 = vmatprep.subr.bf16.mxu0 0
      %729 = vmatpush1.bf16.msra.mxu0 %v617
      %730 = vmatprep.subr.bf16.mxu0 0
      %731 = vmatpush1.bf16.msra.mxu0 %v616
      %732 = vmatprep.subr.bf16.mxu0 0
      %733 = vmatpush1.bf16.msra.mxu0 %v615
      %734 = vmatprep.subr.bf16.mxu0 0
      %735 = vmatpush1.bf16.msra.mxu0 %v614
      %736 = vmatprep.subr.bf16.mxu0 0
      %737 = vmatpush1.bf16.msra.mxu0 %v613
      %738 = vmatprep.subr.bf16.mxu0 0
      %739 = vmatpush1.bf16.msra.mxu0 %v612
      %740 = vmatprep.subr.bf16.mxu0 0
      %741 = vmatpush1.bf16.msra.mxu0 %v611
      %742 = vmatprep.subr.bf16.mxu0 0
      %743 = vmatpush2.bf16.msra.mxu0 0
      %744 = vmatprep.subr.bf16.mxu0 0
      %745 = vmatpush2.bf16.msra.mxu0 0
      %746 = vmatprep.subr.bf16.mxu0 0
      %747 = vmatpush2.bf16.msra.mxu0 0
      %748 = vmatprep.subr.bf16.mxu0 0
      %749 = vmatpush2.bf16.msra.mxu0 0
      %750 = vmatprep.subr.bf16.mxu0 0
      %751 = vmatpush2.bf16.msra.mxu0 0
      %752 = vmatprep.subr.bf16.mxu0 0
      %753 = vmatpush2.bf16.msra.mxu0 0
      %754 = vmatprep.subr.bf16.mxu0 0
      %755 = vmatpush2.bf16.msra.mxu0 0
      %756 = vmatprep.subr.bf16.mxu0 0
      %757 = vmatpush2.bf16.msra.mxu0 %v619
      %758 = vmatprep.mubr.bf16.mxu0 %v631
      %759 = vmatmul.mubr.bf16.gmra.mxu0 %v479
      %v760 = vpop.f32.mrf.mxu0
      %v761 = vadd.f32 0.0, %v760
      %v762 = vpop.f32.mrf.mxu0
      %v763 = vpop.f32.mrf.mxu0
      %v764 = vadd.f32 0.0, %v763
      %v765 = vpop.f32.mrf.mxu0
      %766 = vmatprep.mubr.bf16.mxu0 %v634
      %767 = vmatmul.mubr.bf16.gmra.mxu0 %v481
      %v768 = vpop.f32.mrf.mxu0
      %v769 = vadd.f32 0.0, %v768
      %v770 = vpop.f32.mrf.mxu0
      %v771 = vpop.f32.mrf.mxu0
      %v772 = vadd.f32 0.0, %v771
      %v773 = vpop.f32.mrf.mxu0
      %774 = vmatprep.mubr.bf16.mxu0 %v637
      %775 = vmatmul.mubr.bf16.gmra.mxu0 %v483
      %v776 = vpop.f32.mrf.mxu0
      %v777 = vadd.f32 0.0, %v776
      %v778 = vpop.f32.mrf.mxu0
      %v779 = vpop.f32.mrf.mxu0
      %v780 = vadd.f32 0.0, %v779
      %v781 = vpop.f32.mrf.mxu0
      %782 = vmatprep.mubr.bf16.mxu0 %v640
      %783 = vmatmul.mubr.bf16.gmra.mxu0 %v485
      %v784 = vpop.f32.mrf.mxu0
      %v785 = vadd.f32 0.0, %v784
      %v786 = vpop.f32.mrf.mxu0
      %v787 = vpop.f32.mrf.mxu0
      %v788 = vadd.f32 0.0, %v787
      %v789 = vpop.f32.mrf.mxu0
      %790 = vmatprep.mubr.bf16.mxu0 %v643
      %791 = vmatmul.mubr.bf16.gmra.mxu0 %v487
      %v792 = vpop.f32.mrf.mxu0
      %v793 = vadd.f32 0.0, %v792
      %v794 = vpop.f32.mrf.mxu0
      %v795 = vpop.f32.mrf.mxu0
      %v796 = vadd.f32 0.0, %v795
      %v797 = vpop.f32.mrf.mxu0
      %798 = vmatprep.mubr.bf16.mxu0 %v646
      %799 = vmatmul.mubr.bf16.gmra.mxu0 %v489
      %v800 = vpop.f32.mrf.mxu0
      %v801 = vadd.f32 0.0, %v800
      %v802 = vpop.f32.mrf.mxu0
      %v803 = vpop.f32.mrf.mxu0
      %v804 = vadd.f32 0.0, %v803
      %v805 = vpop.f32.mrf.mxu0
      %806 = vmatprep.mubr.bf16.mxu0 %v649
      %807 = vmatmul.mubr.bf16.gmra.mxu0 %v491
      %v808 = vpop.f32.mrf.mxu0
      %v809 = vadd.f32 0.0, %v808
      %v810 = vpop.f32.mrf.mxu0
      %v811 = vpop.f32.mrf.mxu0
      %v812 = vadd.f32 0.0, %v811
      %v813 = vpop.f32.mrf.mxu0
      %814 = vmatprep.mubr.bf16.mxu0 %v652
      %815 = vmatmul.mubr.bf16.gmra.mxu0 %v493
      %v816 = vpop.f32.mrf.mxu0
      %v817 = vadd.f32 0.0, %v816
      %v818 = vpop.f32.mrf.mxu0
      %v819 = vpop.f32.mrf.mxu0
      %v820 = vadd.f32 0.0, %v819
      %v821 = vpop.f32.mrf.mxu0
      %822 = vmatprep.mubr.bf16.mxu0 %v655
      %823 = vmatmul.mubr.bf16.gmra.mxu0 %v495
      %v824 = vpop.f32.mrf.mxu0
      %v825 = vadd.f32 0.0, %v824
      %v826 = vpop.f32.mrf.mxu0
      %v827 = vpop.f32.mrf.mxu0
      %v828 = vadd.f32 0.0, %v827
      %v829 = vpop.f32.mrf.mxu0
      %830 = vmatprep.mubr.bf16.mxu0 %v658
      %831 = vmatmul.mubr.bf16.gmra.mxu0 %v497
      %v832 = vpop.f32.mrf.mxu0
      %v833 = vadd.f32 0.0, %v832
      %v834 = vpop.f32.mrf.mxu0
      %v835 = vpop.f32.mrf.mxu0
      %v836 = vadd.f32 0.0, %v835
      %v837 = vpop.f32.mrf.mxu0
      %838 = vmatprep.mubr.bf16.mxu0 %v661
      %839 = vmatmul.mubr.bf16.gmra.mxu0 %v499
      %v840 = vpop.f32.mrf.mxu0
      %v841 = vadd.f32 0.0, %v840
      %v842 = vpop.f32.mrf.mxu0
      %v843 = vpop.f32.mrf.mxu0
      %v844 = vadd.f32 0.0, %v843
      %v845 = vpop.f32.mrf.mxu0
      %846 = vmatprep.mubr.bf16.mxu0 %v664
      %847 = vmatmul.mubr.bf16.gmra.mxu0 %v501
      %v848 = vpop.f32.mrf.mxu0
      %v849 = vadd.f32 0.0, %v848
      %v850 = vpop.f32.mrf.mxu0
      %v851 = vpop.f32.mrf.mxu0
      %v852 = vadd.f32 0.0, %v851
      %v853 = vpop.f32.mrf.mxu0
      %854 = vmatprep.mubr.bf16.mxu0 %v667
      %855 = vmatmul.mubr.bf16.gmra.mxu0 %v503
      %v856 = vpop.f32.mrf.mxu0
      %v857 = vadd.f32 0.0, %v856
      %v858 = vpop.f32.mrf.mxu0
      %v859 = vpop.f32.mrf.mxu0
      %v860 = vadd.f32 0.0, %v859
      %v861 = vpop.f32.mrf.mxu0
      %862 = vmatprep.mubr.bf16.mxu0 %v670
      %863 = vmatmul.mubr.bf16.gmra.mxu0 %v505
      %v864 = vpop.f32.mrf.mxu0
      %v865 = vadd.f32 0.0, %v864
      %v866 = vpop.f32.mrf.mxu0
      %v867 = vpop.f32.mrf.mxu0
      %v868 = vadd.f32 0.0, %v867
      %v869 = vpop.f32.mrf.mxu0
      %870 = vmatprep.mubr.bf16.mxu0 %v673
      %871 = vmatmul.mubr.bf16.gmra.mxu0 %v507
      %v872 = vpop.f32.mrf.mxu0
      %v873 = vadd.f32 0.0, %v872
      %v874 = vpop.f32.mrf.mxu0
      %v875 = vpop.f32.mrf.mxu0
      %v876 = vadd.f32 0.0, %v875
      %v877 = vpop.f32.mrf.mxu0
      %878 = vmatprep.mubr.bf16.mxu0 %v676
      %879 = vmatmul.mubr.bf16.gmra.mxu0 %v509
      %v880 = vpop.f32.mrf.mxu0
      %v881 = vadd.f32 0.0, %v880
      %v882 = vpop.f32.mrf.mxu0
      %v883 = vpop.f32.mrf.mxu0
      %v884 = vadd.f32 0.0, %v883
      %v885 = vpop.f32.mrf.mxu0
      %886 = vmatprep.mubr.bf16.mxu0 %v679
      %887 = vmatmul.mubr.bf16.gmra.mxu0 %v511
      %v888 = vpop.f32.mrf.mxu0
      %v889 = vadd.f32 0.0, %v888
      %v890 = vpop.f32.mrf.mxu0
      %v891 = vpop.f32.mrf.mxu0
      %v892 = vadd.f32 0.0, %v891
      %v893 = vpop.f32.mrf.mxu0
      %894 = vmatprep.mubr.bf16.mxu0 %v682
      %895 = vmatmul.mubr.bf16.gmra.mxu0 %v513
      %v896 = vpop.f32.mrf.mxu0
      %v897 = vadd.f32 0.0, %v896
      %v898 = vpop.f32.mrf.mxu0
      %v899 = vpop.f32.mrf.mxu0
      %v900 = vadd.f32 0.0, %v899
      %v901 = vpop.f32.mrf.mxu0
      %902 = vmatprep.mubr.bf16.mxu0 %v685
      %903 = vmatmul.mubr.bf16.gmra.mxu0 %v515
      %v904 = vpop.f32.mrf.mxu0
      %v905 = vadd.f32 0.0, %v904
      %v906 = vpop.f32.mrf.mxu0
      %v907 = vpop.f32.mrf.mxu0
      %v908 = vadd.f32 0.0, %v907
      %v909 = vpop.f32.mrf.mxu0
      %910 = vmatprep.mubr.bf16.mxu0 %v688
      %911 = vmatmul.mubr.bf16.gmra.mxu0 %v517
      %v912 = vpop.f32.mrf.mxu0
      %v913 = vadd.f32 0.0, %v912
      %v914 = vpop.f32.mrf.mxu0
      %v915 = vpop.f32.mrf.mxu0
      %v916 = vadd.f32 0.0, %v915
      %v917 = vpop.f32.mrf.mxu0
      %918 = vmatprep.mubr.bf16.mxu0 %v691
      %919 = vmatmul.mubr.bf16.gmra.mxu0 %v519
      %v920 = vpop.f32.mrf.mxu0
      %v921 = vadd.f32 0.0, %v920
      %v922 = vpop.f32.mrf.mxu0
      %v923 = vpop.f32.mrf.mxu0
      %v924 = vadd.f32 0.0, %v923
      %v925 = vpop.f32.mrf.mxu0
      %926 = vmatprep.mubr.bf16.mxu0 %v694
      %927 = vmatmul.mubr.bf16.gmra.mxu0 %v521
      %v928 = vpop.f32.mrf.mxu0
      %v929 = vadd.f32 0.0, %v928
      %v930 = vpop.f32.mrf.mxu0
      %v931 = vpop.f32.mrf.mxu0
      %v932 = vadd.f32 0.0, %v931
      %v933 = vpop.f32.mrf.mxu0
      %934 = vmatprep.mubr.bf16.mxu0 %v697
      %935 = vmatmul.mubr.bf16.gmra.mxu0 %v523
      %v936 = vpop.f32.mrf.mxu0
      %v937 = vadd.f32 0.0, %v936
      %v938 = vpop.f32.mrf.mxu0
      %v939 = vpop.f32.mrf.mxu0
      %v940 = vadd.f32 0.0, %v939
      %v941 = vpop.f32.mrf.mxu0
      %942 = vmatprep.mubr.bf16.mxu0 %v700
      %943 = vmatmul.mubr.bf16.gmra.mxu0 %v525
      %v944 = vpop.f32.mrf.mxu0
      %v945 = vadd.f32 0.0, %v944
      %v946 = vpop.f32.mrf.mxu0
      %v947 = vpop.f32.mrf.mxu0
      %v948 = vadd.f32 0.0, %v947
      %v949 = vpop.f32.mrf.mxu0
      %950 = vmatprep.mubr.bf16.mxu0 %v703
      %951 = vmatmul.mubr.bf16.gmra.mxu0 %v527
      %v952 = vpop.f32.mrf.mxu0
      %v953 = vadd.f32 0.0, %v952
      %v954 = vpop.f32.mrf.mxu0
      %v955 = vpop.f32.mrf.mxu0
      %v956 = vadd.f32 0.0, %v955
      %v957 = vpop.f32.mrf.mxu0
      %958 = vmatprep.mubr.bf16.mxu0 %v706
      %959 = vmatmul.mubr.bf16.gmra.mxu0 %v529
      %v960 = vpop.f32.mrf.mxu0
      %v961 = vadd.f32 0.0, %v960
      %v962 = vpop.f32.mrf.mxu0
      %v963 = vpop.f32.mrf.mxu0
      %v964 = vadd.f32 0.0, %v963
      %v965 = vpop.f32.mrf.mxu0
      %966 = vmatprep.mubr.bf16.mxu0 %v709
      %967 = vmatmul.mubr.bf16.gmra.mxu0 %v531
      %v968 = vpop.f32.mrf.mxu0
      %v969 = vadd.f32 0.0, %v968
      %v970 = vpop.f32.mrf.mxu0
      %v971 = vpop.f32.mrf.mxu0
      %v972 = vadd.f32 0.0, %v971
      %v973 = vpop.f32.mrf.mxu0
      %974 = vmatprep.mubr.bf16.mxu0 %v712
      %975 = vmatmul.mubr.bf16.gmra.mxu0 %v533
      %v976 = vpop.f32.mrf.mxu0
      %v977 = vadd.f32 0.0, %v976
      %v978 = vpop.f32.mrf.mxu0
      %v979 = vpop.f32.mrf.mxu0
      %v980 = vadd.f32 0.0, %v979
      %v981 = vpop.f32.mrf.mxu0
      %982 = vmatprep.mubr.bf16.mxu0 %v715
      %983 = vmatmul.mubr.bf16.gmra.mxu0 %v535
      %v984 = vpop.f32.mrf.mxu0
      %v985 = vadd.f32 0.0, %v984
      %v986 = vpop.f32.mrf.mxu0
      %v987 = vpop.f32.mrf.mxu0
      %v988 = vadd.f32 0.0, %v987
      %v989 = vpop.f32.mrf.mxu0
      %990 = vmatprep.mubr.bf16.mxu0 %v718
      %991 = vmatmul.mubr.bf16.gmra.mxu0 %v537
      %v992 = vpop.f32.mrf.mxu0
      %v993 = vadd.f32 0.0, %v992
      %v994 = vpop.f32.mrf.mxu0
      %v995 = vpop.f32.mrf.mxu0
      %v996 = vadd.f32 0.0, %v995
      %v997 = vpop.f32.mrf.mxu0
      %998 = vmatprep.mubr.bf16.mxu0 %v721
      %999 = vmatmul.mubr.bf16.gmra.mxu0 %v539
      %v1000 = vpop.f32.mrf.mxu0
      %v1001 = vadd.f32 0.0, %v1000
      %v1002 = vpop.f32.mrf.mxu0
      %v1003 = vpop.f32.mrf.mxu0
      %v1004 = vadd.f32 0.0, %v1003
      %v1005 = vpop.f32.mrf.mxu0
      %1006 = vmatprep.mubr.bf16.mxu0 %v724
      %1007 = vmatmul.mubr.bf16.gmra.mxu0 %v541
      %v1008 = vpop.f32.mrf.mxu0
      %v1009 = vadd.f32 0.0, %v1008
      %v1010 = vpop.f32.mrf.mxu0
      %v1011 = vpop.f32.mrf.mxu0
      %v1012 = vadd.f32 0.0, %v1011
      %v1013 = vpop.f32.mrf.mxu0
      %1014 = vdwg.mxu0
      %v1015 = vld [vmem:[%s2] sm:$0x1]
      %v1017 = vlaneseq
      %v1018 = vshrl.u32 %v1017, 7
      %v1019 = vsub.s32 0, %v1018
      %v1020 = vrot.slane %v1015, %v1019
      %v1022 = vmul.f32 %v761, %v1020
      %v1023 = vmul.f32 %v764, %v1020
      %v1024 = vmul.f32 %v769, %v1020
      %v1025 = vmul.f32 %v772, %v1020
      %v1026 = vmul.f32 %v777, %v1020
      %v1027 = vmul.f32 %v780, %v1020
      %v1028 = vmul.f32 %v785, %v1020
      %v1029 = vmul.f32 %v788, %v1020
      %v1030 = vmul.f32 %v793, %v1020
      %v1031 = vmul.f32 %v796, %v1020
      %v1032 = vmul.f32 %v801, %v1020
      %v1033 = vmul.f32 %v804, %v1020
      %v1034 = vmul.f32 %v809, %v1020
      %v1035 = vmul.f32 %v812, %v1020
      %v1036 = vmul.f32 %v817, %v1020
      %v1037 = vmul.f32 %v820, %v1020
      %v1038 = vmul.f32 %v825, %v1020
      %v1039 = vmul.f32 %v828, %v1020
      %v1040 = vmul.f32 %v833, %v1020
      %v1041 = vmul.f32 %v836, %v1020
      %v1042 = vmul.f32 %v841, %v1020
      %v1043 = vmul.f32 %v844, %v1020
      %v1044 = vmul.f32 %v849, %v1020
      %v1045 = vmul.f32 %v852, %v1020
      %v1046 = vmul.f32 %v857, %v1020
      %v1047 = vmul.f32 %v860, %v1020
      %v1048 = vmul.f32 %v865, %v1020
      %v1049 = vmul.f32 %v868, %v1020
      %v1050 = vmul.f32 %v873, %v1020
      %v1051 = vmul.f32 %v876, %v1020
      %v1052 = vmul.f32 %v881, %v1020
      %v1053 = vmul.f32 %v884, %v1020
      %v1054 = vmul.f32 %v889, %v1020
      %v1055 = vmul.f32 %v892, %v1020
      %v1056 = vmul.f32 %v897, %v1020
      %v1057 = vmul.f32 %v900, %v1020
      %v1058 = vmul.f32 %v905, %v1020
      %v1059 = vmul.f32 %v908, %v1020
      %v1060 = vmul.f32 %v913, %v1020
      %v1061 = vmul.f32 %v916, %v1020
      %v1062 = vmul.f32 %v921, %v1020
      %v1063 = vmul.f32 %v924, %v1020
      %v1064 = vmul.f32 %v929, %v1020
      %v1065 = vmul.f32 %v932, %v1020
      %v1066 = vmul.f32 %v937, %v1020
      %v1067 = vmul.f32 %v940, %v1020
      %v1068 = vmul.f32 %v945, %v1020
      %v1069 = vmul.f32 %v948, %v1020
      %v1070 = vmul.f32 %v953, %v1020
      %v1071 = vmul.f32 %v956, %v1020
      %v1072 = vmul.f32 %v961, %v1020
      %v1073 = vmul.f32 %v964, %v1020
      %v1074 = vmul.f32 %v969, %v1020
      %v1075 = vmul.f32 %v972, %v1020
      %v1076 = vmul.f32 %v977, %v1020
      %v1077 = vmul.f32 %v980, %v1020
      %v1078 = vmul.f32 %v985, %v1020
      %v1079 = vmul.f32 %v988, %v1020
      %v1080 = vmul.f32 %v993, %v1020
      %v1081 = vmul.f32 %v996, %v1020
      %v1082 = vmul.f32 %v1001, %v1020
      %v1083 = vmul.f32 %v1004, %v1020
      %v1084 = vmul.f32 %v1009, %v1020
      %v1085 = vmul.f32 %v1012, %v1020
      %v1086 = vld [vmem:[%s3] sm:$0x1]
      %v1088 = vlaneseq
      %v1089 = vshrl.u32 %v1088, 7
      %v1090 = vsub.s32 0, %v1089
      %v1091 = vrot.slane %v1086, %v1090
      %v1093 = vadd.f32 %v1022, %v1091
      %v1094 = vadd.f32 %v1023, %v1091
      %v1095 = vadd.f32 %v1024, %v1091
      %v1096 = vadd.f32 %v1025, %v1091
      %v1097 = vadd.f32 %v1026, %v1091
      %v1098 = vadd.f32 %v1027, %v1091
      %v1099 = vadd.f32 %v1028, %v1091
      %v1100 = vadd.f32 %v1029, %v1091
      %v1101 = vadd.f32 %v1030, %v1091
      %v1102 = vadd.f32 %v1031, %v1091
      %v1103 = vadd.f32 %v1032, %v1091
      %v1104 = vadd.f32 %v1033, %v1091
      %v1105 = vadd.f32 %v1034, %v1091
      %v1106 = vadd.f32 %v1035, %v1091
      %v1107 = vadd.f32 %v1036, %v1091
      %v1108 = vadd.f32 %v1037, %v1091
      %v1109 = vadd.f32 %v1038, %v1091
      %v1110 = vadd.f32 %v1039, %v1091
      %v1111 = vadd.f32 %v1040, %v1091
      %v1112 = vadd.f32 %v1041, %v1091
      %v1113 = vadd.f32 %v1042, %v1091
      %v1114 = vadd.f32 %v1043, %v1091
      %v1115 = vadd.f32 %v1044, %v1091
      %v1116 = vadd.f32 %v1045, %v1091
      %v1117 = vadd.f32 %v1046, %v1091
      %v1118 = vadd.f32 %v1047, %v1091
      %v1119 = vadd.f32 %v1048, %v1091
      %v1120 = vadd.f32 %v1049, %v1091
      %v1121 = vadd.f32 %v1050, %v1091
      %v1122 = vadd.f32 %v1051, %v1091
      %v1123 = vadd.f32 %v1052, %v1091
      %v1124 = vadd.f32 %v1053, %v1091
      %v1125 = vadd.f32 %v1054, %v1091
      %v1126 = vadd.f32 %v1055, %v1091
      %v1127 = vadd.f32 %v1056, %v1091
      %v1128 = vadd.f32 %v1057, %v1091
      %v1129 = vadd.f32 %v1058, %v1091
      %v1130 = vadd.f32 %v1059, %v1091
      %v1131 = vadd.f32 %v1060, %v1091
      %v1132 = vadd.f32 %v1061, %v1091
      %v1133 = vadd.f32 %v1062, %v1091
      %v1134 = vadd.f32 %v1063, %v1091
      %v1135 = vadd.f32 %v1064, %v1091
      %v1136 = vadd.f32 %v1065, %v1091
      %v1137 = vadd.f32 %v1066, %v1091
      %v1138 = vadd.f32 %v1067, %v1091
      %v1139 = vadd.f32 %v1068, %v1091
      %v1140 = vadd.f32 %v1069, %v1091
      %v1141 = vadd.f32 %v1070, %v1091
      %v1142 = vadd.f32 %v1071, %v1091
      %v1143 = vadd.f32 %v1072, %v1091
      %v1144 = vadd.f32 %v1073, %v1091
      %v1145 = vadd.f32 %v1074, %v1091
      %v1146 = vadd.f32 %v1075, %v1091
      %v1147 = vadd.f32 %v1076, %v1091
      %v1148 = vadd.f32 %v1077, %v1091
      %v1149 = vadd.f32 %v1078, %v1091
      %v1150 = vadd.f32 %v1079, %v1091
      %v1151 = vadd.f32 %v1080, %v1091
      %v1152 = vadd.f32 %v1081, %v1091
      %v1153 = vadd.f32 %v1082, %v1091
      %v1154 = vadd.f32 %v1083, %v1091
      %v1155 = vadd.f32 %v1084, %v1091
      %v1156 = vadd.f32 %v1085, %v1091
      %v1157 = vtanh.pop %v1093
      %v1158 = vtanh.pop %v1094
      %v1159 = vtanh.pop %v1095
      %v1160 = vtanh.pop %v1096
      %v1161 = vtanh.pop %v1097
      %v1162 = vtanh.pop %v1098
      %v1163 = vtanh.pop %v1099
      %v1164 = vtanh.pop %v1100
      %v1165 = vtanh.pop %v1101
      %v1166 = vtanh.pop %v1102
      %v1167 = vtanh.pop %v1103
      %v1168 = vtanh.pop %v1104
      %v1169 = vtanh.pop %v1105
      %v1170 = vtanh.pop %v1106
      %v1171 = vtanh.pop %v1107
      %v1172 = vtanh.pop %v1108
      %v1173 = vtanh.pop %v1109
      %v1174 = vtanh.pop %v1110
      %v1175 = vtanh.pop %v1111
      %v1176 = vtanh.pop %v1112
      %v1177 = vtanh.pop %v1113
      %v1178 = vtanh.pop %v1114
      %v1179 = vtanh.pop %v1115
      %v1180 = vtanh.pop %v1116
      %v1181 = vtanh.pop %v1117
      %v1182 = vtanh.pop %v1118
      %v1183 = vtanh.pop %v1119
      %v1184 = vtanh.pop %v1120
      %v1185 = vtanh.pop %v1121
      %v1186 = vtanh.pop %v1122
      %v1187 = vtanh.pop %v1123
      %v1188 = vtanh.pop %v1124
      %v1189 = vtanh.pop %v1125
      %v1190 = vtanh.pop %v1126
      %v1191 = vtanh.pop %v1127
      %v1192 = vtanh.pop %v1128
      %v1193 = vtanh.pop %v1129
      %v1194 = vtanh.pop %v1130
      %v1195 = vtanh.pop %v1131
      %v1196 = vtanh.pop %v1132
      %v1197 = vtanh.pop %v1133
      %v1198 = vtanh.pop %v1134
      %v1199 = vtanh.pop %v1135
      %v1200 = vtanh.pop %v1136
      %v1201 = vtanh.pop %v1137
      %v1202 = vtanh.pop %v1138
      %v1203 = vtanh.pop %v1139
      %v1204 = vtanh.pop %v1140
      %v1205 = vtanh.pop %v1141
      %v1206 = vtanh.pop %v1142
      %v1207 = vtanh.pop %v1143
      %v1208 = vtanh.pop %v1144
      %v1209 = vtanh.pop %v1145
      %v1210 = vtanh.pop %v1146
      %v1211 = vtanh.pop %v1147
      %v1212 = vtanh.pop %v1148
      %v1213 = vtanh.pop %v1149
      %v1214 = vtanh.pop %v1150
      %v1215 = vtanh.pop %v1151
      %v1216 = vtanh.pop %v1152
      %v1217 = vtanh.pop %v1153
      %v1218 = vtanh.pop %v1154
      %v1219 = vtanh.pop %v1155
      %v1220 = vtanh.pop %v1156
      %1221 = vst [vmem:[%s202] sm:$0xff] %v1157
      %1222 = vst [vmem:[%s202 + $0x8] sm:$0xff] %v1158
      %1223 = vst [vmem:[%s202 + $0x10] sm:$0xff] %v1159
      %1224 = vst [vmem:[%s202 + $0x18] sm:$0xff] %v1160
      %1225 = vst [vmem:[%s202 + $0x20] sm:$0xff] %v1161
      %1226 = vst [vmem:[%s202 + $0x28] sm:$0xff] %v1162
      %1227 = vst [vmem:[%s202 + $0x30] sm:$0xff] %v1163
      %1228 = vst [vmem:[%s202 + $0x38] sm:$0xff] %v1164
      %1229 = vst [vmem:[%s202 + $0x40] sm:$0xff] %v1165
      %1230 = vst [vmem:[%s202 + $0x48] sm:$0xff] %v1166
      %1231 = vst [vmem:[%s202 + $0x50] sm:$0xff] %v1167
      %1232 = vst [vmem:[%s202 + $0x58] sm:$0xff] %v1168
      %1233 = vst [vmem:[%s202 + $0x60] sm:$0xff] %v1169
      %1234 = vst [vmem:[%s202 + $0x68] sm:$0xff] %v1170
      %1235 = vst [vmem:[%s202 + $0x70] sm:$0xff] %v1171
      %1236 = vst [vmem:[%s202 + $0x78] sm:$0xff] %v1172
      %1237 = vst [vmem:[%s202 + $0x80] sm:$0xff] %v1173
      %1238 = vst [vmem:[%s202 + $0x88] sm:$0xff] %v1174
      %1239 = vst [vmem:[%s202 + $0x90] sm:$0xff] %v1175
      %1240 = vst [vmem:[%s202 + $0x98] sm:$0xff] %v1176
      %1241 = vst [vmem:[%s202 + $0xa0] sm:$0xff] %v1177
      %1242 = vst [vmem:[%s202 + $0xa8] sm:$0xff] %v1178
      %1243 = vst [vmem:[%s202 + $0xb0] sm:$0xff] %v1179
      %1244 = vst [vmem:[%s202 + $0xb8] sm:$0xff] %v1180
      %1245 = vst [vmem:[%s202 + $0xc0] sm:$0xff] %v1181
      %1246 = vst [vmem:[%s202 + $0xc8] sm:$0xff] %v1182
      %1247 = vst [vmem:[%s202 + $0xd0] sm:$0xff] %v1183
      %1248 = vst [vmem:[%s202 + $0xd8] sm:$0xff] %v1184
      %1249 = vst [vmem:[%s202 + $0xe0] sm:$0xff] %v1185
      %1250 = vst [vmem:[%s202 + $0xe8] sm:$0xff] %v1186
      %1251 = vst [vmem:[%s202 + $0xf0] sm:$0xff] %v1187
      %1252 = vst [vmem:[%s202 + $0xf8] sm:$0xff] %v1188
      %1253 = vst [vmem:[%s202 + $0x100] sm:$0xff] %v1189
      %1254 = vst [vmem:[%s202 + $0x108] sm:$0xff] %v1190
      %1255 = vst [vmem:[%s202 + $0x110] sm:$0xff] %v1191
      %1256 = vst [vmem:[%s202 + $0x118] sm:$0xff] %v1192
      %1257 = vst [vmem:[%s202 + $0x120] sm:$0xff] %v1193
      %1258 = vst [vmem:[%s202 + $0x128] sm:$0xff] %v1194
      %1259 = vst [vmem:[%s202 + $0x130] sm:$0xff] %v1195
      %1260 = vst [vmem:[%s202 + $0x138] sm:$0xff] %v1196
      %1261 = vst [vmem:[%s202 + $0x140] sm:$0xff] %v1197
      %1262 = vst [vmem:[%s202 + $0x148] sm:$0xff] %v1198
      %1263 = vst [vmem:[%s202 + $0x150] sm:$0xff] %v1199
      %1264 = vst [vmem:[%s202 + $0x158] sm:$0xff] %v1200
      %1265 = vst [vmem:[%s202 + $0x160] sm:$0xff] %v1201
      %1266 = vst [vmem:[%s202 + $0x168] sm:$0xff] %v1202
      %1267 = vst [vmem:[%s202 + $0x170] sm:$0xff] %v1203
      %1268 = vst [vmem:[%s202 + $0x178] sm:$0xff] %v1204
      %1269 = vst [vmem:[%s202 + $0x180] sm:$0xff] %v1205
      %1270 = vst [vmem:[%s202 + $0x188] sm:$0xff] %v1206
      %1271 = vst [vmem:[%s202 + $0x190] sm:$0xff] %v1207
      %1272 = vst [vmem:[%s202 + $0x198] sm:$0xff] %v1208
      %1273 = vst [vmem:[%s202 + $0x1a0] sm:$0xff] %v1209
      %1274 = vst [vmem:[%s202 + $0x1a8] sm:$0xff] %v1210
      %1275 = vst [vmem:[%s202 + $0x1b0] sm:$0xff] %v1211
      %1276 = vst [vmem:[%s202 + $0x1b8] sm:$0xff] %v1212
      %1277 = vst [vmem:[%s202 + $0x1c0] sm:$0xff] %v1213
      %1278 = vst [vmem:[%s202 + $0x1c8] sm:$0xff] %v1214
      %1279 = vst [vmem:[%s202 + $0x1d0] sm:$0xff] %v1215
      %1280 = vst [vmem:[%s202 + $0x1d8] sm:$0xff] %v1216
      %1281 = vst [vmem:[%s202 + $0x1e0] sm:$0xff] %v1217
      %1282 = vst [vmem:[%s202 + $0x1e8] sm:$0xff] %v1218
      %1283 = vst [vmem:[%s202 + $0x1f0] sm:$0xff] %v1219
      %1284 = vst [vmem:[%s202 + $0x1f8] sm:$0xff] %v1220
      %s1285 = smul.u32 64, %s15
      %p1286 = scmp.lt.s32.totalorder %s1285, 1023
      %s1287 = scalar_select %p1286, %s1285, 1023
      %s1288 = smul.addr %s1287, 8
      %s1289 = scalar_lea.vmem %s4, %s1288
      // Predicated region
      $region37: #{vae_forward.15} parent=35 // pred_check
        %p1290 = pneg %p122
      $region38: #{vae_forward.15} parent=35 // pred_check_branch
        %1292 = sbr.rel (%p1290) target = $region40
      $region39: #{vae_forward.15} parent=35 // pred_region
        %s1293 = smul.u32 64, %s15
      $region40: #{vae_forward.15} parent=35 // pred_fallthru
        _
    $region36: #{vae_forward.15} parent=5 // pred_fallthru
      _
    %p1294 = scmp.le.s32.totalorder 2, %s10
    // Predicated region
    $region41: #{vae_forward.15} parent=5 // pred_check
      %p1295 = pneg %p1294
    $region42: #{vae_forward.15} parent=5 // pred_check_branch
      %1297 = sbr.rel (%p1295) target = $region44
    $region43: #{vae_forward.15} parent=5 // pred_region
      %s1298 = ssub.s32 %s10, 2
      // Predicated region
      $region45: #{vae_forward.15} parent=43 // pred_check
        %p1299 = pneg %p128
      $region46: #{vae_forward.15} parent=43 // pred_check_branch
        %1301 = sbr.rel (%p1299) target = $region48
      $region47: #{vae_forward.15} parent=43 // pred_region
        %s1302 = smul.u32 64, %s16
        %p1303 = scmp.lt.s32.totalorder %s1302, 1023
        %s1304 = scalar_select %p1303, %s1302, 1023
        %s1305 = smul.addr %s1304, 8
        %s1306 = scalar_lea.vmem %s4, %s1305
      $region48: #{vae_forward.15} parent=43 // pred_fallthru
        _
    $region44: #{vae_forward.15} parent=5 // pred_fallthru
      _
  $region6: #{vae_forward.15} parent=0 // loop_footer
    %s14 = sadd.s32 1, %s10
  $region7: #{vae_forward.15} parent=0 // loop_footer_branch
    %9 = sbr.rel target = $region3
  $region8: #{vae_forward.15} parent=0 // loop_exit
    _

</llo_original>
